<compile_context>
chip_gen: v6e
topology: v6e:2x2x1
jax: 0.10.0
libtpu: 0.0.40
codegen_flags: <defaults>
</compile_context>

<pallas_src>
import functools
import math

import jax
import jax.numpy as jnp
from jax import lax
from jax.experimental import pallas as pl
from jax.experimental.pallas import tpu as pltpu

EPS_LN = 1e-5   # torch.nn.LayerNorm default eps
EPS_BN = 1e-5   # torch.nn.BatchNorm1d default eps

# Rows of the packed per-block (17 + ksize, adim) vector table.
(V_FF1_G, V_FF1_B, V_FF1_B2,
 V_MHA_G, V_MHA_B, V_MHA_BO,
 V_CV_G, V_CV_B, V_CV_BDW, V_BN_S, V_BN_T, V_CV_B2,
 V_FF2_G, V_FF2_B, V_FF2_B2,
 V_FIN_G, V_FIN_B) = range(17)
V_DW0 = 17            # depthwise-conv taps occupy rows V_DW0 .. V_DW0 + ksize - 1
_N_SMALL_VECS = 17


# ----------------------------------------------------------------------------
# small helpers
# ----------------------------------------------------------------------------
def _ln(x, g, b):
    """LayerNorm over the last dim (matches torch.nn.LayerNorm, f32 math)."""
    mu = jnp.mean(x, axis=-1, keepdims=True)
    var = jnp.mean(jnp.square(x - mu), axis=-1, keepdims=True)
    return (x - mu) * jax.lax.rsqrt(var + EPS_LN) * g + b


def _round_up(n, m):
    return ((n + m - 1) // m) * m


def _pick_vmem_limit():
    """Generation-aware scoped-VMEM budget (v7x has only 64 MiB physical)."""
    cap = 64 * 1024 * 1024                      # conservative fallback
    try:
        info = pltpu.get_tpu_info()
        cap = int(getattr(info, "vmem_capacity_bytes", cap)) or cap
    except Exception:                            # not fatal; keep the fallback
        pass
    return max(32 * 1024 * 1024, min(cap - 16 * 1024 * 1024, 96 * 1024 * 1024))


@functools.lru_cache(maxsize=1)
def _single_buffer_supported():
    """Probe once whether this build honors pipeline_mode=pl.Buffered(1)."""
    try:
        spec = pl.BlockSpec((8, 128), lambda i: (0, 0), pipeline_mode=pl.Buffered(1))

        def _k(x_ref, o_ref):
            o_ref[...] = x_ref[...] + 1.0

        f = pl.pallas_call(
            _k,
            out_shape=jax.ShapeDtypeStruct((8, 128), jnp.float32),
            grid=(2,),
            in_specs=[spec],
            out_specs=pl.BlockSpec((8, 128), lambda i: (0, 0)),
        )
        jax.block_until_ready(f(jnp.zeros((8, 128), jnp.float32)))
        return True
    except Exception:
        return False


def _const_spec(a):
    """Full-array block, constant index map -> weight stays resident in VMEM.

    Constant index maps never re-fetch, so single-buffering (Buffered(1))
    halves the weight-resident VMEM; fall back to default double buffering if
    the JAX build does not support pipeline_mode on pallas_call.
    """
    nd = a.ndim
    index_map = lambda b, _n=nd: (0,) * _n
    if _single_buffer_supported():
        return pl.BlockSpec(a.shape, index_map, pipeline_mode=pl.Buffered(1))
    return pl.BlockSpec(a.shape, index_map)


# ----------------------------------------------------------------------------
# fused Pallas kernels
# ----------------------------------------------------------------------------
def input_layer_kernel(x_ref, w_ref, vec_ref, pe_ref, o_ref, *, xscale):
    # Linear(idim, adim) -> LayerNorm -> Dropout(id) -> ReLU -> PositionalEncoding
    x = x_ref[...].astype(jnp.bfloat16)                        # (T, idim_pad)
    vec = vec_ref[...]                                          # (3, D): bias, gamma, beta
    y = jnp.dot(x, w_ref[...], preferred_element_type=jnp.float32) + vec[0:1, :]
    y = _ln(y, vec[1:2, :], vec[2:3, :])
    y = jnp.maximum(y, 0.0)
    o_ref[...] = y * xscale + pe_ref[...]


def conformer_block_kernel(
        x_ref, vec_ref,
        ff1_w1, ff1_b1, ff1_w2,
        wqkv, bqkv, wo,
        cv_w1, cv_b1, cv_w2,
        ff2_w1, ff2_b1, ff2_w2,
        o_ref, *, nheads, ksize):
    """One whole macaron conformer block for one batch element, fully fused."""
    x = x_ref[...]                               # (T, D) f32 residual stream
    T, D = x.shape
    H = nheads
    dh = D // H
    pad = (ksize - 1) // 2

    vec = vec_ref[...]                           # (17 + ksize, D) packed small vectors
    row = lambda i: vec[i:i + 1, :]              # (1, D), broadcasts over T

    def ffn(v, ig, ib, w1, b1, w2, ib2):
        h = _ln(v, row(ig), row(ib)).astype(jnp.bfloat16)
        h = jnp.dot(h, w1[...], preferred_element_type=jnp.float32) + b1[...]
        h = (h * jax.nn.sigmoid(h)).astype(jnp.bfloat16)        # Swish
        return jnp.dot(h, w2[...], preferred_element_type=jnp.float32) + row(ib2)

    # ---- macaron feed-forward: x + 0.5 * FFN(LN(x)) ----
    x = x + 0.5 * ffn(x, V_FF1_G, V_FF1_B, ff1_w1, ff1_b1, ff1_w2, V_FF1_B2)

    # ---- multi-head self-attention: x + MHSA(LN(x)) ----
    hn = _ln(x, row(V_MHA_G), row(V_MHA_B)).astype(jnp.bfloat16)
    # One fused lane-dense (T,D)@(D,3D) projection (was 3*H small matmuls).
    qkv = jnp.dot(hn, wqkv[...], preferred_element_type=jnp.float32) + bqkv[...]   # (T, 3D)
    inv_sqrt = 1.0 / math.sqrt(dh)

    def heads(z):
        # (T, D) -> (H, T, dh) with the head axis leading (pure layout work;
        # the score/context math below is ONE batched op over this axis).
        zb = z.astype(jnp.bfloat16)
        return jnp.stack([zb[:, h * dh:(h + 1) * dh] for h in range(H)], axis=0)

    q = heads(qkv[:, :D] * inv_sqrt)             # scale folded into q
    k = heads(qkv[:, D:2 * D])
    v = heads(qkv[:, 2 * D:])

    # Online (flash-style) softmax over K/V chunks: the live score tensor is
    # (H, T, tkv) instead of (H, T, T); for the demo T <= 512 -> single chunk.
    tkv = 512 if (T > 512 and T % 512 == 0) else T
    n_kv = T // tkv
    m = jnp.full((H, T, 1), -jnp.inf, jnp.float32)
    l = jnp.zeros((H, T, 1), jnp.float32)
    acc = jnp.zeros((H, T, dh), jnp.float32)
    for j in range(n_kv):                        # serial dep through (m,l,acc) bounds live set
        kj = k[:, j * tkv:(j + 1) * tkv, :]
        vj = v[:, j * tkv:(j + 1) * tkv, :]
        s = jnp.einsum('htd,hsd->hts', q, kj, preferred_element_type=jnp.float32)
        mj = jnp.maximum(m, jnp.max(s, axis=-1, keepdims=True))
        a = jnp.exp(m - mj)
        p = jnp.exp(s - mj)
        l = a * l + jnp.sum(p, axis=-1, keepdims=True)
        acc = a * acc + jnp.einsum('hts,hsd->htd', p.astype(jnp.bfloat16), vj,
                                   preferred_element_type=jnp.float32)
        m = mj
    ctx3 = acc * pl.reciprocal(l, approx=True)                  # (H, T, dh)
    # Regroup heads to (T, D) and do ONE lane-dense (T,D)@(D,D) out-projection.
    ctx = jnp.concatenate([ctx3[h] for h in range(H)], axis=-1).astype(jnp.bfloat16)
    x = x + jnp.dot(ctx, wo[...], preferred_element_type=jnp.float32) + row(V_MHA_BO)

    # ---- convolution module: x + PW(Swish(BN(DWConv(GLU(PW(LN(x))))))) ----
    hc = _ln(x, row(V_CV_G), row(V_CV_B)).astype(jnp.bfloat16)
    g2 = jnp.dot(hc, cv_w1[...], preferred_element_type=jnp.float32) + cv_b1[...]   # (T, 2D)
    glu = g2[:, :D] * jax.nn.sigmoid(g2[:, D:])                                      # GLU
    # Depthwise "same" conv: k taps via XLU rolls + iota masks (no pad/concat).
    ti = lax.broadcasted_iota(jnp.int32, (T, D), 0)
    yc = jnp.zeros((T, D), jnp.float32)
    for j in range(ksize):
        lo = pad - j                              # out[t] uses glu[t - lo]
        s = lo % T
        rolled = pltpu.roll(glu, s, 0) if s else glu
        valid = (ti >= lo) & (ti < T + lo)
        yc = yc + jnp.where(valid, rolled, 0.0) * row(V_DW0 + j)
    yc = yc + row(V_CV_BDW)
    yc = yc * row(V_BN_S) + row(V_BN_T)           # eval-mode BN, pre-folded scale/shift
    yc = yc * jax.nn.sigmoid(yc)                  # Swish
    yc = jnp.dot(yc.astype(jnp.bfloat16), cv_w2[...],
                 preferred_element_type=jnp.float32) + row(V_CV_B2)
    x = x + yc

    # ---- second feed-forward + final LayerNorm ----
    x = x + 0.5 * ffn(x, V_FF2_G, V_FF2_B, ff2_w1, ff2_b1, ff2_w2, V_FF2_B2)
    o_ref[...] = _ln(x, row(V_FIN_G), row(V_FIN_B))


# ----------------------------------------------------------------------------
# pallas_call wrappers
# ----------------------------------------------------------------------------
def input_layer(x_pad, in_w, in_vec, pe, *, vmem_limit):
    B, T, idim_pad = x_pad.shape
    D = in_w.shape[-1]
    weights = [in_w, in_vec, pe]
    act_in = pl.BlockSpec((None, T, idim_pad), lambda b: (b, 0, 0))
    act_out = pl.BlockSpec((None, T, D), lambda b: (b, 0, 0))
    return pl.pallas_call(
        functools.partial(input_layer_kernel, xscale=math.sqrt(D)),
        out_shape=jax.ShapeDtypeStruct((B, T, D), jnp.float32),
        grid=(B,),
        in_specs=[act_in] + [_const_spec(a) for a in weights],
        out_specs=act_out,
        compiler_params=pltpu.CompilerParams(
            dimension_semantics=("parallel",),
            vmem_limit_bytes=vmem_limit),
    )(x_pad, *weights)


_BLOCK_KEYS = ('vec',
               'ff1_w1', 'ff1_b1', 'ff1_w2',
               'wqkv', 'bqkv', 'wo',
               'cv_w1', 'cv_b1', 'cv_w2',
               'ff2_w1', 'ff2_b1', 'ff2_w2')


def conformer_block(h, blk, *, nheads, ksize, vmem_limit):
    B, T, D = h.shape
    weights = [blk[k] for k in _BLOCK_KEYS]
    act_spec = pl.BlockSpec((None, T, D), lambda b: (b, 0, 0))
    return pl.pallas_call(
        functools.partial(conformer_block_kernel, nheads=nheads, ksize=ksize),
        out_shape=jax.ShapeDtypeStruct((B, T, D), jnp.float32),
        grid=(B,),
        in_specs=[act_spec] + [_const_spec(a) for a in weights],
        out_specs=act_spec,
        input_output_aliases={0: 0},              # reuse the residual-stream buffer
        compiler_params=pltpu.CompilerParams(
            dimension_semantics=("parallel",),
            vmem_limit_bytes=vmem_limit),
    )(h, *weights)


# ----------------------------------------------------------------------------
# parameters (deterministic, in-script) + positional encoding
# ----------------------------------------------------------------------------
def sinusoidal_pe(length, d):
    pos = jnp.arange(length, dtype=jnp.float32)[:, None]
    div = jnp.exp(jnp.arange(0, d, 2, dtype=jnp.float32) * -(math.log(10000.0) / d))
    pe = jnp.zeros((length, d), jnp.float32)
    pe = pe.at[:, 0::2].set(jnp.sin(pos * div))
    pe = pe.at[:, 1::2].set(jnp.cos(pos * div))
    return pe


def init_params(key, idim, adim, eunits, elayers, aheads, ksize):
    idim_pad = _round_up(idim, 128)               # lane-dense input-layer contraction
    keys = iter(jax.random.split(key, 2 + 11 * elayers))

    def rnd(shape, scale=0.02):
        return jax.random.normal(next(keys), shape, jnp.float32) * scale

    def wb(shape, scale=0.02):                    # bf16 matmul weights
        return rnd(shape, scale).astype(jnp.bfloat16)

    zeros = lambda *s: jnp.zeros(s, jnp.float32)
    ones = lambda *s: jnp.ones(s, jnp.float32)

    in_w = jnp.zeros((idim_pad, adim), jnp.float32).at[:idim].set(rnd((idim, adim)))
    p = {
        'in_w': in_w.astype(jnp.bfloat16),
        # packed input-layer vectors: [linear bias, LN gamma, LN beta]
        'in_vec': jnp.stack([jnp.zeros(adim), jnp.ones(adim), jnp.zeros(adim)], 0
                            ).astype(jnp.float32),
        'blocks': [],
    }

    # Eval-mode BatchNorm folded into scale/shift (placeholder stats gamma=1,
    # beta=0, mean=0, var=1); real checkpoints must fold running stats here.
    bn_scale = jnp.full((adim,), 1.0 / math.sqrt(1.0 + EPS_BN), jnp.float32)

    for _ in range(elayers):
        wq, wk, wv = rnd((adim, adim)), rnd((adim, adim)), rnd((adim, adim))
        small = jnp.stack([
            jnp.ones(adim), jnp.zeros(adim), jnp.zeros(adim),     # ff1: g, b, b2
            jnp.ones(adim), jnp.zeros(adim), jnp.zeros(adim),     # mha: g, b, out bias
            jnp.ones(adim), jnp.zeros(adim), jnp.zeros(adim),     # conv: g, b, dw bias
            bn_scale, jnp.zeros(adim), jnp.zeros(adim),           # bn scale, bn shift, pw2 bias
            jnp.ones(adim), jnp.zeros(adim), jnp.zeros(adim),     # ff2: g, b, b2
            jnp.ones(adim), jnp.zeros(adim),                      # final LN: g, b
        ], axis=0)
        dw_taps = rnd((ksize, adim), 0.1)
        blk = dict(
            vec=jnp.concatenate([small, dw_taps], axis=0).astype(jnp.float32),
            ff1_w1=wb((adim, eunits)), ff1_b1=zeros(1, eunits), ff1_w2=wb((eunits, adim)),
            wqkv=jnp.concatenate([wq, wk, wv], axis=1).astype(jnp.bfloat16),
            bqkv=zeros(1, 3 * adim),
            wo=wb((adim, adim)),
            cv_w1=wb((adim, 2 * adim)), cv_b1=zeros(1, 2 * adim), cv_w2=wb((adim, adim)),
            ff2_w1=wb((adim, eunits)), ff2_b1=zeros(1, eunits), ff2_w2=wb((eunits, adim)),
        )
        p['blocks'].append(blk)
    return p


# ----------------------------------------------------------------------------
# forward pass
# ----------------------------------------------------------------------------
def conformer_encoder(params, x, mask=None, *, aheads, ksize, vmem_limit=None):
    if vmem_limit is None:
        vmem_limit = _pick_vmem_limit()
    idim_pad = params['in_w'].shape[0]
    B, T, idim = x.shape
    D = params['in_w'].shape[-1]
    if idim_pad > idim:                                   # lane-dense input (zero rows in W)
        x = jnp.pad(x, ((0, 0), (0, 0), (0, idim_pad - idim)))
    pe = sinusoidal_pe(T, D)                              # tiny trace-time glue
    h = input_layer(x, params['in_w'], params['in_vec'], pe, vmem_limit=vmem_limit)
    for blk in params['blocks']:
        h = conformer_block(h, blk, nheads=aheads, ksize=ksize, vmem_limit=vmem_limit)
    return h, mask


# ----------------------------------------------------------------------------
if __name__ == "__main__":
    # Small, lane-friendly shapes consistent with the module (adim % aheads == 0,
    # adim a multiple of 128 so every store is lane-dense).
    idim, adim, eunits, elayers, aheads, ksize = 64, 128, 512, 2, 4, 7
    B, T = 2, 16

    key = jax.random.PRNGKey(0)
    kp, kx = jax.random.split(key)
    params = init_params(kp, idim, adim, eunits, elayers, aheads, ksize)
    x = jax.random.normal(kx, (B, T, idim), jnp.float32)

    _ = _single_buffer_supported()        # run the Buffered(1) probe eagerly, once
    fwd = jax.jit(functools.partial(conformer_encoder, aheads=aheads, ksize=ksize))
    out, mask = fwd(params, x)
    out = jax.block_until_ready(out)

    assert out.shape == (B, T, adim), out.shape
    assert bool(jnp.all(jnp.isfinite(out)))
    print("KERNEL_OK")
</pallas_src>

<mosaic_0001>
module attributes {stable_mosaic.version = 11 : i64} {
  func.func @_k(%arg0: i32, %arg1: memref<8x128xf32, #tpu.memory_space<vmem>>, %arg2: memref<8x128xf32, #tpu.memory_space<vmem>>) attributes {dimension_semantics = [#tpu.dimension_semantics<arbitrary>], iteration_bounds = array<i64: 2>, scalar_prefetch = 0 : i64, scratch_operands = 0 : i64, tpu.core_type = #tpu.core_type<tc>, window_params = [{pipeline_mode = #tpu.pipeline_mode<synchronous>, transform_indices = @transform_0, window_bounds = array<i64: 8, 128>}, {pipeline_mode = #tpu.pipeline_mode<synchronous>, transform_indices = @transform_1, window_bounds = array<i64: 8, 128>}]} {
    %c0 = arith.constant 0 : index
    %c0_0 = arith.constant 0 : index
    %0 = vector.load %arg1[%c0, %c0_0] : memref<8x128xf32, #tpu.memory_space<vmem>>, vector<8x128xf32>
    %cst = arith.constant 1.000000e+00 : f32
    %1 = vector.broadcast %cst : f32 to vector<8x128xf32>
    %2 = arith.addf %0, %1 : vector<8x128xf32>
    %c0_1 = arith.constant 0 : index
    %c0_2 = arith.constant 0 : index
    %3 = vector.load %arg2[%c0_1, %c0_2] : memref<8x128xf32, #tpu.memory_space<vmem>>, vector<8x128xf32>
    tpu.vector_store %arg2[%c0_1, %c0_2], %2 {strides = array<i32>} : memref<8x128xf32, #tpu.memory_space<vmem>>, vector<8x128xf32>,
    return
  }
  func.func @transform_0(%arg0: i32) -> (i32, i32) {
    %c0_i32 = arith.constant 0 : i32
    %c0_i32_0 = arith.constant 0 : i32
    %c0_i32_1 = arith.constant 0 : i32
    return %c0_i32, %c0_i32_0 : i32, i32
  }
  func.func @transform_1(%arg0: i32) -> (i32, i32) {
    %c0_i32 = arith.constant 0 : i32
    %c0_i32_0 = arith.constant 0 : i32
    %c0_i32_1 = arith.constant 0 : i32
    return %c0_i32, %c0_i32_0 : i32, i32
  }
}

module attributes {stable_mosaic.version = 11 : i64} {
  func.func @input_layer_kernel(%arg0: i32, %arg1: memref<1x16x128xf32, #tpu.memory_space<vmem>>, %arg2: memref<128x128xbf16, #tpu.memory_space<vmem>>, %arg3: memref<3x128xf32, #tpu.memory_space<vmem>>, %arg4: memref<16x128xf32, #tpu.memory_space<vmem>>, %arg5: memref<1x16x128xf32, #tpu.memory_space<vmem>>) attributes {dimension_semantics = [#tpu.dimension_semantics<parallel>], iteration_bounds = array<i64: 2>, scalar_prefetch = 0 : i64, scratch_operands = 0 : i64, tpu.core_type = #tpu.core_type<tc>, window_params = [{transform_indices = @transform_0, window_bounds = array<i64: 1, 16, 128>}, {pipeline_mode = #tpu.pipeline_mode<synchronous>, transform_indices = @transform_1, window_bounds = array<i64: 128, 128>}, {pipeline_mode = #tpu.pipeline_mode<synchronous>, transform_indices = @transform_2, window_bounds = array<i64: 3, 128>}, {pipeline_mode = #tpu.pipeline_mode<synchronous>, transform_indices = @transform_3, window_bounds = array<i64: 16, 128>}, {transform_indices = @transform_4, window_bounds = array<i64: 1, 16, 128>}]} {
    %c0 = arith.constant 0 : index
    %c0_0 = arith.constant 0 : index
    %c0_1 = arith.constant 0 : index
    %0 = vector.load %arg1[%c0, %c0_0, %c0_1] : memref<1x16x128xf32, #tpu.memory_space<vmem>>, vector<1x16x128xf32>
    %1 = vector.shape_cast %0 : vector<1x16x128xf32> to vector<16x128xf32>
    %2 = arith.truncf %1 : vector<16x128xf32> to vector<16x128xbf16>
    %c0_2 = arith.constant 0 : index
    %c0_3 = arith.constant 0 : index
    %3 = vector.load %arg3[%c0_2, %c0_3] : memref<3x128xf32, #tpu.memory_space<vmem>>, vector<3x128xf32>
    %c0_4 = arith.constant 0 : index
    %c0_5 = arith.constant 0 : index
    %4 = vector.load %arg2[%c0_4, %c0_5] : memref<128x128xbf16, #tpu.memory_space<vmem>>, vector<128x128xbf16>
    %cst = arith.constant dense<0.000000e+00> : vector<16x128xf32>
    %5 = tpu.matmul %2, %4, %cst {dimension_numbers = #tpu.dot_dimension_numbers<[1], [0], [0], [1], [0, 0, 1, 1], [], []>} : vector<16x128xbf16>, vector<128x128xbf16>, vector<16x128xf32> -> vector<16x128xf32>
    %6 = vector.extract_strided_slice %3 {offsets = [0, 0], sizes = [1, 128], strides = [1, 1]} : vector<3x128xf32> to vector<1x128xf32>
    %7 = vector.broadcast %6 : vector<1x128xf32> to vector<16x128xf32>
    %8 = arith.addf %5, %7 : vector<16x128xf32>
    %9 = vector.extract_strided_slice %3 {offsets = [1, 0], sizes = [1, 128], strides = [1, 1]} : vector<3x128xf32> to vector<1x128xf32>
    %10 = vector.extract_strided_slice %3 {offsets = [2, 0], sizes = [1, 128], strides = [1, 1]} : vector<3x128xf32> to vector<1x128xf32>
    %cst_6 = arith.constant dense<0.000000e+00> : vector<16xf32>
    %11 = vector.multi_reduction <add>, %8, %cst_6 [1] : vector<16x128xf32> to vector<16xf32>
    %12 = vector.shape_cast %11 : vector<16xf32> to vector<16x1xf32>
    %cst_7 = arith.constant 1.280000e+02 : f32
    %13 = vector.broadcast %cst_7 : f32 to vector<16x1xf32>
    %14 = arith.divf %12, %13 : vector<16x1xf32>
    %15 = vector.broadcast %14 : vector<16x1xf32> to vector<16x128xf32>
    %16 = arith.subf %8, %15 : vector<16x128xf32>
    %17 = arith.mulf %16, %16 : vector<16x128xf32>
    %cst_8 = arith.constant dense<0.000000e+00> : vector<16xf32>
    %18 = vector.multi_reduction <add>, %17, %cst_8 [1] : vector<16x128xf32> to vector<16xf32>
    %19 = vector.shape_cast %18 : vector<16xf32> to vector<16x1xf32>
    %cst_9 = arith.constant 1.280000e+02 : f32
    %20 = vector.broadcast %cst_9 : f32 to vector<16x1xf32>
    %21 = arith.divf %19, %20 : vector<16x1xf32>
    %22 = vector.broadcast %14 : vector<16x1xf32> to vector<16x128xf32>
    %23 = arith.subf %8, %22 : vector<16x128xf32>
    %cst_10 = arith.constant 9.99999974E-6 : f32
    %24 = vector.broadcast %cst_10 : f32 to vector<16x1xf32>
    %25 = arith.addf %21, %24 : vector<16x1xf32>
    %26 = math.rsqrt %25 : vector<16x1xf32>
    %27 = vector.broadcast %26 : vector<16x1xf32> to vector<16x128xf32>
    %28 = arith.mulf %23, %27 : vector<16x128xf32>
    %29 = vector.broadcast %9 : vector<1x128xf32> to vector<16x128xf32>
    %30 = arith.mulf %28, %29 : vector<16x128xf32>
    %31 = vector.broadcast %10 : vector<1x128xf32> to vector<16x128xf32>
    %32 = arith.addf %30, %31 : vector<16x128xf32>
    %cst_11 = arith.constant 0.000000e+00 : f32
    %33 = vector.broadcast %cst_11 : f32 to vector<16x128xf32>
    %34 = arith.maximumf %32, %33 : vector<16x128xf32>
    %cst_12 = arith.constant 11.3137083 : f32
    %35 = vector.broadcast %cst_12 : f32 to vector<16x128xf32>
    %36 = arith.mulf %34, %35 : vector<16x128xf32>
    %c0_13 = arith.constant 0 : index
    %c0_14 = arith.constant 0 : index
    %37 = vector.load %arg4[%c0_13, %c0_14] : memref<16x128xf32, #tpu.memory_space<vmem>>, vector<16x128xf32>
    %38 = arith.addf %36, %37 : vector<16x128xf32>
    %c0_15 = arith.constant 0 : index
    %c0_16 = arith.constant 0 : index
    %c0_17 = arith.constant 0 : index
    %39 = vector.load %arg5[%c0_15, %c0_16, %c0_17] : memref<1x16x128xf32, #tpu.memory_space<vmem>>, vector<1x16x128xf32>
    %40 = vector.shape_cast %39 : vector<1x16x128xf32> to vector<16x128xf32>
    %41 = vector.shape_cast %38 : vector<16x128xf32> to vector<1x16x128xf32>
    tpu.vector_store %arg5[%c0_15, %c0_16, %c0_17], %41 {strides = array<i32>} : memref<1x16x128xf32, #tpu.memory_space<vmem>>, vector<1x16x128xf32>,
    return
  }
  func.func @transform_0(%arg0: i32) -> (i32, i32, i32) {
    %c0_i32 = arith.constant 0 : i32
    %c0_i32_0 = arith.constant 0 : i32
    %c0_i32_1 = arith.constant 0 : i32
    return %arg0, %c0_i32, %c0_i32_0 : i32, i32, i32
  }
  func.func @transform_1(%arg0: i32) -> (i32, i32) {
    %c0_i32 = arith.constant 0 : i32
    %c0_i32_0 = arith.constant 0 : i32
    %c0_i32_1 = arith.constant 0 : i32
    return %c0_i32, %c0_i32_0 : i32, i32
  }
  func.func @transform_2(%arg0: i32) -> (i32, i32) {
    %c0_i32 = arith.constant 0 : i32
    %c0_i32_0 = arith.constant 0 : i32
    %c0_i32_1 = arith.constant 0 : i32
    return %c0_i32, %c0_i32_0 : i32, i32
  }
  func.func @transform_3(%arg0: i32) -> (i32, i32) {
    %c0_i32 = arith.constant 0 : i32
    %c0_i32_0 = arith.constant 0 : i32
    %c0_i32_1 = arith.constant 0 : i32
    return %c0_i32, %c0_i32_0 : i32, i32
  }
  func.func @transform_4(%arg0: i32) -> (i32, i32, i32) {
    %c0_i32 = arith.constant 0 : i32
    %c0_i32_0 = arith.constant 0 : i32
    %c0_i32_1 = arith.constant 0 : i32
    return %arg0, %c0_i32, %c0_i32_0 : i32, i32, i32
  }
}

module attributes {stable_mosaic.version = 11 : i64} {
  func.func @conformer_block_kernel(%arg0: i32, %arg1: memref<1x16x128xf32, #tpu.memory_space<vmem>>, %arg2: memref<24x128xf32, #tpu.memory_space<vmem>>, %arg3: memref<128x512xbf16, #tpu.memory_space<vmem>>, %arg4: memref<1x512xf32, #tpu.memory_space<vmem>>, %arg5: memref<512x128xbf16, #tpu.memory_space<vmem>>, %arg6: memref<128x384xbf16, #tpu.memory_space<vmem>>, %arg7: memref<1x384xf32, #tpu.memory_space<vmem>>, %arg8: memref<128x128xbf16, #tpu.memory_space<vmem>>, %arg9: memref<128x256xbf16, #tpu.memory_space<vmem>>, %arg10: memref<1x256xf32, #tpu.memory_space<vmem>>, %arg11: memref<128x128xbf16, #tpu.memory_space<vmem>>, %arg12: memref<128x512xbf16, #tpu.memory_space<vmem>>, %arg13: memref<1x512xf32, #tpu.memory_space<vmem>>, %arg14: memref<512x128xbf16, #tpu.memory_space<vmem>>, %arg15: memref<1x16x128xf32, #tpu.memory_space<vmem>>) attributes {dimension_semantics = [#tpu.dimension_semantics<parallel>], iteration_bounds = array<i64: 2>, scalar_prefetch = 0 : i64, scratch_operands = 0 : i64, tpu.core_type = #tpu.core_type<tc>, window_params = [{transform_indices = @transform_0, window_bounds = array<i64: 1, 16, 128>}, {pipeline_mode = #tpu.pipeline_mode<synchronous>, transform_indices = @transform_1, window_bounds = array<i64: 24, 128>}, {pipeline_mode = #tpu.pipeline_mode<synchronous>, transform_indices = @transform_2, window_bounds = array<i64: 128, 512>}, {pipeline_mode = #tpu.pipeline_mode<synchronous>, transform_indices = @transform_3, window_bounds = array<i64: 1, 512>}, {pipeline_mode = #tpu.pipeline_mode<synchronous>, transform_indices = @transform_4, window_bounds = array<i64: 512, 128>}, {pipeline_mode = #tpu.pipeline_mode<synchronous>, transform_indices = @transform_5, window_bounds = array<i64: 128, 384>}, {pipeline_mode = #tpu.pipeline_mode<synchronous>, transform_indices = @transform_6, window_bounds = array<i64: 1, 384>}, {pipeline_mode = #tpu.pipeline_mode<synchronous>, transform_indices = @transform_7, window_bounds = array<i64: 128, 128>}, {pipeline_mode = #tpu.pipeline_mode<synchronous>, transform_indices = @transform_8, window_bounds = array<i64: 128, 256>}, {pipeline_mode = #tpu.pipeline_mode<synchronous>, transform_indices = @transform_9, window_bounds = array<i64: 1, 256>}, {pipeline_mode = #tpu.pipeline_mode<synchronous>, transform_indices = @transform_10, window_bounds = array<i64: 128, 128>}, {pipeline_mode = #tpu.pipeline_mode<synchronous>, transform_indices = @transform_11, window_bounds = array<i64: 128, 512>}, {pipeline_mode = #tpu.pipeline_mode<synchronous>, transform_indices = @transform_12, window_bounds = array<i64: 1, 512>}, {pipeline_mode = #tpu.pipeline_mode<synchronous>, transform_indices = @transform_13, window_bounds = array<i64: 512, 128>}, {transform_indices = @transform_14, window_bounds = array<i64: 1, 16, 128>}]} {
    %c0 = arith.constant 0 : index
    %c0_0 = arith.constant 0 : index
    %c0_1 = arith.constant 0 : index
    %0 = vector.load %arg1[%c0, %c0_0, %c0_1] : memref<1x16x128xf32, #tpu.memory_space<vmem>>, vector<1x16x128xf32>
    %1 = vector.shape_cast %0 : vector<1x16x128xf32> to vector<16x128xf32>
    %c0_2 = arith.constant 0 : index
    %c0_3 = arith.constant 0 : index
    %2 = vector.load %arg2[%c0_2, %c0_3] : memref<24x128xf32, #tpu.memory_space<vmem>>, vector<24x128xf32>
    %3 = vector.extract_strided_slice %2 {offsets = [0, 0], sizes = [1, 128], strides = [1, 1]} : vector<24x128xf32> to vector<1x128xf32>
    %4 = vector.extract_strided_slice %2 {offsets = [1, 0], sizes = [1, 128], strides = [1, 1]} : vector<24x128xf32> to vector<1x128xf32>
    %cst = arith.constant dense<0.000000e+00> : vector<16xf32>
    %5 = vector.multi_reduction <add>, %1, %cst [1] : vector<16x128xf32> to vector<16xf32>
    %6 = vector.shape_cast %5 : vector<16xf32> to vector<16x1xf32>
    %cst_4 = arith.constant 1.280000e+02 : f32
    %7 = vector.broadcast %cst_4 : f32 to vector<16x1xf32>
    %8 = arith.divf %6, %7 : vector<16x1xf32>
    %9 = vector.broadcast %8 : vector<16x1xf32> to vector<16x128xf32>
    %10 = arith.subf %1, %9 : vector<16x128xf32>
    %11 = arith.mulf %10, %10 : vector<16x128xf32>
    %cst_5 = arith.constant dense<0.000000e+00> : vector<16xf32>
    %12 = vector.multi_reduction <add>, %11, %cst_5 [1] : vector<16x128xf32> to vector<16xf32>
    %13 = vector.shape_cast %12 : vector<16xf32> to vector<16x1xf32>
    %cst_6 = arith.constant 1.280000e+02 : f32
    %14 = vector.broadcast %cst_6 : f32 to vector<16x1xf32>
    %15 = arith.divf %13, %14 : vector<16x1xf32>
    %16 = vector.broadcast %8 : vector<16x1xf32> to vector<16x128xf32>
    %17 = arith.subf %1, %16 : vector<16x128xf32>
    %cst_7 = arith.constant 9.99999974E-6 : f32
    %18 = vector.broadcast %cst_7 : f32 to vector<16x1xf32>
    %19 = arith.addf %15, %18 : vector<16x1xf32>
    %20 = math.rsqrt %19 : vector<16x1xf32>
    %21 = vector.broadcast %20 : vector<16x1xf32> to vector<16x128xf32>
    %22 = arith.mulf %17, %21 : vector<16x128xf32>
    %23 = vector.broadcast %3 : vector<1x128xf32> to vector<16x128xf32>
    %24 = arith.mulf %22, %23 : vector<16x128xf32>
    %25 = vector.broadcast %4 : vector<1x128xf32> to vector<16x128xf32>
    %26 = arith.addf %24, %25 : vector<16x128xf32>
    %27 = arith.truncf %26 : vector<16x128xf32> to vector<16x128xbf16>
    %c0_8 = arith.constant 0 : index
    %c0_9 = arith.constant 0 : index
    %28 = vector.load %arg3[%c0_8, %c0_9] : memref<128x512xbf16, #tpu.memory_space<vmem>>, vector<128x512xbf16>
    %cst_10 = arith.constant dense<0.000000e+00> : vector<16x512xf32>
    %29 = tpu.matmul %27, %28, %cst_10 {dimension_numbers = #tpu.dot_dimension_numbers<[1], [0], [0], [1], [0, 0, 1, 1], [], []>} : vector<16x128xbf16>, vector<128x512xbf16>, vector<16x512xf32> -> vector<16x512xf32>
    %c0_11 = arith.constant 0 : index
    %c0_12 = arith.constant 0 : index
    %30 = vector.load %arg4[%c0_11, %c0_12] : memref<1x512xf32, #tpu.memory_space<vmem>>, vector<1x512xf32>
    %31 = vector.broadcast %30 : vector<1x512xf32> to vector<16x512xf32>
    %32 = arith.addf %29, %31 : vector<16x512xf32>
    %33 = arith.negf %32 : vector<16x512xf32>
    %34 = math.exp %33 : vector<16x512xf32>
    %cst_13 = arith.constant 1.000000e+00 : f32
    %35 = vector.broadcast %cst_13 : f32 to vector<16x512xf32>
    %36 = arith.addf %35, %34 : vector<16x512xf32>
    %37 = arith.divf %35, %36 : vector<16x512xf32>
    %38 = arith.mulf %32, %37 : vector<16x512xf32>
    %39 = arith.truncf %38 : vector<16x512xf32> to vector<16x512xbf16>
    %c0_14 = arith.constant 0 : index
    %c0_15 = arith.constant 0 : index
    %40 = vector.load %arg5[%c0_14, %c0_15] : memref<512x128xbf16, #tpu.memory_space<vmem>>, vector<512x128xbf16>
    %cst_16 = arith.constant dense<0.000000e+00> : vector<16x128xf32>
    %41 = tpu.matmul %39, %40, %cst_16 {dimension_numbers = #tpu.dot_dimension_numbers<[1], [0], [0], [1], [0, 0, 1, 1], [], []>} : vector<16x512xbf16>, vector<512x128xbf16>, vector<16x128xf32> -> vector<16x128xf32>
    %42 = vector.extract_strided_slice %2 {offsets = [2, 0], sizes = [1, 128], strides = [1, 1]} : vector<24x128xf32> to vector<1x128xf32>
    %43 = vector.broadcast %42 : vector<1x128xf32> to vector<16x128xf32>
    %44 = arith.addf %41, %43 : vector<16x128xf32>
    %cst_17 = arith.constant 5.000000e-01 : f32
    %45 = vector.broadcast %cst_17 : f32 to vector<16x128xf32>
    %46 = arith.mulf %45, %44 : vector<16x128xf32>
    %47 = arith.addf %1, %46 : vector<16x128xf32>
    %48 = vector.extract_strided_slice %2 {offsets = [3, 0], sizes = [1, 128], strides = [1, 1]} : vector<24x128xf32> to vector<1x128xf32>
    %49 = vector.extract_strided_slice %2 {offsets = [4, 0], sizes = [1, 128], strides = [1, 1]} : vector<24x128xf32> to vector<1x128xf32>
    %cst_18 = arith.constant dense<0.000000e+00> : vector<16xf32>
    %50 = vector.multi_reduction <add>, %47, %cst_18 [1] : vector<16x128xf32> to vector<16xf32>
    %51 = vector.shape_cast %50 : vector<16xf32> to vector<16x1xf32>
    %cst_19 = arith.constant 1.280000e+02 : f32
    %52 = vector.broadcast %cst_19 : f32 to vector<16x1xf32>
    %53 = arith.divf %51, %52 : vector<16x1xf32>
    %54 = vector.broadcast %53 : vector<16x1xf32> to vector<16x128xf32>
    %55 = arith.subf %47, %54 : vector<16x128xf32>
    %56 = arith.mulf %55, %55 : vector<16x128xf32>
    %cst_20 = arith.constant dense<0.000000e+00> : vector<16xf32>
    %57 = vector.multi_reduction <add>, %56, %cst_20 [1] : vector<16x128xf32> to vector<16xf32>
    %58 = vector.shape_cast %57 : vector<16xf32> to vector<16x1xf32>
    %cst_21 = arith.constant 1.280000e+02 : f32
    %59 = vector.broadcast %cst_21 : f32 to vector<16x1xf32>
    %60 = arith.divf %58, %59 : vector<16x1xf32>
    %61 = vector.broadcast %53 : vector<16x1xf32> to vector<16x128xf32>
    %62 = arith.subf %47, %61 : vector<16x128xf32>
    %cst_22 = arith.constant 9.99999974E-6 : f32
    %63 = vector.broadcast %cst_22 : f32 to vector<16x1xf32>
    %64 = arith.addf %60, %63 : vector<16x1xf32>
    %65 = math.rsqrt %64 : vector<16x1xf32>
    %66 = vector.broadcast %65 : vector<16x1xf32> to vector<16x128xf32>
    %67 = arith.mulf %62, %66 : vector<16x128xf32>
    %68 = vector.broadcast %48 : vector<1x128xf32> to vector<16x128xf32>
    %69 = arith.mulf %67, %68 : vector<16x128xf32>
    %70 = vector.broadcast %49 : vector<1x128xf32> to vector<16x128xf32>
    %71 = arith.addf %69, %70 : vector<16x128xf32>
    %72 = arith.truncf %71 : vector<16x128xf32> to vector<16x128xbf16>
    %c0_23 = arith.constant 0 : index
    %c0_24 = arith.constant 0 : index
    %73 = vector.load %arg6[%c0_23, %c0_24] : memref<128x384xbf16, #tpu.memory_space<vmem>>, vector<128x384xbf16>
    %cst_25 = arith.constant dense<0.000000e+00> : vector<16x384xf32>
    %74 = tpu.matmul %72, %73, %cst_25 {dimension_numbers = #tpu.dot_dimension_numbers<[1], [0], [0], [1], [0, 0, 1, 1], [], []>} : vector<16x128xbf16>, vector<128x384xbf16>, vector<16x384xf32> -> vector<16x384xf32>
    %c0_26 = arith.constant 0 : index
    %c0_27 = arith.constant 0 : index
    %75 = vector.load %arg7[%c0_26, %c0_27] : memref<1x384xf32, #tpu.memory_space<vmem>>, vector<1x384xf32>
    %76 = vector.broadcast %75 : vector<1x384xf32> to vector<16x384xf32>
    %77 = arith.addf %74, %76 : vector<16x384xf32>
    %78 = vector.extract_strided_slice %77 {offsets = [0, 0], sizes = [16, 128], strides = [1, 1]} : vector<16x384xf32> to vector<16x128xf32>
    %cst_28 = arith.constant 0.176776692 : f32
    %79 = vector.broadcast %cst_28 : f32 to vector<16x128xf32>
    %80 = arith.mulf %78, %79 : vector<16x128xf32>
    %81 = arith.truncf %80 : vector<16x128xf32> to vector<16x128xbf16>
    %82 = vector.extract_strided_slice %81 {offsets = [0, 0], sizes = [16, 32], strides = [1, 1]} : vector<16x128xbf16> to vector<16x32xbf16>
    %83 = vector.extract_strided_slice %81 {offsets = [0, 32], sizes = [16, 32], strides = [1, 1]} : vector<16x128xbf16> to vector<16x32xbf16>
    %84 = vector.extract_strided_slice %81 {offsets = [0, 64], sizes = [16, 32], strides = [1, 1]} : vector<16x128xbf16> to vector<16x32xbf16>
    %85 = vector.extract_strided_slice %81 {offsets = [0, 96], sizes = [16, 32], strides = [1, 1]} : vector<16x128xbf16> to vector<16x32xbf16>
    %86 = vector.shape_cast %82 : vector<16x32xbf16> to vector<1x16x32xbf16>
    %87 = vector.shape_cast %83 : vector<16x32xbf16> to vector<1x16x32xbf16>
    %88 = vector.shape_cast %84 : vector<16x32xbf16> to vector<1x16x32xbf16>
    %89 = vector.shape_cast %85 : vector<16x32xbf16> to vector<1x16x32xbf16>
    %90 = tpu.concatenate %86, %87, %88, %89 in 0 : vector<1x16x32xbf16>, vector<1x16x32xbf16>, vector<1x16x32xbf16>, vector<1x16x32xbf16> -> vector<4x16x32xbf16>
    %91 = vector.extract_strided_slice %77 {offsets = [0, 128], sizes = [16, 128], strides = [1, 1]} : vector<16x384xf32> to vector<16x128xf32>
    %92 = arith.truncf %91 : vector<16x128xf32> to vector<16x128xbf16>
    %93 = vector.extract_strided_slice %92 {offsets = [0, 0], sizes = [16, 32], strides = [1, 1]} : vector<16x128xbf16> to vector<16x32xbf16>
    %94 = vector.extract_strided_slice %92 {offsets = [0, 32], sizes = [16, 32], strides = [1, 1]} : vector<16x128xbf16> to vector<16x32xbf16>
    %95 = vector.extract_strided_slice %92 {offsets = [0, 64], sizes = [16, 32], strides = [1, 1]} : vector<16x128xbf16> to vector<16x32xbf16>
    %96 = vector.extract_strided_slice %92 {offsets = [0, 96], sizes = [16, 32], strides = [1, 1]} : vector<16x128xbf16> to vector<16x32xbf16>
    %97 = vector.shape_cast %93 : vector<16x32xbf16> to vector<1x16x32xbf16>
    %98 = vector.shape_cast %94 : vector<16x32xbf16> to vector<1x16x32xbf16>
    %99 = vector.shape_cast %95 : vector<16x32xbf16> to vector<1x16x32xbf16>
    %100 = vector.shape_cast %96 : vector<16x32xbf16> to vector<1x16x32xbf16>
    %101 = tpu.concatenate %97, %98, %99, %100 in 0 : vector<1x16x32xbf16>, vector<1x16x32xbf16>, vector<1x16x32xbf16>, vector<1x16x32xbf16> -> vector<4x16x32xbf16>
    %102 = vector.extract_strided_slice %77 {offsets = [0, 256], sizes = [16, 128], strides = [1, 1]} : vector<16x384xf32> to vector<16x128xf32>
    %103 = arith.truncf %102 : vector<16x128xf32> to vector<16x128xbf16>
    %104 = vector.extract_strided_slice %103 {offsets = [0, 0], sizes = [16, 32], strides = [1, 1]} : vector<16x128xbf16> to vector<16x32xbf16>
    %105 = vector.extract_strided_slice %103 {offsets = [0, 32], sizes = [16, 32], strides = [1, 1]} : vector<16x128xbf16> to vector<16x32xbf16>
    %106 = vector.extract_strided_slice %103 {offsets = [0, 64], sizes = [16, 32], strides = [1, 1]} : vector<16x128xbf16> to vector<16x32xbf16>
    %107 = vector.extract_strided_slice %103 {offsets = [0, 96], sizes = [16, 32], strides = [1, 1]} : vector<16x128xbf16> to vector<16x32xbf16>
    %108 = vector.shape_cast %104 : vector<16x32xbf16> to vector<1x16x32xbf16>
    %109 = vector.shape_cast %105 : vector<16x32xbf16> to vector<1x16x32xbf16>
    %110 = vector.shape_cast %106 : vector<16x32xbf16> to vector<1x16x32xbf16>
    %111 = vector.shape_cast %107 : vector<16x32xbf16> to vector<1x16x32xbf16>
    %112 = tpu.concatenate %108, %109, %110, %111 in 0 : vector<1x16x32xbf16>, vector<1x16x32xbf16>, vector<1x16x32xbf16>, vector<1x16x32xbf16> -> vector<4x16x32xbf16>
    %cst_29 = arith.constant 0xFF800000 : f32
    %113 = vector.broadcast %cst_29 : f32 to vector<4x16x1xf32>
    %cst_30 = arith.constant 0.000000e+00 : f32
    %114 = vector.broadcast %cst_30 : f32 to vector<4x16x1xf32>
    %cst_31 = arith.constant 0.000000e+00 : f32
    %115 = vector.broadcast %cst_31 : f32 to vector<4x16x32xf32>
    "tpu.trace_start"() <{level = 10 : i32, message = "htd,hsd->hts"}> : () -> ()
    %cst_32 = arith.constant dense<0.000000e+00> : vector<4x16x16xf32>
    %116 = tpu.matmul %90, %101, %cst_32 {dimension_numbers = #tpu.dot_dimension_numbers<[2], [2], [1], [1], [0, 0, 0, 1, 1, 1], [0], [0]>} : vector<4x16x32xbf16>, vector<4x16x32xbf16>, vector<4x16x16xf32> -> vector<4x16x16xf32>
    "tpu.trace_stop"() : () -> ()
    %cst_33 = arith.constant dense<0xFF800000> : vector<4x16xf32>
    %117 = vector.multi_reduction <maximumf>, %116, %cst_33 [2] : vector<4x16x16xf32> to vector<4x16xf32>
    %118 = vector.shape_cast %117 : vector<4x16xf32> to vector<4x16x1xf32>
    %119 = arith.maximumf %113, %118 : vector<4x16x1xf32>
    %120 = arith.subf %113, %119 : vector<4x16x1xf32>
    %121 = math.exp %120 : vector<4x16x1xf32>
    %122 = vector.broadcast %119 : vector<4x16x1xf32> to vector<4x16x16xf32>
    %123 = arith.subf %116, %122 : vector<4x16x16xf32>
    %124 = math.exp %123 : vector<4x16x16xf32>
    %125 = arith.mulf %121, %114 : vector<4x16x1xf32>
    %cst_34 = arith.constant dense<0.000000e+00> : vector<4x16xf32>
    %126 = vector.multi_reduction <add>, %124, %cst_34 [2] : vector<4x16x16xf32> to vector<4x16xf32>
    %127 = vector.shape_cast %126 : vector<4x16xf32> to vector<4x16x1xf32>
    %128 = arith.addf %125, %127 : vector<4x16x1xf32>
    %129 = vector.broadcast %121 : vector<4x16x1xf32> to vector<4x16x32xf32>
    %130 = arith.mulf %129, %115 : vector<4x16x32xf32>
    %131 = arith.truncf %124 : vector<4x16x16xf32> to vector<4x16x16xbf16>
    "tpu.trace_start"() <{level = 10 : i32, message = "hts,hsd->htd"}> : () -> ()
    %cst_35 = arith.constant dense<0.000000e+00> : vector<4x16x32xf32>
    %132 = tpu.matmul %131, %112, %cst_35 {dimension_numbers = #tpu.dot_dimension_numbers<[2], [1], [1], [2], [0, 0, 0, 1, 1, 2], [0], [0]>} : vector<4x16x16xbf16>, vector<4x16x32xbf16>, vector<4x16x32xf32> -> vector<4x16x32xf32>
    "tpu.trace_stop"() : () -> ()
    %133 = arith.addf %130, %132 : vector<4x16x32xf32>
    %134 = tpu.reciprocal %128 {approx = true} : vector<4x16x1xf32> -> vector<4x16x1xf32>
    %135 = vector.broadcast %134 : vector<4x16x1xf32> to vector<4x16x32xf32>
    %136 = arith.mulf %133, %135 : vector<4x16x32xf32>
    %137 = vector.extract_strided_slice %136 {offsets = [0, 0, 0], sizes = [1, 16, 32], strides = [1, 1, 1]} : vector<4x16x32xf32> to vector<1x16x32xf32>
    %138 = vector.shape_cast %137 : vector<1x16x32xf32> to vector<16x32xf32>
    %139 = vector.extract_strided_slice %136 {offsets = [1, 0, 0], sizes = [1, 16, 32], strides = [1, 1, 1]} : vector<4x16x32xf32> to vector<1x16x32xf32>
    %140 = vector.shape_cast %139 : vector<1x16x32xf32> to vector<16x32xf32>
    %141 = vector.extract_strided_slice %136 {offsets = [2, 0, 0], sizes = [1, 16, 32], strides = [1, 1, 1]} : vector<4x16x32xf32> to vector<1x16x32xf32>
    %142 = vector.shape_cast %141 : vector<1x16x32xf32> to vector<16x32xf32>
    %143 = vector.extract_strided_slice %136 {offsets = [3, 0, 0], sizes = [1, 16, 32], strides = [1, 1, 1]} : vector<4x16x32xf32> to vector<1x16x32xf32>
    %144 = vector.shape_cast %143 : vector<1x16x32xf32> to vector<16x32xf32>
    %145 = tpu.concatenate %138, %140, %142, %144 in 1 : vector<16x32xf32>, vector<16x32xf32>, vector<16x32xf32>, vector<16x32xf32> -> vector<16x128xf32>
    %146 = arith.truncf %145 : vector<16x128xf32> to vector<16x128xbf16>
    %c0_36 = arith.constant 0 : index
    %c0_37 = arith.constant 0 : index
    %147 = vector.load %arg8[%c0_36, %c0_37] : memref<128x128xbf16, #tpu.memory_space<vmem>>, vector<128x128xbf16>
    %cst_38 = arith.constant dense<0.000000e+00> : vector<16x128xf32>
    %148 = tpu.matmul %146, %147, %cst_38 {dimension_numbers = #tpu.dot_dimension_numbers<[1], [0], [0], [1], [0, 0, 1, 1], [], []>} : vector<16x128xbf16>, vector<128x128xbf16>, vector<16x128xf32> -> vector<16x128xf32>
    %149 = arith.addf %47, %148 : vector<16x128xf32>
    %150 = vector.extract_strided_slice %2 {offsets = [5, 0], sizes = [1, 128], strides = [1, 1]} : vector<24x128xf32> to vector<1x128xf32>
    %151 = vector.broadcast %150 : vector<1x128xf32> to vector<16x128xf32>
    %152 = arith.addf %149, %151 : vector<16x128xf32>
    %153 = vector.extract_strided_slice %2 {offsets = [6, 0], sizes = [1, 128], strides = [1, 1]} : vector<24x128xf32> to vector<1x128xf32>
    %154 = vector.extract_strided_slice %2 {offsets = [7, 0], sizes = [1, 128], strides = [1, 1]} : vector<24x128xf32> to vector<1x128xf32>
    %cst_39 = arith.constant dense<0.000000e+00> : vector<16xf32>
    %155 = vector.multi_reduction <add>, %152, %cst_39 [1] : vector<16x128xf32> to vector<16xf32>
    %156 = vector.shape_cast %155 : vector<16xf32> to vector<16x1xf32>
    %cst_40 = arith.constant 1.280000e+02 : f32
    %157 = vector.broadcast %cst_40 : f32 to vector<16x1xf32>
    %158 = arith.divf %156, %157 : vector<16x1xf32>
    %159 = vector.broadcast %158 : vector<16x1xf32> to vector<16x128xf32>
    %160 = arith.subf %152, %159 : vector<16x128xf32>
    %161 = arith.mulf %160, %160 : vector<16x128xf32>
    %cst_41 = arith.constant dense<0.000000e+00> : vector<16xf32>
    %162 = vector.multi_reduction <add>, %161, %cst_41 [1] : vector<16x128xf32> to vector<16xf32>
    %163 = vector.shape_cast %162 : vector<16xf32> to vector<16x1xf32>
    %cst_42 = arith.constant 1.280000e+02 : f32
    %164 = vector.broadcast %cst_42 : f32 to vector<16x1xf32>
    %165 = arith.divf %163, %164 : vector<16x1xf32>
    %166 = vector.broadcast %158 : vector<16x1xf32> to vector<16x128xf32>
    %167 = arith.subf %152, %166 : vector<16x128xf32>
    %cst_43 = arith.constant 9.99999974E-6 : f32
    %168 = vector.broadcast %cst_43 : f32 to vector<16x1xf32>
    %169 = arith.addf %165, %168 : vector<16x1xf32>
    %170 = math.rsqrt %169 : vector<16x1xf32>
    %171 = vector.broadcast %170 : vector<16x1xf32> to vector<16x128xf32>
    %172 = arith.mulf %167, %171 : vector<16x128xf32>
    %173 = vector.broadcast %153 : vector<1x128xf32> to vector<16x128xf32>
    %174 = arith.mulf %172, %173 : vector<16x128xf32>
    %175 = vector.broadcast %154 : vector<1x128xf32> to vector<16x128xf32>
    %176 = arith.addf %174, %175 : vector<16x128xf32>
    %177 = arith.truncf %176 : vector<16x128xf32> to vector<16x128xbf16>
    %c0_44 = arith.constant 0 : index
    %c0_45 = arith.constant 0 : index
    %178 = vector.load %arg9[%c0_44, %c0_45] : memref<128x256xbf16, #tpu.memory_space<vmem>>, vector<128x256xbf16>
    %cst_46 = arith.constant dense<0.000000e+00> : vector<16x256xf32>
    %179 = tpu.matmul %177, %178, %cst_46 {dimension_numbers = #tpu.dot_dimension_numbers<[1], [0], [0], [1], [0, 0, 1, 1], [], []>} : vector<16x128xbf16>, vector<128x256xbf16>, vector<16x256xf32> -> vector<16x256xf32>
    %c0_47 = arith.constant 0 : index
    %c0_48 = arith.constant 0 : index
    %180 = vector.load %arg10[%c0_47, %c0_48] : memref<1x256xf32, #tpu.memory_space<vmem>>, vector<1x256xf32>
    %181 = vector.broadcast %180 : vector<1x256xf32> to vector<16x256xf32>
    %182 = arith.addf %179, %181 : vector<16x256xf32>
    %183 = vector.extract_strided_slice %182 {offsets = [0, 0], sizes = [16, 128], strides = [1, 1]} : vector<16x256xf32> to vector<16x128xf32>
    %184 = vector.extract_strided_slice %182 {offsets = [0, 128], sizes = [16, 128], strides = [1, 1]} : vector<16x256xf32> to vector<16x128xf32>
    %185 = arith.negf %184 : vector<16x128xf32>
    %186 = math.exp %185 : vector<16x128xf32>
    %cst_49 = arith.constant 1.000000e+00 : f32
    %187 = vector.broadcast %cst_49 : f32 to vector<16x128xf32>
    %188 = arith.addf %187, %186 : vector<16x128xf32>
    %189 = arith.divf %187, %188 : vector<16x128xf32>
    %190 = arith.mulf %183, %189 : vector<16x128xf32>
    %191 = tpu.iota {dimensions = array<i32: 0>} : vector<16x128xi32>
    %cst_50 = arith.constant 0.000000e+00 : f32
    %192 = vector.broadcast %cst_50 : f32 to vector<16x128xf32>
    %c3_i32 = arith.constant 3 : i32
    %193 = tpu.dynamic_rotate %190 by %c3_i32 dim 0 : vector<16x128xf32>, i32 -> vector<16x128xf32>
    %c3_i32_51 = arith.constant 3 : i32
    %194 = vector.broadcast %c3_i32_51 : i32 to vector<16x128xi32>
    %195 = arith.cmpi sge, %191, %194 : vector<16x128xi32>
    %c19_i32 = arith.constant 19 : i32
    %196 = vector.broadcast %c19_i32 : i32 to vector<16x128xi32>
    %197 = arith.cmpi slt, %191, %196 : vector<16x128xi32>
    %198 = arith.andi %195, %197 : vector<16x128xi1>
    %cst_52 = arith.constant 0.000000e+00 : f32
    %199 = vector.broadcast %cst_52 : f32 to vector<16x128xf32>
    %200 = arith.select %198, %193, %199 : vector<16x128xi1>, vector<16x128xf32>
    %201 = vector.extract_strided_slice %2 {offsets = [17, 0], sizes = [1, 128], strides = [1, 1]} : vector<24x128xf32> to vector<1x128xf32>
    %202 = vector.broadcast %201 : vector<1x128xf32> to vector<16x128xf32>
    %203 = arith.mulf %200, %202 : vector<16x128xf32>
    %204 = arith.addf %192, %203 : vector<16x128xf32>
    %c2_i32 = arith.constant 2 : i32
    %205 = tpu.dynamic_rotate %190 by %c2_i32 dim 0 : vector<16x128xf32>, i32 -> vector<16x128xf32>
    %c2_i32_53 = arith.constant 2 : i32
    %206 = vector.broadcast %c2_i32_53 : i32 to vector<16x128xi32>
    %207 = arith.cmpi sge, %191, %206 : vector<16x128xi32>
    %c18_i32 = arith.constant 18 : i32
    %208 = vector.broadcast %c18_i32 : i32 to vector<16x128xi32>
    %209 = arith.cmpi slt, %191, %208 : vector<16x128xi32>
    %210 = arith.andi %207, %209 : vector<16x128xi1>
    %cst_54 = arith.constant 0.000000e+00 : f32
    %211 = vector.broadcast %cst_54 : f32 to vector<16x128xf32>
    %212 = arith.select %210, %205, %211 : vector<16x128xi1>, vector<16x128xf32>
    %213 = vector.extract_strided_slice %2 {offsets = [18, 0], sizes = [1, 128], strides = [1, 1]} : vector<24x128xf32> to vector<1x128xf32>
    %214 = vector.broadcast %213 : vector<1x128xf32> to vector<16x128xf32>
    %215 = arith.mulf %212, %214 : vector<16x128xf32>
    %216 = arith.addf %204, %215 : vector<16x128xf32>
    %c1_i32 = arith.constant 1 : i32
    %217 = tpu.dynamic_rotate %190 by %c1_i32 dim 0 : vector<16x128xf32>, i32 -> vector<16x128xf32>
    %c1_i32_55 = arith.constant 1 : i32
    %218 = vector.broadcast %c1_i32_55 : i32 to vector<16x128xi32>
    %219 = arith.cmpi sge, %191, %218 : vector<16x128xi32>
    %c17_i32 = arith.constant 17 : i32
    %220 = vector.broadcast %c17_i32 : i32 to vector<16x128xi32>
    %221 = arith.cmpi slt, %191, %220 : vector<16x128xi32>
    %222 = arith.andi %219, %221 : vector<16x128xi1>
    %cst_56 = arith.constant 0.000000e+00 : f32
    %223 = vector.broadcast %cst_56 : f32 to vector<16x128xf32>
    %224 = arith.select %222, %217, %223 : vector<16x128xi1>, vector<16x128xf32>
    %225 = vector.extract_strided_slice %2 {offsets = [19, 0], sizes = [1, 128], strides = [1, 1]} : vector<24x128xf32> to vector<1x128xf32>
    %226 = vector.broadcast %225 : vector<1x128xf32> to vector<16x128xf32>
    %227 = arith.mulf %224, %226 : vector<16x128xf32>
    %228 = arith.addf %216, %227 : vector<16x128xf32>
    %c0_i32 = arith.constant 0 : i32
    %229 = vector.broadcast %c0_i32 : i32 to vector<16x128xi32>
    %230 = arith.cmpi sge, %191, %229 : vector<16x128xi32>
    %c16_i32 = arith.constant 16 : i32
    %231 = vector.broadcast %c16_i32 : i32 to vector<16x128xi32>
    %232 = arith.cmpi slt, %191, %231 : vector<16x128xi32>
    %233 = arith.andi %230, %232 : vector<16x128xi1>
    %cst_57 = arith.constant 0.000000e+00 : f32
    %234 = vector.broadcast %cst_57 : f32 to vector<16x128xf32>
    %235 = arith.select %233, %190, %234 : vector<16x128xi1>, vector<16x128xf32>
    %236 = vector.extract_strided_slice %2 {offsets = [20, 0], sizes = [1, 128], strides = [1, 1]} : vector<24x128xf32> to vector<1x128xf32>
    %237 = vector.broadcast %236 : vector<1x128xf32> to vector<16x128xf32>
    %238 = arith.mulf %235, %237 : vector<16x128xf32>
    %239 = arith.addf %228, %238 : vector<16x128xf32>
    %c15_i32 = arith.constant 15 : i32
    %240 = tpu.dynamic_rotate %190 by %c15_i32 dim 0 : vector<16x128xf32>, i32 -> vector<16x128xf32>
    %c-1_i32 = arith.constant -1 : i32
    %241 = vector.broadcast %c-1_i32 : i32 to vector<16x128xi32>
    %242 = arith.cmpi sge, %191, %241 : vector<16x128xi32>
    %c15_i32_58 = arith.constant 15 : i32
    %243 = vector.broadcast %c15_i32_58 : i32 to vector<16x128xi32>
    %244 = arith.cmpi slt, %191, %243 : vector<16x128xi32>
    %245 = arith.andi %242, %244 : vector<16x128xi1>
    %cst_59 = arith.constant 0.000000e+00 : f32
    %246 = vector.broadcast %cst_59 : f32 to vector<16x128xf32>
    %247 = arith.select %245, %240, %246 : vector<16x128xi1>, vector<16x128xf32>
    %248 = vector.extract_strided_slice %2 {offsets = [21, 0], sizes = [1, 128], strides = [1, 1]} : vector<24x128xf32> to vector<1x128xf32>
    %249 = vector.broadcast %248 : vector<1x128xf32> to vector<16x128xf32>
    %250 = arith.mulf %247, %249 : vector<16x128xf32>
    %251 = arith.addf %239, %250 : vector<16x128xf32>
    %c14_i32 = arith.constant 14 : i32
    %252 = tpu.dynamic_rotate %190 by %c14_i32 dim 0 : vector<16x128xf32>, i32 -> vector<16x128xf32>
    %c-2_i32 = arith.constant -2 : i32
    %253 = vector.broadcast %c-2_i32 : i32 to vector<16x128xi32>
    %254 = arith.cmpi sge, %191, %253 : vector<16x128xi32>
    %c14_i32_60 = arith.constant 14 : i32
    %255 = vector.broadcast %c14_i32_60 : i32 to vector<16x128xi32>
    %256 = arith.cmpi slt, %191, %255 : vector<16x128xi32>
    %257 = arith.andi %254, %256 : vector<16x128xi1>
    %cst_61 = arith.constant 0.000000e+00 : f32
    %258 = vector.broadcast %cst_61 : f32 to vector<16x128xf32>
    %259 = arith.select %257, %252, %258 : vector<16x128xi1>, vector<16x128xf32>
    %260 = vector.extract_strided_slice %2 {offsets = [22, 0], sizes = [1, 128], strides = [1, 1]} : vector<24x128xf32> to vector<1x128xf32>
    %261 = vector.broadcast %260 : vector<1x128xf32> to vector<16x128xf32>
    %262 = arith.mulf %259, %261 : vector<16x128xf32>
    %263 = arith.addf %251, %262 : vector<16x128xf32>
    %c13_i32 = arith.constant 13 : i32
    %264 = tpu.dynamic_rotate %190 by %c13_i32 dim 0 : vector<16x128xf32>, i32 -> vector<16x128xf32>
    %c-3_i32 = arith.constant -3 : i32
    %265 = vector.broadcast %c-3_i32 : i32 to vector<16x128xi32>
    %266 = arith.cmpi sge, %191, %265 : vector<16x128xi32>
    %c13_i32_62 = arith.constant 13 : i32
    %267 = vector.broadcast %c13_i32_62 : i32 to vector<16x128xi32>
    %268 = arith.cmpi slt, %191, %267 : vector<16x128xi32>
    %269 = arith.andi %266, %268 : vector<16x128xi1>
    %cst_63 = arith.constant 0.000000e+00 : f32
    %270 = vector.broadcast %cst_63 : f32 to vector<16x128xf32>
    %271 = arith.select %269, %264, %270 : vector<16x128xi1>, vector<16x128xf32>
    %272 = vector.extract_strided_slice %2 {offsets = [23, 0], sizes = [1, 128], strides = [1, 1]} : vector<24x128xf32> to vector<1x128xf32>
    %273 = vector.broadcast %272 : vector<1x128xf32> to vector<16x128xf32>
    %274 = arith.mulf %271, %273 : vector<16x128xf32>
    %275 = arith.addf %263, %274 : vector<16x128xf32>
    %276 = vector.extract_strided_slice %2 {offsets = [8, 0], sizes = [1, 128], strides = [1, 1]} : vector<24x128xf32> to vector<1x128xf32>
    %277 = vector.broadcast %276 : vector<1x128xf32> to vector<16x128xf32>
    %278 = arith.addf %275, %277 : vector<16x128xf32>
    %279 = vector.extract_strided_slice %2 {offsets = [9, 0], sizes = [1, 128], strides = [1, 1]} : vector<24x128xf32> to vector<1x128xf32>
    %280 = vector.broadcast %279 : vector<1x128xf32> to vector<16x128xf32>
    %281 = arith.mulf %278, %280 : vector<16x128xf32>
    %282 = vector.extract_strided_slice %2 {offsets = [10, 0], sizes = [1, 128], strides = [1, 1]} : vector<24x128xf32> to vector<1x128xf32>
    %283 = vector.broadcast %282 : vector<1x128xf32> to vector<16x128xf32>
    %284 = arith.addf %281, %283 : vector<16x128xf32>
    %285 = arith.negf %284 : vector<16x128xf32>
    %286 = math.exp %285 : vector<16x128xf32>
    %cst_64 = arith.constant 1.000000e+00 : f32
    %287 = vector.broadcast %cst_64 : f32 to vector<16x128xf32>
    %288 = arith.addf %287, %286 : vector<16x128xf32>
    %289 = arith.divf %287, %288 : vector<16x128xf32>
    %290 = arith.mulf %284, %289 : vector<16x128xf32>
    %291 = arith.truncf %290 : vector<16x128xf32> to vector<16x128xbf16>
    %c0_65 = arith.constant 0 : index
    %c0_66 = arith.constant 0 : index
    %292 = vector.load %arg11[%c0_65, %c0_66] : memref<128x128xbf16, #tpu.memory_space<vmem>>, vector<128x128xbf16>
    %cst_67 = arith.constant dense<0.000000e+00> : vector<16x128xf32>
    %293 = tpu.matmul %291, %292, %cst_67 {dimension_numbers = #tpu.dot_dimension_numbers<[1], [0], [0], [1], [0, 0, 1, 1], [], []>} : vector<16x128xbf16>, vector<128x128xbf16>, vector<16x128xf32> -> vector<16x128xf32>
    %294 = vector.extract_strided_slice %2 {offsets = [11, 0], sizes = [1, 128], strides = [1, 1]} : vector<24x128xf32> to vector<1x128xf32>
    %295 = vector.broadcast %294 : vector<1x128xf32> to vector<16x128xf32>
    %296 = arith.addf %293, %295 : vector<16x128xf32>
    %297 = arith.addf %152, %296 : vector<16x128xf32>
    %298 = vector.extract_strided_slice %2 {offsets = [12, 0], sizes = [1, 128], strides = [1, 1]} : vector<24x128xf32> to vector<1x128xf32>
    %299 = vector.extract_strided_slice %2 {offsets = [13, 0], sizes = [1, 128], strides = [1, 1]} : vector<24x128xf32> to vector<1x128xf32>
    %cst_68 = arith.constant dense<0.000000e+00> : vector<16xf32>
    %300 = vector.multi_reduction <add>, %297, %cst_68 [1] : vector<16x128xf32> to vector<16xf32>
    %301 = vector.shape_cast %300 : vector<16xf32> to vector<16x1xf32>
    %cst_69 = arith.constant 1.280000e+02 : f32
    %302 = vector.broadcast %cst_69 : f32 to vector<16x1xf32>
    %303 = arith.divf %301, %302 : vector<16x1xf32>
    %304 = vector.broadcast %303 : vector<16x1xf32> to vector<16x128xf32>
    %305 = arith.subf %297, %304 : vector<16x128xf32>
    %306 = arith.mulf %305, %305 : vector<16x128xf32>
    %cst_70 = arith.constant dense<0.000000e+00> : vector<16xf32>
    %307 = vector.multi_reduction <add>, %306, %cst_70 [1] : vector<16x128xf32> to vector<16xf32>
    %308 = vector.shape_cast %307 : vector<16xf32> to vector<16x1xf32>
    %cst_71 = arith.constant 1.280000e+02 : f32
    %309 = vector.broadcast %cst_71 : f32 to vector<16x1xf32>
    %310 = arith.divf %308, %309 : vector<16x1xf32>
    %311 = vector.broadcast %303 : vector<16x1xf32> to vector<16x128xf32>
    %312 = arith.subf %297, %311 : vector<16x128xf32>
    %cst_72 = arith.constant 9.99999974E-6 : f32
    %313 = vector.broadcast %cst_72 : f32 to vector<16x1xf32>
    %314 = arith.addf %310, %313 : vector<16x1xf32>
    %315 = math.rsqrt %314 : vector<16x1xf32>
    %316 = vector.broadcast %315 : vector<16x1xf32> to vector<16x128xf32>
    %317 = arith.mulf %312, %316 : vector<16x128xf32>
    %318 = vector.broadcast %298 : vector<1x128xf32> to vector<16x128xf32>
    %319 = arith.mulf %317, %318 : vector<16x128xf32>
    %320 = vector.broadcast %299 : vector<1x128xf32> to vector<16x128xf32>
    %321 = arith.addf %319, %320 : vector<16x128xf32>
    %322 = arith.truncf %321 : vector<16x128xf32> to vector<16x128xbf16>
    %c0_73 = arith.constant 0 : index
    %c0_74 = arith.constant 0 : index
    %323 = vector.load %arg12[%c0_73, %c0_74] : memref<128x512xbf16, #tpu.memory_space<vmem>>, vector<128x512xbf16>
    %cst_75 = arith.constant dense<0.000000e+00> : vector<16x512xf32>
    %324 = tpu.matmul %322, %323, %cst_75 {dimension_numbers = #tpu.dot_dimension_numbers<[1], [0], [0], [1], [0, 0, 1, 1], [], []>} : vector<16x128xbf16>, vector<128x512xbf16>, vector<16x512xf32> -> vector<16x512xf32>
    %c0_76 = arith.constant 0 : index
    %c0_77 = arith.constant 0 : index
    %325 = vector.load %arg13[%c0_76, %c0_77] : memref<1x512xf32, #tpu.memory_space<vmem>>, vector<1x512xf32>
    %326 = vector.broadcast %325 : vector<1x512xf32> to vector<16x512xf32>
    %327 = arith.addf %324, %326 : vector<16x512xf32>
    %328 = arith.negf %327 : vector<16x512xf32>
    %329 = math.exp %328 : vector<16x512xf32>
    %cst_78 = arith.constant 1.000000e+00 : f32
    %330 = vector.broadcast %cst_78 : f32 to vector<16x512xf32>
    %331 = arith.addf %330, %329 : vector<16x512xf32>
    %332 = arith.divf %330, %331 : vector<16x512xf32>
    %333 = arith.mulf %327, %332 : vector<16x512xf32>
    %334 = arith.truncf %333 : vector<16x512xf32> to vector<16x512xbf16>
    %c0_79 = arith.constant 0 : index
    %c0_80 = arith.constant 0 : index
    %335 = vector.load %arg14[%c0_79, %c0_80] : memref<512x128xbf16, #tpu.memory_space<vmem>>, vector<512x128xbf16>
    %cst_81 = arith.constant dense<0.000000e+00> : vector<16x128xf32>
    %336 = tpu.matmul %334, %335, %cst_81 {dimension_numbers = #tpu.dot_dimension_numbers<[1], [0], [0], [1], [0, 0, 1, 1], [], []>} : vector<16x512xbf16>, vector<512x128xbf16>, vector<16x128xf32> -> vector<16x128xf32>
    %337 = vector.extract_strided_slice %2 {offsets = [14, 0], sizes = [1, 128], strides = [1, 1]} : vector<24x128xf32> to vector<1x128xf32>
    %338 = vector.broadcast %337 : vector<1x128xf32> to vector<16x128xf32>
    %339 = arith.addf %336, %338 : vector<16x128xf32>
    %cst_82 = arith.constant 5.000000e-01 : f32
    %340 = vector.broadcast %cst_82 : f32 to vector<16x128xf32>
    %341 = arith.mulf %340, %339 : vector<16x128xf32>
    %342 = arith.addf %297, %341 : vector<16x128xf32>
    %343 = vector.extract_strided_slice %2 {offsets = [15, 0], sizes = [1, 128], strides = [1, 1]} : vector<24x128xf32> to vector<1x128xf32>
    %344 = vector.extract_strided_slice %2 {offsets = [16, 0], sizes = [1, 128], strides = [1, 1]} : vector<24x128xf32> to vector<1x128xf32>
    %cst_83 = arith.constant dense<0.000000e+00> : vector<16xf32>
    %345 = vector.multi_reduction <add>, %342, %cst_83 [1] : vector<16x128xf32> to vector<16xf32>
    %346 = vector.shape_cast %345 : vector<16xf32> to vector<16x1xf32>
    %cst_84 = arith.constant 1.280000e+02 : f32
    %347 = vector.broadcast %cst_84 : f32 to vector<16x1xf32>
    %348 = arith.divf %346, %347 : vector<16x1xf32>
    %349 = vector.broadcast %348 : vector<16x1xf32> to vector<16x128xf32>
    %350 = arith.subf %342, %349 : vector<16x128xf32>
    %351 = arith.mulf %350, %350 : vector<16x128xf32>
    %cst_85 = arith.constant dense<0.000000e+00> : vector<16xf32>
    %352 = vector.multi_reduction <add>, %351, %cst_85 [1] : vector<16x128xf32> to vector<16xf32>
    %353 = vector.shape_cast %352 : vector<16xf32> to vector<16x1xf32>
    %cst_86 = arith.constant 1.280000e+02 : f32
    %354 = vector.broadcast %cst_86 : f32 to vector<16x1xf32>
    %355 = arith.divf %353, %354 : vector<16x1xf32>
    %356 = vector.broadcast %348 : vector<16x1xf32> to vector<16x128xf32>
    %357 = arith.subf %342, %356 : vector<16x128xf32>
    %cst_87 = arith.constant 9.99999974E-6 : f32
    %358 = vector.broadcast %cst_87 : f32 to vector<16x1xf32>
    %359 = arith.addf %355, %358 : vector<16x1xf32>
    %360 = math.rsqrt %359 : vector<16x1xf32>
    %361 = vector.broadcast %360 : vector<16x1xf32> to vector<16x128xf32>
    %362 = arith.mulf %357, %361 : vector<16x128xf32>
    %363 = vector.broadcast %343 : vector<1x128xf32> to vector<16x128xf32>
    %364 = arith.mulf %362, %363 : vector<16x128xf32>
    %365 = vector.broadcast %344 : vector<1x128xf32> to vector<16x128xf32>
    %366 = arith.addf %364, %365 : vector<16x128xf32>
    %c0_88 = arith.constant 0 : index
    %c0_89 = arith.constant 0 : index
    %c0_90 = arith.constant 0 : index
    %367 = vector.load %arg15[%c0_88, %c0_89, %c0_90] : memref<1x16x128xf32, #tpu.memory_space<vmem>>, vector<1x16x128xf32>
    %368 = vector.shape_cast %367 : vector<1x16x128xf32> to vector<16x128xf32>
    %369 = vector.shape_cast %366 : vector<16x128xf32> to vector<1x16x128xf32>
    tpu.vector_store %arg15[%c0_88, %c0_89, %c0_90], %369 {strides = array<i32>} : memref<1x16x128xf32, #tpu.memory_space<vmem>>, vector<1x16x128xf32>,
    return
  }
  func.func @transform_0(%arg0: i32) -> (i32, i32, i32) {
    %c0_i32 = arith.constant 0 : i32
    %c0_i32_0 = arith.constant 0 : i32
    %c0_i32_1 = arith.constant 0 : i32
    return %arg0, %c0_i32, %c0_i32_0 : i32, i32, i32
  }
  func.func @transform_1(%arg0: i32) -> (i32, i32) {
    %c0_i32 = arith.constant 0 : i32
    %c0_i32_0 = arith.constant 0 : i32
    %c0_i32_1 = arith.constant 0 : i32
    return %c0_i32, %c0_i32_0 : i32, i32
  }
  func.func @transform_2(%arg0: i32) -> (i32, i32) {
    %c0_i32 = arith.constant 0 : i32
    %c0_i32_0 = arith.constant 0 : i32
    %c0_i32_1 = arith.constant 0 : i32
    return %c0_i32, %c0_i32_0 : i32, i32
  }
  func.func @transform_3(%arg0: i32) -> (i32, i32) {
    %c0_i32 = arith.constant 0 : i32
    %c0_i32_0 = arith.constant 0 : i32
    %c0_i32_1 = arith.constant 0 : i32
    return %c0_i32, %c0_i32_0 : i32, i32
  }
  func.func @transform_4(%arg0: i32) -> (i32, i32) {
    %c0_i32 = arith.constant 0 : i32
    %c0_i32_0 = arith.constant 0 : i32
    %c0_i32_1 = arith.constant 0 : i32
    return %c0_i32, %c0_i32_0 : i32, i32
  }
  func.func @transform_5(%arg0: i32) -> (i32, i32) {
    %c0_i32 = arith.constant 0 : i32
    %c0_i32_0 = arith.constant 0 : i32
    %c0_i32_1 = arith.constant 0 : i32
    return %c0_i32, %c0_i32_0 : i32, i32
  }
  func.func @transform_6(%arg0: i32) -> (i32, i32) {
    %c0_i32 = arith.constant 0 : i32
    %c0_i32_0 = arith.constant 0 : i32
    %c0_i32_1 = arith.constant 0 : i32
    return %c0_i32, %c0_i32_0 : i32, i32
  }
  func.func @transform_7(%arg0: i32) -> (i32, i32) {
    %c0_i32 = arith.constant 0 : i32
    %c0_i32_0 = arith.constant 0 : i32
    %c0_i32_1 = arith.constant 0 : i32
    return %c0_i32, %c0_i32_0 : i32, i32
  }
  func.func @transform_8(%arg0: i32) -> (i32, i32) {
    %c0_i32 = arith.constant 0 : i32
    %c0_i32_0 = arith.constant 0 : i32
    %c0_i32_1 = arith.constant 0 : i32
    return %c0_i32, %c0_i32_0 : i32, i32
  }
  func.func @transform_9(%arg0: i32) -> (i32, i32) {
    %c0_i32 = arith.constant 0 : i32
    %c0_i32_0 = arith.constant 0 : i32
    %c0_i32_1 = arith.constant 0 : i32
    return %c0_i32, %c0_i32_0 : i32, i32
  }
  func.func @transform_10(%arg0: i32) -> (i32, i32) {
    %c0_i32 = arith.constant 0 : i32
    %c0_i32_0 = arith.constant 0 : i32
    %c0_i32_1 = arith.constant 0 : i32
    return %c0_i32, %c0_i32_0 : i32, i32
  }
  func.func @transform_11(%arg0: i32) -> (i32, i32) {
    %c0_i32 = arith.constant 0 : i32
    %c0_i32_0 = arith.constant 0 : i32
    %c0_i32_1 = arith.constant 0 : i32
    return %c0_i32, %c0_i32_0 : i32, i32
  }
  func.func @transform_12(%arg0: i32) -> (i32, i32) {
    %c0_i32 = arith.constant 0 : i32
    %c0_i32_0 = arith.constant 0 : i32
    %c0_i32_1 = arith.constant 0 : i32
    return %c0_i32, %c0_i32_0 : i32, i32
  }
  func.func @transform_13(%arg0: i32) -> (i32, i32) {
    %c0_i32 = arith.constant 0 : i32
    %c0_i32_0 = arith.constant 0 : i32
    %c0_i32_1 = arith.constant 0 : i32
    return %c0_i32, %c0_i32_0 : i32, i32
  }
  func.func @transform_14(%arg0: i32) -> (i32, i32, i32) {
    %c0_i32 = arith.constant 0 : i32
    %c0_i32_0 = arith.constant 0 : i32
    %c0_i32_1 = arith.constant 0 : i32
    return %arg0, %c0_i32, %c0_i32_0 : i32, i32, i32
  }
}

module attributes {stable_mosaic.version = 11 : i64} {
  func.func @conformer_block_kernel(%arg0: i32, %arg1: memref<1x16x128xf32, #tpu.memory_space<vmem>>, %arg2: memref<24x128xf32, #tpu.memory_space<vmem>>, %arg3: memref<128x512xbf16, #tpu.memory_space<vmem>>, %arg4: memref<1x512xf32, #tpu.memory_space<vmem>>, %arg5: memref<512x128xbf16, #tpu.memory_space<vmem>>, %arg6: memref<128x384xbf16, #tpu.memory_space<vmem>>, %arg7: memref<1x384xf32, #tpu.memory_space<vmem>>, %arg8: memref<128x128xbf16, #tpu.memory_space<vmem>>, %arg9: memref<128x256xbf16, #tpu.memory_space<vmem>>, %arg10: memref<1x256xf32, #tpu.memory_space<vmem>>, %arg11: memref<128x128xbf16, #tpu.memory_space<vmem>>, %arg12: memref<128x512xbf16, #tpu.memory_space<vmem>>, %arg13: memref<1x512xf32, #tpu.memory_space<vmem>>, %arg14: memref<512x128xbf16, #tpu.memory_space<vmem>>, %arg15: memref<1x16x128xf32, #tpu.memory_space<vmem>>) attributes {dimension_semantics = [#tpu.dimension_semantics<parallel>], iteration_bounds = array<i64: 2>, scalar_prefetch = 0 : i64, scratch_operands = 0 : i64, tpu.core_type = #tpu.core_type<tc>, window_params = [{transform_indices = @transform_0, window_bounds = array<i64: 1, 16, 128>}, {pipeline_mode = #tpu.pipeline_mode<synchronous>, transform_indices = @transform_1, window_bounds = array<i64: 24, 128>}, {pipeline_mode = #tpu.pipeline_mode<synchronous>, transform_indices = @transform_2, window_bounds = array<i64: 128, 512>}, {pipeline_mode = #tpu.pipeline_mode<synchronous>, transform_indices = @transform_3, window_bounds = array<i64: 1, 512>}, {pipeline_mode = #tpu.pipeline_mode<synchronous>, transform_indices = @transform_4, window_bounds = array<i64: 512, 128>}, {pipeline_mode = #tpu.pipeline_mode<synchronous>, transform_indices = @transform_5, window_bounds = array<i64: 128, 384>}, {pipeline_mode = #tpu.pipeline_mode<synchronous>, transform_indices = @transform_6, window_bounds = array<i64: 1, 384>}, {pipeline_mode = #tpu.pipeline_mode<synchronous>, transform_indices = @transform_7, window_bounds = array<i64: 128, 128>}, {pipeline_mode = #tpu.pipeline_mode<synchronous>, transform_indices = @transform_8, window_bounds = array<i64: 128, 256>}, {pipeline_mode = #tpu.pipeline_mode<synchronous>, transform_indices = @transform_9, window_bounds = array<i64: 1, 256>}, {pipeline_mode = #tpu.pipeline_mode<synchronous>, transform_indices = @transform_10, window_bounds = array<i64: 128, 128>}, {pipeline_mode = #tpu.pipeline_mode<synchronous>, transform_indices = @transform_11, window_bounds = array<i64: 128, 512>}, {pipeline_mode = #tpu.pipeline_mode<synchronous>, transform_indices = @transform_12, window_bounds = array<i64: 1, 512>}, {pipeline_mode = #tpu.pipeline_mode<synchronous>, transform_indices = @transform_13, window_bounds = array<i64: 512, 128>}, {transform_indices = @transform_14, window_bounds = array<i64: 1, 16, 128>}]} {
    %c0 = arith.constant 0 : index
    %c0_0 = arith.constant 0 : index
    %c0_1 = arith.constant 0 : index
    %0 = vector.load %arg1[%c0, %c0_0, %c0_1] : memref<1x16x128xf32, #tpu.memory_space<vmem>>, vector<1x16x128xf32>
    %1 = vector.shape_cast %0 : vector<1x16x128xf32> to vector<16x128xf32>
    %c0_2 = arith.constant 0 : index
    %c0_3 = arith.constant 0 : index
    %2 = vector.load %arg2[%c0_2, %c0_3] : memref<24x128xf32, #tpu.memory_space<vmem>>, vector<24x128xf32>
    %3 = vector.extract_strided_slice %2 {offsets = [0, 0], sizes = [1, 128], strides = [1, 1]} : vector<24x128xf32> to vector<1x128xf32>
    %4 = vector.extract_strided_slice %2 {offsets = [1, 0], sizes = [1, 128], strides = [1, 1]} : vector<24x128xf32> to vector<1x128xf32>
    %cst = arith.constant dense<0.000000e+00> : vector<16xf32>
    %5 = vector.multi_reduction <add>, %1, %cst [1] : vector<16x128xf32> to vector<16xf32>
    %6 = vector.shape_cast %5 : vector<16xf32> to vector<16x1xf32>
    %cst_4 = arith.constant 1.280000e+02 : f32
    %7 = vector.broadcast %cst_4 : f32 to vector<16x1xf32>
    %8 = arith.divf %6, %7 : vector<16x1xf32>
    %9 = vector.broadcast %8 : vector<16x1xf32> to vector<16x128xf32>
    %10 = arith.subf %1, %9 : vector<16x128xf32>
    %11 = arith.mulf %10, %10 : vector<16x128xf32>
    %cst_5 = arith.constant dense<0.000000e+00> : vector<16xf32>
    %12 = vector.multi_reduction <add>, %11, %cst_5 [1] : vector<16x128xf32> to vector<16xf32>
    %13 = vector.shape_cast %12 : vector<16xf32> to vector<16x1xf32>
    %cst_6 = arith.constant 1.280000e+02 : f32
    %14 = vector.broadcast %cst_6 : f32 to vector<16x1xf32>
    %15 = arith.divf %13, %14 : vector<16x1xf32>
    %16 = vector.broadcast %8 : vector<16x1xf32> to vector<16x128xf32>
    %17 = arith.subf %1, %16 : vector<16x128xf32>
    %cst_7 = arith.constant 9.99999974E-6 : f32
    %18 = vector.broadcast %cst_7 : f32 to vector<16x1xf32>
    %19 = arith.addf %15, %18 : vector<16x1xf32>
    %20 = math.rsqrt %19 : vector<16x1xf32>
    %21 = vector.broadcast %20 : vector<16x1xf32> to vector<16x128xf32>
    %22 = arith.mulf %17, %21 : vector<16x128xf32>
    %23 = vector.broadcast %3 : vector<1x128xf32> to vector<16x128xf32>
    %24 = arith.mulf %22, %23 : vector<16x128xf32>
    %25 = vector.broadcast %4 : vector<1x128xf32> to vector<16x128xf32>
    %26 = arith.addf %24, %25 : vector<16x128xf32>
    %27 = arith.truncf %26 : vector<16x128xf32> to vector<16x128xbf16>
    %c0_8 = arith.constant 0 : index
    %c0_9 = arith.constant 0 : index
    %28 = vector.load %arg3[%c0_8, %c0_9] : memref<128x512xbf16, #tpu.memory_space<vmem>>, vector<128x512xbf16>
    %cst_10 = arith.constant dense<0.000000e+00> : vector<16x512xf32>
    %29 = tpu.matmul %27, %28, %cst_10 {dimension_numbers = #tpu.dot_dimension_numbers<[1], [0], [0], [1], [0, 0, 1, 1], [], []>} : vector<16x128xbf16>, vector<128x512xbf16>, vector<16x512xf32> -> vector<16x512xf32>
    %c0_11 = arith.constant 0 : index
    %c0_12 = arith.constant 0 : index
    %30 = vector.load %arg4[%c0_11, %c0_12] : memref<1x512xf32, #tpu.memory_space<vmem>>, vector<1x512xf32>
    %31 = vector.broadcast %30 : vector<1x512xf32> to vector<16x512xf32>
    %32 = arith.addf %29, %31 : vector<16x512xf32>
    %33 = arith.negf %32 : vector<16x512xf32>
    %34 = math.exp %33 : vector<16x512xf32>
    %cst_13 = arith.constant 1.000000e+00 : f32
    %35 = vector.broadcast %cst_13 : f32 to vector<16x512xf32>
    %36 = arith.addf %35, %34 : vector<16x512xf32>
    %37 = arith.divf %35, %36 : vector<16x512xf32>
    %38 = arith.mulf %32, %37 : vector<16x512xf32>
    %39 = arith.truncf %38 : vector<16x512xf32> to vector<16x512xbf16>
    %c0_14 = arith.constant 0 : index
    %c0_15 = arith.constant 0 : index
    %40 = vector.load %arg5[%c0_14, %c0_15] : memref<512x128xbf16, #tpu.memory_space<vmem>>, vector<512x128xbf16>
    %cst_16 = arith.constant dense<0.000000e+00> : vector<16x128xf32>
    %41 = tpu.matmul %39, %40, %cst_16 {dimension_numbers = #tpu.dot_dimension_numbers<[1], [0], [0], [1], [0, 0, 1, 1], [], []>} : vector<16x512xbf16>, vector<512x128xbf16>, vector<16x128xf32> -> vector<16x128xf32>
    %42 = vector.extract_strided_slice %2 {offsets = [2, 0], sizes = [1, 128], strides = [1, 1]} : vector<24x128xf32> to vector<1x128xf32>
    %43 = vector.broadcast %42 : vector<1x128xf32> to vector<16x128xf32>
    %44 = arith.addf %41, %43 : vector<16x128xf32>
    %cst_17 = arith.constant 5.000000e-01 : f32
    %45 = vector.broadcast %cst_17 : f32 to vector<16x128xf32>
    %46 = arith.mulf %45, %44 : vector<16x128xf32>
    %47 = arith.addf %1, %46 : vector<16x128xf32>
    %48 = vector.extract_strided_slice %2 {offsets = [3, 0], sizes = [1, 128], strides = [1, 1]} : vector<24x128xf32> to vector<1x128xf32>
    %49 = vector.extract_strided_slice %2 {offsets = [4, 0], sizes = [1, 128], strides = [1, 1]} : vector<24x128xf32> to vector<1x128xf32>
    %cst_18 = arith.constant dense<0.000000e+00> : vector<16xf32>
    %50 = vector.multi_reduction <add>, %47, %cst_18 [1] : vector<16x128xf32> to vector<16xf32>
    %51 = vector.shape_cast %50 : vector<16xf32> to vector<16x1xf32>
    %cst_19 = arith.constant 1.280000e+02 : f32
    %52 = vector.broadcast %cst_19 : f32 to vector<16x1xf32>
    %53 = arith.divf %51, %52 : vector<16x1xf32>
    %54 = vector.broadcast %53 : vector<16x1xf32> to vector<16x128xf32>
    %55 = arith.subf %47, %54 : vector<16x128xf32>
    %56 = arith.mulf %55, %55 : vector<16x128xf32>
    %cst_20 = arith.constant dense<0.000000e+00> : vector<16xf32>
    %57 = vector.multi_reduction <add>, %56, %cst_20 [1] : vector<16x128xf32> to vector<16xf32>
    %58 = vector.shape_cast %57 : vector<16xf32> to vector<16x1xf32>
    %cst_21 = arith.constant 1.280000e+02 : f32
    %59 = vector.broadcast %cst_21 : f32 to vector<16x1xf32>
    %60 = arith.divf %58, %59 : vector<16x1xf32>
    %61 = vector.broadcast %53 : vector<16x1xf32> to vector<16x128xf32>
    %62 = arith.subf %47, %61 : vector<16x128xf32>
    %cst_22 = arith.constant 9.99999974E-6 : f32
    %63 = vector.broadcast %cst_22 : f32 to vector<16x1xf32>
    %64 = arith.addf %60, %63 : vector<16x1xf32>
    %65 = math.rsqrt %64 : vector<16x1xf32>
    %66 = vector.broadcast %65 : vector<16x1xf32> to vector<16x128xf32>
    %67 = arith.mulf %62, %66 : vector<16x128xf32>
    %68 = vector.broadcast %48 : vector<1x128xf32> to vector<16x128xf32>
    %69 = arith.mulf %67, %68 : vector<16x128xf32>
    %70 = vector.broadcast %49 : vector<1x128xf32> to vector<16x128xf32>
    %71 = arith.addf %69, %70 : vector<16x128xf32>
    %72 = arith.truncf %71 : vector<16x128xf32> to vector<16x128xbf16>
    %c0_23 = arith.constant 0 : index
    %c0_24 = arith.constant 0 : index
    %73 = vector.load %arg6[%c0_23, %c0_24] : memref<128x384xbf16, #tpu.memory_space<vmem>>, vector<128x384xbf16>
    %cst_25 = arith.constant dense<0.000000e+00> : vector<16x384xf32>
    %74 = tpu.matmul %72, %73, %cst_25 {dimension_numbers = #tpu.dot_dimension_numbers<[1], [0], [0], [1], [0, 0, 1, 1], [], []>} : vector<16x128xbf16>, vector<128x384xbf16>, vector<16x384xf32> -> vector<16x384xf32>
    %c0_26 = arith.constant 0 : index
    %c0_27 = arith.constant 0 : index
    %75 = vector.load %arg7[%c0_26, %c0_27] : memref<1x384xf32, #tpu.memory_space<vmem>>, vector<1x384xf32>
    %76 = vector.broadcast %75 : vector<1x384xf32> to vector<16x384xf32>
    %77 = arith.addf %74, %76 : vector<16x384xf32>
    %78 = vector.extract_strided_slice %77 {offsets = [0, 0], sizes = [16, 128], strides = [1, 1]} : vector<16x384xf32> to vector<16x128xf32>
    %cst_28 = arith.constant 0.176776692 : f32
    %79 = vector.broadcast %cst_28 : f32 to vector<16x128xf32>
    %80 = arith.mulf %78, %79 : vector<16x128xf32>
    %81 = arith.truncf %80 : vector<16x128xf32> to vector<16x128xbf16>
    %82 = vector.extract_strided_slice %81 {offsets = [0, 0], sizes = [16, 32], strides = [1, 1]} : vector<16x128xbf16> to vector<16x32xbf16>
    %83 = vector.extract_strided_slice %81 {offsets = [0, 32], sizes = [16, 32], strides = [1, 1]} : vector<16x128xbf16> to vector<16x32xbf16>
    %84 = vector.extract_strided_slice %81 {offsets = [0, 64], sizes = [16, 32], strides = [1, 1]} : vector<16x128xbf16> to vector<16x32xbf16>
    %85 = vector.extract_strided_slice %81 {offsets = [0, 96], sizes = [16, 32], strides = [1, 1]} : vector<16x128xbf16> to vector<16x32xbf16>
    %86 = vector.shape_cast %82 : vector<16x32xbf16> to vector<1x16x32xbf16>
    %87 = vector.shape_cast %83 : vector<16x32xbf16> to vector<1x16x32xbf16>
    %88 = vector.shape_cast %84 : vector<16x32xbf16> to vector<1x16x32xbf16>
    %89 = vector.shape_cast %85 : vector<16x32xbf16> to vector<1x16x32xbf16>
    %90 = tpu.concatenate %86, %87, %88, %89 in 0 : vector<1x16x32xbf16>, vector<1x16x32xbf16>, vector<1x16x32xbf16>, vector<1x16x32xbf16> -> vector<4x16x32xbf16>
    %91 = vector.extract_strided_slice %77 {offsets = [0, 128], sizes = [16, 128], strides = [1, 1]} : vector<16x384xf32> to vector<16x128xf32>
    %92 = arith.truncf %91 : vector<16x128xf32> to vector<16x128xbf16>
    %93 = vector.extract_strided_slice %92 {offsets = [0, 0], sizes = [16, 32], strides = [1, 1]} : vector<16x128xbf16> to vector<16x32xbf16>
    %94 = vector.extract_strided_slice %92 {offsets = [0, 32], sizes = [16, 32], strides = [1, 1]} : vector<16x128xbf16> to vector<16x32xbf16>
    %95 = vector.extract_strided_slice %92 {offsets = [0, 64], sizes = [16, 32], strides = [1, 1]} : vector<16x128xbf16> to vector<16x32xbf16>
    %96 = vector.extract_strided_slice %92 {offsets = [0, 96], sizes = [16, 32], strides = [1, 1]} : vector<16x128xbf16> to vector<16x32xbf16>
    %97 = vector.shape_cast %93 : vector<16x32xbf16> to vector<1x16x32xbf16>
    %98 = vector.shape_cast %94 : vector<16x32xbf16> to vector<1x16x32xbf16>
    %99 = vector.shape_cast %95 : vector<16x32xbf16> to vector<1x16x32xbf16>
    %100 = vector.shape_cast %96 : vector<16x32xbf16> to vector<1x16x32xbf16>
    %101 = tpu.concatenate %97, %98, %99, %100 in 0 : vector<1x16x32xbf16>, vector<1x16x32xbf16>, vector<1x16x32xbf16>, vector<1x16x32xbf16> -> vector<4x16x32xbf16>
    %102 = vector.extract_strided_slice %77 {offsets = [0, 256], sizes = [16, 128], strides = [1, 1]} : vector<16x384xf32> to vector<16x128xf32>
    %103 = arith.truncf %102 : vector<16x128xf32> to vector<16x128xbf16>
    %104 = vector.extract_strided_slice %103 {offsets = [0, 0], sizes = [16, 32], strides = [1, 1]} : vector<16x128xbf16> to vector<16x32xbf16>
    %105 = vector.extract_strided_slice %103 {offsets = [0, 32], sizes = [16, 32], strides = [1, 1]} : vector<16x128xbf16> to vector<16x32xbf16>
    %106 = vector.extract_strided_slice %103 {offsets = [0, 64], sizes = [16, 32], strides = [1, 1]} : vector<16x128xbf16> to vector<16x32xbf16>
    %107 = vector.extract_strided_slice %103 {offsets = [0, 96], sizes = [16, 32], strides = [1, 1]} : vector<16x128xbf16> to vector<16x32xbf16>
    %108 = vector.shape_cast %104 : vector<16x32xbf16> to vector<1x16x32xbf16>
    %109 = vector.shape_cast %105 : vector<16x32xbf16> to vector<1x16x32xbf16>
    %110 = vector.shape_cast %106 : vector<16x32xbf16> to vector<1x16x32xbf16>
    %111 = vector.shape_cast %107 : vector<16x32xbf16> to vector<1x16x32xbf16>
    %112 = tpu.concatenate %108, %109, %110, %111 in 0 : vector<1x16x32xbf16>, vector<1x16x32xbf16>, vector<1x16x32xbf16>, vector<1x16x32xbf16> -> vector<4x16x32xbf16>
    %cst_29 = arith.constant 0xFF800000 : f32
    %113 = vector.broadcast %cst_29 : f32 to vector<4x16x1xf32>
    %cst_30 = arith.constant 0.000000e+00 : f32
    %114 = vector.broadcast %cst_30 : f32 to vector<4x16x1xf32>
    %cst_31 = arith.constant 0.000000e+00 : f32
    %115 = vector.broadcast %cst_31 : f32 to vector<4x16x32xf32>
    "tpu.trace_start"() <{level = 10 : i32, message = "htd,hsd->hts"}> : () -> ()
    %cst_32 = arith.constant dense<0.000000e+00> : vector<4x16x16xf32>
    %116 = tpu.matmul %90, %101, %cst_32 {dimension_numbers = #tpu.dot_dimension_numbers<[2], [2], [1], [1], [0, 0, 0, 1, 1, 1], [0], [0]>} : vector<4x16x32xbf16>, vector<4x16x32xbf16>, vector<4x16x16xf32> -> vector<4x16x16xf32>
    "tpu.trace_stop"() : () -> ()
    %cst_33 = arith.constant dense<0xFF800000> : vector<4x16xf32>
    %117 = vector.multi_reduction <maximumf>, %116, %cst_33 [2] : vector<4x16x16xf32> to vector<4x16xf32>
    %118 = vector.shape_cast %117 : vector<4x16xf32> to vector<4x16x1xf32>
    %119 = arith.maximumf %113, %118 : vector<4x16x1xf32>
    %120 = arith.subf %113, %119 : vector<4x16x1xf32>
    %121 = math.exp %120 : vector<4x16x1xf32>
    %122 = vector.broadcast %119 : vector<4x16x1xf32> to vector<4x16x16xf32>
    %123 = arith.subf %116, %122 : vector<4x16x16xf32>
    %124 = math.exp %123 : vector<4x16x16xf32>
    %125 = arith.mulf %121, %114 : vector<4x16x1xf32>
    %cst_34 = arith.constant dense<0.000000e+00> : vector<4x16xf32>
    %126 = vector.multi_reduction <add>, %124, %cst_34 [2] : vector<4x16x16xf32> to vector<4x16xf32>
    %127 = vector.shape_cast %126 : vector<4x16xf32> to vector<4x16x1xf32>
    %128 = arith.addf %125, %127 : vector<4x16x1xf32>
    %129 = vector.broadcast %121 : vector<4x16x1xf32> to vector<4x16x32xf32>
    %130 = arith.mulf %129, %115 : vector<4x16x32xf32>
    %131 = arith.truncf %124 : vector<4x16x16xf32> to vector<4x16x16xbf16>
    "tpu.trace_start"() <{level = 10 : i32, message = "hts,hsd->htd"}> : () -> ()
    %cst_35 = arith.constant dense<0.000000e+00> : vector<4x16x32xf32>
    %132 = tpu.matmul %131, %112, %cst_35 {dimension_numbers = #tpu.dot_dimension_numbers<[2], [1], [1], [2], [0, 0, 0, 1, 1, 2], [0], [0]>} : vector<4x16x16xbf16>, vector<4x16x32xbf16>, vector<4x16x32xf32> -> vector<4x16x32xf32>
    "tpu.trace_stop"() : () -> ()
    %133 = arith.addf %130, %132 : vector<4x16x32xf32>
    %134 = tpu.reciprocal %128 {approx = true} : vector<4x16x1xf32> -> vector<4x16x1xf32>
    %135 = vector.broadcast %134 : vector<4x16x1xf32> to vector<4x16x32xf32>
    %136 = arith.mulf %133, %135 : vector<4x16x32xf32>
    %137 = vector.extract_strided_slice %136 {offsets = [0, 0, 0], sizes = [1, 16, 32], strides = [1, 1, 1]} : vector<4x16x32xf32> to vector<1x16x32xf32>
    %138 = vector.shape_cast %137 : vector<1x16x32xf32> to vector<16x32xf32>
    %139 = vector.extract_strided_slice %136 {offsets = [1, 0, 0], sizes = [1, 16, 32], strides = [1, 1, 1]} : vector<4x16x32xf32> to vector<1x16x32xf32>
    %140 = vector.shape_cast %139 : vector<1x16x32xf32> to vector<16x32xf32>
    %141 = vector.extract_strided_slice %136 {offsets = [2, 0, 0], sizes = [1, 16, 32], strides = [1, 1, 1]} : vector<4x16x32xf32> to vector<1x16x32xf32>
    %142 = vector.shape_cast %141 : vector<1x16x32xf32> to vector<16x32xf32>
    %143 = vector.extract_strided_slice %136 {offsets = [3, 0, 0], sizes = [1, 16, 32], strides = [1, 1, 1]} : vector<4x16x32xf32> to vector<1x16x32xf32>
    %144 = vector.shape_cast %143 : vector<1x16x32xf32> to vector<16x32xf32>
    %145 = tpu.concatenate %138, %140, %142, %144 in 1 : vector<16x32xf32>, vector<16x32xf32>, vector<16x32xf32>, vector<16x32xf32> -> vector<16x128xf32>
    %146 = arith.truncf %145 : vector<16x128xf32> to vector<16x128xbf16>
    %c0_36 = arith.constant 0 : index
    %c0_37 = arith.constant 0 : index
    %147 = vector.load %arg8[%c0_36, %c0_37] : memref<128x128xbf16, #tpu.memory_space<vmem>>, vector<128x128xbf16>
    %cst_38 = arith.constant dense<0.000000e+00> : vector<16x128xf32>
    %148 = tpu.matmul %146, %147, %cst_38 {dimension_numbers = #tpu.dot_dimension_numbers<[1], [0], [0], [1], [0, 0, 1, 1], [], []>} : vector<16x128xbf16>, vector<128x128xbf16>, vector<16x128xf32> -> vector<16x128xf32>
    %149 = arith.addf %47, %148 : vector<16x128xf32>
    %150 = vector.extract_strided_slice %2 {offsets = [5, 0], sizes = [1, 128], strides = [1, 1]} : vector<24x128xf32> to vector<1x128xf32>
    %151 = vector.broadcast %150 : vector<1x128xf32> to vector<16x128xf32>
    %152 = arith.addf %149, %151 : vector<16x128xf32>
    %153 = vector.extract_strided_slice %2 {offsets = [6, 0], sizes = [1, 128], strides = [1, 1]} : vector<24x128xf32> to vector<1x128xf32>
    %154 = vector.extract_strided_slice %2 {offsets = [7, 0], sizes = [1, 128], strides = [1, 1]} : vector<24x128xf32> to vector<1x128xf32>
    %cst_39 = arith.constant dense<0.000000e+00> : vector<16xf32>
    %155 = vector.multi_reduction <add>, %152, %cst_39 [1] : vector<16x128xf32> to vector<16xf32>
    %156 = vector.shape_cast %155 : vector<16xf32> to vector<16x1xf32>
    %cst_40 = arith.constant 1.280000e+02 : f32
    %157 = vector.broadcast %cst_40 : f32 to vector<16x1xf32>
    %158 = arith.divf %156, %157 : vector<16x1xf32>
    %159 = vector.broadcast %158 : vector<16x1xf32> to vector<16x128xf32>
    %160 = arith.subf %152, %159 : vector<16x128xf32>
    %161 = arith.mulf %160, %160 : vector<16x128xf32>
    %cst_41 = arith.constant dense<0.000000e+00> : vector<16xf32>
    %162 = vector.multi_reduction <add>, %161, %cst_41 [1] : vector<16x128xf32> to vector<16xf32>
    %163 = vector.shape_cast %162 : vector<16xf32> to vector<16x1xf32>
    %cst_42 = arith.constant 1.280000e+02 : f32
    %164 = vector.broadcast %cst_42 : f32 to vector<16x1xf32>
    %165 = arith.divf %163, %164 : vector<16x1xf32>
    %166 = vector.broadcast %158 : vector<16x1xf32> to vector<16x128xf32>
    %167 = arith.subf %152, %166 : vector<16x128xf32>
    %cst_43 = arith.constant 9.99999974E-6 : f32
    %168 = vector.broadcast %cst_43 : f32 to vector<16x1xf32>
    %169 = arith.addf %165, %168 : vector<16x1xf32>
    %170 = math.rsqrt %169 : vector<16x1xf32>
    %171 = vector.broadcast %170 : vector<16x1xf32> to vector<16x128xf32>
    %172 = arith.mulf %167, %171 : vector<16x128xf32>
    %173 = vector.broadcast %153 : vector<1x128xf32> to vector<16x128xf32>
    %174 = arith.mulf %172, %173 : vector<16x128xf32>
    %175 = vector.broadcast %154 : vector<1x128xf32> to vector<16x128xf32>
    %176 = arith.addf %174, %175 : vector<16x128xf32>
    %177 = arith.truncf %176 : vector<16x128xf32> to vector<16x128xbf16>
    %c0_44 = arith.constant 0 : index
    %c0_45 = arith.constant 0 : index
    %178 = vector.load %arg9[%c0_44, %c0_45] : memref<128x256xbf16, #tpu.memory_space<vmem>>, vector<128x256xbf16>
    %cst_46 = arith.constant dense<0.000000e+00> : vector<16x256xf32>
    %179 = tpu.matmul %177, %178, %cst_46 {dimension_numbers = #tpu.dot_dimension_numbers<[1], [0], [0], [1], [0, 0, 1, 1], [], []>} : vector<16x128xbf16>, vector<128x256xbf16>, vector<16x256xf32> -> vector<16x256xf32>
    %c0_47 = arith.constant 0 : index
    %c0_48 = arith.constant 0 : index
    %180 = vector.load %arg10[%c0_47, %c0_48] : memref<1x256xf32, #tpu.memory_space<vmem>>, vector<1x256xf32>
    %181 = vector.broadcast %180 : vector<1x256xf32> to vector<16x256xf32>
    %182 = arith.addf %179, %181 : vector<16x256xf32>
    %183 = vector.extract_strided_slice %182 {offsets = [0, 0], sizes = [16, 128], strides = [1, 1]} : vector<16x256xf32> to vector<16x128xf32>
    %184 = vector.extract_strided_slice %182 {offsets = [0, 128], sizes = [16, 128], strides = [1, 1]} : vector<16x256xf32> to vector<16x128xf32>
    %185 = arith.negf %184 : vector<16x128xf32>
    %186 = math.exp %185 : vector<16x128xf32>
    %cst_49 = arith.constant 1.000000e+00 : f32
    %187 = vector.broadcast %cst_49 : f32 to vector<16x128xf32>
    %188 = arith.addf %187, %186 : vector<16x128xf32>
    %189 = arith.divf %187, %188 : vector<16x128xf32>
    %190 = arith.mulf %183, %189 : vector<16x128xf32>
    %191 = tpu.iota {dimensions = array<i32: 0>} : vector<16x128xi32>
    %cst_50 = arith.constant 0.000000e+00 : f32
    %192 = vector.broadcast %cst_50 : f32 to vector<16x128xf32>
    %c3_i32 = arith.constant 3 : i32
    %193 = tpu.dynamic_rotate %190 by %c3_i32 dim 0 : vector<16x128xf32>, i32 -> vector<16x128xf32>
    %c3_i32_51 = arith.constant 3 : i32
    %194 = vector.broadcast %c3_i32_51 : i32 to vector<16x128xi32>
    %195 = arith.cmpi sge, %191, %194 : vector<16x128xi32>
    %c19_i32 = arith.constant 19 : i32
    %196 = vector.broadcast %c19_i32 : i32 to vector<16x128xi32>
    %197 = arith.cmpi slt, %191, %196 : vector<16x128xi32>
    %198 = arith.andi %195, %197 : vector<16x128xi1>
    %cst_52 = arith.constant 0.000000e+00 : f32
    %199 = vector.broadcast %cst_52 : f32 to vector<16x128xf32>
    %200 = arith.select %198, %193, %199 : vector<16x128xi1>, vector<16x128xf32>
    %201 = vector.extract_strided_slice %2 {offsets = [17, 0], sizes = [1, 128], strides = [1, 1]} : vector<24x128xf32> to vector<1x128xf32>
    %202 = vector.broadcast %201 : vector<1x128xf32> to vector<16x128xf32>
    %203 = arith.mulf %200, %202 : vector<16x128xf32>
    %204 = arith.addf %192, %203 : vector<16x128xf32>
    %c2_i32 = arith.constant 2 : i32
    %205 = tpu.dynamic_rotate %190 by %c2_i32 dim 0 : vector<16x128xf32>, i32 -> vector<16x128xf32>
    %c2_i32_53 = arith.constant 2 : i32
    %206 = vector.broadcast %c2_i32_53 : i32 to vector<16x128xi32>
    %207 = arith.cmpi sge, %191, %206 : vector<16x128xi32>
    %c18_i32 = arith.constant 18 : i32
    %208 = vector.broadcast %c18_i32 : i32 to vector<16x128xi32>
    %209 = arith.cmpi slt, %191, %208 : vector<16x128xi32>
    %210 = arith.andi %207, %209 : vector<16x128xi1>
    %cst_54 = arith.constant 0.000000e+00 : f32
    %211 = vector.broadcast %cst_54 : f32 to vector<16x128xf32>
    %212 = arith.select %210, %205, %211 : vector<16x128xi1>, vector<16x128xf32>
    %213 = vector.extract_strided_slice %2 {offsets = [18, 0], sizes = [1, 128], strides = [1, 1]} : vector<24x128xf32> to vector<1x128xf32>
    %214 = vector.broadcast %213 : vector<1x128xf32> to vector<16x128xf32>
    %215 = arith.mulf %212, %214 : vector<16x128xf32>
    %216 = arith.addf %204, %215 : vector<16x128xf32>
    %c1_i32 = arith.constant 1 : i32
    %217 = tpu.dynamic_rotate %190 by %c1_i32 dim 0 : vector<16x128xf32>, i32 -> vector<16x128xf32>
    %c1_i32_55 = arith.constant 1 : i32
    %218 = vector.broadcast %c1_i32_55 : i32 to vector<16x128xi32>
    %219 = arith.cmpi sge, %191, %218 : vector<16x128xi32>
    %c17_i32 = arith.constant 17 : i32
    %220 = vector.broadcast %c17_i32 : i32 to vector<16x128xi32>
    %221 = arith.cmpi slt, %191, %220 : vector<16x128xi32>
    %222 = arith.andi %219, %221 : vector<16x128xi1>
    %cst_56 = arith.constant 0.000000e+00 : f32
    %223 = vector.broadcast %cst_56 : f32 to vector<16x128xf32>
    %224 = arith.select %222, %217, %223 : vector<16x128xi1>, vector<16x128xf32>
    %225 = vector.extract_strided_slice %2 {offsets = [19, 0], sizes = [1, 128], strides = [1, 1]} : vector<24x128xf32> to vector<1x128xf32>
    %226 = vector.broadcast %225 : vector<1x128xf32> to vector<16x128xf32>
    %227 = arith.mulf %224, %226 : vector<16x128xf32>
    %228 = arith.addf %216, %227 : vector<16x128xf32>
    %c0_i32 = arith.constant 0 : i32
    %229 = vector.broadcast %c0_i32 : i32 to vector<16x128xi32>
    %230 = arith.cmpi sge, %191, %229 : vector<16x128xi32>
    %c16_i32 = arith.constant 16 : i32
    %231 = vector.broadcast %c16_i32 : i32 to vector<16x128xi32>
    %232 = arith.cmpi slt, %191, %231 : vector<16x128xi32>
    %233 = arith.andi %230, %232 : vector<16x128xi1>
    %cst_57 = arith.constant 0.000000e+00 : f32
    %234 = vector.broadcast %cst_57 : f32 to vector<16x128xf32>
    %235 = arith.select %233, %190, %234 : vector<16x128xi1>, vector<16x128xf32>
    %236 = vector.extract_strided_slice %2 {offsets = [20, 0], sizes = [1, 128], strides = [1, 1]} : vector<24x128xf32> to vector<1x128xf32>
    %237 = vector.broadcast %236 : vector<1x128xf32> to vector<16x128xf32>
    %238 = arith.mulf %235, %237 : vector<16x128xf32>
    %239 = arith.addf %228, %238 : vector<16x128xf32>
    %c15_i32 = arith.constant 15 : i32
    %240 = tpu.dynamic_rotate %190 by %c15_i32 dim 0 : vector<16x128xf32>, i32 -> vector<16x128xf32>
    %c-1_i32 = arith.constant -1 : i32
    %241 = vector.broadcast %c-1_i32 : i32 to vector<16x128xi32>
    %242 = arith.cmpi sge, %191, %241 : vector<16x128xi32>
    %c15_i32_58 = arith.constant 15 : i32
    %243 = vector.broadcast %c15_i32_58 : i32 to vector<16x128xi32>
    %244 = arith.cmpi slt, %191, %243 : vector<16x128xi32>
    %245 = arith.andi %242, %244 : vector<16x128xi1>
    %cst_59 = arith.constant 0.000000e+00 : f32
    %246 = vector.broadcast %cst_59 : f32 to vector<16x128xf32>
    %247 = arith.select %245, %240, %246 : vector<16x128xi1>, vector<16x128xf32>
    %248 = vector.extract_strided_slice %2 {offsets = [21, 0], sizes = [1, 128], strides = [1, 1]} : vector<24x128xf32> to vector<1x128xf32>
    %249 = vector.broadcast %248 : vector<1x128xf32> to vector<16x128xf32>
    %250 = arith.mulf %247, %249 : vector<16x128xf32>
    %251 = arith.addf %239, %250 : vector<16x128xf32>
    %c14_i32 = arith.constant 14 : i32
    %252 = tpu.dynamic_rotate %190 by %c14_i32 dim 0 : vector<16x128xf32>, i32 -> vector<16x128xf32>
    %c-2_i32 = arith.constant -2 : i32
    %253 = vector.broadcast %c-2_i32 : i32 to vector<16x128xi32>
    %254 = arith.cmpi sge, %191, %253 : vector<16x128xi32>
    %c14_i32_60 = arith.constant 14 : i32
    %255 = vector.broadcast %c14_i32_60 : i32 to vector<16x128xi32>
    %256 = arith.cmpi slt, %191, %255 : vector<16x128xi32>
    %257 = arith.andi %254, %256 : vector<16x128xi1>
    %cst_61 = arith.constant 0.000000e+00 : f32
    %258 = vector.broadcast %cst_61 : f32 to vector<16x128xf32>
    %259 = arith.select %257, %252, %258 : vector<16x128xi1>, vector<16x128xf32>
    %260 = vector.extract_strided_slice %2 {offsets = [22, 0], sizes = [1, 128], strides = [1, 1]} : vector<24x128xf32> to vector<1x128xf32>
    %261 = vector.broadcast %260 : vector<1x128xf32> to vector<16x128xf32>
    %262 = arith.mulf %259, %261 : vector<16x128xf32>
    %263 = arith.addf %251, %262 : vector<16x128xf32>
    %c13_i32 = arith.constant 13 : i32
    %264 = tpu.dynamic_rotate %190 by %c13_i32 dim 0 : vector<16x128xf32>, i32 -> vector<16x128xf32>
    %c-3_i32 = arith.constant -3 : i32
    %265 = vector.broadcast %c-3_i32 : i32 to vector<16x128xi32>
    %266 = arith.cmpi sge, %191, %265 : vector<16x128xi32>
    %c13_i32_62 = arith.constant 13 : i32
    %267 = vector.broadcast %c13_i32_62 : i32 to vector<16x128xi32>
    %268 = arith.cmpi slt, %191, %267 : vector<16x128xi32>
    %269 = arith.andi %266, %268 : vector<16x128xi1>
    %cst_63 = arith.constant 0.000000e+00 : f32
    %270 = vector.broadcast %cst_63 : f32 to vector<16x128xf32>
    %271 = arith.select %269, %264, %270 : vector<16x128xi1>, vector<16x128xf32>
    %272 = vector.extract_strided_slice %2 {offsets = [23, 0], sizes = [1, 128], strides = [1, 1]} : vector<24x128xf32> to vector<1x128xf32>
    %273 = vector.broadcast %272 : vector<1x128xf32> to vector<16x128xf32>
    %274 = arith.mulf %271, %273 : vector<16x128xf32>
    %275 = arith.addf %263, %274 : vector<16x128xf32>
    %276 = vector.extract_strided_slice %2 {offsets = [8, 0], sizes = [1, 128], strides = [1, 1]} : vector<24x128xf32> to vector<1x128xf32>
    %277 = vector.broadcast %276 : vector<1x128xf32> to vector<16x128xf32>
    %278 = arith.addf %275, %277 : vector<16x128xf32>
    %279 = vector.extract_strided_slice %2 {offsets = [9, 0], sizes = [1, 128], strides = [1, 1]} : vector<24x128xf32> to vector<1x128xf32>
    %280 = vector.broadcast %279 : vector<1x128xf32> to vector<16x128xf32>
    %281 = arith.mulf %278, %280 : vector<16x128xf32>
    %282 = vector.extract_strided_slice %2 {offsets = [10, 0], sizes = [1, 128], strides = [1, 1]} : vector<24x128xf32> to vector<1x128xf32>
    %283 = vector.broadcast %282 : vector<1x128xf32> to vector<16x128xf32>
    %284 = arith.addf %281, %283 : vector<16x128xf32>
    %285 = arith.negf %284 : vector<16x128xf32>
    %286 = math.exp %285 : vector<16x128xf32>
    %cst_64 = arith.constant 1.000000e+00 : f32
    %287 = vector.broadcast %cst_64 : f32 to vector<16x128xf32>
    %288 = arith.addf %287, %286 : vector<16x128xf32>
    %289 = arith.divf %287, %288 : vector<16x128xf32>
    %290 = arith.mulf %284, %289 : vector<16x128xf32>
    %291 = arith.truncf %290 : vector<16x128xf32> to vector<16x128xbf16>
    %c0_65 = arith.constant 0 : index
    %c0_66 = arith.constant 0 : index
    %292 = vector.load %arg11[%c0_65, %c0_66] : memref<128x128xbf16, #tpu.memory_space<vmem>>, vector<128x128xbf16>
    %cst_67 = arith.constant dense<0.000000e+00> : vector<16x128xf32>
    %293 = tpu.matmul %291, %292, %cst_67 {dimension_numbers = #tpu.dot_dimension_numbers<[1], [0], [0], [1], [0, 0, 1, 1], [], []>} : vector<16x128xbf16>, vector<128x128xbf16>, vector<16x128xf32> -> vector<16x128xf32>
    %294 = vector.extract_strided_slice %2 {offsets = [11, 0], sizes = [1, 128], strides = [1, 1]} : vector<24x128xf32> to vector<1x128xf32>
    %295 = vector.broadcast %294 : vector<1x128xf32> to vector<16x128xf32>
    %296 = arith.addf %293, %295 : vector<16x128xf32>
    %297 = arith.addf %152, %296 : vector<16x128xf32>
    %298 = vector.extract_strided_slice %2 {offsets = [12, 0], sizes = [1, 128], strides = [1, 1]} : vector<24x128xf32> to vector<1x128xf32>
    %299 = vector.extract_strided_slice %2 {offsets = [13, 0], sizes = [1, 128], strides = [1, 1]} : vector<24x128xf32> to vector<1x128xf32>
    %cst_68 = arith.constant dense<0.000000e+00> : vector<16xf32>
    %300 = vector.multi_reduction <add>, %297, %cst_68 [1] : vector<16x128xf32> to vector<16xf32>
    %301 = vector.shape_cast %300 : vector<16xf32> to vector<16x1xf32>
    %cst_69 = arith.constant 1.280000e+02 : f32
    %302 = vector.broadcast %cst_69 : f32 to vector<16x1xf32>
    %303 = arith.divf %301, %302 : vector<16x1xf32>
    %304 = vector.broadcast %303 : vector<16x1xf32> to vector<16x128xf32>
    %305 = arith.subf %297, %304 : vector<16x128xf32>
    %306 = arith.mulf %305, %305 : vector<16x128xf32>
    %cst_70 = arith.constant dense<0.000000e+00> : vector<16xf32>
    %307 = vector.multi_reduction <add>, %306, %cst_70 [1] : vector<16x128xf32> to vector<16xf32>
    %308 = vector.shape_cast %307 : vector<16xf32> to vector<16x1xf32>
    %cst_71 = arith.constant 1.280000e+02 : f32
    %309 = vector.broadcast %cst_71 : f32 to vector<16x1xf32>
    %310 = arith.divf %308, %309 : vector<16x1xf32>
    %311 = vector.broadcast %303 : vector<16x1xf32> to vector<16x128xf32>
    %312 = arith.subf %297, %311 : vector<16x128xf32>
    %cst_72 = arith.constant 9.99999974E-6 : f32
    %313 = vector.broadcast %cst_72 : f32 to vector<16x1xf32>
    %314 = arith.addf %310, %313 : vector<16x1xf32>
    %315 = math.rsqrt %314 : vector<16x1xf32>
    %316 = vector.broadcast %315 : vector<16x1xf32> to vector<16x128xf32>
    %317 = arith.mulf %312, %316 : vector<16x128xf32>
    %318 = vector.broadcast %298 : vector<1x128xf32> to vector<16x128xf32>
    %319 = arith.mulf %317, %318 : vector<16x128xf32>
    %320 = vector.broadcast %299 : vector<1x128xf32> to vector<16x128xf32>
    %321 = arith.addf %319, %320 : vector<16x128xf32>
    %322 = arith.truncf %321 : vector<16x128xf32> to vector<16x128xbf16>
    %c0_73 = arith.constant 0 : index
    %c0_74 = arith.constant 0 : index
    %323 = vector.load %arg12[%c0_73, %c0_74] : memref<128x512xbf16, #tpu.memory_space<vmem>>, vector<128x512xbf16>
    %cst_75 = arith.constant dense<0.000000e+00> : vector<16x512xf32>
    %324 = tpu.matmul %322, %323, %cst_75 {dimension_numbers = #tpu.dot_dimension_numbers<[1], [0], [0], [1], [0, 0, 1, 1], [], []>} : vector<16x128xbf16>, vector<128x512xbf16>, vector<16x512xf32> -> vector<16x512xf32>
    %c0_76 = arith.constant 0 : index
    %c0_77 = arith.constant 0 : index
    %325 = vector.load %arg13[%c0_76, %c0_77] : memref<1x512xf32, #tpu.memory_space<vmem>>, vector<1x512xf32>
    %326 = vector.broadcast %325 : vector<1x512xf32> to vector<16x512xf32>
    %327 = arith.addf %324, %326 : vector<16x512xf32>
    %328 = arith.negf %327 : vector<16x512xf32>
    %329 = math.exp %328 : vector<16x512xf32>
    %cst_78 = arith.constant 1.000000e+00 : f32
    %330 = vector.broadcast %cst_78 : f32 to vector<16x512xf32>
    %331 = arith.addf %330, %329 : vector<16x512xf32>
    %332 = arith.divf %330, %331 : vector<16x512xf32>
    %333 = arith.mulf %327, %332 : vector<16x512xf32>
    %334 = arith.truncf %333 : vector<16x512xf32> to vector<16x512xbf16>
    %c0_79 = arith.constant 0 : index
    %c0_80 = arith.constant 0 : index
    %335 = vector.load %arg14[%c0_79, %c0_80] : memref<512x128xbf16, #tpu.memory_space<vmem>>, vector<512x128xbf16>
    %cst_81 = arith.constant dense<0.000000e+00> : vector<16x128xf32>
    %336 = tpu.matmul %334, %335, %cst_81 {dimension_numbers = #tpu.dot_dimension_numbers<[1], [0], [0], [1], [0, 0, 1, 1], [], []>} : vector<16x512xbf16>, vector<512x128xbf16>, vector<16x128xf32> -> vector<16x128xf32>
    %337 = vector.extract_strided_slice %2 {offsets = [14, 0], sizes = [1, 128], strides = [1, 1]} : vector<24x128xf32> to vector<1x128xf32>
    %338 = vector.broadcast %337 : vector<1x128xf32> to vector<16x128xf32>
    %339 = arith.addf %336, %338 : vector<16x128xf32>
    %cst_82 = arith.constant 5.000000e-01 : f32
    %340 = vector.broadcast %cst_82 : f32 to vector<16x128xf32>
    %341 = arith.mulf %340, %339 : vector<16x128xf32>
    %342 = arith.addf %297, %341 : vector<16x128xf32>
    %343 = vector.extract_strided_slice %2 {offsets = [15, 0], sizes = [1, 128], strides = [1, 1]} : vector<24x128xf32> to vector<1x128xf32>
    %344 = vector.extract_strided_slice %2 {offsets = [16, 0], sizes = [1, 128], strides = [1, 1]} : vector<24x128xf32> to vector<1x128xf32>
    %cst_83 = arith.constant dense<0.000000e+00> : vector<16xf32>
    %345 = vector.multi_reduction <add>, %342, %cst_83 [1] : vector<16x128xf32> to vector<16xf32>
    %346 = vector.shape_cast %345 : vector<16xf32> to vector<16x1xf32>
    %cst_84 = arith.constant 1.280000e+02 : f32
    %347 = vector.broadcast %cst_84 : f32 to vector<16x1xf32>
    %348 = arith.divf %346, %347 : vector<16x1xf32>
    %349 = vector.broadcast %348 : vector<16x1xf32> to vector<16x128xf32>
    %350 = arith.subf %342, %349 : vector<16x128xf32>
    %351 = arith.mulf %350, %350 : vector<16x128xf32>
    %cst_85 = arith.constant dense<0.000000e+00> : vector<16xf32>
    %352 = vector.multi_reduction <add>, %351, %cst_85 [1] : vector<16x128xf32> to vector<16xf32>
    %353 = vector.shape_cast %352 : vector<16xf32> to vector<16x1xf32>
    %cst_86 = arith.constant 1.280000e+02 : f32
    %354 = vector.broadcast %cst_86 : f32 to vector<16x1xf32>
    %355 = arith.divf %353, %354 : vector<16x1xf32>
    %356 = vector.broadcast %348 : vector<16x1xf32> to vector<16x128xf32>
    %357 = arith.subf %342, %356 : vector<16x128xf32>
    %cst_87 = arith.constant 9.99999974E-6 : f32
    %358 = vector.broadcast %cst_87 : f32 to vector<16x1xf32>
    %359 = arith.addf %355, %358 : vector<16x1xf32>
    %360 = math.rsqrt %359 : vector<16x1xf32>
    %361 = vector.broadcast %360 : vector<16x1xf32> to vector<16x128xf32>
    %362 = arith.mulf %357, %361 : vector<16x128xf32>
    %363 = vector.broadcast %343 : vector<1x128xf32> to vector<16x128xf32>
    %364 = arith.mulf %362, %363 : vector<16x128xf32>
    %365 = vector.broadcast %344 : vector<1x128xf32> to vector<16x128xf32>
    %366 = arith.addf %364, %365 : vector<16x128xf32>
    %c0_88 = arith.constant 0 : index
    %c0_89 = arith.constant 0 : index
    %c0_90 = arith.constant 0 : index
    %367 = vector.load %arg15[%c0_88, %c0_89, %c0_90] : memref<1x16x128xf32, #tpu.memory_space<vmem>>, vector<1x16x128xf32>
    %368 = vector.shape_cast %367 : vector<1x16x128xf32> to vector<16x128xf32>
    %369 = vector.shape_cast %366 : vector<16x128xf32> to vector<1x16x128xf32>
    tpu.vector_store %arg15[%c0_88, %c0_89, %c0_90], %369 {strides = array<i32>} : memref<1x16x128xf32, #tpu.memory_space<vmem>>, vector<1x16x128xf32>,
    return
  }
  func.func @transform_0(%arg0: i32) -> (i32, i32, i32) {
    %c0_i32 = arith.constant 0 : i32
    %c0_i32_0 = arith.constant 0 : i32
    %c0_i32_1 = arith.constant 0 : i32
    return %arg0, %c0_i32, %c0_i32_0 : i32, i32, i32
  }
  func.func @transform_1(%arg0: i32) -> (i32, i32) {
    %c0_i32 = arith.constant 0 : i32
    %c0_i32_0 = arith.constant 0 : i32
    %c0_i32_1 = arith.constant 0 : i32
    return %c0_i32, %c0_i32_0 : i32, i32
  }
  func.func @transform_2(%arg0: i32) -> (i32, i32) {
    %c0_i32 = arith.constant 0 : i32
    %c0_i32_0 = arith.constant 0 : i32
    %c0_i32_1 = arith.constant 0 : i32
    return %c0_i32, %c0_i32_0 : i32, i32
  }
  func.func @transform_3(%arg0: i32) -> (i32, i32) {
    %c0_i32 = arith.constant 0 : i32
    %c0_i32_0 = arith.constant 0 : i32
    %c0_i32_1 = arith.constant 0 : i32
    return %c0_i32, %c0_i32_0 : i32, i32
  }
  func.func @transform_4(%arg0: i32) -> (i32, i32) {
    %c0_i32 = arith.constant 0 : i32
    %c0_i32_0 = arith.constant 0 : i32
    %c0_i32_1 = arith.constant 0 : i32
    return %c0_i32, %c0_i32_0 : i32, i32
  }
  func.func @transform_5(%arg0: i32) -> (i32, i32) {
    %c0_i32 = arith.constant 0 : i32
    %c0_i32_0 = arith.constant 0 : i32
    %c0_i32_1 = arith.constant 0 : i32
    return %c0_i32, %c0_i32_0 : i32, i32
  }
  func.func @transform_6(%arg0: i32) -> (i32, i32) {
    %c0_i32 = arith.constant 0 : i32
    %c0_i32_0 = arith.constant 0 : i32
    %c0_i32_1 = arith.constant 0 : i32
    return %c0_i32, %c0_i32_0 : i32, i32
  }
  func.func @transform_7(%arg0: i32) -> (i32, i32) {
    %c0_i32 = arith.constant 0 : i32
    %c0_i32_0 = arith.constant 0 : i32
    %c0_i32_1 = arith.constant 0 : i32
    return %c0_i32, %c0_i32_0 : i32, i32
  }
  func.func @transform_8(%arg0: i32) -> (i32, i32) {
    %c0_i32 = arith.constant 0 : i32
    %c0_i32_0 = arith.constant 0 : i32
    %c0_i32_1 = arith.constant 0 : i32
    return %c0_i32, %c0_i32_0 : i32, i32
  }
  func.func @transform_9(%arg0: i32) -> (i32, i32) {
    %c0_i32 = arith.constant 0 : i32
    %c0_i32_0 = arith.constant 0 : i32
    %c0_i32_1 = arith.constant 0 : i32
    return %c0_i32, %c0_i32_0 : i32, i32
  }
  func.func @transform_10(%arg0: i32) -> (i32, i32) {
    %c0_i32 = arith.constant 0 : i32
    %c0_i32_0 = arith.constant 0 : i32
    %c0_i32_1 = arith.constant 0 : i32
    return %c0_i32, %c0_i32_0 : i32, i32
  }
  func.func @transform_11(%arg0: i32) -> (i32, i32) {
    %c0_i32 = arith.constant 0 : i32
    %c0_i32_0 = arith.constant 0 : i32
    %c0_i32_1 = arith.constant 0 : i32
    return %c0_i32, %c0_i32_0 : i32, i32
  }
  func.func @transform_12(%arg0: i32) -> (i32, i32) {
    %c0_i32 = arith.constant 0 : i32
    %c0_i32_0 = arith.constant 0 : i32
    %c0_i32_1 = arith.constant 0 : i32
    return %c0_i32, %c0_i32_0 : i32, i32
  }
  func.func @transform_13(%arg0: i32) -> (i32, i32) {
    %c0_i32 = arith.constant 0 : i32
    %c0_i32_0 = arith.constant 0 : i32
    %c0_i32_1 = arith.constant 0 : i32
    return %c0_i32, %c0_i32_0 : i32, i32
  }
  func.func @transform_14(%arg0: i32) -> (i32, i32, i32) {
    %c0_i32 = arith.constant 0 : i32
    %c0_i32_0 = arith.constant 0 : i32
    %c0_i32_1 = arith.constant 0 : i32
    return %arg0, %c0_i32, %c0_i32_0 : i32, i32, i32
  }
}

</mosaic_0001>

<llo_original>
// kernel: tpu_custom_call.1
$region0: #{tpu_custom_call.1}
  #allocation0 [shape = 'u32[]', space=smem, size = 0x4, offset = 0x4, fixed_abs, tag = 'smem constant byte address 0x4 - core index']
  #allocation1 [shape = 'u32[144,128]{1,0:T(1,128)}', space=vmem, size = 0x12000, scoped, tag = 'internal scratch']
  %s0 = inlined_call_operand.hbm [shape: f32[8,128], index: 0, kind: input, shape index: {}]
  %s1 = inlined_call_operand.hbm [shape: f32[8,128], index: 1, kind: output, shape index: {}]
  %s2 = sld [smem:[#allocation0]]
  $region41: #{tpu_custom_call.1} parent=0
    _
  %s4 = ssub.s32 1, %s2
  %s5 = scalar_select 0, %s4, %s2
  $region1: #{tpu_custom_call.1} parent=0
    #allocation2 [shape = 'u8[4096]{0}', space=vmem, size = 0x1000, scoped, tag = 'input window, operand 0, single buffered']
    #allocation3 [shape = 's32[2]{0}', space=sflag, size = 0x8, scoped, tag = 'scoped memory for tpu_custom_call.1']
    #allocation4 [shape = 's32[2]{0}', space=sflag, size = 0x8, scoped, tag = 'scoped memory for tpu_custom_call.1']
    #allocation5 [shape = 'u8[4096]{0}', space=vmem, size = 0x1000, scoped, tag = 'output window, operand 0, single buffered']
    %6 = vsyncpa [#allocation3], 0
    %7 = vsyncpa [#allocation4], 0
    loop: start=0, step=1, limit=4
    $region2: #{tpu_custom_call.1} parent=1 // loop_pre_header
      _
    $region3: #{tpu_custom_call.1} parent=1 // loop_header
      %s9 = sphi 0, %s13
      %p10 = scmp.ge.s32.totalorder %s9, 4
      %s17 = sphi 0, %s17
      %s19 = sphi 0, %s17
      %s20 = sphi 0, %s19
      %s34 = sphi 0, %s20
      %s38 = sphi 0, %s38
      %s40 = sphi 0, %s38
      %s41 = sphi 0, %s40
      %s55 = sphi 0, %s41
    $region4: #{tpu_custom_call.1} parent=1 // loop_header_branch
      %12 = sbr.rel (%p10) target = $region8
    $region5: #{tpu_custom_call.1} parent=1 // loop_body
      %s14 = ssub.s32 %s9, 1
      %s15 = ssub.s32 %s9, 2
      %s16 = sadd.s32 %s9, 1
      %s18 = sadd.s32 %s17, 1
      %p21 = scmp.eq.s32.totalorder %s9, 1
      %p22 = scmp.ne.s32.totalorder %s17, %s19
      %p23 = scmp.eq.s32.totalorder %s9, 0
      %p24 = por %p22, %p23
      %p25 = scmp.ne.s32.totalorder %s17, %s19
      %p26 = scmp.eq.s32.totalorder %s14, 1
      %p27 = por %p25, %p26
      %p28 = scmp.ne.s32.totalorder %s19, %s20
      %p29 = scmp.eq.s32.totalorder %s14, 0
      %p30 = por %p28, %p29
      %p31 = scmp.ne.s32.totalorder %s19, %s20
      %p32 = scmp.eq.s32.totalorder %s15, 1
      %p33 = por %p31, %p32
      %p35 = scmp.ne.s32.totalorder %s20, %s34
      %p36 = scmp.eq.s32.totalorder %s15, 0
      %p37 = por %p35, %p36
      %s39 = sadd.s32 %s38, 1
      %p42 = scmp.eq.s32.totalorder %s9, 1
      %p43 = scmp.ne.s32.totalorder %s38, %s40
      %p44 = scmp.eq.s32.totalorder %s9, 0
      %p45 = por %p43, %p44
      %p46 = scmp.ne.s32.totalorder %s38, %s40
      %p47 = scmp.eq.s32.totalorder %s14, 1
      %p48 = por %p46, %p47
      %p49 = scmp.ne.s32.totalorder %s40, %s41
      %p50 = scmp.eq.s32.totalorder %s14, 0
      %p51 = por %p49, %p50
      %p52 = scmp.ne.s32.totalorder %s40, %s41
      %p53 = scmp.eq.s32.totalorder %s15, 1
      %p54 = por %p52, %p53
      %p56 = scmp.ne.s32.totalorder %s41, %s55
      %p57 = scmp.eq.s32.totalorder %s15, 0
      %p58 = por %p56, %p57
      %p59 = scmp.le.s32.totalorder 1, %s9
      %p60 = scmp.lt.s32.totalorder %s9, 3
      %p61 = pnand %p59, %p60
      %p62 = pneg %p61
      // Predicated region
      $region9: #{tpu_custom_call.1} parent=5 // pred_check
        _
      $region10: #{tpu_custom_call.1} parent=5 // pred_check_branch
        %64 = sbr.rel (%p61) target = $region12
      $region11: #{tpu_custom_call.1} parent=5 // pred_region
        %s65 = ssub.s32 %s9, 1
        // Predicated region
        $region13: #{tpu_custom_call.1} parent=11 // pred_check
          %p66 = pneg %p30
        $region14: #{tpu_custom_call.1} parent=11 // pred_check_branch
          %68 = sbr.rel (%p66) target = $region16
        $region15: #{tpu_custom_call.1} parent=11 // pred_region
          %s70 = ssub.s32 128, 128
          %71 = vsyncadd [#allocation3], %s70
          %s73 = sshll.u32 [#allocation2], 4
          %s74 = int_to_ptr.vmem [resolvable:$true] %s73
          %76 = dma.hbm_to_vmem [thread:$0]  %s0, 128, %s74, [#allocation3]
        $region16: #{tpu_custom_call.1} parent=11 // pred_fallthru
          _
      $region12: #{tpu_custom_call.1} parent=5 // pred_fallthru
        _
      %p77 = scmp.lt.s32.totalorder %s9, 2
      // Predicated region
      $region17: #{tpu_custom_call.1} parent=5 // pred_check
        %p78 = pneg %p77
      $region18: #{tpu_custom_call.1} parent=5 // pred_check_branch
        %80 = sbr.rel (%p78) target = $region20
      $region19: #{tpu_custom_call.1} parent=5 // pred_region
        _
      $region20: #{tpu_custom_call.1} parent=5 // pred_fallthru
        _
      %p81 = scmp.le.s32.totalorder 1, %s9
      %p82 = scmp.lt.s32.totalorder %s9, 3
      %p83 = pnand %p81, %p82
      %p84 = pneg %p83
      // Predicated region
      $region21: #{tpu_custom_call.1} parent=5 // pred_check
        _
      $region22: #{tpu_custom_call.1} parent=5 // pred_check_branch
        %86 = sbr.rel (%p83) target = $region24
      $region23: #{tpu_custom_call.1} parent=5 // pred_region
        %s87 = ssub.s32 %s9, 1
        // Predicated region
        $region25: #{tpu_custom_call.1} parent=23 // pred_check
          %p88 = pneg %p30
        $region26: #{tpu_custom_call.1} parent=23 // pred_check_branch
          %90 = sbr.rel (%p88) target = $region28
        $region27: #{tpu_custom_call.1} parent=23 // pred_region
          %91 = dma.done [#allocation3], 128
        $region28: #{tpu_custom_call.1} parent=23 // pred_fallthru
          _
        %p92 = pneg %p30
        %p93 = pneg %p27
        %p94 = pneg %p51
        %p95 = pneg %p48
        %v96 = vld [vmem:[#allocation2] sm:$0xff]
        %v97 = vadd.f32 %v96, 1.0
        %98 = vst [vmem:[#allocation5] sm:$0xff] %v97
        // Predicated region
        $region29: #{tpu_custom_call.1} parent=23 // pred_check
          %p99 = pneg %p48
        $region30: #{tpu_custom_call.1} parent=23 // pred_check_branch
          %101 = sbr.rel (%p99) target = $region32
        $region31: #{tpu_custom_call.1} parent=23 // pred_region
          %s103 = ssub.s32 128, 128
          %104 = vsyncadd [#allocation4], %s103
          %s106 = sshll.u32 [#allocation5], 4
          %s107 = int_to_ptr.vmem [resolvable:$true] %s106
          %109 = dma.vmem_to_hbm [thread:$0]  %s107, 128, %s1, [#allocation4]
        $region32: #{tpu_custom_call.1} parent=23 // pred_fallthru
          _
        // Predicated region
        $region33: #{tpu_custom_call.1} parent=23 // pred_check
          %p110 = pneg %p48
        $region34: #{tpu_custom_call.1} parent=23 // pred_check_branch
          %112 = sbr.rel (%p110) target = $region36
        $region35: #{tpu_custom_call.1} parent=23 // pred_region
          %113 = dma.done [#allocation4], 128
        $region36: #{tpu_custom_call.1} parent=23 // pred_fallthru
          _
      $region24: #{tpu_custom_call.1} parent=5 // pred_fallthru
        _
      %p114 = scmp.le.s32.totalorder 2, %s9
      // Predicated region
      $region37: #{tpu_custom_call.1} parent=5 // pred_check
        %p115 = pneg %p114
      $region38: #{tpu_custom_call.1} parent=5 // pred_check_branch
        %117 = sbr.rel (%p115) target = $region40
      $region39: #{tpu_custom_call.1} parent=5 // pred_region
        %s118 = ssub.s32 %s9, 2
      $region40: #{tpu_custom_call.1} parent=5 // pred_fallthru
        _
    $region6: #{tpu_custom_call.1} parent=1 // loop_footer
      %s13 = sadd.s32 1, %s9
    $region7: #{tpu_custom_call.1} parent=1 // loop_footer_branch
      %8 = sbr.rel target = $region3
    $region8: #{tpu_custom_call.1} parent=1 // loop_exit
      _
    %119 = vsyncpa [#allocation3], 1
    %s120 = scalar_lea.sflag [#allocation3], 1
    %121 = vsyncpa %s120, 1
    %122 = vsyncpa [#allocation4], 1
    %s123 = scalar_lea.sflag [#allocation4], 1
    %124 = vsyncpa %s123, 1

// kernel: conformer_encoder.3
$region0: #{conformer_encoder.3}
  #allocation0 [shape = 'u32[]', space=smem, size = 0x4, offset = 0x4, fixed_abs, tag = 'smem constant byte address 0x4 - core index']
  #allocation1 [shape = 'u32[144,128]{1,0:T(1,128)}', space=vmem, size = 0x12000, scoped, tag = 'internal scratch']
  %s0 = inlined_call_operand.vmem [shape: f32[2,16,128], index: 0, kind: input, shape index: {}]
  %s1 = inlined_call_operand.hbm [shape: bf16[128,128], index: 1, kind: input, shape index: {}]
  %s2 = inlined_call_operand.hbm [shape: f32[3,128], index: 2, kind: input, shape index: {}]
  %s3 = inlined_call_operand.vmem [shape: f32[16,128], index: 3, kind: input, shape index: {}]
  %s4 = inlined_call_operand.vmem [shape: f32[2,16,128], index: 4, kind: output, shape index: {}]
  %s5 = sld [smem:[#allocation0]]
  $region57: #{conformer_encoder.3} parent=0
    _
  %s7 = ssub.s32 1, %s5
  %s8 = scalar_select 0, %s7, %s5
  $region1: #{conformer_encoder.3} parent=0
    #allocation2 [shape = 'u8[32768]{0}', space=vmem, size = 0x8000, scoped, tag = 'input window, operand 1, single buffered']
    #allocation3 [shape = 's32[2]{0}', space=sflag, size = 0x8, scoped, tag = 'scoped memory for conformer_encoder.3']
    #allocation4 [shape = 'u8[2048]{0}', space=vmem, size = 0x800, scoped, tag = 'input window, operand 2, single buffered']
    #allocation5 [shape = 's32[1]{0}', space=sflag, size = 0x4, scoped, tag = 'scoped memory for conformer_encoder.3']
    %9 = vsyncpa [#allocation3], 0
    %10 = vsyncpa [#allocation5], 0
    loop: start=0, step=1, limit=4
    $region2: #{conformer_encoder.3} parent=1 // loop_pre_header
      _
    $region3: #{conformer_encoder.3} parent=1 // loop_header
      %s12 = sphi 0, %s16
      %p13 = scmp.ge.s32.totalorder %s12, 4
      %s22 = sphi 0, %s24
      %s25 = sphi 0, %s22
      %s26 = sphi 0, %s25
      %s42 = sphi 0, %s26
      %s46 = sphi 0, %s46
      %s48 = sphi 0, %s46
      %s49 = sphi 0, %s48
      %s63 = sphi 0, %s49
      %s67 = sphi 0, %s67
      %s69 = sphi 0, %s67
      %s70 = sphi 0, %s69
      %s84 = sphi 0, %s70
      %s88 = sphi 0, %s88
      %s90 = sphi 0, %s88
      %s91 = sphi 0, %s90
      %s105 = sphi 0, %s91
      %s111 = sphi 0, %s113
      %s114 = sphi 0, %s111
      %s115 = sphi 0, %s114
      %s131 = sphi 0, %s115
    $region4: #{conformer_encoder.3} parent=1 // loop_header_branch
      %15 = sbr.rel (%p13) target = $region8
    $region5: #{conformer_encoder.3} parent=1 // loop_body
      %s17 = ssub.s32 %s12, 1
      %s18 = ssub.s32 %s12, 2
      %s19 = sadd.s32 %s12, 1
      %s20 = ssub.s32 %s12, %s19
      %p21 = scmp.eq.s32.totalorder %s20, 0
      %s23 = sadd.s32 %s22, 1
      %s24 = scalar_select %p21, %s22, %s23
      %p27 = pneg %p21
      %p28 = scmp.eq.s32.totalorder %s12, 1
      %p29 = por %p27, %p28
      %p30 = scmp.ne.s32.totalorder %s22, %s25
      %p31 = scmp.eq.s32.totalorder %s12, 0
      %p32 = por %p30, %p31
      %p33 = scmp.ne.s32.totalorder %s22, %s25
      %p34 = scmp.eq.s32.totalorder %s17, 1
      %p35 = por %p33, %p34
      %p36 = scmp.ne.s32.totalorder %s25, %s26
      %p37 = scmp.eq.s32.totalorder %s17, 0
      %p38 = por %p36, %p37
      %p39 = scmp.ne.s32.totalorder %s25, %s26
      %p40 = scmp.eq.s32.totalorder %s18, 1
      %p41 = por %p39, %p40
      %p43 = scmp.ne.s32.totalorder %s26, %s42
      %p44 = scmp.eq.s32.totalorder %s18, 0
      %p45 = por %p43, %p44
      %s47 = sadd.s32 %s46, 1
      %p50 = scmp.eq.s32.totalorder %s12, 1
      %p51 = scmp.ne.s32.totalorder %s46, %s48
      %p52 = scmp.eq.s32.totalorder %s12, 0
      %p53 = por %p51, %p52
      %p54 = scmp.ne.s32.totalorder %s46, %s48
      %p55 = scmp.eq.s32.totalorder %s17, 1
      %p56 = por %p54, %p55
      %p57 = scmp.ne.s32.totalorder %s48, %s49
      %p58 = scmp.eq.s32.totalorder %s17, 0
      %p59 = por %p57, %p58
      %p60 = scmp.ne.s32.totalorder %s48, %s49
      %p61 = scmp.eq.s32.totalorder %s18, 1
      %p62 = por %p60, %p61
      %p64 = scmp.ne.s32.totalorder %s49, %s63
      %p65 = scmp.eq.s32.totalorder %s18, 0
      %p66 = por %p64, %p65
      %s68 = sadd.s32 %s67, 1
      %p71 = scmp.eq.s32.totalorder %s12, 1
      %p72 = scmp.ne.s32.totalorder %s67, %s69
      %p73 = scmp.eq.s32.totalorder %s12, 0
      %p74 = por %p72, %p73
      %p75 = scmp.ne.s32.totalorder %s67, %s69
      %p76 = scmp.eq.s32.totalorder %s17, 1
      %p77 = por %p75, %p76
      %p78 = scmp.ne.s32.totalorder %s69, %s70
      %p79 = scmp.eq.s32.totalorder %s17, 0
      %p80 = por %p78, %p79
      %p81 = scmp.ne.s32.totalorder %s69, %s70
      %p82 = scmp.eq.s32.totalorder %s18, 1
      %p83 = por %p81, %p82
      %p85 = scmp.ne.s32.totalorder %s70, %s84
      %p86 = scmp.eq.s32.totalorder %s18, 0
      %p87 = por %p85, %p86
      %s89 = sadd.s32 %s88, 1
      %p92 = scmp.eq.s32.totalorder %s12, 1
      %p93 = scmp.ne.s32.totalorder %s88, %s90
      %p94 = scmp.eq.s32.totalorder %s12, 0
      %p95 = por %p93, %p94
      %p96 = scmp.ne.s32.totalorder %s88, %s90
      %p97 = scmp.eq.s32.totalorder %s17, 1
      %p98 = por %p96, %p97
      %p99 = scmp.ne.s32.totalorder %s90, %s91
      %p100 = scmp.eq.s32.totalorder %s17, 0
      %p101 = por %p99, %p100
      %p102 = scmp.ne.s32.totalorder %s90, %s91
      %p103 = scmp.eq.s32.totalorder %s18, 1
      %p104 = por %p102, %p103
      %p106 = scmp.ne.s32.totalorder %s91, %s105
      %p107 = scmp.eq.s32.totalorder %s18, 0
      %p108 = por %p106, %p107
      %s109 = ssub.s32 %s12, %s19
      %p110 = scmp.eq.s32.totalorder %s109, 0
      %s112 = sadd.s32 %s111, 1
      %s113 = scalar_select %p110, %s111, %s112
      %p116 = pneg %p110
      %p117 = scmp.eq.s32.totalorder %s12, 1
      %p118 = por %p116, %p117
      %p119 = scmp.ne.s32.totalorder %s111, %s114
      %p120 = scmp.eq.s32.totalorder %s12, 0
      %p121 = por %p119, %p120
      %p122 = scmp.ne.s32.totalorder %s111, %s114
      %p123 = scmp.eq.s32.totalorder %s17, 1
      %p124 = por %p122, %p123
      %p125 = scmp.ne.s32.totalorder %s114, %s115
      %p126 = scmp.eq.s32.totalorder %s17, 0
      %p127 = por %p125, %p126
      %p128 = scmp.ne.s32.totalorder %s114, %s115
      %p129 = scmp.eq.s32.totalorder %s18, 1
      %p130 = por %p128, %p129
      %p132 = scmp.ne.s32.totalorder %s115, %s131
      %p133 = scmp.eq.s32.totalorder %s18, 0
      %p134 = por %p132, %p133
      %p135 = scmp.le.s32.totalorder 1, %s12
      %p136 = scmp.lt.s32.totalorder %s12, 3
      %p137 = pnand %p135, %p136
      %p138 = pneg %p137
      // Predicated region
      $region9: #{conformer_encoder.3} parent=5 // pred_check
        _
      $region10: #{conformer_encoder.3} parent=5 // pred_check_branch
        %140 = sbr.rel (%p137) target = $region12
      $region11: #{conformer_encoder.3} parent=5 // pred_region
        %s141 = ssub.s32 %s12, 1
        // Predicated region
        $region13: #{conformer_encoder.3} parent=11 // pred_check
          %p142 = pneg %p59
        $region14: #{conformer_encoder.3} parent=11 // pred_check_branch
          %144 = sbr.rel (%p142) target = $region16
        $region15: #{conformer_encoder.3} parent=11 // pred_region
          %s146 = ssub.s32 1024, 1024
          %147 = vsyncadd [#allocation3], %s146
          %s148 = sshll.u32 [#allocation2], 4
          %s149 = int_to_ptr.vmem [resolvable:$true] %s148
          %154 = dma.hbm_to_vmem [thread:$0]  %s1, 1024, %s149, [#allocation3], 64, 64, 4
        $region16: #{conformer_encoder.3} parent=11 // pred_fallthru
          _
        // Predicated region
        $region17: #{conformer_encoder.3} parent=11 // pred_check
          %p155 = pneg %p80
        $region18: #{conformer_encoder.3} parent=11 // pred_check_branch
          %157 = sbr.rel (%p155) target = $region20
        $region19: #{conformer_encoder.3} parent=11 // pred_region
          %s159 = ssub.s32 64, 64
          %160 = vsyncadd [#allocation5], %s159
          %s162 = sshll.u32 [#allocation4], 4
          %s163 = int_to_ptr.vmem [resolvable:$true] %s162
          %165 = dma.hbm_to_vmem [thread:$0]  %s2, 64, %s163, [#allocation5]
        $region20: #{conformer_encoder.3} parent=11 // pred_fallthru
          _
        // Predicated region
        $region21: #{conformer_encoder.3} parent=11 // pred_check
          %p166 = pneg %p101
        $region22: #{conformer_encoder.3} parent=11 // pred_check_branch
          %168 = sbr.rel (%p166) target = $region24
        $region23: #{conformer_encoder.3} parent=11 // pred_region
          _
        $region24: #{conformer_encoder.3} parent=11 // pred_fallthru
          _
      $region12: #{conformer_encoder.3} parent=5 // pred_fallthru
        _
      %p169 = scmp.lt.s32.totalorder %s12, 2
      // Predicated region
      $region25: #{conformer_encoder.3} parent=5 // pred_check
        %p170 = pneg %p169
      $region26: #{conformer_encoder.3} parent=5 // pred_check_branch
        %172 = sbr.rel (%p170) target = $region28
      $region27: #{conformer_encoder.3} parent=5 // pred_region
        // Predicated region
        $region29: #{conformer_encoder.3} parent=27 // pred_check
          %p173 = pneg %p32
        $region30: #{conformer_encoder.3} parent=27 // pred_check_branch
          %175 = sbr.rel (%p173) target = $region32
        $region31: #{conformer_encoder.3} parent=27 // pred_region
          %p176 = scmp.lt.s32.totalorder %s12, 1
          %s177 = scalar_select %p176, %s12, 1
          %s178 = smul.addr %s177, 2
          %s179 = smul.addr %s178, 8
          %s180 = scalar_lea.vmem %s0, %s179
        $region32: #{conformer_encoder.3} parent=27 // pred_fallthru
          _
      $region28: #{conformer_encoder.3} parent=5 // pred_fallthru
        _
      %p181 = scmp.le.s32.totalorder 1, %s12
      %p182 = scmp.lt.s32.totalorder %s12, 3
      %p183 = pnand %p181, %p182
      %p184 = pneg %p183
      // Predicated region
      $region33: #{conformer_encoder.3} parent=5 // pred_check
        _
      $region34: #{conformer_encoder.3} parent=5 // pred_check_branch
        %186 = sbr.rel (%p183) target = $region36
      $region35: #{conformer_encoder.3} parent=5 // pred_region
        %s187 = ssub.s32 %s12, 1
        // Predicated region
        $region37: #{conformer_encoder.3} parent=35 // pred_check
          %p188 = pneg %p59
        $region38: #{conformer_encoder.3} parent=35 // pred_check_branch
          %190 = sbr.rel (%p188) target = $region40
        $region39: #{conformer_encoder.3} parent=35 // pred_region
          %191 = dma.done [#allocation3], 1024
        $region40: #{conformer_encoder.3} parent=35 // pred_fallthru
          _
        // Predicated region
        $region41: #{conformer_encoder.3} parent=35 // pred_check
          %p192 = pneg %p80
        $region42: #{conformer_encoder.3} parent=35 // pred_check_branch
          %194 = sbr.rel (%p192) target = $region44
        $region43: #{conformer_encoder.3} parent=35 // pred_region
          %195 = dma.done [#allocation5], 64
        $region44: #{conformer_encoder.3} parent=35 // pred_fallthru
          _
        %p196 = scmp.lt.s32.totalorder %s17, 1
        %s197 = scalar_select %p196, %s17, 1
        %s198 = smul.addr %s197, 2
        %s199 = smul.addr %s198, 8
        %s200 = scalar_lea.vmem %s0, %s199
        %p201 = pneg %p38
        %p202 = pneg %p35
        %p203 = pneg %p59
        %p204 = pneg %p56
        %p205 = pneg %p80
        %p206 = pneg %p77
        %p207 = pneg %p101
        %p208 = pneg %p98
        %p209 = pneg %p127
        %p210 = pneg %p124
        %p211 = scmp.lt.s32.totalorder %s17, 1
        %s212 = scalar_select %p211, %s17, 1
        %s213 = smul.addr %s212, 2
        %s214 = smul.addr %s213, 8
        %s215 = scalar_lea.vmem %s4, %s214
        %p216 = scmp.lt.s32.totalorder %s17, 1
        %s217 = scalar_select %p216, %s17, 1
        %s218 = smul.addr %s217, 2
        %s219 = smul.addr %s218, 8
        %s220 = scalar_lea.vmem %s0, %s219
        %p221 = scmp.lt.s32.totalorder %s17, 1
        %s222 = scalar_select %p221, %s17, 1
        %s223 = smul.addr %s222, 2
        %s224 = smul.addr %s223, 8
        %s225 = scalar_lea.vmem %s4, %s224
        %v227 = vld [vmem:[%s220] sm:$0xff]
        %v228 = vld [vmem:[%s220 + $0x8] sm:$0xff]
        %v229 = vpack.c.bf16 %v228, %v227
        %v230 = vld [vmem:[#allocation4] sm:$0x7]
        %v231 = vld [vmem:[#allocation2] sm:$0xf]
        %v232 = vld [vmem:[#allocation2 + $0x4] sm:$0xf]
        %v233 = vld [vmem:[#allocation2 + $0x8] sm:$0xf]
        %v234 = vld [vmem:[#allocation2 + $0xc] sm:$0xf]
        %v235 = vld [vmem:[#allocation2 + $0x10] sm:$0xf]
        %v236 = vld [vmem:[#allocation2 + $0x14] sm:$0xf]
        %v237 = vld [vmem:[#allocation2 + $0x18] sm:$0xf]
        %v238 = vld [vmem:[#allocation2 + $0x1c] sm:$0xf]
        %v239 = vld [vmem:[#allocation2 + $0x20] sm:$0xf]
        %v240 = vld [vmem:[#allocation2 + $0x24] sm:$0xf]
        %v241 = vld [vmem:[#allocation2 + $0x28] sm:$0xf]
        %v242 = vld [vmem:[#allocation2 + $0x2c] sm:$0xf]
        %v243 = vld [vmem:[#allocation2 + $0x30] sm:$0xf]
        %v244 = vld [vmem:[#allocation2 + $0x34] sm:$0xf]
        %v245 = vld [vmem:[#allocation2 + $0x38] sm:$0xf]
        %v246 = vld [vmem:[#allocation2 + $0x3c] sm:$0xf]
        %v247 = vlaneseq
        %v248 = vshrl.u32 %v247, 7
        %v249 = vsub.s32 0, %v248
        %v250 = vrot.slane %v230, %v249
        %v267 = vunpack.c.l.b16 %v231
        %v268 = vunpack.c.l.b16 %v232
        %v269 = vunpack.c.l.b16 %v233
        %v270 = vunpack.c.l.b16 %v234
        %v271 = vunpack.c.l.b16 %v235
        %v272 = vunpack.c.l.b16 %v236
        %v273 = vunpack.c.l.b16 %v237
        %v274 = vunpack.c.l.b16 %v238
        %v275 = vunpack.c.l.b16 %v239
        %v276 = vunpack.c.l.b16 %v240
        %v277 = vunpack.c.l.b16 %v241
        %v278 = vunpack.c.l.b16 %v242
        %v279 = vunpack.c.l.b16 %v243
        %v280 = vunpack.c.l.b16 %v244
        %v281 = vunpack.c.l.b16 %v245
        %v282 = vunpack.c.l.b16 %v246
        %v283 = vpack.c.b16 %v268, %v267
        %v284 = vpack.c.b16 %v270, %v269
        %v285 = vpack.c.b16 %v272, %v271
        %v286 = vpack.c.b16 %v274, %v273
        %v287 = vpack.c.b16 %v276, %v275
        %v288 = vpack.c.b16 %v278, %v277
        %v289 = vpack.c.b16 %v280, %v279
        %v290 = vpack.c.b16 %v282, %v281
        %299 = vmatprep.subr.bf16.mxu0 0
        %300 = vmatpush1.bf16.msra.mxu0 %v290
        %301 = vmatprep.subr.bf16.mxu0 0
        %302 = vmatpush1.bf16.msra.mxu0 %v289
        %303 = vmatprep.subr.bf16.mxu0 0
        %304 = vmatpush1.bf16.msra.mxu0 %v288
        %305 = vmatprep.subr.bf16.mxu0 0
        %306 = vmatpush1.bf16.msra.mxu0 %v287
        %307 = vmatprep.subr.bf16.mxu0 0
        %308 = vmatpush1.bf16.msra.mxu0 %v286
        %309 = vmatprep.subr.bf16.mxu0 0
        %310 = vmatpush1.bf16.msra.mxu0 %v285
        %311 = vmatprep.subr.bf16.mxu0 0
        %312 = vmatpush1.bf16.msra.mxu0 %v284
        %313 = vmatprep.subr.bf16.mxu0 0
        %314 = vmatpush1.bf16.msra.mxu0 %v283
        %315 = vmatprep.subr.bf16.mxu0 0
        %316 = vmatpush2.bf16.msra.mxu0 0
        %317 = vmatprep.subr.bf16.mxu0 0
        %318 = vmatpush2.bf16.msra.mxu0 0
        %319 = vmatprep.subr.bf16.mxu0 0
        %320 = vmatpush2.bf16.msra.mxu0 0
        %321 = vmatprep.subr.bf16.mxu0 0
        %322 = vmatpush2.bf16.msra.mxu0 0
        %323 = vmatprep.subr.bf16.mxu0 0
        %324 = vmatpush2.bf16.msra.mxu0 0
        %325 = vmatprep.subr.bf16.mxu0 0
        %326 = vmatpush2.bf16.msra.mxu0 0
        %327 = vmatprep.subr.bf16.mxu0 0
        %328 = vmatpush2.bf16.msra.mxu0 0
        %329 = vmatprep.subr.bf16.mxu0 0
        %330 = vmatpush2.bf16.msra.mxu0 0
        %331 = vmatprep.mubr.bf16.mxu0 0
        %332 = vmatmul.mubr.bf16.gmra.mxu0 %v229
        %v333 = vpop.f32.mrf.mxu0
        %v334 = vadd.f32 %v250, %v333
        %v335 = vpop.f32.mrf.mxu0
        %v336 = vpop.f32.mrf.mxu0
        %v337 = vadd.f32 %v250, %v336
        %v338 = vpop.f32.mrf.mxu0
        %339 = vdwg.mxu0
        %340 = vadd.xlane.f32.xlu0 %v334
        %v341 = vpop.xlane.xlu0 %340
        %342 = vadd.xlane.f32.xlu0 %v337
        %v343 = vpop.xlane.xlu0 %342
        %v344 = vrcp.pop 128.0
        %v345 = vmul.f32 %v341, %v344
        %v346 = vmul.f32 %v343, %v344
        %v347 = vsub.f32 %v334, %v345
        %v348 = vsub.f32 %v337, %v346
        %v349 = vmul.f32 %v347, %v347
        %v350 = vmul.f32 %v348, %v348
        %351 = vadd.xlane.f32.xlu0 %v349
        %v352 = vpop.xlane.xlu0 %351
        %353 = vadd.xlane.f32.xlu0 %v350
        %v354 = vpop.xlane.xlu0 %353
        %v355 = vmul.f32 %v352, %v344
        %v356 = vmul.f32 %v354, %v344
        %v357 = vadd.f32 %v355, 1e-05
        %v358 = vadd.f32 %v356, 1e-05
        %v359 = vrsqrt.pop %v357
        %v360 = vrsqrt.pop %v358
        %v361 = vmul.f32 %v347, %v359
        %v362 = vmul.f32 %v348, %v360
        %v363 = vlaneseq
        %v364 = vshrl.u32 %v363, 7
        %v365 = vsub.s32 1, %v364
        %v366 = vrot.slane %v230, %v365
        %v367 = vmul.f32 %v361, %v366
        %v368 = vmul.f32 %v362, %v366
        %v369 = vlaneseq
        %v370 = vshrl.u32 %v369, 7
        %v371 = vsub.s32 2, %v370
        %v372 = vrot.slane %v230, %v371
        %v373 = vadd.f32 %v367, %v372
        %v374 = vadd.f32 %v368, %v372
        %v375 = vmax.f32 %v373, 0.0
        %v376 = vmax.f32 %v374, 0.0
        %v377 = vmul.f32 %v375, 11.313708
        %v378 = vmul.f32 %v376, 11.313708
        %v379 = vld [vmem:[%s3] sm:$0xff]
        %v380 = vld [vmem:[%s3 + $0x8] sm:$0xff]
        %v381 = vadd.f32 %v377, %v379
        %v382 = vadd.f32 %v378, %v380
        %383 = vst [vmem:[%s225] sm:$0xff] %v381
        %384 = vst [vmem:[%s225 + $0x8] sm:$0xff] %v382
        %p385 = scmp.lt.s32.totalorder %s17, 1
        %s386 = scalar_select %p385, %s17, 1
        %s387 = smul.addr %s386, 2
        %s388 = smul.addr %s387, 8
        %s389 = scalar_lea.vmem %s4, %s388
        // Predicated region
        $region45: #{conformer_encoder.3} parent=35 // pred_check
          %p390 = pneg %p124
        $region46: #{conformer_encoder.3} parent=35 // pred_check_branch
          %392 = sbr.rel (%p390) target = $region48
        $region47: #{conformer_encoder.3} parent=35 // pred_region
          _
        $region48: #{conformer_encoder.3} parent=35 // pred_fallthru
          _
      $region36: #{conformer_encoder.3} parent=5 // pred_fallthru
        _
      %p393 = scmp.le.s32.totalorder 2, %s12
      // Predicated region
      $region49: #{conformer_encoder.3} parent=5 // pred_check
        %p394 = pneg %p393
      $region50: #{conformer_encoder.3} parent=5 // pred_check_branch
        %396 = sbr.rel (%p394) target = $region52
      $region51: #{conformer_encoder.3} parent=5 // pred_region
        %s397 = ssub.s32 %s12, 2
        // Predicated region
        $region53: #{conformer_encoder.3} parent=51 // pred_check
          %p398 = pneg %p130
        $region54: #{conformer_encoder.3} parent=51 // pred_check_branch
          %400 = sbr.rel (%p398) target = $region56
        $region55: #{conformer_encoder.3} parent=51 // pred_region
          %p401 = scmp.lt.s32.totalorder %s18, 1
          %s402 = scalar_select %p401, %s18, 1
          %s403 = smul.addr %s402, 2
          %s404 = smul.addr %s403, 8
          %s405 = scalar_lea.vmem %s4, %s404
        $region56: #{conformer_encoder.3} parent=51 // pred_fallthru
          _
      $region52: #{conformer_encoder.3} parent=5 // pred_fallthru
        _
    $region6: #{conformer_encoder.3} parent=1 // loop_footer
      %s16 = sadd.s32 1, %s12
    $region7: #{conformer_encoder.3} parent=1 // loop_footer_branch
      %11 = sbr.rel target = $region3
    $region8: #{conformer_encoder.3} parent=1 // loop_exit
      _
    %406 = vsyncpa [#allocation3], 1
    %s407 = scalar_lea.sflag [#allocation3], 1
    %408 = vsyncpa %s407, 1
    %409 = vsyncpa [#allocation5], 1

// kernel: conformer_encoder.4
$region0: #{conformer_encoder.4}
  #allocation0 [shape = 'u32[]', space=smem, size = 0x4, offset = 0x4, fixed_abs, tag = 'smem constant byte address 0x4 - core index']
  #allocation1 [shape = 'u32[144,128]{1,0:T(1,128)}', space=vmem, size = 0x12000, scoped, tag = 'internal scratch']
  %s0 = inlined_call_operand.vmem [shape: f32[2,16,128], index: 0, kind: input, shape index: {}, may-alias: {0,14}]
  %s1 = inlined_call_operand.hbm [shape: f32[24,128], index: 1, kind: input, shape index: {}]
  %s2 = inlined_call_operand.vmem [shape: bf16[128,512], index: 2, kind: input, shape index: {}]
  %s3 = inlined_call_operand.hbm [shape: f32[1,512], index: 3, kind: input, shape index: {}]
  %s4 = inlined_call_operand.vmem [shape: bf16[512,128], index: 4, kind: input, shape index: {}]
  %s5 = inlined_call_operand.hbm [shape: bf16[128,384], index: 5, kind: input, shape index: {}]
  %s6 = inlined_call_operand.hbm [shape: f32[1,384], index: 6, kind: input, shape index: {}]
  %s7 = inlined_call_operand.hbm [shape: bf16[128,128], index: 7, kind: input, shape index: {}]
  %s8 = inlined_call_operand.vmem [shape: bf16[128,256], index: 8, kind: input, shape index: {}]
  %s9 = inlined_call_operand.hbm [shape: f32[1,256], index: 9, kind: input, shape index: {}]
  %s10 = inlined_call_operand.hbm [shape: bf16[128,128], index: 10, kind: input, shape index: {}]
  %s11 = inlined_call_operand.hbm [shape: bf16[128,512], index: 11, kind: input, shape index: {}]
  %s12 = inlined_call_operand.hbm [shape: f32[1,512], index: 12, kind: input, shape index: {}]
  %s13 = inlined_call_operand.hbm [shape: bf16[512,128], index: 13, kind: input, shape index: {}]
  %s14 = inlined_call_operand.vmem [shape: f32[2,16,128], index: 14, kind: output, shape index: {}, may-alias: {0,14}]
  %s15 = sld [smem:[#allocation0]]
  $region129: #{conformer_encoder.4} parent=0
    _
  %s17 = ssub.s32 1, %s15
  %s18 = scalar_select 0, %s17, %s15
  $region1: #{conformer_encoder.4} parent=0
    #allocation2 [shape = 'u8[12288]{0}', space=vmem, size = 0x3000, scoped, tag = 'input window, operand 1, single buffered']
    #allocation3 [shape = 's32[2]{0}', space=sflag, size = 0x8, scoped, tag = 'scoped memory for conformer_encoder.4']
    #allocation4 [shape = 'u8[2048]{0}', space=vmem, size = 0x800, scoped, tag = 'input window, operand 3, single buffered']
    #allocation5 [shape = 's32[1]{0}', space=sflag, size = 0x4, scoped, tag = 'scoped memory for conformer_encoder.4']
    #allocation6 [shape = 'u8[98304]{0}', space=vmem, size = 0x18000, scoped, tag = 'input window, operand 5, single buffered']
    #allocation7 [shape = 'u8[1536]{0}', space=vmem, size = 0x800, scoped, tag = 'input window, operand 6, single buffered']
    #allocation8 [shape = 's32[1]{0}', space=sflag, size = 0x4, scoped, tag = 'scoped memory for conformer_encoder.4']
    #allocation9 [shape = 'u8[32768]{0}', space=vmem, size = 0x8000, scoped, tag = 'input window, operand 7, single buffered']
    #allocation10 [shape = 'u8[1024]{0}', space=vmem, size = 0x400, scoped, tag = 'input window, operand 9, single buffered']
    #allocation11 [shape = 's32[1]{0}', space=sflag, size = 0x4, scoped, tag = 'scoped memory for conformer_encoder.4']
    #allocation12 [shape = 'u8[32768]{0}', space=vmem, size = 0x8000, scoped, tag = 'input window, operand 10, single buffered']
    #allocation13 [shape = 'u8[131072]{0}', space=vmem, size = 0x20000, scoped, tag = 'input window, operand 11, single buffered']
    #allocation14 [shape = 's32[1]{0}', space=sflag, size = 0x4, scoped, tag = 'scoped memory for conformer_encoder.4']
    #allocation15 [shape = 'u8[2048]{0}', space=vmem, size = 0x800, scoped, tag = 'input window, operand 12, single buffered']
    #allocation16 [shape = 'u8[131072]{0}', space=vmem, size = 0x20000, scoped, tag = 'input window, operand 13, single buffered']
    #allocation17 [shape = 's32[1]{0}', space=sflag, size = 0x4, scoped, tag = 'scoped memory for conformer_encoder.4']
    %19 = vsyncpa [#allocation3], 0
    %20 = vsyncpa [#allocation5], 0
    %21 = vsyncpa [#allocation8], 0
    %22 = vsyncpa [#allocation11], 0
    %23 = vsyncpa [#allocation14], 0
    %24 = vsyncpa [#allocation17], 0
    loop: start=0, step=1, limit=4
    $region2: #{conformer_encoder.4} parent=1 // loop_pre_header
      _
    $region3: #{conformer_encoder.4} parent=1 // loop_header
      %s26 = sphi 0, %s30
      %p27 = scmp.ge.s32.totalorder %s26, 4
      %s36 = sphi 0, %s38
      %s39 = sphi 0, %s36
      %s40 = sphi 0, %s39
      %s56 = sphi 0, %s40
      %s60 = sphi 0, %s60
      %s62 = sphi 0, %s60
      %s63 = sphi 0, %s62
      %s77 = sphi 0, %s63
      %s81 = sphi 0, %s81
      %s83 = sphi 0, %s81
      %s84 = sphi 0, %s83
      %s98 = sphi 0, %s84
      %s102 = sphi 0, %s102
      %s104 = sphi 0, %s102
      %s105 = sphi 0, %s104
      %s119 = sphi 0, %s105
      %s123 = sphi 0, %s123
      %s125 = sphi 0, %s123
      %s126 = sphi 0, %s125
      %s140 = sphi 0, %s126
      %s144 = sphi 0, %s144
      %s146 = sphi 0, %s144
      %s147 = sphi 0, %s146
      %s161 = sphi 0, %s147
      %s165 = sphi 0, %s165
      %s167 = sphi 0, %s165
      %s168 = sphi 0, %s167
      %s182 = sphi 0, %s168
      %s186 = sphi 0, %s186
      %s188 = sphi 0, %s186
      %s189 = sphi 0, %s188
      %s203 = sphi 0, %s189
      %s207 = sphi 0, %s207
      %s209 = sphi 0, %s207
      %s210 = sphi 0, %s209
      %s224 = sphi 0, %s210
      %s228 = sphi 0, %s228
      %s230 = sphi 0, %s228
      %s231 = sphi 0, %s230
      %s245 = sphi 0, %s231
      %s249 = sphi 0, %s249
      %s251 = sphi 0, %s249
      %s252 = sphi 0, %s251
      %s266 = sphi 0, %s252
      %s270 = sphi 0, %s270
      %s272 = sphi 0, %s270
      %s273 = sphi 0, %s272
      %s287 = sphi 0, %s273
      %s291 = sphi 0, %s291
      %s293 = sphi 0, %s291
      %s294 = sphi 0, %s293
      %s308 = sphi 0, %s294
      %s312 = sphi 0, %s312
      %s314 = sphi 0, %s312
      %s315 = sphi 0, %s314
      %s329 = sphi 0, %s315
      %s335 = sphi 0, %s337
      %s338 = sphi 0, %s335
      %s339 = sphi 0, %s338
      %s355 = sphi 0, %s339
    $region4: #{conformer_encoder.4} parent=1 // loop_header_branch
      %29 = sbr.rel (%p27) target = $region8
    $region5: #{conformer_encoder.4} parent=1 // loop_body
      %s31 = ssub.s32 %s26, 1
      %s32 = ssub.s32 %s26, 2
      %s33 = sadd.s32 %s26, 1
      %s34 = ssub.s32 %s26, %s33
      %p35 = scmp.eq.s32.totalorder %s34, 0
      %s37 = sadd.s32 %s36, 1
      %s38 = scalar_select %p35, %s36, %s37
      %p41 = pneg %p35
      %p42 = scmp.eq.s32.totalorder %s26, 1
      %p43 = por %p41, %p42
      %p44 = scmp.ne.s32.totalorder %s36, %s39
      %p45 = scmp.eq.s32.totalorder %s26, 0
      %p46 = por %p44, %p45
      %p47 = scmp.ne.s32.totalorder %s36, %s39
      %p48 = scmp.eq.s32.totalorder %s31, 1
      %p49 = por %p47, %p48
      %p50 = scmp.ne.s32.totalorder %s39, %s40
      %p51 = scmp.eq.s32.totalorder %s31, 0
      %p52 = por %p50, %p51
      %p53 = scmp.ne.s32.totalorder %s39, %s40
      %p54 = scmp.eq.s32.totalorder %s32, 1
      %p55 = por %p53, %p54
      %p57 = scmp.ne.s32.totalorder %s40, %s56
      %p58 = scmp.eq.s32.totalorder %s32, 0
      %p59 = por %p57, %p58
      %s61 = sadd.s32 %s60, 1
      %p64 = scmp.eq.s32.totalorder %s26, 1
      %p65 = scmp.ne.s32.totalorder %s60, %s62
      %p66 = scmp.eq.s32.totalorder %s26, 0
      %p67 = por %p65, %p66
      %p68 = scmp.ne.s32.totalorder %s60, %s62
      %p69 = scmp.eq.s32.totalorder %s31, 1
      %p70 = por %p68, %p69
      %p71 = scmp.ne.s32.totalorder %s62, %s63
      %p72 = scmp.eq.s32.totalorder %s31, 0
      %p73 = por %p71, %p72
      %p74 = scmp.ne.s32.totalorder %s62, %s63
      %p75 = scmp.eq.s32.totalorder %s32, 1
      %p76 = por %p74, %p75
      %p78 = scmp.ne.s32.totalorder %s63, %s77
      %p79 = scmp.eq.s32.totalorder %s32, 0
      %p80 = por %p78, %p79
      %s82 = sadd.s32 %s81, 1
      %p85 = scmp.eq.s32.totalorder %s26, 1
      %p86 = scmp.ne.s32.totalorder %s81, %s83
      %p87 = scmp.eq.s32.totalorder %s26, 0
      %p88 = por %p86, %p87
      %p89 = scmp.ne.s32.totalorder %s81, %s83
      %p90 = scmp.eq.s32.totalorder %s31, 1
      %p91 = por %p89, %p90
      %p92 = scmp.ne.s32.totalorder %s83, %s84
      %p93 = scmp.eq.s32.totalorder %s31, 0
      %p94 = por %p92, %p93
      %p95 = scmp.ne.s32.totalorder %s83, %s84
      %p96 = scmp.eq.s32.totalorder %s32, 1
      %p97 = por %p95, %p96
      %p99 = scmp.ne.s32.totalorder %s84, %s98
      %p100 = scmp.eq.s32.totalorder %s32, 0
      %p101 = por %p99, %p100
      %s103 = sadd.s32 %s102, 1
      %p106 = scmp.eq.s32.totalorder %s26, 1
      %p107 = scmp.ne.s32.totalorder %s102, %s104
      %p108 = scmp.eq.s32.totalorder %s26, 0
      %p109 = por %p107, %p108
      %p110 = scmp.ne.s32.totalorder %s102, %s104
      %p111 = scmp.eq.s32.totalorder %s31, 1
      %p112 = por %p110, %p111
      %p113 = scmp.ne.s32.totalorder %s104, %s105
      %p114 = scmp.eq.s32.totalorder %s31, 0
      %p115 = por %p113, %p114
      %p116 = scmp.ne.s32.totalorder %s104, %s105
      %p117 = scmp.eq.s32.totalorder %s32, 1
      %p118 = por %p116, %p117
      %p120 = scmp.ne.s32.totalorder %s105, %s119
      %p121 = scmp.eq.s32.totalorder %s32, 0
      %p122 = por %p120, %p121
      %s124 = sadd.s32 %s123, 1
      %p127 = scmp.eq.s32.totalorder %s26, 1
      %p128 = scmp.ne.s32.totalorder %s123, %s125
      %p129 = scmp.eq.s32.totalorder %s26, 0
      %p130 = por %p128, %p129
      %p131 = scmp.ne.s32.totalorder %s123, %s125
      %p132 = scmp.eq.s32.totalorder %s31, 1
      %p133 = por %p131, %p132
      %p134 = scmp.ne.s32.totalorder %s125, %s126
      %p135 = scmp.eq.s32.totalorder %s31, 0
      %p136 = por %p134, %p135
      %p137 = scmp.ne.s32.totalorder %s125, %s126
      %p138 = scmp.eq.s32.totalorder %s32, 1
      %p139 = por %p137, %p138
      %p141 = scmp.ne.s32.totalorder %s126, %s140
      %p142 = scmp.eq.s32.totalorder %s32, 0
      %p143 = por %p141, %p142
      %s145 = sadd.s32 %s144, 1
      %p148 = scmp.eq.s32.totalorder %s26, 1
      %p149 = scmp.ne.s32.totalorder %s144, %s146
      %p150 = scmp.eq.s32.totalorder %s26, 0
      %p151 = por %p149, %p150
      %p152 = scmp.ne.s32.totalorder %s144, %s146
      %p153 = scmp.eq.s32.totalorder %s31, 1
      %p154 = por %p152, %p153
      %p155 = scmp.ne.s32.totalorder %s146, %s147
      %p156 = scmp.eq.s32.totalorder %s31, 0
      %p157 = por %p155, %p156
      %p158 = scmp.ne.s32.totalorder %s146, %s147
      %p159 = scmp.eq.s32.totalorder %s32, 1
      %p160 = por %p158, %p159
      %p162 = scmp.ne.s32.totalorder %s147, %s161
      %p163 = scmp.eq.s32.totalorder %s32, 0
      %p164 = por %p162, %p163
      %s166 = sadd.s32 %s165, 1
      %p169 = scmp.eq.s32.totalorder %s26, 1
      %p170 = scmp.ne.s32.totalorder %s165, %s167
      %p171 = scmp.eq.s32.totalorder %s26, 0
      %p172 = por %p170, %p171
      %p173 = scmp.ne.s32.totalorder %s165, %s167
      %p174 = scmp.eq.s32.totalorder %s31, 1
      %p175 = por %p173, %p174
      %p176 = scmp.ne.s32.totalorder %s167, %s168
      %p177 = scmp.eq.s32.totalorder %s31, 0
      %p178 = por %p176, %p177
      %p179 = scmp.ne.s32.totalorder %s167, %s168
      %p180 = scmp.eq.s32.totalorder %s32, 1
      %p181 = por %p179, %p180
      %p183 = scmp.ne.s32.totalorder %s168, %s182
      %p184 = scmp.eq.s32.totalorder %s32, 0
      %p185 = por %p183, %p184
      %s187 = sadd.s32 %s186, 1
      %p190 = scmp.eq.s32.totalorder %s26, 1
      %p191 = scmp.ne.s32.totalorder %s186, %s188
      %p192 = scmp.eq.s32.totalorder %s26, 0
      %p193 = por %p191, %p192
      %p194 = scmp.ne.s32.totalorder %s186, %s188
      %p195 = scmp.eq.s32.totalorder %s31, 1
      %p196 = por %p194, %p195
      %p197 = scmp.ne.s32.totalorder %s188, %s189
      %p198 = scmp.eq.s32.totalorder %s31, 0
      %p199 = por %p197, %p198
      %p200 = scmp.ne.s32.totalorder %s188, %s189
      %p201 = scmp.eq.s32.totalorder %s32, 1
      %p202 = por %p200, %p201
      %p204 = scmp.ne.s32.totalorder %s189, %s203
      %p205 = scmp.eq.s32.totalorder %s32, 0
      %p206 = por %p204, %p205
      %s208 = sadd.s32 %s207, 1
      %p211 = scmp.eq.s32.totalorder %s26, 1
      %p212 = scmp.ne.s32.totalorder %s207, %s209
      %p213 = scmp.eq.s32.totalorder %s26, 0
      %p214 = por %p212, %p213
      %p215 = scmp.ne.s32.totalorder %s207, %s209
      %p216 = scmp.eq.s32.totalorder %s31, 1
      %p217 = por %p215, %p216
      %p218 = scmp.ne.s32.totalorder %s209, %s210
      %p219 = scmp.eq.s32.totalorder %s31, 0
      %p220 = por %p218, %p219
      %p221 = scmp.ne.s32.totalorder %s209, %s210
      %p222 = scmp.eq.s32.totalorder %s32, 1
      %p223 = por %p221, %p222
      %p225 = scmp.ne.s32.totalorder %s210, %s224
      %p226 = scmp.eq.s32.totalorder %s32, 0
      %p227 = por %p225, %p226
      %s229 = sadd.s32 %s228, 1
      %p232 = scmp.eq.s32.totalorder %s26, 1
      %p233 = scmp.ne.s32.totalorder %s228, %s230
      %p234 = scmp.eq.s32.totalorder %s26, 0
      %p235 = por %p233, %p234
      %p236 = scmp.ne.s32.totalorder %s228, %s230
      %p237 = scmp.eq.s32.totalorder %s31, 1
      %p238 = por %p236, %p237
      %p239 = scmp.ne.s32.totalorder %s230, %s231
      %p240 = scmp.eq.s32.totalorder %s31, 0
      %p241 = por %p239, %p240
      %p242 = scmp.ne.s32.totalorder %s230, %s231
      %p243 = scmp.eq.s32.totalorder %s32, 1
      %p244 = por %p242, %p243
      %p246 = scmp.ne.s32.totalorder %s231, %s245
      %p247 = scmp.eq.s32.totalorder %s32, 0
      %p248 = por %p246, %p247
      %s250 = sadd.s32 %s249, 1
      %p253 = scmp.eq.s32.totalorder %s26, 1
      %p254 = scmp.ne.s32.totalorder %s249, %s251
      %p255 = scmp.eq.s32.totalorder %s26, 0
      %p256 = por %p254, %p255
      %p257 = scmp.ne.s32.totalorder %s249, %s251
      %p258 = scmp.eq.s32.totalorder %s31, 1
      %p259 = por %p257, %p258
      %p260 = scmp.ne.s32.totalorder %s251, %s252
      %p261 = scmp.eq.s32.totalorder %s31, 0
      %p262 = por %p260, %p261
      %p263 = scmp.ne.s32.totalorder %s251, %s252
      %p264 = scmp.eq.s32.totalorder %s32, 1
      %p265 = por %p263, %p264
      %p267 = scmp.ne.s32.totalorder %s252, %s266
      %p268 = scmp.eq.s32.totalorder %s32, 0
      %p269 = por %p267, %p268
      %s271 = sadd.s32 %s270, 1
      %p274 = scmp.eq.s32.totalorder %s26, 1
      %p275 = scmp.ne.s32.totalorder %s270, %s272
      %p276 = scmp.eq.s32.totalorder %s26, 0
      %p277 = por %p275, %p276
      %p278 = scmp.ne.s32.totalorder %s270, %s272
      %p279 = scmp.eq.s32.totalorder %s31, 1
      %p280 = por %p278, %p279
      %p281 = scmp.ne.s32.totalorder %s272, %s273
      %p282 = scmp.eq.s32.totalorder %s31, 0
      %p283 = por %p281, %p282
      %p284 = scmp.ne.s32.totalorder %s272, %s273
      %p285 = scmp.eq.s32.totalorder %s32, 1
      %p286 = por %p284, %p285
      %p288 = scmp.ne.s32.totalorder %s273, %s287
      %p289 = scmp.eq.s32.totalorder %s32, 0
      %p290 = por %p288, %p289
      %s292 = sadd.s32 %s291, 1
      %p295 = scmp.eq.s32.totalorder %s26, 1
      %p296 = scmp.ne.s32.totalorder %s291, %s293
      %p297 = scmp.eq.s32.totalorder %s26, 0
      %p298 = por %p296, %p297
      %p299 = scmp.ne.s32.totalorder %s291, %s293
      %p300 = scmp.eq.s32.totalorder %s31, 1
      %p301 = por %p299, %p300
      %p302 = scmp.ne.s32.totalorder %s293, %s294
      %p303 = scmp.eq.s32.totalorder %s31, 0
      %p304 = por %p302, %p303
      %p305 = scmp.ne.s32.totalorder %s293, %s294
      %p306 = scmp.eq.s32.totalorder %s32, 1
      %p307 = por %p305, %p306
      %p309 = scmp.ne.s32.totalorder %s294, %s308
      %p310 = scmp.eq.s32.totalorder %s32, 0
      %p311 = por %p309, %p310
      %s313 = sadd.s32 %s312, 1
      %p316 = scmp.eq.s32.totalorder %s26, 1
      %p317 = scmp.ne.s32.totalorder %s312, %s314
      %p318 = scmp.eq.s32.totalorder %s26, 0
      %p319 = por %p317, %p318
      %p320 = scmp.ne.s32.totalorder %s312, %s314
      %p321 = scmp.eq.s32.totalorder %s31, 1
      %p322 = por %p320, %p321
      %p323 = scmp.ne.s32.totalorder %s314, %s315
      %p324 = scmp.eq.s32.totalorder %s31, 0
      %p325 = por %p323, %p324
      %p326 = scmp.ne.s32.totalorder %s314, %s315
      %p327 = scmp.eq.s32.totalorder %s32, 1
      %p328 = por %p326, %p327
      %p330 = scmp.ne.s32.totalorder %s315, %s329
      %p331 = scmp.eq.s32.totalorder %s32, 0
      %p332 = por %p330, %p331
      %s333 = ssub.s32 %s26, %s33
      %p334 = scmp.eq.s32.totalorder %s333, 0
      %s336 = sadd.s32 %s335, 1
      %s337 = scalar_select %p334, %s335, %s336
      %p340 = pneg %p334
      %p341 = scmp.eq.s32.totalorder %s26, 1
      %p342 = por %p340, %p341
      %p343 = scmp.ne.s32.totalorder %s335, %s338
      %p344 = scmp.eq.s32.totalorder %s26, 0
      %p345 = por %p343, %p344
      %p346 = scmp.ne.s32.totalorder %s335, %s338
      %p347 = scmp.eq.s32.totalorder %s31, 1
      %p348 = por %p346, %p347
      %p349 = scmp.ne.s32.totalorder %s338, %s339
      %p350 = scmp.eq.s32.totalorder %s31, 0
      %p351 = por %p349, %p350
      %p352 = scmp.ne.s32.totalorder %s338, %s339
      %p353 = scmp.eq.s32.totalorder %s32, 1
      %p354 = por %p352, %p353
      %p356 = scmp.ne.s32.totalorder %s339, %s355
      %p357 = scmp.eq.s32.totalorder %s32, 0
      %p358 = por %p356, %p357
      %p359 = scmp.le.s32.totalorder 1, %s26
      %p360 = scmp.lt.s32.totalorder %s26, 3
      %p361 = pnand %p359, %p360
      %p362 = pneg %p361
      // Predicated region
      $region9: #{conformer_encoder.4} parent=5 // pred_check
        _
      $region10: #{conformer_encoder.4} parent=5 // pred_check_branch
        %364 = sbr.rel (%p361) target = $region12
      $region11: #{conformer_encoder.4} parent=5 // pred_region
        %s365 = ssub.s32 %s26, 1
        // Predicated region
        $region13: #{conformer_encoder.4} parent=11 // pred_check
          %p366 = pneg %p73
        $region14: #{conformer_encoder.4} parent=11 // pred_check_branch
          %368 = sbr.rel (%p366) target = $region16
        $region15: #{conformer_encoder.4} parent=11 // pred_region
          %s370 = ssub.s32 384, 384
          %371 = vsyncadd [#allocation3], %s370
          %s372 = sshll.u32 [#allocation2], 4
          %s373 = int_to_ptr.vmem [resolvable:$true] %s372
          %378 = dma.hbm_to_vmem [thread:$0]  %s1, 384, %s373, [#allocation3], 128, 128, 8
        $region16: #{conformer_encoder.4} parent=11 // pred_fallthru
          _
        // Predicated region
        $region17: #{conformer_encoder.4} parent=11 // pred_check
          %p379 = pneg %p94
        $region18: #{conformer_encoder.4} parent=11 // pred_check_branch
          %381 = sbr.rel (%p379) target = $region20
        $region19: #{conformer_encoder.4} parent=11 // pred_region
          _
        $region20: #{conformer_encoder.4} parent=11 // pred_fallthru
          _
        // Predicated region
        $region21: #{conformer_encoder.4} parent=11 // pred_check
          %p382 = pneg %p115
        $region22: #{conformer_encoder.4} parent=11 // pred_check_branch
          %384 = sbr.rel (%p382) target = $region24
        $region23: #{conformer_encoder.4} parent=11 // pred_region
          %s386 = ssub.s32 64, 64
          %387 = vsyncadd [#allocation5], %s386
          %s389 = sshll.u32 [#allocation4], 4
          %s390 = int_to_ptr.vmem [resolvable:$true] %s389
          %392 = dma.hbm_to_vmem [thread:$0]  %s3, 64, %s390, [#allocation5]
        $region24: #{conformer_encoder.4} parent=11 // pred_fallthru
          _
        // Predicated region
        $region25: #{conformer_encoder.4} parent=11 // pred_check
          %p393 = pneg %p136
        $region26: #{conformer_encoder.4} parent=11 // pred_check_branch
          %395 = sbr.rel (%p393) target = $region28
        $region27: #{conformer_encoder.4} parent=11 // pred_region
          _
        $region28: #{conformer_encoder.4} parent=11 // pred_fallthru
          _
        // Predicated region
        $region29: #{conformer_encoder.4} parent=11 // pred_check
          %p396 = pneg %p157
        $region30: #{conformer_encoder.4} parent=11 // pred_check_branch
          %398 = sbr.rel (%p396) target = $region32
        $region31: #{conformer_encoder.4} parent=11 // pred_region
          %s400 = ssub.s32 3072, 3072
          %401 = vsyncadd [#allocation5], %s400
          %s402 = sshll.u32 [#allocation6], 4
          %s403 = int_to_ptr.vmem [resolvable:$true] %s402
          %408 = dma.hbm_to_vmem [thread:$0]  %s5, 3072, %s403, [#allocation5], 192, 192, 12
        $region32: #{conformer_encoder.4} parent=11 // pred_fallthru
          _
        // Predicated region
        $region33: #{conformer_encoder.4} parent=11 // pred_check
          %p409 = pneg %p178
        $region34: #{conformer_encoder.4} parent=11 // pred_check_branch
          %411 = sbr.rel (%p409) target = $region36
        $region35: #{conformer_encoder.4} parent=11 // pred_region
          %s413 = ssub.s32 48, 48
          %414 = vsyncadd [#allocation8], %s413
          %s416 = sshll.u32 [#allocation7], 4
          %s417 = int_to_ptr.vmem [resolvable:$true] %s416
          %419 = dma.hbm_to_vmem [thread:$0]  %s6, 48, %s417, [#allocation8]
        $region36: #{conformer_encoder.4} parent=11 // pred_fallthru
          _
        // Predicated region
        $region37: #{conformer_encoder.4} parent=11 // pred_check
          %p420 = pneg %p199
        $region38: #{conformer_encoder.4} parent=11 // pred_check_branch
          %422 = sbr.rel (%p420) target = $region40
        $region39: #{conformer_encoder.4} parent=11 // pred_region
          %s424 = ssub.s32 1024, 1024
          %425 = vsyncadd [#allocation8], %s424
          %s426 = sshll.u32 [#allocation9], 4
          %s427 = int_to_ptr.vmem [resolvable:$true] %s426
          %432 = dma.hbm_to_vmem [thread:$0]  %s7, 1024, %s427, [#allocation8], 64, 64, 4
        $region40: #{conformer_encoder.4} parent=11 // pred_fallthru
          _
        // Predicated region
        $region41: #{conformer_encoder.4} parent=11 // pred_check
          %p433 = pneg %p220
        $region42: #{conformer_encoder.4} parent=11 // pred_check_branch
          %435 = sbr.rel (%p433) target = $region44
        $region43: #{conformer_encoder.4} parent=11 // pred_region
          _
        $region44: #{conformer_encoder.4} parent=11 // pred_fallthru
          _
        // Predicated region
        $region45: #{conformer_encoder.4} parent=11 // pred_check
          %p436 = pneg %p241
        $region46: #{conformer_encoder.4} parent=11 // pred_check_branch
          %438 = sbr.rel (%p436) target = $region48
        $region47: #{conformer_encoder.4} parent=11 // pred_region
          %s440 = ssub.s32 32, 32
          %441 = vsyncadd [#allocation11], %s440
          %s443 = sshll.u32 [#allocation10], 4
          %s444 = int_to_ptr.vmem [resolvable:$true] %s443
          %446 = dma.hbm_to_vmem [thread:$0]  %s9, 32, %s444, [#allocation11]
        $region48: #{conformer_encoder.4} parent=11 // pred_fallthru
          _
        // Predicated region
        $region49: #{conformer_encoder.4} parent=11 // pred_check
          %p447 = pneg %p262
        $region50: #{conformer_encoder.4} parent=11 // pred_check_branch
          %449 = sbr.rel (%p447) target = $region52
        $region51: #{conformer_encoder.4} parent=11 // pred_region
          %s451 = ssub.s32 1024, 1024
          %452 = vsyncadd [#allocation11], %s451
          %s453 = sshll.u32 [#allocation12], 4
          %s454 = int_to_ptr.vmem [resolvable:$true] %s453
          %459 = dma.hbm_to_vmem [thread:$0]  %s10, 1024, %s454, [#allocation11], 64, 64, 4
        $region52: #{conformer_encoder.4} parent=11 // pred_fallthru
          _
        // Predicated region
        $region53: #{conformer_encoder.4} parent=11 // pred_check
          %p460 = pneg %p283
        $region54: #{conformer_encoder.4} parent=11 // pred_check_branch
          %462 = sbr.rel (%p460) target = $region56
        $region55: #{conformer_encoder.4} parent=11 // pred_region
          %s464 = ssub.s32 4096, 4096
          %465 = vsyncadd [#allocation14], %s464
          %s466 = sshll.u32 [#allocation13], 4
          %s467 = int_to_ptr.vmem [resolvable:$true] %s466
          %472 = dma.hbm_to_vmem [thread:$0]  %s11, 4096, %s467, [#allocation14], 256, 256, 16
        $region56: #{conformer_encoder.4} parent=11 // pred_fallthru
          _
        // Predicated region
        $region57: #{conformer_encoder.4} parent=11 // pred_check
          %p473 = pneg %p304
        $region58: #{conformer_encoder.4} parent=11 // pred_check_branch
          %475 = sbr.rel (%p473) target = $region60
        $region59: #{conformer_encoder.4} parent=11 // pred_region
          %s477 = ssub.s32 64, 64
          %478 = vsyncadd [#allocation14], %s477
          %s480 = sshll.u32 [#allocation15], 4
          %s481 = int_to_ptr.vmem [resolvable:$true] %s480
          %483 = dma.hbm_to_vmem [thread:$0]  %s12, 64, %s481, [#allocation14]
        $region60: #{conformer_encoder.4} parent=11 // pred_fallthru
          _
        // Predicated region
        $region61: #{conformer_encoder.4} parent=11 // pred_check
          %p484 = pneg %p325
        $region62: #{conformer_encoder.4} parent=11 // pred_check_branch
          %486 = sbr.rel (%p484) target = $region64
        $region63: #{conformer_encoder.4} parent=11 // pred_region
          %s488 = ssub.s32 4096, 4096
          %489 = vsyncadd [#allocation17], %s488
          %s490 = sshll.u32 [#allocation16], 4
          %s491 = int_to_ptr.vmem [resolvable:$true] %s490
          %496 = dma.hbm_to_vmem [thread:$0]  %s13, 4096, %s491, [#allocation17], 64, 64, 4
        $region64: #{conformer_encoder.4} parent=11 // pred_fallthru
          _
      $region12: #{conformer_encoder.4} parent=5 // pred_fallthru
        _
      %p497 = scmp.lt.s32.totalorder %s26, 2
      // Predicated region
      $region65: #{conformer_encoder.4} parent=5 // pred_check
        %p498 = pneg %p497
      $region66: #{conformer_encoder.4} parent=5 // pred_check_branch
        %500 = sbr.rel (%p498) target = $region68
      $region67: #{conformer_encoder.4} parent=5 // pred_region
        // Predicated region
        $region69: #{conformer_encoder.4} parent=67 // pred_check
          %p501 = pneg %p46
        $region70: #{conformer_encoder.4} parent=67 // pred_check_branch
          %503 = sbr.rel (%p501) target = $region72
        $region71: #{conformer_encoder.4} parent=67 // pred_region
          %p504 = scmp.lt.s32.totalorder %s26, 1
          %s505 = scalar_select %p504, %s26, 1
          %s506 = smul.addr %s505, 2
          %s507 = smul.addr %s506, 8
          %s508 = scalar_lea.vmem %s0, %s507
        $region72: #{conformer_encoder.4} parent=67 // pred_fallthru
          _
      $region68: #{conformer_encoder.4} parent=5 // pred_fallthru
        _
      %p509 = scmp.le.s32.totalorder 1, %s26
      %p510 = scmp.lt.s32.totalorder %s26, 3
      %p511 = pnand %p509, %p510
      %p512 = pneg %p511
      // Predicated region
      $region73: #{conformer_encoder.4} parent=5 // pred_check
        _
      $region74: #{conformer_encoder.4} parent=5 // pred_check_branch
        %514 = sbr.rel (%p511) target = $region76
      $region75: #{conformer_encoder.4} parent=5 // pred_region
        %s515 = ssub.s32 %s26, 1
        // Predicated region
        $region77: #{conformer_encoder.4} parent=75 // pred_check
          %p516 = pneg %p73
        $region78: #{conformer_encoder.4} parent=75 // pred_check_branch
          %518 = sbr.rel (%p516) target = $region80
        $region79: #{conformer_encoder.4} parent=75 // pred_region
          %519 = dma.done [#allocation3], 384
        $region80: #{conformer_encoder.4} parent=75 // pred_fallthru
          _
        // Predicated region
        $region81: #{conformer_encoder.4} parent=75 // pred_check
          %p520 = pneg %p115
        $region82: #{conformer_encoder.4} parent=75 // pred_check_branch
          %522 = sbr.rel (%p520) target = $region84
        $region83: #{conformer_encoder.4} parent=75 // pred_region
          %523 = dma.done [#allocation5], 64
        $region84: #{conformer_encoder.4} parent=75 // pred_fallthru
          _
        // Predicated region
        $region85: #{conformer_encoder.4} parent=75 // pred_check
          %p524 = pneg %p157
        $region86: #{conformer_encoder.4} parent=75 // pred_check_branch
          %526 = sbr.rel (%p524) target = $region88
        $region87: #{conformer_encoder.4} parent=75 // pred_region
          %527 = dma.done [#allocation5], 3072
        $region88: #{conformer_encoder.4} parent=75 // pred_fallthru
          _
        // Predicated region
        $region89: #{conformer_encoder.4} parent=75 // pred_check
          %p528 = pneg %p178
        $region90: #{conformer_encoder.4} parent=75 // pred_check_branch
          %530 = sbr.rel (%p528) target = $region92
        $region91: #{conformer_encoder.4} parent=75 // pred_region
          %531 = dma.done [#allocation8], 48
        $region92: #{conformer_encoder.4} parent=75 // pred_fallthru
          _
        // Predicated region
        $region93: #{conformer_encoder.4} parent=75 // pred_check
          %p532 = pneg %p199
        $region94: #{conformer_encoder.4} parent=75 // pred_check_branch
          %534 = sbr.rel (%p532) target = $region96
        $region95: #{conformer_encoder.4} parent=75 // pred_region
          %535 = dma.done [#allocation8], 1024
        $region96: #{conformer_encoder.4} parent=75 // pred_fallthru
          _
        // Predicated region
        $region97: #{conformer_encoder.4} parent=75 // pred_check
          %p536 = pneg %p241
        $region98: #{conformer_encoder.4} parent=75 // pred_check_branch
          %538 = sbr.rel (%p536) target = $region100
        $region99: #{conformer_encoder.4} parent=75 // pred_region
          %539 = dma.done [#allocation11], 32
        $region100: #{conformer_encoder.4} parent=75 // pred_fallthru
          _
        // Predicated region
        $region101: #{conformer_encoder.4} parent=75 // pred_check
          %p540 = pneg %p262
        $region102: #{conformer_encoder.4} parent=75 // pred_check_branch
          %542 = sbr.rel (%p540) target = $region104
        $region103: #{conformer_encoder.4} parent=75 // pred_region
          %543 = dma.done [#allocation11], 1024
        $region104: #{conformer_encoder.4} parent=75 // pred_fallthru
          _
        // Predicated region
        $region105: #{conformer_encoder.4} parent=75 // pred_check
          %p544 = pneg %p283
        $region106: #{conformer_encoder.4} parent=75 // pred_check_branch
          %546 = sbr.rel (%p544) target = $region108
        $region107: #{conformer_encoder.4} parent=75 // pred_region
          %547 = dma.done [#allocation14], 4096
        $region108: #{conformer_encoder.4} parent=75 // pred_fallthru
          _
        // Predicated region
        $region109: #{conformer_encoder.4} parent=75 // pred_check
          %p548 = pneg %p304
        $region110: #{conformer_encoder.4} parent=75 // pred_check_branch
          %550 = sbr.rel (%p548) target = $region112
        $region111: #{conformer_encoder.4} parent=75 // pred_region
          %551 = dma.done [#allocation14], 64
        $region112: #{conformer_encoder.4} parent=75 // pred_fallthru
          _
        // Predicated region
        $region113: #{conformer_encoder.4} parent=75 // pred_check
          %p552 = pneg %p325
        $region114: #{conformer_encoder.4} parent=75 // pred_check_branch
          %554 = sbr.rel (%p552) target = $region116
        $region115: #{conformer_encoder.4} parent=75 // pred_region
          %555 = dma.done [#allocation17], 4096
        $region116: #{conformer_encoder.4} parent=75 // pred_fallthru
          _
        %p556 = scmp.lt.s32.totalorder %s31, 1
        %s557 = scalar_select %p556, %s31, 1
        %s558 = smul.addr %s557, 2
        %s559 = smul.addr %s558, 8
        %s560 = scalar_lea.vmem %s0, %s559
        %p561 = pneg %p52
        %p562 = pneg %p49
        %p563 = pneg %p73
        %p564 = pneg %p70
        %p565 = pneg %p94
        %p566 = pneg %p91
        %p567 = pneg %p115
        %p568 = pneg %p112
        %p569 = pneg %p136
        %p570 = pneg %p133
        %p571 = pneg %p157
        %p572 = pneg %p154
        %p573 = pneg %p178
        %p574 = pneg %p175
        %p575 = pneg %p199
        %p576 = pneg %p196
        %p577 = pneg %p220
        %p578 = pneg %p217
        %p579 = pneg %p241
        %p580 = pneg %p238
        %p581 = pneg %p262
        %p582 = pneg %p259
        %p583 = pneg %p283
        %p584 = pneg %p280
        %p585 = pneg %p304
        %p586 = pneg %p301
        %p587 = pneg %p325
        %p588 = pneg %p322
        %p589 = pneg %p351
        %p590 = pneg %p348
        %p591 = scmp.lt.s32.totalorder %s31, 1
        %s592 = scalar_select %p591, %s31, 1
        %s593 = smul.addr %s592, 2
        %s594 = smul.addr %s593, 8
        %s595 = scalar_lea.vmem %s14, %s594
        %p596 = scmp.lt.s32.totalorder %s31, 1
        %s597 = scalar_select %p596, %s31, 1
        %s598 = smul.addr %s597, 2
        %s599 = smul.addr %s598, 8
        %s600 = scalar_lea.vmem %s0, %s599
        %p601 = scmp.lt.s32.totalorder %s31, 1
        %s602 = scalar_select %p601, %s31, 1
        %s603 = smul.addr %s602, 2
        %s604 = smul.addr %s603, 8
        %s605 = scalar_lea.vmem %s14, %s604
        %v607 = vld [vmem:[%s600] sm:$0xff]
        %v608 = vld [vmem:[%s600 + $0x8] sm:$0xff]
        %v609 = vld [vmem:[#allocation2] sm:$0xff]
        %v610 = vld [vmem:[#allocation2 + $0x8] sm:$0xff]
        %v611 = vld [vmem:[#allocation2 + $0x10] sm:$0xff]
        %612 = vadd.xlane.f32.xlu0 %v607
        %v613 = vpop.xlane.xlu0 %612
        %614 = vadd.xlane.f32.xlu0 %v608
        %v615 = vpop.xlane.xlu0 %614
        %v616 = vrcp.pop 128.0
        %v617 = vmul.f32 %v613, %v616
        %v618 = vmul.f32 %v615, %v616
        %v619 = vsub.f32 %v607, %v617
        %v620 = vsub.f32 %v608, %v618
        %v621 = vmul.f32 %v619, %v619
        %v622 = vmul.f32 %v620, %v620
        %623 = vadd.xlane.f32.xlu0 %v621
        %v624 = vpop.xlane.xlu0 %623
        %625 = vadd.xlane.f32.xlu0 %v622
        %v626 = vpop.xlane.xlu0 %625
        %v627 = vmul.f32 %v624, %v616
        %v628 = vmul.f32 %v626, %v616
        %v629 = vadd.f32 %v627, 1e-05
        %v630 = vadd.f32 %v628, 1e-05
        %v631 = vrsqrt.pop %v629
        %v632 = vrsqrt.pop %v630
        %v633 = vmul.f32 %v619, %v631
        %v634 = vmul.f32 %v620, %v632
        %v635 = vlaneseq
        %v636 = vshrl.u32 %v635, 7
        %v637 = vsub.s32 0, %v636
        %v638 = vrot.slane %v609, %v637
        %v639 = vmul.f32 %v633, %v638
        %v640 = vmul.f32 %v634, %v638
        %v641 = vlaneseq
        %v642 = vshrl.u32 %v641, 7
        %v643 = vsub.s32 1, %v642
        %v644 = vrot.slane %v609, %v643
        %v645 = vadd.f32 %v639, %v644
        %v646 = vadd.f32 %v640, %v644
        %v647 = vpack.c.bf16 %v646, %v645
        %v648 = vld [vmem:[%s2] sm:$0xff]
        %v649 = vld [vmem:[%s2 + $0x8] sm:$0xff]
        %v650 = vld [vmem:[%s2 + $0x10] sm:$0xff]
        %v651 = vld [vmem:[%s2 + $0x18] sm:$0xff]
        %v652 = vld [vmem:[%s2 + $0x20] sm:$0xff]
        %v653 = vld [vmem:[%s2 + $0x28] sm:$0xff]
        %v654 = vld [vmem:[%s2 + $0x30] sm:$0xff]
        %v655 = vld [vmem:[%s2 + $0x38] sm:$0xff]
        %v656 = vld [vmem:[%s2 + $0x40] sm:$0xff]
        %v657 = vld [vmem:[%s2 + $0x48] sm:$0xff]
        %v658 = vld [vmem:[%s2 + $0x50] sm:$0xff]
        %v659 = vld [vmem:[%s2 + $0x58] sm:$0xff]
        %v660 = vld [vmem:[%s2 + $0x60] sm:$0xff]
        %v661 = vld [vmem:[%s2 + $0x68] sm:$0xff]
        %v662 = vld [vmem:[%s2 + $0x70] sm:$0xff]
        %v663 = vld [vmem:[%s2 + $0x78] sm:$0xff]
        %v664 = vld [vmem:[%s2 + $0x80] sm:$0xff]
        %v665 = vld [vmem:[%s2 + $0x88] sm:$0xff]
        %v666 = vld [vmem:[%s2 + $0x90] sm:$0xff]
        %v667 = vld [vmem:[%s2 + $0x98] sm:$0xff]
        %v668 = vld [vmem:[%s2 + $0xa0] sm:$0xff]
        %v669 = vld [vmem:[%s2 + $0xa8] sm:$0xff]
        %v670 = vld [vmem:[%s2 + $0xb0] sm:$0xff]
        %v671 = vld [vmem:[%s2 + $0xb8] sm:$0xff]
        %v672 = vld [vmem:[%s2 + $0xc0] sm:$0xff]
        %v673 = vld [vmem:[%s2 + $0xc8] sm:$0xff]
        %v674 = vld [vmem:[%s2 + $0xd0] sm:$0xff]
        %v675 = vld [vmem:[%s2 + $0xd8] sm:$0xff]
        %v676 = vld [vmem:[%s2 + $0xe0] sm:$0xff]
        %v677 = vld [vmem:[%s2 + $0xe8] sm:$0xff]
        %v678 = vld [vmem:[%s2 + $0xf0] sm:$0xff]
        %v679 = vld [vmem:[%s2 + $0xf8] sm:$0xff]
        %v680 = vld [vmem:[#allocation4] sm:$0xf]
        %v682 = vlaneseq
        %v683 = vshrl.u32 %v682, 7
        %v684 = vsub.s32 0, %v683
        %v685 = vrot.slane %v680, %v684
        %v686 = vlaneseq
        %v687 = vshrl.u32 %v686, 7
        %v688 = vsub.s32 1, %v687
        %v689 = vrot.slane %v680, %v688
        %v690 = vlaneseq
        %v691 = vshrl.u32 %v690, 7
        %v692 = vsub.s32 2, %v691
        %v693 = vrot.slane %v680, %v692
        %v694 = vlaneseq
        %v695 = vshrl.u32 %v694, 7
        %v696 = vsub.s32 3, %v695
        %v697 = vrot.slane %v680, %v696
        %v734 = vunpack.c.l.b16 %v648
        %v735 = vunpack.c.h.b16 %v648
        %v736 = vunpack.c.l.b16 %v649
        %v737 = vunpack.c.h.b16 %v649
        %v738 = vunpack.c.l.b16 %v650
        %v739 = vunpack.c.h.b16 %v650
        %v740 = vunpack.c.l.b16 %v651
        %v741 = vunpack.c.h.b16 %v651
        %v742 = vunpack.c.l.b16 %v652
        %v743 = vunpack.c.h.b16 %v652
        %v744 = vunpack.c.l.b16 %v653
        %v745 = vunpack.c.h.b16 %v653
        %v746 = vunpack.c.l.b16 %v654
        %v747 = vunpack.c.h.b16 %v654
        %v748 = vunpack.c.l.b16 %v655
        %v749 = vunpack.c.h.b16 %v655
        %v750 = vunpack.c.l.b16 %v656
        %v751 = vunpack.c.h.b16 %v656
        %v752 = vunpack.c.l.b16 %v657
        %v753 = vunpack.c.h.b16 %v657
        %v754 = vunpack.c.l.b16 %v658
        %v755 = vunpack.c.h.b16 %v658
        %v756 = vunpack.c.l.b16 %v659
        %v757 = vunpack.c.h.b16 %v659
        %v758 = vunpack.c.l.b16 %v660
        %v759 = vunpack.c.h.b16 %v660
        %v760 = vunpack.c.l.b16 %v661
        %v761 = vunpack.c.h.b16 %v661
        %v762 = vunpack.c.l.b16 %v662
        %v763 = vunpack.c.h.b16 %v662
        %v764 = vunpack.c.l.b16 %v663
        %v765 = vunpack.c.h.b16 %v663
        %v766 = vunpack.c.l.b16 %v664
        %v767 = vunpack.c.h.b16 %v664
        %v768 = vunpack.c.l.b16 %v665
        %v769 = vunpack.c.h.b16 %v665
        %v770 = vunpack.c.l.b16 %v666
        %v771 = vunpack.c.h.b16 %v666
        %v772 = vunpack.c.l.b16 %v667
        %v773 = vunpack.c.h.b16 %v667
        %v774 = vunpack.c.l.b16 %v668
        %v775 = vunpack.c.h.b16 %v668
        %v776 = vunpack.c.l.b16 %v669
        %v777 = vunpack.c.h.b16 %v669
        %v778 = vunpack.c.l.b16 %v670
        %v779 = vunpack.c.h.b16 %v670
        %v780 = vunpack.c.l.b16 %v671
        %v781 = vunpack.c.h.b16 %v671
        %v782 = vunpack.c.l.b16 %v672
        %v783 = vunpack.c.h.b16 %v672
        %v784 = vunpack.c.l.b16 %v673
        %v785 = vunpack.c.h.b16 %v673
        %v786 = vunpack.c.l.b16 %v674
        %v787 = vunpack.c.h.b16 %v674
        %v788 = vunpack.c.l.b16 %v675
        %v789 = vunpack.c.h.b16 %v675
        %v790 = vunpack.c.l.b16 %v676
        %v791 = vunpack.c.h.b16 %v676
        %v792 = vunpack.c.l.b16 %v677
        %v793 = vunpack.c.h.b16 %v677
        %v794 = vunpack.c.l.b16 %v678
        %v795 = vunpack.c.h.b16 %v678
        %v796 = vunpack.c.l.b16 %v679
        %v797 = vunpack.c.h.b16 %v679
        %v798 = vpack.c.b16 %v738, %v734
        %v799 = vpack.c.b16 %v739, %v735
        %v800 = vpack.c.b16 %v740, %v736
        %v801 = vpack.c.b16 %v741, %v737
        %v802 = vpack.c.b16 %v746, %v742
        %v803 = vpack.c.b16 %v747, %v743
        %v804 = vpack.c.b16 %v748, %v744
        %v805 = vpack.c.b16 %v749, %v745
        %v806 = vpack.c.b16 %v754, %v750
        %v807 = vpack.c.b16 %v755, %v751
        %v808 = vpack.c.b16 %v756, %v752
        %v809 = vpack.c.b16 %v757, %v753
        %v810 = vpack.c.b16 %v762, %v758
        %v811 = vpack.c.b16 %v763, %v759
        %v812 = vpack.c.b16 %v764, %v760
        %v813 = vpack.c.b16 %v765, %v761
        %v814 = vpack.c.b16 %v770, %v766
        %v815 = vpack.c.b16 %v771, %v767
        %v816 = vpack.c.b16 %v772, %v768
        %v817 = vpack.c.b16 %v773, %v769
        %v818 = vpack.c.b16 %v778, %v774
        %v819 = vpack.c.b16 %v779, %v775
        %v820 = vpack.c.b16 %v780, %v776
        %v821 = vpack.c.b16 %v781, %v777
        %v822 = vpack.c.b16 %v786, %v782
        %v823 = vpack.c.b16 %v787, %v783
        %v824 = vpack.c.b16 %v788, %v784
        %v825 = vpack.c.b16 %v789, %v785
        %v826 = vpack.c.b16 %v794, %v790
        %v827 = vpack.c.b16 %v795, %v791
        %v828 = vpack.c.b16 %v796, %v792
        %v829 = vpack.c.b16 %v797, %v793
        %862 = vmatprep.subr.bf16.mxu0 %v827
        %863 = vmatpush1.bf16.msra.mxu0 %v826
        %864 = vmatprep.subr.bf16.mxu0 %v823
        %865 = vmatpush1.bf16.msra.mxu0 %v822
        %866 = vmatprep.subr.bf16.mxu0 %v819
        %867 = vmatpush1.bf16.msra.mxu0 %v818
        %868 = vmatprep.subr.bf16.mxu0 %v815
        %869 = vmatpush1.bf16.msra.mxu0 %v814
        %870 = vmatprep.subr.bf16.mxu0 %v811
        %871 = vmatpush1.bf16.msra.mxu0 %v810
        %872 = vmatprep.subr.bf16.mxu0 %v807
        %873 = vmatpush1.bf16.msra.mxu0 %v806
        %874 = vmatprep.subr.bf16.mxu0 %v803
        %875 = vmatpush1.bf16.msra.mxu0 %v802
        %876 = vmatprep.subr.bf16.mxu0 %v799
        %877 = vmatpush1.bf16.msra.mxu0 %v798
        %878 = vmatprep.subr.bf16.mxu0 0
        %879 = vmatpush2.bf16.msra.mxu0 0
        %880 = vmatprep.subr.bf16.mxu0 0
        %881 = vmatpush2.bf16.msra.mxu0 0
        %882 = vmatprep.subr.bf16.mxu0 0
        %883 = vmatpush2.bf16.msra.mxu0 0
        %884 = vmatprep.subr.bf16.mxu0 0
        %885 = vmatpush2.bf16.msra.mxu0 0
        %886 = vmatprep.subr.bf16.mxu0 0
        %887 = vmatpush2.bf16.msra.mxu0 0
        %888 = vmatprep.subr.bf16.mxu0 0
        %889 = vmatpush2.bf16.msra.mxu0 0
        %890 = vmatprep.subr.bf16.mxu0 0
        %891 = vmatpush2.bf16.msra.mxu0 0
        %892 = vmatprep.subr.bf16.mxu0 0
        %893 = vmatpush2.bf16.msra.mxu0 0
        %894 = vmatprep.mubr.bf16.mxu0 0
        %895 = vmatmul.mubr.bf16.gmra.mxu0 %v647
        %v896 = vpop.f32.mrf.mxu0
        %v897 = vadd.f32 %v685, %v896
        %v898 = vpop.f32.mrf.mxu0
        %v899 = vadd.f32 %v689, %v898
        %v900 = vpop.f32.mrf.mxu0
        %v901 = vadd.f32 %v685, %v900
        %v902 = vpop.f32.mrf.mxu0
        %v903 = vadd.f32 %v689, %v902
        %904 = vdwg.mxu0
        %905 = vmatprep.subr.bf16.mxu0 %v829
        %906 = vmatpush1.bf16.msra.mxu0 %v828
        %907 = vmatprep.subr.bf16.mxu0 %v825
        %908 = vmatpush1.bf16.msra.mxu0 %v824
        %909 = vmatprep.subr.bf16.mxu0 %v821
        %910 = vmatpush1.bf16.msra.mxu0 %v820
        %911 = vmatprep.subr.bf16.mxu0 %v817
        %912 = vmatpush1.bf16.msra.mxu0 %v816
        %913 = vmatprep.subr.bf16.mxu0 %v813
        %914 = vmatpush1.bf16.msra.mxu0 %v812
        %915 = vmatprep.subr.bf16.mxu0 %v809
        %916 = vmatpush1.bf16.msra.mxu0 %v808
        %917 = vmatprep.subr.bf16.mxu0 %v805
        %918 = vmatpush1.bf16.msra.mxu0 %v804
        %919 = vmatprep.subr.bf16.mxu0 %v801
        %920 = vmatpush1.bf16.msra.mxu0 %v800
        %921 = vmatprep.subr.bf16.mxu0 0
        %922 = vmatpush2.bf16.msra.mxu0 0
        %923 = vmatprep.subr.bf16.mxu0 0
        %924 = vmatpush2.bf16.msra.mxu0 0
        %925 = vmatprep.subr.bf16.mxu0 0
        %926 = vmatpush2.bf16.msra.mxu0 0
        %927 = vmatprep.subr.bf16.mxu0 0
        %928 = vmatpush2.bf16.msra.mxu0 0
        %929 = vmatprep.subr.bf16.mxu0 0
        %930 = vmatpush2.bf16.msra.mxu0 0
        %931 = vmatprep.subr.bf16.mxu0 0
        %932 = vmatpush2.bf16.msra.mxu0 0
        %933 = vmatprep.subr.bf16.mxu0 0
        %934 = vmatpush2.bf16.msra.mxu0 0
        %935 = vmatprep.subr.bf16.mxu0 0
        %936 = vmatpush2.bf16.msra.mxu0 0
        %937 = vmatprep.mubr.bf16.mxu0 0
        %938 = vmatmul.mubr.bf16.gmra.mxu0 %v647
        %v939 = vpop.f32.mrf.mxu0
        %v940 = vadd.f32 %v693, %v939
        %v941 = vpop.f32.mrf.mxu0
        %v942 = vadd.f32 %v697, %v941
        %v943 = vpop.f32.mrf.mxu0
        %v944 = vadd.f32 %v693, %v943
        %v945 = vpop.f32.mrf.mxu0
        %v946 = vadd.f32 %v697, %v945
        %947 = vdwg.mxu0
        %v948 = vxor.u32 %v897, 2147483648
        %v949 = vxor.u32 %v899, 2147483648
        %v950 = vxor.u32 %v940, 2147483648
        %v951 = vxor.u32 %v942, 2147483648
        %v952 = vxor.u32 %v901, 2147483648
        %v953 = vxor.u32 %v903, 2147483648
        %v954 = vxor.u32 %v944, 2147483648
        %v955 = vxor.u32 %v946, 2147483648
        %v956 = vmul.f32 %v948, 1.442695
        %v957 = vpow.pop %v956
        %v958 = vmul.f32 %v949, 1.442695
        %v959 = vpow.pop %v958
        %v960 = vmul.f32 %v950, 1.442695
        %v961 = vpow.pop %v960
        %v962 = vmul.f32 %v951, 1.442695
        %v963 = vpow.pop %v962
        %v964 = vmul.f32 %v952, 1.442695
        %v965 = vpow.pop %v964
        %v966 = vmul.f32 %v953, 1.442695
        %v967 = vpow.pop %v966
        %v968 = vmul.f32 %v954, 1.442695
        %v969 = vpow.pop %v968
        %v970 = vmul.f32 %v955, 1.442695
        %v971 = vpow.pop %v970
        %v972 = vadd.f32 %v957, 1.0
        %v973 = vadd.f32 %v959, 1.0
        %v974 = vadd.f32 %v961, 1.0
        %v975 = vadd.f32 %v963, 1.0
        %v976 = vadd.f32 %v965, 1.0
        %v977 = vadd.f32 %v967, 1.0
        %v978 = vadd.f32 %v969, 1.0
        %v979 = vadd.f32 %v971, 1.0
        %v980 = vrcp.pop %v972
        %v981 = vmul.f32 1.0, %v980
        %v982 = vrcp.pop %v973
        %v983 = vmul.f32 1.0, %v982
        %v984 = vrcp.pop %v974
        %v985 = vmul.f32 1.0, %v984
        %v986 = vrcp.pop %v975
        %v987 = vmul.f32 1.0, %v986
        %v988 = vrcp.pop %v976
        %v989 = vmul.f32 1.0, %v988
        %v990 = vrcp.pop %v977
        %v991 = vmul.f32 1.0, %v990
        %v992 = vrcp.pop %v978
        %v993 = vmul.f32 1.0, %v992
        %v994 = vrcp.pop %v979
        %v995 = vmul.f32 1.0, %v994
        %v996 = vmul.f32 %v897, %v981
        %v997 = vmul.f32 %v899, %v983
        %v998 = vmul.f32 %v940, %v985
        %v999 = vmul.f32 %v942, %v987
        %v1000 = vmul.f32 %v901, %v989
        %v1001 = vmul.f32 %v903, %v991
        %v1002 = vmul.f32 %v944, %v993
        %v1003 = vmul.f32 %v946, %v995
        %v1004 = vpack.c.bf16 %v1000, %v996
        %v1005 = vpack.c.bf16 %v1001, %v997
        %v1006 = vpack.c.bf16 %v1002, %v998
        %v1007 = vpack.c.bf16 %v1003, %v999
        %v1008 = vld [vmem:[%s4] sm:$0xf]
        %v1009 = vld [vmem:[%s4 + $0x4] sm:$0xf]
        %v1010 = vld [vmem:[%s4 + $0x8] sm:$0xf]
        %v1011 = vld [vmem:[%s4 + $0xc] sm:$0xf]
        %v1012 = vld [vmem:[%s4 + $0x10] sm:$0xf]
        %v1013 = vld [vmem:[%s4 + $0x14] sm:$0xf]
        %v1014 = vld [vmem:[%s4 + $0x18] sm:$0xf]
        %v1015 = vld [vmem:[%s4 + $0x1c] sm:$0xf]
        %v1016 = vld [vmem:[%s4 + $0x20] sm:$0xf]
        %v1017 = vld [vmem:[%s4 + $0x24] sm:$0xf]
        %v1018 = vld [vmem:[%s4 + $0x28] sm:$0xf]
        %v1019 = vld [vmem:[%s4 + $0x2c] sm:$0xf]
        %v1020 = vld [vmem:[%s4 + $0x30] sm:$0xf]
        %v1021 = vld [vmem:[%s4 + $0x34] sm:$0xf]
        %v1022 = vld [vmem:[%s4 + $0x38] sm:$0xf]
        %v1023 = vld [vmem:[%s4 + $0x3c] sm:$0xf]
        %v1024 = vld [vmem:[%s4 + $0x40] sm:$0xf]
        %v1025 = vld [vmem:[%s4 + $0x44] sm:$0xf]
        %v1026 = vld [vmem:[%s4 + $0x48] sm:$0xf]
        %v1027 = vld [vmem:[%s4 + $0x4c] sm:$0xf]
        %v1028 = vld [vmem:[%s4 + $0x50] sm:$0xf]
        %v1029 = vld [vmem:[%s4 + $0x54] sm:$0xf]
        %v1030 = vld [vmem:[%s4 + $0x58] sm:$0xf]
        %v1031 = vld [vmem:[%s4 + $0x5c] sm:$0xf]
        %v1032 = vld [vmem:[%s4 + $0x60] sm:$0xf]
        %v1033 = vld [vmem:[%s4 + $0x64] sm:$0xf]
        %v1034 = vld [vmem:[%s4 + $0x68] sm:$0xf]
        %v1035 = vld [vmem:[%s4 + $0x6c] sm:$0xf]
        %v1036 = vld [vmem:[%s4 + $0x70] sm:$0xf]
        %v1037 = vld [vmem:[%s4 + $0x74] sm:$0xf]
        %v1038 = vld [vmem:[%s4 + $0x78] sm:$0xf]
        %v1039 = vld [vmem:[%s4 + $0x7c] sm:$0xf]
        %v1040 = vld [vmem:[%s4 + $0x80] sm:$0xf]
        %v1041 = vld [vmem:[%s4 + $0x84] sm:$0xf]
        %v1042 = vld [vmem:[%s4 + $0x88] sm:$0xf]
        %v1043 = vld [vmem:[%s4 + $0x8c] sm:$0xf]
        %v1044 = vld [vmem:[%s4 + $0x90] sm:$0xf]
        %v1045 = vld [vmem:[%s4 + $0x94] sm:$0xf]
        %v1046 = vld [vmem:[%s4 + $0x98] sm:$0xf]
        %v1047 = vld [vmem:[%s4 + $0x9c] sm:$0xf]
        %v1048 = vld [vmem:[%s4 + $0xa0] sm:$0xf]
        %v1049 = vld [vmem:[%s4 + $0xa4] sm:$0xf]
        %v1050 = vld [vmem:[%s4 + $0xa8] sm:$0xf]
        %v1051 = vld [vmem:[%s4 + $0xac] sm:$0xf]
        %v1052 = vld [vmem:[%s4 + $0xb0] sm:$0xf]
        %v1053 = vld [vmem:[%s4 + $0xb4] sm:$0xf]
        %v1054 = vld [vmem:[%s4 + $0xb8] sm:$0xf]
        %v1055 = vld [vmem:[%s4 + $0xbc] sm:$0xf]
        %v1056 = vld [vmem:[%s4 + $0xc0] sm:$0xf]
        %v1057 = vld [vmem:[%s4 + $0xc4] sm:$0xf]
        %v1058 = vld [vmem:[%s4 + $0xc8] sm:$0xf]
        %v1059 = vld [vmem:[%s4 + $0xcc] sm:$0xf]
        %v1060 = vld [vmem:[%s4 + $0xd0] sm:$0xf]
        %v1061 = vld [vmem:[%s4 + $0xd4] sm:$0xf]
        %v1062 = vld [vmem:[%s4 + $0xd8] sm:$0xf]
        %v1063 = vld [vmem:[%s4 + $0xdc] sm:$0xf]
        %v1064 = vld [vmem:[%s4 + $0xe0] sm:$0xf]
        %v1065 = vld [vmem:[%s4 + $0xe4] sm:$0xf]
        %v1066 = vld [vmem:[%s4 + $0xe8] sm:$0xf]
        %v1067 = vld [vmem:[%s4 + $0xec] sm:$0xf]
        %v1068 = vld [vmem:[%s4 + $0xf0] sm:$0xf]
        %v1069 = vld [vmem:[%s4 + $0xf4] sm:$0xf]
        %v1070 = vld [vmem:[%s4 + $0xf8] sm:$0xf]
        %v1071 = vld [vmem:[%s4 + $0xfc] sm:$0xf]
        %v1072 = vlaneseq
        %v1073 = vshrl.u32 %v1072, 7
        %v1074 = vsub.s32 2, %v1073
        %v1075 = vrot.slane %v609, %v1074
        %v1140 = vunpack.c.l.b16 %v1008
        %v1141 = vunpack.c.l.b16 %v1009
        %v1142 = vunpack.c.l.b16 %v1010
        %v1143 = vunpack.c.l.b16 %v1011
        %v1144 = vunpack.c.l.b16 %v1012
        %v1145 = vunpack.c.l.b16 %v1013
        %v1146 = vunpack.c.l.b16 %v1014
        %v1147 = vunpack.c.l.b16 %v1015
        %v1148 = vunpack.c.l.b16 %v1016
        %v1149 = vunpack.c.l.b16 %v1017
        %v1150 = vunpack.c.l.b16 %v1018
        %v1151 = vunpack.c.l.b16 %v1019
        %v1152 = vunpack.c.l.b16 %v1020
        %v1153 = vunpack.c.l.b16 %v1021
        %v1154 = vunpack.c.l.b16 %v1022
        %v1155 = vunpack.c.l.b16 %v1023
        %v1156 = vunpack.c.l.b16 %v1024
        %v1157 = vunpack.c.l.b16 %v1025
        %v1158 = vunpack.c.l.b16 %v1026
        %v1159 = vunpack.c.l.b16 %v1027
        %v1160 = vunpack.c.l.b16 %v1028
        %v1161 = vunpack.c.l.b16 %v1029
        %v1162 = vunpack.c.l.b16 %v1030
        %v1163 = vunpack.c.l.b16 %v1031
        %v1164 = vunpack.c.l.b16 %v1032
        %v1165 = vunpack.c.l.b16 %v1033
        %v1166 = vunpack.c.l.b16 %v1034
        %v1167 = vunpack.c.l.b16 %v1035
        %v1168 = vunpack.c.l.b16 %v1036
        %v1169 = vunpack.c.l.b16 %v1037
        %v1170 = vunpack.c.l.b16 %v1038
        %v1171 = vunpack.c.l.b16 %v1039
        %v1172 = vunpack.c.l.b16 %v1040
        %v1173 = vunpack.c.l.b16 %v1041
        %v1174 = vunpack.c.l.b16 %v1042
        %v1175 = vunpack.c.l.b16 %v1043
        %v1176 = vunpack.c.l.b16 %v1044
        %v1177 = vunpack.c.l.b16 %v1045
        %v1178 = vunpack.c.l.b16 %v1046
        %v1179 = vunpack.c.l.b16 %v1047
        %v1180 = vunpack.c.l.b16 %v1048
        %v1181 = vunpack.c.l.b16 %v1049
        %v1182 = vunpack.c.l.b16 %v1050
        %v1183 = vunpack.c.l.b16 %v1051
        %v1184 = vunpack.c.l.b16 %v1052
        %v1185 = vunpack.c.l.b16 %v1053
        %v1186 = vunpack.c.l.b16 %v1054
        %v1187 = vunpack.c.l.b16 %v1055
        %v1188 = vunpack.c.l.b16 %v1056
        %v1189 = vunpack.c.l.b16 %v1057
        %v1190 = vunpack.c.l.b16 %v1058
        %v1191 = vunpack.c.l.b16 %v1059
        %v1192 = vunpack.c.l.b16 %v1060
        %v1193 = vunpack.c.l.b16 %v1061
        %v1194 = vunpack.c.l.b16 %v1062
        %v1195 = vunpack.c.l.b16 %v1063
        %v1196 = vunpack.c.l.b16 %v1064
        %v1197 = vunpack.c.l.b16 %v1065
        %v1198 = vunpack.c.l.b16 %v1066
        %v1199 = vunpack.c.l.b16 %v1067
        %v1200 = vunpack.c.l.b16 %v1068
        %v1201 = vunpack.c.l.b16 %v1069
        %v1202 = vunpack.c.l.b16 %v1070
        %v1203 = vunpack.c.l.b16 %v1071
        %v1204 = vpack.c.b16 %v1141, %v1140
        %v1205 = vpack.c.b16 %v1143, %v1142
        %v1206 = vpack.c.b16 %v1145, %v1144
        %v1207 = vpack.c.b16 %v1147, %v1146
        %v1208 = vpack.c.b16 %v1149, %v1148
        %v1209 = vpack.c.b16 %v1151, %v1150
        %v1210 = vpack.c.b16 %v1153, %v1152
        %v1211 = vpack.c.b16 %v1155, %v1154
        %v1212 = vpack.c.b16 %v1157, %v1156
        %v1213 = vpack.c.b16 %v1159, %v1158
        %v1214 = vpack.c.b16 %v1161, %v1160
        %v1215 = vpack.c.b16 %v1163, %v1162
        %v1216 = vpack.c.b16 %v1165, %v1164
        %v1217 = vpack.c.b16 %v1167, %v1166
        %v1218 = vpack.c.b16 %v1169, %v1168
        %v1219 = vpack.c.b16 %v1171, %v1170
        %v1220 = vpack.c.b16 %v1173, %v1172
        %v1221 = vpack.c.b16 %v1175, %v1174
        %v1222 = vpack.c.b16 %v1177, %v1176
        %v1223 = vpack.c.b16 %v1179, %v1178
        %v1224 = vpack.c.b16 %v1181, %v1180
        %v1225 = vpack.c.b16 %v1183, %v1182
        %v1226 = vpack.c.b16 %v1185, %v1184
        %v1227 = vpack.c.b16 %v1187, %v1186
        %v1228 = vpack.c.b16 %v1189, %v1188
        %v1229 = vpack.c.b16 %v1191, %v1190
        %v1230 = vpack.c.b16 %v1193, %v1192
        %v1231 = vpack.c.b16 %v1195, %v1194
        %v1232 = vpack.c.b16 %v1197, %v1196
        %v1233 = vpack.c.b16 %v1199, %v1198
        %v1234 = vpack.c.b16 %v1201, %v1200
        %v1235 = vpack.c.b16 %v1203, %v1202
        %1268 = vmatprep.subr.bf16.mxu0 0
        %1269 = vmatpush1.bf16.msra.mxu0 %v1211
        %1270 = vmatprep.subr.bf16.mxu0 0
        %1271 = vmatpush1.bf16.msra.mxu0 %v1210
        %1272 = vmatprep.subr.bf16.mxu0 0
        %1273 = vmatpush1.bf16.msra.mxu0 %v1209
        %1274 = vmatprep.subr.bf16.mxu0 0
        %1275 = vmatpush1.bf16.msra.mxu0 %v1208
        %1276 = vmatprep.subr.bf16.mxu0 0
        %1277 = vmatpush1.bf16.msra.mxu0 %v1207
        %1278 = vmatprep.subr.bf16.mxu0 0
        %1279 = vmatpush1.bf16.msra.mxu0 %v1206
        %1280 = vmatprep.subr.bf16.mxu0 0
        %1281 = vmatpush1.bf16.msra.mxu0 %v1205
        %1282 = vmatprep.subr.bf16.mxu0 0
        %1283 = vmatpush1.bf16.msra.mxu0 %v1204
        %1284 = vmatprep.subr.bf16.mxu0 0
        %1285 = vmatpush2.bf16.msra.mxu0 %v1219
        %1286 = vmatprep.subr.bf16.mxu0 0
        %1287 = vmatpush2.bf16.msra.mxu0 %v1218
        %1288 = vmatprep.subr.bf16.mxu0 0
        %1289 = vmatpush2.bf16.msra.mxu0 %v1217
        %1290 = vmatprep.subr.bf16.mxu0 0
        %1291 = vmatpush2.bf16.msra.mxu0 %v1216
        %1292 = vmatprep.subr.bf16.mxu0 0
        %1293 = vmatpush2.bf16.msra.mxu0 %v1215
        %1294 = vmatprep.subr.bf16.mxu0 0
        %1295 = vmatpush2.bf16.msra.mxu0 %v1214
        %1296 = vmatprep.subr.bf16.mxu0 0
        %1297 = vmatpush2.bf16.msra.mxu0 %v1213
        %1298 = vmatprep.subr.bf16.mxu0 0
        %1299 = vmatpush2.bf16.msra.mxu0 %v1212
        %1300 = vmatprep.mubr.bf16.mxu0 %v1005
        %1301 = vmatmul.mubr.bf16.gmra.mxu0 %v1004
        %v1302 = vpop.f32.mrf.mxu0
        %v1303 = vadd.f32 %v1075, %v1302
        %v1304 = vpop.f32.mrf.mxu0
        %v1305 = vpop.f32.mrf.mxu0
        %v1306 = vadd.f32 %v1075, %v1305
        %v1307 = vpop.f32.mrf.mxu0
        %1308 = vdwg.mxu0
        %1309 = vmatprep.subr.bf16.mxu0 0
        %1310 = vmatpush1.bf16.msra.mxu0 %v1227
        %1311 = vmatprep.subr.bf16.mxu0 0
        %1312 = vmatpush1.bf16.msra.mxu0 %v1226
        %1313 = vmatprep.subr.bf16.mxu0 0
        %1314 = vmatpush1.bf16.msra.mxu0 %v1225
        %1315 = vmatprep.subr.bf16.mxu0 0
        %1316 = vmatpush1.bf16.msra.mxu0 %v1224
        %1317 = vmatprep.subr.bf16.mxu0 0
        %1318 = vmatpush1.bf16.msra.mxu0 %v1223
        %1319 = vmatprep.subr.bf16.mxu0 0
        %1320 = vmatpush1.bf16.msra.mxu0 %v1222
        %1321 = vmatprep.subr.bf16.mxu0 0
        %1322 = vmatpush1.bf16.msra.mxu0 %v1221
        %1323 = vmatprep.subr.bf16.mxu0 0
        %1324 = vmatpush1.bf16.msra.mxu0 %v1220
        %1325 = vmatprep.subr.bf16.mxu0 0
        %1326 = vmatpush2.bf16.msra.mxu0 %v1235
        %1327 = vmatprep.subr.bf16.mxu0 0
        %1328 = vmatpush2.bf16.msra.mxu0 %v1234
        %1329 = vmatprep.subr.bf16.mxu0 0
        %1330 = vmatpush2.bf16.msra.mxu0 %v1233
        %1331 = vmatprep.subr.bf16.mxu0 0
        %1332 = vmatpush2.bf16.msra.mxu0 %v1232
        %1333 = vmatprep.subr.bf16.mxu0 0
        %1334 = vmatpush2.bf16.msra.mxu0 %v1231
        %1335 = vmatprep.subr.bf16.mxu0 0
        %1336 = vmatpush2.bf16.msra.mxu0 %v1230
        %1337 = vmatprep.subr.bf16.mxu0 0
        %1338 = vmatpush2.bf16.msra.mxu0 %v1229
        %1339 = vmatprep.subr.bf16.mxu0 0
        %1340 = vmatpush2.bf16.msra.mxu0 %v1228
        %1341 = vmatprep.mubr.bf16.mxu0 %v1007
        %1342 = vmatmul.mubr.bf16.gmra.mxu0 %v1006
        %v1343 = vpop.f32.mrf.mxu0
        %v1344 = vadd.f32 %v1303, %v1343
        %v1345 = vpop.f32.mrf.mxu0
        %v1346 = vpop.f32.mrf.mxu0
        %v1347 = vadd.f32 %v1306, %v1346
        %v1348 = vpop.f32.mrf.mxu0
        %1349 = vdwg.mxu0
        %v1350 = vmul.f32 %v1344, 0.5
        %v1351 = vmul.f32 %v1347, 0.5
        %v1352 = vadd.f32 %v607, %v1350
        %v1353 = vadd.f32 %v608, %v1351
        %1354 = vadd.xlane.f32.xlu0 %v1352
        %v1355 = vpop.xlane.xlu0 %1354
        %1356 = vadd.xlane.f32.xlu0 %v1353
        %v1357 = vpop.xlane.xlu0 %1356
        %v1358 = vmul.f32 %v1355, %v616
        %v1359 = vmul.f32 %v1357, %v616
        %v1360 = vsub.f32 %v1352, %v1358
        %v1361 = vsub.f32 %v1353, %v1359
        %v1362 = vmul.f32 %v1360, %v1360
        %v1363 = vmul.f32 %v1361, %v1361
        %1364 = vadd.xlane.f32.xlu0 %v1362
        %v1365 = vpop.xlane.xlu0 %1364
        %1366 = vadd.xlane.f32.xlu0 %v1363
        %v1367 = vpop.xlane.xlu0 %1366
        %v1368 = vmul.f32 %v1365, %v616
        %v1369 = vmul.f32 %v1367, %v616
        %v1370 = vadd.f32 %v1368, 1e-05
        %v1371 = vadd.f32 %v1369, 1e-05
        %v1372 = vrsqrt.pop %v1370
        %v1373 = vrsqrt.pop %v1371
        %v1374 = vmul.f32 %v1360, %v1372
        %v1375 = vmul.f32 %v1361, %v1373
        %v1376 = vlaneseq
        %v1377 = vshrl.u32 %v1376, 7
        %v1378 = vsub.s32 3, %v1377
        %v1379 = vrot.slane %v609, %v1378
        %v1380 = vmul.f32 %v1374, %v1379
        %v1381 = vmul.f32 %v1375, %v1379
        %v1382 = vlaneseq
        %v1383 = vshrl.u32 %v1382, 7
        %v1384 = vsub.s32 4, %v1383
        %v1385 = vrot.slane %v609, %v1384
        %v1386 = vadd.f32 %v1380, %v1385
        %v1387 = vadd.f32 %v1381, %v1385
        %v1388 = vpack.c.bf16 %v1387, %v1386
        %v1389 = vld [vmem:[#allocation6] sm:$0xff]
        %v1390 = vld [vmem:[#allocation6 + $0x8] sm:$0xf]
        %v1391 = vld [vmem:[#allocation6 + $0xc] sm:$0xff]
        %v1392 = vld [vmem:[#allocation6 + $0x14] sm:$0xf]
        %v1393 = vld [vmem:[#allocation6 + $0x18] sm:$0xff]
        %v1394 = vld [vmem:[#allocation6 + $0x20] sm:$0xf]
        %v1395 = vld [vmem:[#allocation6 + $0x24] sm:$0xff]
        %v1396 = vld [vmem:[#allocation6 + $0x2c] sm:$0xf]
        %v1397 = vld [vmem:[#allocation6 + $0x30] sm:$0xff]
        %v1398 = vld [vmem:[#allocation6 + $0x38] sm:$0xf]
        %v1399 = vld [vmem:[#allocation6 + $0x3c] sm:$0xff]
        %v1400 = vld [vmem:[#allocation6 + $0x44] sm:$0xf]
        %v1401 = vld [vmem:[#allocation6 + $0x48] sm:$0xff]
        %v1402 = vld [vmem:[#allocation6 + $0x50] sm:$0xf]
        %v1403 = vld [vmem:[#allocation6 + $0x54] sm:$0xff]
        %v1404 = vld [vmem:[#allocation6 + $0x5c] sm:$0xf]
        %v1405 = vld [vmem:[#allocation6 + $0x60] sm:$0xff]
        %v1406 = vld [vmem:[#allocation6 + $0x68] sm:$0xf]
        %v1407 = vld [vmem:[#allocation6 + $0x6c] sm:$0xff]
        %v1408 = vld [vmem:[#allocation6 + $0x74] sm:$0xf]
        %v1409 = vld [vmem:[#allocation6 + $0x78] sm:$0xff]
        %v1410 = vld [vmem:[#allocation6 + $0x80] sm:$0xf]
        %v1411 = vld [vmem:[#allocation6 + $0x84] sm:$0xff]
        %v1412 = vld [vmem:[#allocation6 + $0x8c] sm:$0xf]
        %v1413 = vld [vmem:[#allocation6 + $0x90] sm:$0xff]
        %v1414 = vld [vmem:[#allocation6 + $0x98] sm:$0xf]
        %v1415 = vld [vmem:[#allocation6 + $0x9c] sm:$0xff]
        %v1416 = vld [vmem:[#allocation6 + $0xa4] sm:$0xf]
        %v1417 = vld [vmem:[#allocation6 + $0xa8] sm:$0xff]
        %v1418 = vld [vmem:[#allocation6 + $0xb0] sm:$0xf]
        %v1419 = vld [vmem:[#allocation6 + $0xb4] sm:$0xff]
        %v1420 = vld [vmem:[#allocation6 + $0xbc] sm:$0xf]
        %v1421 = vld [vmem:[#allocation7] sm:$0x7]
        %v1423 = vlaneseq
        %v1424 = vshrl.u32 %v1423, 7
        %v1425 = vsub.s32 0, %v1424
        %v1426 = vrot.slane %v1421, %v1425
        %v1427 = vlaneseq
        %v1428 = vshrl.u32 %v1427, 7
        %v1429 = vsub.s32 1, %v1428
        %v1430 = vrot.slane %v1421, %v1429
        %v1431 = vlaneseq
        %v1432 = vshrl.u32 %v1431, 7
        %v1433 = vsub.s32 2, %v1432
        %v1434 = vrot.slane %v1421, %v1433
        %v1470 = vunpack.c.l.b16 %v1389
        %v1471 = vunpack.c.h.b16 %v1389
        %v1472 = vunpack.c.l.b16 %v1390
        %v1473 = vunpack.c.l.b16 %v1391
        %v1474 = vunpack.c.h.b16 %v1391
        %v1475 = vunpack.c.l.b16 %v1392
        %v1476 = vunpack.c.l.b16 %v1393
        %v1477 = vunpack.c.h.b16 %v1393
        %v1478 = vunpack.c.l.b16 %v1394
        %v1479 = vunpack.c.l.b16 %v1395
        %v1480 = vunpack.c.h.b16 %v1395
        %v1481 = vunpack.c.l.b16 %v1396
        %v1482 = vunpack.c.l.b16 %v1397
        %v1483 = vunpack.c.h.b16 %v1397
        %v1484 = vunpack.c.l.b16 %v1398
        %v1485 = vunpack.c.l.b16 %v1399
        %v1486 = vunpack.c.h.b16 %v1399
        %v1487 = vunpack.c.l.b16 %v1400
        %v1488 = vunpack.c.l.b16 %v1401
        %v1489 = vunpack.c.h.b16 %v1401
        %v1490 = vunpack.c.l.b16 %v1402
        %v1491 = vunpack.c.l.b16 %v1403
        %v1492 = vunpack.c.h.b16 %v1403
        %v1493 = vunpack.c.l.b16 %v1404
        %v1494 = vunpack.c.l.b16 %v1405
        %v1495 = vunpack.c.h.b16 %v1405
        %v1496 = vunpack.c.l.b16 %v1406
        %v1497 = vunpack.c.l.b16 %v1407
        %v1498 = vunpack.c.h.b16 %v1407
        %v1499 = vunpack.c.l.b16 %v1408
        %v1500 = vunpack.c.l.b16 %v1409
        %v1501 = vunpack.c.h.b16 %v1409
        %v1502 = vunpack.c.l.b16 %v1410
        %v1503 = vunpack.c.l.b16 %v1411
        %v1504 = vunpack.c.h.b16 %v1411
        %v1505 = vunpack.c.l.b16 %v1412
        %v1506 = vunpack.c.l.b16 %v1413
        %v1507 = vunpack.c.h.b16 %v1413
        %v1508 = vunpack.c.l.b16 %v1414
        %v1509 = vunpack.c.l.b16 %v1415
        %v1510 = vunpack.c.h.b16 %v1415
        %v1511 = vunpack.c.l.b16 %v1416
        %v1512 = vunpack.c.l.b16 %v1417
        %v1513 = vunpack.c.h.b16 %v1417
        %v1514 = vunpack.c.l.b16 %v1418
        %v1515 = vunpack.c.l.b16 %v1419
        %v1516 = vunpack.c.h.b16 %v1419
        %v1517 = vunpack.c.l.b16 %v1420
        %v1518 = vpack.c.b16 %v1473, %v1470
        %v1519 = vpack.c.b16 %v1474, %v1471
        %v1520 = vpack.c.b16 %v1475, %v1472
        %v1521 = vpack.c.b16 %v1479, %v1476
        %v1522 = vpack.c.b16 %v1480, %v1477
        %v1523 = vpack.c.b16 %v1481, %v1478
        %v1524 = vpack.c.b16 %v1485, %v1482
        %v1525 = vpack.c.b16 %v1486, %v1483
        %v1526 = vpack.c.b16 %v1487, %v1484
        %v1527 = vpack.c.b16 %v1491, %v1488
        %v1528 = vpack.c.b16 %v1492, %v1489
        %v1529 = vpack.c.b16 %v1493, %v1490
        %v1530 = vpack.c.b16 %v1497, %v1494
        %v1531 = vpack.c.b16 %v1498, %v1495
        %v1532 = vpack.c.b16 %v1499, %v1496
        %v1533 = vpack.c.b16 %v1503, %v1500
        %v1534 = vpack.c.b16 %v1504, %v1501
        %v1535 = vpack.c.b16 %v1505, %v1502
        %v1536 = vpack.c.b16 %v1509, %v1506
        %v1537 = vpack.c.b16 %v1510, %v1507
        %v1538 = vpack.c.b16 %v1511, %v1508
        %v1539 = vpack.c.b16 %v1515, %v1512
        %v1540 = vpack.c.b16 %v1516, %v1513
        %v1541 = vpack.c.b16 %v1517, %v1514
        %1566 = vmatprep.subr.bf16.mxu0 %v1540
        %1567 = vmatpush1.bf16.msra.mxu0 %v1539
        %1568 = vmatprep.subr.bf16.mxu0 %v1537
        %1569 = vmatpush1.bf16.msra.mxu0 %v1536
        %1570 = vmatprep.subr.bf16.mxu0 %v1534
        %1571 = vmatpush1.bf16.msra.mxu0 %v1533
        %1572 = vmatprep.subr.bf16.mxu0 %v1531
        %1573 = vmatpush1.bf16.msra.mxu0 %v1530
        %1574 = vmatprep.subr.bf16.mxu0 %v1528
        %1575 = vmatpush1.bf16.msra.mxu0 %v1527
        %1576 = vmatprep.subr.bf16.mxu0 %v1525
        %1577 = vmatpush1.bf16.msra.mxu0 %v1524
        %1578 = vmatprep.subr.bf16.mxu0 %v1522
        %1579 = vmatpush1.bf16.msra.mxu0 %v1521
        %1580 = vmatprep.subr.bf16.mxu0 %v1519
        %1581 = vmatpush1.bf16.msra.mxu0 %v1518
        %1582 = vmatprep.subr.bf16.mxu0 0
        %1583 = vmatpush2.bf16.msra.mxu0 0
        %1584 = vmatprep.subr.bf16.mxu0 0
        %1585 = vmatpush2.bf16.msra.mxu0 0
        %1586 = vmatprep.subr.bf16.mxu0 0
        %1587 = vmatpush2.bf16.msra.mxu0 0
        %1588 = vmatprep.subr.bf16.mxu0 0
        %1589 = vmatpush2.bf16.msra.mxu0 0
        %1590 = vmatprep.subr.bf16.mxu0 0
        %1591 = vmatpush2.bf16.msra.mxu0 0
        %1592 = vmatprep.subr.bf16.mxu0 0
        %1593 = vmatpush2.bf16.msra.mxu0 0
        %1594 = vmatprep.subr.bf16.mxu0 0
        %1595 = vmatpush2.bf16.msra.mxu0 0
        %1596 = vmatprep.subr.bf16.mxu0 0
        %1597 = vmatpush2.bf16.msra.mxu0 0
        %1598 = vmatprep.mubr.bf16.mxu0 0
        %1599 = vmatmul.mubr.bf16.gmra.mxu0 %v1388
        %v1600 = vpop.f32.mrf.mxu0
        %v1601 = vadd.f32 %v1426, %v1600
        %v1602 = vpop.f32.mrf.mxu0
        %v1603 = vadd.f32 %v1430, %v1602
        %v1604 = vpop.f32.mrf.mxu0
        %v1605 = vadd.f32 %v1426, %v1604
        %v1606 = vpop.f32.mrf.mxu0
        %v1607 = vadd.f32 %v1430, %v1606
        %1608 = vdwg.mxu0
        %1609 = vmatprep.subr.bf16.mxu0 0
        %1610 = vmatpush1.bf16.msra.mxu0 %v1541
        %1611 = vmatprep.subr.bf16.mxu0 0
        %1612 = vmatpush1.bf16.msra.mxu0 %v1538
        %1613 = vmatprep.subr.bf16.mxu0 0
        %1614 = vmatpush1.bf16.msra.mxu0 %v1535
        %1615 = vmatprep.subr.bf16.mxu0 0
        %1616 = vmatpush1.bf16.msra.mxu0 %v1532
        %1617 = vmatprep.subr.bf16.mxu0 0
        %1618 = vmatpush1.bf16.msra.mxu0 %v1529
        %1619 = vmatprep.subr.bf16.mxu0 0
        %1620 = vmatpush1.bf16.msra.mxu0 %v1526
        %1621 = vmatprep.subr.bf16.mxu0 0
        %1622 = vmatpush1.bf16.msra.mxu0 %v1523
        %1623 = vmatprep.subr.bf16.mxu0 0
        %1624 = vmatpush1.bf16.msra.mxu0 %v1520
        %1625 = vmatprep.subr.bf16.mxu0 0
        %1626 = vmatpush2.bf16.msra.mxu0 0
        %1627 = vmatprep.subr.bf16.mxu0 0
        %1628 = vmatpush2.bf16.msra.mxu0 0
        %1629 = vmatprep.subr.bf16.mxu0 0
        %1630 = vmatpush2.bf16.msra.mxu0 0
        %1631 = vmatprep.subr.bf16.mxu0 0
        %1632 = vmatpush2.bf16.msra.mxu0 0
        %1633 = vmatprep.subr.bf16.mxu0 0
        %1634 = vmatpush2.bf16.msra.mxu0 0
        %1635 = vmatprep.subr.bf16.mxu0 0
        %1636 = vmatpush2.bf16.msra.mxu0 0
        %1637 = vmatprep.subr.bf16.mxu0 0
        %1638 = vmatpush2.bf16.msra.mxu0 0
        %1639 = vmatprep.subr.bf16.mxu0 0
        %1640 = vmatpush2.bf16.msra.mxu0 0
        %1641 = vmatprep.mubr.bf16.mxu0 0
        %1642 = vmatmul.mubr.bf16.gmra.mxu0 %v1388
        %v1643 = vpop.f32.mrf.mxu0
        %v1644 = vadd.f32 %v1434, %v1643
        %v1645 = vpop.f32.mrf.mxu0
        %v1646 = vpop.f32.mrf.mxu0
        %v1647 = vadd.f32 %v1434, %v1646
        %v1648 = vpop.f32.mrf.mxu0
        %1649 = vdwg.mxu0
        %v1650 = vmul.f32 %v1601, 0.17677669
        %v1651 = vmul.f32 %v1605, 0.17677669
        %v1652 = vpack.c.bf16 %v1651, %v1650
        %1654 = vrot.lane.b32.xlu0 %v1652, 96
        %v1655 = vpop.permute.xlu0 %1654
        %1656 = vrot.lane.b32.xlu0 %v1652, 64
        %v1657 = vpop.permute.xlu0 %1656
        %1658 = vrot.lane.b32.xlu0 %v1652, 32
        %v1659 = vpop.permute.xlu0 %1658
        %v1660 = vpack.c.bf16 %v1607, %v1603
        %1662 = vrot.lane.b32.xlu0 %v1660, 96
        %v1663 = vpop.permute.xlu0 %1662
        %1664 = vrot.lane.b32.xlu0 %v1660, 64
        %v1665 = vpop.permute.xlu0 %1664
        %1666 = vrot.lane.b32.xlu0 %v1660, 32
        %v1667 = vpop.permute.xlu0 %1666
        %v1668 = vpack.c.bf16 %v1647, %v1644
        %1670 = vrot.lane.b32.xlu0 %v1668, 96
        %v1671 = vpop.permute.xlu0 %1670
        %1673 = vrot.lane.b32.xlu0 %v1668, 64
        %v1674 = vpop.permute.xlu0 %1673
        %1676 = vrot.lane.b32.xlu0 %v1668, 32
        %v1677 = vpop.permute.xlu0 %1676
        %vm1679 = vcmask 261120
        %v1681 = vsel %vm1679, %v1652, 0
        %v1684 = vsel %vm1679, %v1660, 0
        %1686 = vmatprep.subr.bf16.mxu0 0
        %1687 = vmatpush1.bf16.xpose.msra.mxu0 0
        %1688 = vmatprep.subr.bf16.mxu0 0
        %1689 = vmatpush1.bf16.xpose.msra.mxu0 0
        %1690 = vmatprep.subr.bf16.mxu0 0
        %1691 = vmatpush1.bf16.xpose.msra.mxu0 0
        %1692 = vmatprep.subr.bf16.mxu0 0
        %1693 = vmatpush1.bf16.xpose.msra.mxu0 0
        %1694 = vmatprep.subr.bf16.mxu0 0
        %1695 = vmatpush1.bf16.xpose.msra.mxu0 0
        %1696 = vmatprep.subr.bf16.mxu0 0
        %1697 = vmatpush1.bf16.xpose.msra.mxu0 0
        %1698 = vmatprep.subr.bf16.mxu0 0
        %1699 = vmatpush1.bf16.xpose.msra.mxu0 0
        %1700 = vmatprep.subr.bf16.mxu0 0
        %1701 = vmatpush1.bf16.xpose.msra.mxu0 %v1684
        %1702 = vmatprep.subr.bf16.mxu0 0
        %1703 = vmatpush2.bf16.xpose.msra.mxu0 0
        %1704 = vmatprep.subr.bf16.mxu0 0
        %1705 = vmatpush2.bf16.xpose.msra.mxu0 0
        %1706 = vmatprep.subr.bf16.mxu0 0
        %1707 = vmatpush2.bf16.xpose.msra.mxu0 0
        %1708 = vmatprep.subr.bf16.mxu0 0
        %1709 = vmatpush2.bf16.xpose.msra.mxu0 0
        %1710 = vmatprep.subr.bf16.mxu0 0
        %1711 = vmatpush2.bf16.xpose.msra.mxu0 0
        %1712 = vmatprep.subr.bf16.mxu0 0
        %1713 = vmatpush2.bf16.xpose.msra.mxu0 0
        %1714 = vmatprep.subr.bf16.mxu0 0
        %1715 = vmatpush2.bf16.xpose.msra.mxu0 0
        %1716 = vmatprep.subr.bf16.mxu0 0
        %1717 = vmatpush2.bf16.xpose.msra.mxu0 0
        %1718 = vmatprep.mubr.bf16.mxu0 0
        %1719 = vmatmul.mubr.bf16.gmra.mxu0 %v1681
        %v1720 = vpop.f32.mrf.mxu0
        %v1721 = vadd.f32 0.0, %v1720
        %v1722 = vpop.f32.mrf.mxu0
        %v1723 = vpop.f32.mrf.mxu0
        %v1724 = vadd.f32 0.0, %v1723
        %v1725 = vpop.f32.mrf.mxu0
        %1726 = vdwg.mxu0
        %v1728 = vsel %vm1679, %v1655, 0
        %v1731 = vsel %vm1679, %v1663, 0
        %1733 = vmatprep.subr.bf16.mxu0 0
        %1734 = vmatpush1.bf16.xpose.msra.mxu0 0
        %1735 = vmatprep.subr.bf16.mxu0 0
        %1736 = vmatpush1.bf16.xpose.msra.mxu0 0
        %1737 = vmatprep.subr.bf16.mxu0 0
        %1738 = vmatpush1.bf16.xpose.msra.mxu0 0
        %1739 = vmatprep.subr.bf16.mxu0 0
        %1740 = vmatpush1.bf16.xpose.msra.mxu0 0
        %1741 = vmatprep.subr.bf16.mxu0 0
        %1742 = vmatpush1.bf16.xpose.msra.mxu0 0
        %1743 = vmatprep.subr.bf16.mxu0 0
        %1744 = vmatpush1.bf16.xpose.msra.mxu0 0
        %1745 = vmatprep.subr.bf16.mxu0 0
        %1746 = vmatpush1.bf16.xpose.msra.mxu0 0
        %1747 = vmatprep.subr.bf16.mxu0 0
        %1748 = vmatpush1.bf16.xpose.msra.mxu0 %v1731
        %1749 = vmatprep.subr.bf16.mxu0 0
        %1750 = vmatpush2.bf16.xpose.msra.mxu0 0
        %1751 = vmatprep.subr.bf16.mxu0 0
        %1752 = vmatpush2.bf16.xpose.msra.mxu0 0
        %1753 = vmatprep.subr.bf16.mxu0 0
        %1754 = vmatpush2.bf16.xpose.msra.mxu0 0
        %1755 = vmatprep.subr.bf16.mxu0 0
        %1756 = vmatpush2.bf16.xpose.msra.mxu0 0
        %1757 = vmatprep.subr.bf16.mxu0 0
        %1758 = vmatpush2.bf16.xpose.msra.mxu0 0
        %1759 = vmatprep.subr.bf16.mxu0 0
        %1760 = vmatpush2.bf16.xpose.msra.mxu0 0
        %1761 = vmatprep.subr.bf16.mxu0 0
        %1762 = vmatpush2.bf16.xpose.msra.mxu0 0
        %1763 = vmatprep.subr.bf16.mxu0 0
        %1764 = vmatpush2.bf16.xpose.msra.mxu0 0
        %1765 = vmatprep.mubr.bf16.mxu0 0
        %1766 = vmatmul.mubr.bf16.gmra.mxu0 %v1728
        %v1767 = vpop.f32.mrf.mxu0
        %v1768 = vadd.f32 0.0, %v1767
        %v1769 = vpop.f32.mrf.mxu0
        %v1770 = vpop.f32.mrf.mxu0
        %v1771 = vadd.f32 0.0, %v1770
        %v1772 = vpop.f32.mrf.mxu0
        %1773 = vdwg.mxu0
        %v1775 = vsel %vm1679, %v1657, 0
        %v1778 = vsel %vm1679, %v1665, 0
        %1780 = vmatprep.subr.bf16.mxu0 0
        %1781 = vmatpush1.bf16.xpose.msra.mxu0 0
        %1782 = vmatprep.subr.bf16.mxu0 0
        %1783 = vmatpush1.bf16.xpose.msra.mxu0 0
        %1784 = vmatprep.subr.bf16.mxu0 0
        %1785 = vmatpush1.bf16.xpose.msra.mxu0 0
        %1786 = vmatprep.subr.bf16.mxu0 0
        %1787 = vmatpush1.bf16.xpose.msra.mxu0 0
        %1788 = vmatprep.subr.bf16.mxu0 0
        %1789 = vmatpush1.bf16.xpose.msra.mxu0 0
        %1790 = vmatprep.subr.bf16.mxu0 0
        %1791 = vmatpush1.bf16.xpose.msra.mxu0 0
        %1792 = vmatprep.subr.bf16.mxu0 0
        %1793 = vmatpush1.bf16.xpose.msra.mxu0 0
        %1794 = vmatprep.subr.bf16.mxu0 0
        %1795 = vmatpush1.bf16.xpose.msra.mxu0 %v1778
        %1796 = vmatprep.subr.bf16.mxu0 0
        %1797 = vmatpush2.bf16.xpose.msra.mxu0 0
        %1798 = vmatprep.subr.bf16.mxu0 0
        %1799 = vmatpush2.bf16.xpose.msra.mxu0 0
        %1800 = vmatprep.subr.bf16.mxu0 0
        %1801 = vmatpush2.bf16.xpose.msra.mxu0 0
        %1802 = vmatprep.subr.bf16.mxu0 0
        %1803 = vmatpush2.bf16.xpose.msra.mxu0 0
        %1804 = vmatprep.subr.bf16.mxu0 0
        %1805 = vmatpush2.bf16.xpose.msra.mxu0 0
        %1806 = vmatprep.subr.bf16.mxu0 0
        %1807 = vmatpush2.bf16.xpose.msra.mxu0 0
        %1808 = vmatprep.subr.bf16.mxu0 0
        %1809 = vmatpush2.bf16.xpose.msra.mxu0 0
        %1810 = vmatprep.subr.bf16.mxu0 0
        %1811 = vmatpush2.bf16.xpose.msra.mxu0 0
        %1812 = vmatprep.mubr.bf16.mxu0 0
        %1813 = vmatmul.mubr.bf16.gmra.mxu0 %v1775
        %v1814 = vpop.f32.mrf.mxu0
        %v1815 = vadd.f32 0.0, %v1814
        %v1816 = vpop.f32.mrf.mxu0
        %v1817 = vpop.f32.mrf.mxu0
        %v1818 = vadd.f32 0.0, %v1817
        %v1819 = vpop.f32.mrf.mxu0
        %1820 = vdwg.mxu0
        %v1822 = vsel %vm1679, %v1659, 0
        %v1825 = vsel %vm1679, %v1667, 0
        %1827 = vmatprep.subr.bf16.mxu0 0
        %1828 = vmatpush1.bf16.xpose.msra.mxu0 0
        %1829 = vmatprep.subr.bf16.mxu0 0
        %1830 = vmatpush1.bf16.xpose.msra.mxu0 0
        %1831 = vmatprep.subr.bf16.mxu0 0
        %1832 = vmatpush1.bf16.xpose.msra.mxu0 0
        %1833 = vmatprep.subr.bf16.mxu0 0
        %1834 = vmatpush1.bf16.xpose.msra.mxu0 0
        %1835 = vmatprep.subr.bf16.mxu0 0
        %1836 = vmatpush1.bf16.xpose.msra.mxu0 0
        %1837 = vmatprep.subr.bf16.mxu0 0
        %1838 = vmatpush1.bf16.xpose.msra.mxu0 0
        %1839 = vmatprep.subr.bf16.mxu0 0
        %1840 = vmatpush1.bf16.xpose.msra.mxu0 0
        %1841 = vmatprep.subr.bf16.mxu0 0
        %1842 = vmatpush1.bf16.xpose.msra.mxu0 %v1825
        %1843 = vmatprep.subr.bf16.mxu0 0
        %1844 = vmatpush2.bf16.xpose.msra.mxu0 0
        %1845 = vmatprep.subr.bf16.mxu0 0
        %1846 = vmatpush2.bf16.xpose.msra.mxu0 0
        %1847 = vmatprep.subr.bf16.mxu0 0
        %1848 = vmatpush2.bf16.xpose.msra.mxu0 0
        %1849 = vmatprep.subr.bf16.mxu0 0
        %1850 = vmatpush2.bf16.xpose.msra.mxu0 0
        %1851 = vmatprep.subr.bf16.mxu0 0
        %1852 = vmatpush2.bf16.xpose.msra.mxu0 0
        %1853 = vmatprep.subr.bf16.mxu0 0
        %1854 = vmatpush2.bf16.xpose.msra.mxu0 0
        %1855 = vmatprep.subr.bf16.mxu0 0
        %1856 = vmatpush2.bf16.xpose.msra.mxu0 0
        %1857 = vmatprep.subr.bf16.mxu0 0
        %1858 = vmatpush2.bf16.xpose.msra.mxu0 0
        %1859 = vmatprep.mubr.bf16.mxu0 0
        %1860 = vmatmul.mubr.bf16.gmra.mxu0 %v1822
        %v1861 = vpop.f32.mrf.mxu0
        %v1862 = vadd.f32 0.0, %v1861
        %v1863 = vpop.f32.mrf.mxu0
        %v1864 = vpop.f32.mrf.mxu0
        %v1865 = vadd.f32 0.0, %v1864
        %v1866 = vpop.f32.mrf.mxu0
        %1867 = vdwg.mxu0
        %vm1868 = vcmask 130048
        %v1869 = vsel %vm1868, %v1721, -inf
        %1870 = vmax.xlane.f32.xlu0 %v1869
        %v1871 = vpop.xlane.xlu0 %1870
        %v1872 = vsel %vm1868, %v1724, -inf
        %1873 = vmax.xlane.f32.xlu0 %v1872
        %v1874 = vpop.xlane.xlu0 %1873
        %v1875 = vsel %vm1868, %v1768, -inf
        %1876 = vmax.xlane.f32.xlu0 %v1875
        %v1877 = vpop.xlane.xlu0 %1876
        %v1878 = vsel %vm1868, %v1771, -inf
        %1879 = vmax.xlane.f32.xlu0 %v1878
        %v1880 = vpop.xlane.xlu0 %1879
        %v1881 = vsel %vm1868, %v1815, -inf
        %1882 = vmax.xlane.f32.xlu0 %v1881
        %v1883 = vpop.xlane.xlu0 %1882
        %v1884 = vsel %vm1868, %v1818, -inf
        %1885 = vmax.xlane.f32.xlu0 %v1884
        %v1886 = vpop.xlane.xlu0 %1885
        %v1887 = vsel %vm1868, %v1862, -inf
        %1888 = vmax.xlane.f32.xlu0 %v1887
        %v1889 = vpop.xlane.xlu0 %1888
        %v1890 = vsel %vm1868, %v1865, -inf
        %1891 = vmax.xlane.f32.xlu0 %v1890
        %v1892 = vpop.xlane.xlu0 %1891
        %v1893 = vsub.f32 -inf, %v1871
        %v1894 = vsub.f32 -inf, %v1874
        %v1895 = vsub.f32 -inf, %v1877
        %v1896 = vsub.f32 -inf, %v1880
        %v1897 = vsub.f32 -inf, %v1883
        %v1898 = vsub.f32 -inf, %v1886
        %v1899 = vsub.f32 -inf, %v1889
        %v1900 = vsub.f32 -inf, %v1892
        %v1901 = vmul.f32 %v1893, 1.442695
        %v1902 = vpow.pop %v1901
        %v1903 = vmul.f32 %v1894, 1.442695
        %v1904 = vpow.pop %v1903
        %v1905 = vmul.f32 %v1895, 1.442695
        %v1906 = vpow.pop %v1905
        %v1907 = vmul.f32 %v1896, 1.442695
        %v1908 = vpow.pop %v1907
        %v1909 = vmul.f32 %v1897, 1.442695
        %v1910 = vpow.pop %v1909
        %v1911 = vmul.f32 %v1898, 1.442695
        %v1912 = vpow.pop %v1911
        %v1913 = vmul.f32 %v1899, 1.442695
        %v1914 = vpow.pop %v1913
        %v1915 = vmul.f32 %v1900, 1.442695
        %v1916 = vpow.pop %v1915
        %v1917 = vsub.f32 %v1721, %v1871
        %v1918 = vsub.f32 %v1724, %v1874
        %v1919 = vsub.f32 %v1768, %v1877
        %v1920 = vsub.f32 %v1771, %v1880
        %v1921 = vsub.f32 %v1815, %v1883
        %v1922 = vsub.f32 %v1818, %v1886
        %v1923 = vsub.f32 %v1862, %v1889
        %v1924 = vsub.f32 %v1865, %v1892
        %v1925 = vmul.f32 %v1917, 1.442695
        %v1926 = vpow.pop %v1925
        %v1927 = vmul.f32 %v1918, 1.442695
        %v1928 = vpow.pop %v1927
        %v1929 = vmul.f32 %v1919, 1.442695
        %v1930 = vpow.pop %v1929
        %v1931 = vmul.f32 %v1920, 1.442695
        %v1932 = vpow.pop %v1931
        %v1933 = vmul.f32 %v1921, 1.442695
        %v1934 = vpow.pop %v1933
        %v1935 = vmul.f32 %v1922, 1.442695
        %v1936 = vpow.pop %v1935
        %v1937 = vmul.f32 %v1923, 1.442695
        %v1938 = vpow.pop %v1937
        %v1939 = vmul.f32 %v1924, 1.442695
        %v1940 = vpow.pop %v1939
        %v1941 = vmul.f32 %v1902, 0.0
        %v1942 = vmul.f32 %v1904, 0.0
        %v1943 = vmul.f32 %v1906, 0.0
        %v1944 = vmul.f32 %v1908, 0.0
        %v1945 = vmul.f32 %v1910, 0.0
        %v1946 = vmul.f32 %v1912, 0.0
        %v1947 = vmul.f32 %v1914, 0.0
        %v1948 = vmul.f32 %v1916, 0.0
        %v1949 = vsel %vm1868, %v1926, 0.0
        %1950 = vadd.xlane.f32.xlu0 %v1949
        %v1951 = vpop.xlane.xlu0 %1950
        %v1952 = vsel %vm1868, %v1928, 0.0
        %1953 = vadd.xlane.f32.xlu0 %v1952
        %v1954 = vpop.xlane.xlu0 %1953
        %v1955 = vsel %vm1868, %v1930, 0.0
        %1956 = vadd.xlane.f32.xlu0 %v1955
        %v1957 = vpop.xlane.xlu0 %1956
        %v1958 = vsel %vm1868, %v1932, 0.0
        %1959 = vadd.xlane.f32.xlu0 %v1958
        %v1960 = vpop.xlane.xlu0 %1959
        %v1961 = vsel %vm1868, %v1934, 0.0
        %1962 = vadd.xlane.f32.xlu0 %v1961
        %v1963 = vpop.xlane.xlu0 %1962
        %v1964 = vsel %vm1868, %v1936, 0.0
        %1965 = vadd.xlane.f32.xlu0 %v1964
        %v1966 = vpop.xlane.xlu0 %1965
        %v1967 = vsel %vm1868, %v1938, 0.0
        %1968 = vadd.xlane.f32.xlu0 %v1967
        %v1969 = vpop.xlane.xlu0 %1968
        %v1970 = vsel %vm1868, %v1940, 0.0
        %1971 = vadd.xlane.f32.xlu0 %v1970
        %v1972 = vpop.xlane.xlu0 %1971
        %v1973 = vadd.f32 %v1941, %v1951
        %v1974 = vadd.f32 %v1942, %v1954
        %v1975 = vadd.f32 %v1943, %v1957
        %v1976 = vadd.f32 %v1944, %v1960
        %v1977 = vadd.f32 %v1945, %v1963
        %v1978 = vadd.f32 %v1946, %v1966
        %v1979 = vadd.f32 %v1947, %v1969
        %v1980 = vadd.f32 %v1948, %v1972
        %v1981 = vpack.c.bf16 %v1928, %v1926
        %v1982 = vpack.c.bf16 %v1932, %v1930
        %v1983 = vpack.c.bf16 %v1936, %v1934
        %v1984 = vpack.c.bf16 %v1940, %v1938
        %v1986 = vsel %vm1868, %v1981, 0
        %1988 = vmatprep.subr.bf16.mxu0 0
        %1989 = vmatpush1.bf16.msra.mxu0 0
        %1990 = vmatprep.subr.bf16.mxu0 0
        %1991 = vmatpush1.bf16.msra.mxu0 0
        %1992 = vmatprep.subr.bf16.mxu0 0
        %1993 = vmatpush1.bf16.msra.mxu0 0
        %1994 = vmatprep.subr.bf16.mxu0 0
        %1995 = vmatpush1.bf16.msra.mxu0 0
        %1996 = vmatprep.subr.bf16.mxu0 0
        %1997 = vmatpush1.bf16.msra.mxu0 0
        %1998 = vmatprep.subr.bf16.mxu0 0
        %1999 = vmatpush1.bf16.msra.mxu0 0
        %2000 = vmatprep.subr.bf16.mxu0 0
        %2001 = vmatpush1.bf16.msra.mxu0 0
        %2002 = vmatprep.subr.bf16.mxu0 0
        %2003 = vmatpush1.bf16.msra.mxu0 %v1668
        %2004 = vmatprep.subr.bf16.mxu0 0
        %2005 = vmatpush2.bf16.msra.mxu0 0
        %2006 = vmatprep.subr.bf16.mxu0 0
        %2007 = vmatpush2.bf16.msra.mxu0 0
        %2008 = vmatprep.subr.bf16.mxu0 0
        %2009 = vmatpush2.bf16.msra.mxu0 0
        %2010 = vmatprep.subr.bf16.mxu0 0
        %2011 = vmatpush2.bf16.msra.mxu0 0
        %2012 = vmatprep.subr.bf16.mxu0 0
        %2013 = vmatpush2.bf16.msra.mxu0 0
        %2014 = vmatprep.subr.bf16.mxu0 0
        %2015 = vmatpush2.bf16.msra.mxu0 0
        %2016 = vmatprep.subr.bf16.mxu0 0
        %2017 = vmatpush2.bf16.msra.mxu0 0
        %2018 = vmatprep.subr.bf16.mxu0 0
        %2019 = vmatpush2.bf16.msra.mxu0 0
        %2020 = vmatprep.mubr.bf16.mxu0 0
        %2021 = vmatmul.mubr.bf16.gmra.mxu0 %v1986
        %v2022 = vpop.f32.mrf.mxu0
        %v2023 = vadd.f32 0.0, %v2022
        %v2024 = vpop.f32.mrf.mxu0
        %v2025 = vpop.f32.mrf.mxu0
        %v2026 = vadd.f32 0.0, %v2025
        %v2027 = vpop.f32.mrf.mxu0
        %2028 = vdwg.mxu0
        %v2030 = vsel %vm1868, %v1982, 0
        %2032 = vmatprep.subr.bf16.mxu0 0
        %2033 = vmatpush1.bf16.msra.mxu0 0
        %2034 = vmatprep.subr.bf16.mxu0 0
        %2035 = vmatpush1.bf16.msra.mxu0 0
        %2036 = vmatprep.subr.bf16.mxu0 0
        %2037 = vmatpush1.bf16.msra.mxu0 0
        %2038 = vmatprep.subr.bf16.mxu0 0
        %2039 = vmatpush1.bf16.msra.mxu0 0
        %2040 = vmatprep.subr.bf16.mxu0 0
        %2041 = vmatpush1.bf16.msra.mxu0 0
        %2042 = vmatprep.subr.bf16.mxu0 0
        %2043 = vmatpush1.bf16.msra.mxu0 0
        %2044 = vmatprep.subr.bf16.mxu0 0
        %2045 = vmatpush1.bf16.msra.mxu0 0
        %2046 = vmatprep.subr.bf16.mxu0 0
        %2047 = vmatpush1.bf16.msra.mxu0 %v1671
        %2048 = vmatprep.subr.bf16.mxu0 0
        %2049 = vmatpush2.bf16.msra.mxu0 0
        %2050 = vmatprep.subr.bf16.mxu0 0
        %2051 = vmatpush2.bf16.msra.mxu0 0
        %2052 = vmatprep.subr.bf16.mxu0 0
        %2053 = vmatpush2.bf16.msra.mxu0 0
        %2054 = vmatprep.subr.bf16.mxu0 0
        %2055 = vmatpush2.bf16.msra.mxu0 0
        %2056 = vmatprep.subr.bf16.mxu0 0
        %2057 = vmatpush2.bf16.msra.mxu0 0
        %2058 = vmatprep.subr.bf16.mxu0 0
        %2059 = vmatpush2.bf16.msra.mxu0 0
        %2060 = vmatprep.subr.bf16.mxu0 0
        %2061 = vmatpush2.bf16.msra.mxu0 0
        %2062 = vmatprep.subr.bf16.mxu0 0
        %2063 = vmatpush2.bf16.msra.mxu0 0
        %2064 = vmatprep.mubr.bf16.mxu0 0
        %2065 = vmatmul.mubr.bf16.gmra.mxu0 %v2030
        %v2066 = vpop.f32.mrf.mxu0
        %v2067 = vadd.f32 0.0, %v2066
        %v2068 = vpop.f32.mrf.mxu0
        %v2069 = vpop.f32.mrf.mxu0
        %v2070 = vadd.f32 0.0, %v2069
        %v2071 = vpop.f32.mrf.mxu0
        %2072 = vdwg.mxu0
        %v2074 = vsel %vm1868, %v1983, 0
        %2076 = vmatprep.subr.bf16.mxu0 0
        %2077 = vmatpush1.bf16.msra.mxu0 0
        %2078 = vmatprep.subr.bf16.mxu0 0
        %2079 = vmatpush1.bf16.msra.mxu0 0
        %2080 = vmatprep.subr.bf16.mxu0 0
        %2081 = vmatpush1.bf16.msra.mxu0 0
        %2082 = vmatprep.subr.bf16.mxu0 0
        %2083 = vmatpush1.bf16.msra.mxu0 0
        %2084 = vmatprep.subr.bf16.mxu0 0
        %2085 = vmatpush1.bf16.msra.mxu0 0
        %2086 = vmatprep.subr.bf16.mxu0 0
        %2087 = vmatpush1.bf16.msra.mxu0 0
        %2088 = vmatprep.subr.bf16.mxu0 0
        %2089 = vmatpush1.bf16.msra.mxu0 0
        %2090 = vmatprep.subr.bf16.mxu0 0
        %2091 = vmatpush1.bf16.msra.mxu0 %v1674
        %2092 = vmatprep.subr.bf16.mxu0 0
        %2093 = vmatpush2.bf16.msra.mxu0 0
        %2094 = vmatprep.subr.bf16.mxu0 0
        %2095 = vmatpush2.bf16.msra.mxu0 0
        %2096 = vmatprep.subr.bf16.mxu0 0
        %2097 = vmatpush2.bf16.msra.mxu0 0
        %2098 = vmatprep.subr.bf16.mxu0 0
        %2099 = vmatpush2.bf16.msra.mxu0 0
        %2100 = vmatprep.subr.bf16.mxu0 0
        %2101 = vmatpush2.bf16.msra.mxu0 0
        %2102 = vmatprep.subr.bf16.mxu0 0
        %2103 = vmatpush2.bf16.msra.mxu0 0
        %2104 = vmatprep.subr.bf16.mxu0 0
        %2105 = vmatpush2.bf16.msra.mxu0 0
        %2106 = vmatprep.subr.bf16.mxu0 0
        %2107 = vmatpush2.bf16.msra.mxu0 0
        %2108 = vmatprep.mubr.bf16.mxu0 0
        %2109 = vmatmul.mubr.bf16.gmra.mxu0 %v2074
        %v2110 = vpop.f32.mrf.mxu0
        %v2111 = vadd.f32 0.0, %v2110
        %v2112 = vpop.f32.mrf.mxu0
        %v2113 = vpop.f32.mrf.mxu0
        %v2114 = vadd.f32 0.0, %v2113
        %v2115 = vpop.f32.mrf.mxu0
        %2116 = vdwg.mxu0
        %v2118 = vsel %vm1868, %v1984, 0
        %2120 = vmatprep.subr.bf16.mxu0 0
        %2121 = vmatpush1.bf16.msra.mxu0 0
        %2122 = vmatprep.subr.bf16.mxu0 0
        %2123 = vmatpush1.bf16.msra.mxu0 0
        %2124 = vmatprep.subr.bf16.mxu0 0
        %2125 = vmatpush1.bf16.msra.mxu0 0
        %2126 = vmatprep.subr.bf16.mxu0 0
        %2127 = vmatpush1.bf16.msra.mxu0 0
        %2128 = vmatprep.subr.bf16.mxu0 0
        %2129 = vmatpush1.bf16.msra.mxu0 0
        %2130 = vmatprep.subr.bf16.mxu0 0
        %2131 = vmatpush1.bf16.msra.mxu0 0
        %2132 = vmatprep.subr.bf16.mxu0 0
        %2133 = vmatpush1.bf16.msra.mxu0 0
        %2134 = vmatprep.subr.bf16.mxu0 0
        %2135 = vmatpush1.bf16.msra.mxu0 %v1677
        %2136 = vmatprep.subr.bf16.mxu0 0
        %2137 = vmatpush2.bf16.msra.mxu0 0
        %2138 = vmatprep.subr.bf16.mxu0 0
        %2139 = vmatpush2.bf16.msra.mxu0 0
        %2140 = vmatprep.subr.bf16.mxu0 0
        %2141 = vmatpush2.bf16.msra.mxu0 0
        %2142 = vmatprep.subr.bf16.mxu0 0
        %2143 = vmatpush2.bf16.msra.mxu0 0
        %2144 = vmatprep.subr.bf16.mxu0 0
        %2145 = vmatpush2.bf16.msra.mxu0 0
        %2146 = vmatprep.subr.bf16.mxu0 0
        %2147 = vmatpush2.bf16.msra.mxu0 0
        %2148 = vmatprep.subr.bf16.mxu0 0
        %2149 = vmatpush2.bf16.msra.mxu0 0
        %2150 = vmatprep.subr.bf16.mxu0 0
        %2151 = vmatpush2.bf16.msra.mxu0 0
        %2152 = vmatprep.mubr.bf16.mxu0 0
        %2153 = vmatmul.mubr.bf16.gmra.mxu0 %v2118
        %v2154 = vpop.f32.mrf.mxu0
        %v2155 = vadd.f32 0.0, %v2154
        %v2156 = vpop.f32.mrf.mxu0
        %v2157 = vpop.f32.mrf.mxu0
        %v2158 = vadd.f32 0.0, %v2157
        %v2159 = vpop.f32.mrf.mxu0
        %2160 = vdwg.mxu0
        %v2161 = vadd.f32 %v1941, %v2023
        %v2162 = vadd.f32 %v1942, %v2026
        %v2163 = vadd.f32 %v1943, %v2067
        %v2164 = vadd.f32 %v1944, %v2070
        %v2165 = vadd.f32 %v1945, %v2111
        %v2166 = vadd.f32 %v1946, %v2114
        %v2167 = vadd.f32 %v1947, %v2155
        %v2168 = vadd.f32 %v1948, %v2158
        %v2169 = vrcp.pop %v1973
        %v2170 = vrcp.pop %v1974
        %v2171 = vrcp.pop %v1975
        %v2172 = vrcp.pop %v1976
        %v2173 = vrcp.pop %v1977
        %v2174 = vrcp.pop %v1978
        %v2175 = vrcp.pop %v1979
        %v2176 = vrcp.pop %v1980
        %v2177 = vmul.f32 %v2161, %v2169
        %v2178 = vmul.f32 %v2162, %v2170
        %v2179 = vmul.f32 %v2163, %v2171
        %v2180 = vmul.f32 %v2164, %v2172
        %v2181 = vmul.f32 %v2165, %v2173
        %v2182 = vmul.f32 %v2166, %v2174
        %v2183 = vmul.f32 %v2167, %v2175
        %v2184 = vmul.f32 %v2168, %v2176
        %2187 = vrot.lane.b32.xlu0 %v2179, 32
        %v2188 = vpop.permute.xlu0 %2187
        %2189 = vrot.lane.b32.xlu0 %v2180, 32
        %v2190 = vpop.permute.xlu0 %2189
        %2195 = vrot.lane.b32.xlu0 %v2181, 64
        %v2196 = vpop.permute.xlu0 %2195
        %2197 = vrot.lane.b32.xlu0 %v2182, 64
        %v2198 = vpop.permute.xlu0 %2197
        %2203 = vrot.lane.b32.xlu0 %v2183, 96
        %v2204 = vpop.permute.xlu0 %2203
        %2205 = vrot.lane.b32.xlu0 %v2184, 96
        %v2206 = vpop.permute.xlu0 %2205
        %v2209 = vsel %vm1679, %v2177, %v2188
        %v2210 = vsel %vm1679, %v2178, %v2190
        %vm2211 = vcmask 523264
        %v2212 = vsel %vm2211, %v2209, %v2196
        %v2213 = vsel %vm2211, %v2210, %v2198
        %vm2214 = vcmask 785408
        %v2215 = vsel %vm2214, %v2212, %v2204
        %v2216 = vsel %vm2214, %v2213, %v2206
        %v2217 = vpack.c.bf16 %v2216, %v2215
        %v2218 = vld [vmem:[#allocation9] sm:$0xf]
        %v2219 = vld [vmem:[#allocation9 + $0x4] sm:$0xf]
        %v2220 = vld [vmem:[#allocation9 + $0x8] sm:$0xf]
        %v2221 = vld [vmem:[#allocation9 + $0xc] sm:$0xf]
        %v2222 = vld [vmem:[#allocation9 + $0x10] sm:$0xf]
        %v2223 = vld [vmem:[#allocation9 + $0x14] sm:$0xf]
        %v2224 = vld [vmem:[#allocation9 + $0x18] sm:$0xf]
        %v2225 = vld [vmem:[#allocation9 + $0x1c] sm:$0xf]
        %v2226 = vld [vmem:[#allocation9 + $0x20] sm:$0xf]
        %v2227 = vld [vmem:[#allocation9 + $0x24] sm:$0xf]
        %v2228 = vld [vmem:[#allocation9 + $0x28] sm:$0xf]
        %v2229 = vld [vmem:[#allocation9 + $0x2c] sm:$0xf]
        %v2230 = vld [vmem:[#allocation9 + $0x30] sm:$0xf]
        %v2231 = vld [vmem:[#allocation9 + $0x34] sm:$0xf]
        %v2232 = vld [vmem:[#allocation9 + $0x38] sm:$0xf]
        %v2233 = vld [vmem:[#allocation9 + $0x3c] sm:$0xf]
        %v2250 = vunpack.c.l.b16 %v2218
        %v2251 = vunpack.c.l.b16 %v2219
        %v2252 = vunpack.c.l.b16 %v2220
        %v2253 = vunpack.c.l.b16 %v2221
        %v2254 = vunpack.c.l.b16 %v2222
        %v2255 = vunpack.c.l.b16 %v2223
        %v2256 = vunpack.c.l.b16 %v2224
        %v2257 = vunpack.c.l.b16 %v2225
        %v2258 = vunpack.c.l.b16 %v2226
        %v2259 = vunpack.c.l.b16 %v2227
        %v2260 = vunpack.c.l.b16 %v2228
        %v2261 = vunpack.c.l.b16 %v2229
        %v2262 = vunpack.c.l.b16 %v2230
        %v2263 = vunpack.c.l.b16 %v2231
        %v2264 = vunpack.c.l.b16 %v2232
        %v2265 = vunpack.c.l.b16 %v2233
        %v2266 = vpack.c.b16 %v2251, %v2250
        %v2267 = vpack.c.b16 %v2253, %v2252
        %v2268 = vpack.c.b16 %v2255, %v2254
        %v2269 = vpack.c.b16 %v2257, %v2256
        %v2270 = vpack.c.b16 %v2259, %v2258
        %v2271 = vpack.c.b16 %v2261, %v2260
        %v2272 = vpack.c.b16 %v2263, %v2262
        %v2273 = vpack.c.b16 %v2265, %v2264
        %2282 = vmatprep.subr.bf16.mxu0 0
        %2283 = vmatpush1.bf16.msra.mxu0 %v2273
        %2284 = vmatprep.subr.bf16.mxu0 0
        %2285 = vmatpush1.bf16.msra.mxu0 %v2272
        %2286 = vmatprep.subr.bf16.mxu0 0
        %2287 = vmatpush1.bf16.msra.mxu0 %v2271
        %2288 = vmatprep.subr.bf16.mxu0 0
        %2289 = vmatpush1.bf16.msra.mxu0 %v2270
        %2290 = vmatprep.subr.bf16.mxu0 0
        %2291 = vmatpush1.bf16.msra.mxu0 %v2269
        %2292 = vmatprep.subr.bf16.mxu0 0
        %2293 = vmatpush1.bf16.msra.mxu0 %v2268
        %2294 = vmatprep.subr.bf16.mxu0 0
        %2295 = vmatpush1.bf16.msra.mxu0 %v2267
        %2296 = vmatprep.subr.bf16.mxu0 0
        %2297 = vmatpush1.bf16.msra.mxu0 %v2266
        %2298 = vmatprep.subr.bf16.mxu0 0
        %2299 = vmatpush2.bf16.msra.mxu0 0
        %2300 = vmatprep.subr.bf16.mxu0 0
        %2301 = vmatpush2.bf16.msra.mxu0 0
        %2302 = vmatprep.subr.bf16.mxu0 0
        %2303 = vmatpush2.bf16.msra.mxu0 0
        %2304 = vmatprep.subr.bf16.mxu0 0
        %2305 = vmatpush2.bf16.msra.mxu0 0
        %2306 = vmatprep.subr.bf16.mxu0 0
        %2307 = vmatpush2.bf16.msra.mxu0 0
        %2308 = vmatprep.subr.bf16.mxu0 0
        %2309 = vmatpush2.bf16.msra.mxu0 0
        %2310 = vmatprep.subr.bf16.mxu0 0
        %2311 = vmatpush2.bf16.msra.mxu0 0
        %2312 = vmatprep.subr.bf16.mxu0 0
        %2313 = vmatpush2.bf16.msra.mxu0 0
        %2314 = vmatprep.mubr.bf16.mxu0 0
        %2315 = vmatmul.mubr.bf16.gmra.mxu0 %v2217
        %v2316 = vpop.f32.mrf.mxu0
        %v2317 = vadd.f32 0.0, %v2316
        %v2318 = vpop.f32.mrf.mxu0
        %v2319 = vpop.f32.mrf.mxu0
        %v2320 = vadd.f32 0.0, %v2319
        %v2321 = vpop.f32.mrf.mxu0
        %2322 = vdwg.mxu0
        %v2323 = vadd.f32 %v1352, %v2317
        %v2324 = vadd.f32 %v1353, %v2320
        %v2325 = vlaneseq
        %v2326 = vshrl.u32 %v2325, 7
        %v2327 = vsub.s32 5, %v2326
        %v2328 = vrot.slane %v609, %v2327
        %v2329 = vadd.f32 %v2323, %v2328
        %v2330 = vadd.f32 %v2324, %v2328
        %2331 = vadd.xlane.f32.xlu0 %v2329
        %v2332 = vpop.xlane.xlu0 %2331
        %2333 = vadd.xlane.f32.xlu0 %v2330
        %v2334 = vpop.xlane.xlu0 %2333
        %v2335 = vmul.f32 %v2332, %v616
        %v2336 = vmul.f32 %v2334, %v616
        %v2337 = vsub.f32 %v2329, %v2335
        %v2338 = vsub.f32 %v2330, %v2336
        %v2339 = vmul.f32 %v2337, %v2337
        %v2340 = vmul.f32 %v2338, %v2338
        %2341 = vadd.xlane.f32.xlu0 %v2339
        %v2342 = vpop.xlane.xlu0 %2341
        %2343 = vadd.xlane.f32.xlu0 %v2340
        %v2344 = vpop.xlane.xlu0 %2343
        %v2345 = vmul.f32 %v2342, %v616
        %v2346 = vmul.f32 %v2344, %v616
        %v2347 = vadd.f32 %v2345, 1e-05
        %v2348 = vadd.f32 %v2346, 1e-05
        %v2349 = vrsqrt.pop %v2347
        %v2350 = vrsqrt.pop %v2348
        %v2351 = vmul.f32 %v2337, %v2349
        %v2352 = vmul.f32 %v2338, %v2350
        %v2353 = vlaneseq
        %v2354 = vshrl.u32 %v2353, 7
        %v2355 = vsub.s32 6, %v2354
        %v2356 = vrot.slane %v609, %v2355
        %v2357 = vmul.f32 %v2351, %v2356
        %v2358 = vmul.f32 %v2352, %v2356
        %v2359 = vlaneseq
        %v2360 = vshrl.u32 %v2359, 7
        %v2361 = vsub.s32 7, %v2360
        %v2362 = vrot.slane %v609, %v2361
        %v2363 = vadd.f32 %v2357, %v2362
        %v2364 = vadd.f32 %v2358, %v2362
        %v2365 = vpack.c.bf16 %v2364, %v2363
        %v2366 = vld [vmem:[%s8] sm:$0xff]
        %v2367 = vld [vmem:[%s8 + $0x8] sm:$0xff]
        %v2368 = vld [vmem:[%s8 + $0x10] sm:$0xff]
        %v2369 = vld [vmem:[%s8 + $0x18] sm:$0xff]
        %v2370 = vld [vmem:[%s8 + $0x20] sm:$0xff]
        %v2371 = vld [vmem:[%s8 + $0x28] sm:$0xff]
        %v2372 = vld [vmem:[%s8 + $0x30] sm:$0xff]
        %v2373 = vld [vmem:[%s8 + $0x38] sm:$0xff]
        %v2374 = vld [vmem:[%s8 + $0x40] sm:$0xff]
        %v2375 = vld [vmem:[%s8 + $0x48] sm:$0xff]
        %v2376 = vld [vmem:[%s8 + $0x50] sm:$0xff]
        %v2377 = vld [vmem:[%s8 + $0x58] sm:$0xff]
        %v2378 = vld [vmem:[%s8 + $0x60] sm:$0xff]
        %v2379 = vld [vmem:[%s8 + $0x68] sm:$0xff]
        %v2380 = vld [vmem:[%s8 + $0x70] sm:$0xff]
        %v2381 = vld [vmem:[%s8 + $0x78] sm:$0xff]
        %v2382 = vld [vmem:[#allocation10] sm:$0x3]
        %v2384 = vlaneseq
        %v2385 = vshrl.u32 %v2384, 7
        %v2386 = vsub.s32 0, %v2385
        %v2387 = vrot.slane %v2382, %v2386
        %v2388 = vlaneseq
        %v2389 = vshrl.u32 %v2388, 7
        %v2390 = vsub.s32 1, %v2389
        %v2391 = vrot.slane %v2382, %v2390
        %v2410 = vunpack.c.l.b16 %v2366
        %v2411 = vunpack.c.h.b16 %v2366
        %v2412 = vunpack.c.l.b16 %v2367
        %v2413 = vunpack.c.h.b16 %v2367
        %v2414 = vunpack.c.l.b16 %v2368
        %v2415 = vunpack.c.h.b16 %v2368
        %v2416 = vunpack.c.l.b16 %v2369
        %v2417 = vunpack.c.h.b16 %v2369
        %v2418 = vunpack.c.l.b16 %v2370
        %v2419 = vunpack.c.h.b16 %v2370
        %v2420 = vunpack.c.l.b16 %v2371
        %v2421 = vunpack.c.h.b16 %v2371
        %v2422 = vunpack.c.l.b16 %v2372
        %v2423 = vunpack.c.h.b16 %v2372
        %v2424 = vunpack.c.l.b16 %v2373
        %v2425 = vunpack.c.h.b16 %v2373
        %v2426 = vunpack.c.l.b16 %v2374
        %v2427 = vunpack.c.h.b16 %v2374
        %v2428 = vunpack.c.l.b16 %v2375
        %v2429 = vunpack.c.h.b16 %v2375
        %v2430 = vunpack.c.l.b16 %v2376
        %v2431 = vunpack.c.h.b16 %v2376
        %v2432 = vunpack.c.l.b16 %v2377
        %v2433 = vunpack.c.h.b16 %v2377
        %v2434 = vunpack.c.l.b16 %v2378
        %v2435 = vunpack.c.h.b16 %v2378
        %v2436 = vunpack.c.l.b16 %v2379
        %v2437 = vunpack.c.h.b16 %v2379
        %v2438 = vunpack.c.l.b16 %v2380
        %v2439 = vunpack.c.h.b16 %v2380
        %v2440 = vunpack.c.l.b16 %v2381
        %v2441 = vunpack.c.h.b16 %v2381
        %v2442 = vpack.c.b16 %v2412, %v2410
        %v2443 = vpack.c.b16 %v2413, %v2411
        %v2444 = vpack.c.b16 %v2416, %v2414
        %v2445 = vpack.c.b16 %v2417, %v2415
        %v2446 = vpack.c.b16 %v2420, %v2418
        %v2447 = vpack.c.b16 %v2421, %v2419
        %v2448 = vpack.c.b16 %v2424, %v2422
        %v2449 = vpack.c.b16 %v2425, %v2423
        %v2450 = vpack.c.b16 %v2428, %v2426
        %v2451 = vpack.c.b16 %v2429, %v2427
        %v2452 = vpack.c.b16 %v2432, %v2430
        %v2453 = vpack.c.b16 %v2433, %v2431
        %v2454 = vpack.c.b16 %v2436, %v2434
        %v2455 = vpack.c.b16 %v2437, %v2435
        %v2456 = vpack.c.b16 %v2440, %v2438
        %v2457 = vpack.c.b16 %v2441, %v2439
        %2474 = vmatprep.subr.bf16.mxu0 %v2457
        %2475 = vmatpush1.bf16.msra.mxu0 %v2456
        %2476 = vmatprep.subr.bf16.mxu0 %v2455
        %2477 = vmatpush1.bf16.msra.mxu0 %v2454
        %2478 = vmatprep.subr.bf16.mxu0 %v2453
        %2479 = vmatpush1.bf16.msra.mxu0 %v2452
        %2480 = vmatprep.subr.bf16.mxu0 %v2451
        %2481 = vmatpush1.bf16.msra.mxu0 %v2450
        %2482 = vmatprep.subr.bf16.mxu0 %v2449
        %2483 = vmatpush1.bf16.msra.mxu0 %v2448
        %2484 = vmatprep.subr.bf16.mxu0 %v2447
        %2485 = vmatpush1.bf16.msra.mxu0 %v2446
        %2486 = vmatprep.subr.bf16.mxu0 %v2445
        %2487 = vmatpush1.bf16.msra.mxu0 %v2444
        %2488 = vmatprep.subr.bf16.mxu0 %v2443
        %2489 = vmatpush1.bf16.msra.mxu0 %v2442
        %2490 = vmatprep.subr.bf16.mxu0 0
        %2491 = vmatpush2.bf16.msra.mxu0 0
        %2492 = vmatprep.subr.bf16.mxu0 0
        %2493 = vmatpush2.bf16.msra.mxu0 0
        %2494 = vmatprep.subr.bf16.mxu0 0
        %2495 = vmatpush2.bf16.msra.mxu0 0
        %2496 = vmatprep.subr.bf16.mxu0 0
        %2497 = vmatpush2.bf16.msra.mxu0 0
        %2498 = vmatprep.subr.bf16.mxu0 0
        %2499 = vmatpush2.bf16.msra.mxu0 0
        %2500 = vmatprep.subr.bf16.mxu0 0
        %2501 = vmatpush2.bf16.msra.mxu0 0
        %2502 = vmatprep.subr.bf16.mxu0 0
        %2503 = vmatpush2.bf16.msra.mxu0 0
        %2504 = vmatprep.subr.bf16.mxu0 0
        %2505 = vmatpush2.bf16.msra.mxu0 0
        %2506 = vmatprep.mubr.bf16.mxu0 0
        %2507 = vmatmul.mubr.bf16.gmra.mxu0 %v2365
        %v2508 = vpop.f32.mrf.mxu0
        %v2509 = vadd.f32 %v2387, %v2508
        %v2510 = vpop.f32.mrf.mxu0
        %v2511 = vadd.f32 %v2391, %v2510
        %v2512 = vpop.f32.mrf.mxu0
        %v2513 = vadd.f32 %v2387, %v2512
        %v2514 = vpop.f32.mrf.mxu0
        %v2515 = vadd.f32 %v2391, %v2514
        %2516 = vdwg.mxu0
        %v2517 = vxor.u32 %v2511, 2147483648
        %v2518 = vxor.u32 %v2515, 2147483648
        %v2519 = vmul.f32 %v2517, 1.442695
        %v2520 = vpow.pop %v2519
        %v2521 = vmul.f32 %v2518, 1.442695
        %v2522 = vpow.pop %v2521
        %v2523 = vadd.f32 %v2520, 1.0
        %v2524 = vadd.f32 %v2522, 1.0
        %v2525 = vrcp.pop %v2523
        %v2526 = vmul.f32 1.0, %v2525
        %v2527 = vrcp.pop %v2524
        %v2528 = vmul.f32 1.0, %v2527
        %v2529 = vmul.f32 %v2509, %v2526
        %v2530 = vmul.f32 %v2513, %v2528
        %v2531 = vlaneseq
        %v2532 = vshrl.u32 %v2531, 7
        %v2533 = vadd.s32 %v2532, 8
        %v2534 = vrot.slane %v2529, 5
        %v2535 = vrot.slane %v2530, 5
        %vm2536 = vcmp.lt.s32.totalorder %v2532, 3
        %v2537 = vsel %vm2536, %v2534, %v2535
        %v2538 = vsel %vm2536, %v2535, %v2534
        %vm2539 = vcmp.ge.s32.totalorder %v2532, 3
        %vm2540 = vcmp.ge.s32.totalorder %v2533, 3
        %vm2541 = vcmp.lt.s32.totalorder %v2532, 19
        %vm2542 = vcmp.lt.s32.totalorder %v2533, 19
        %vm2543 = vmand %vm2539, %vm2541
        %vm2544 = vmand %vm2540, %vm2542
        %v2545 = vsel %vm2543, %v2538, 0.0
        %v2546 = vsel %vm2544, %v2537, 0.0
        %v2547 = vlaneseq
        %v2548 = vshrl.u32 %v2547, 7
        %v2549 = vsub.s32 1, %v2548
        %v2550 = vrot.slane %v611, %v2549
        %v2551 = vmul.f32 %v2545, %v2550
        %v2552 = vmul.f32 %v2546, %v2550
        %v2553 = vadd.f32 %v2551, 0.0
        %v2554 = vadd.f32 %v2552, 0.0
        %v2555 = vrot.slane %v2529, 6
        %v2556 = vrot.slane %v2530, 6
        %vm2557 = vcmp.lt.s32.totalorder %v2532, 2
        %v2558 = vsel %vm2557, %v2555, %v2556
        %v2559 = vsel %vm2557, %v2556, %v2555
        %vm2560 = vcmp.ge.s32.totalorder %v2532, 2
        %vm2561 = vcmp.ge.s32.totalorder %v2533, 2
        %vm2562 = vcmp.lt.s32.totalorder %v2532, 18
        %vm2563 = vcmp.lt.s32.totalorder %v2533, 18
        %vm2564 = vmand %vm2560, %vm2562
        %vm2565 = vmand %vm2561, %vm2563
        %v2566 = vsel %vm2564, %v2559, 0.0
        %v2567 = vsel %vm2565, %v2558, 0.0
        %v2568 = vlaneseq
        %v2569 = vshrl.u32 %v2568, 7
        %v2570 = vsub.s32 2, %v2569
        %v2571 = vrot.slane %v611, %v2570
        %v2572 = vmul.f32 %v2566, %v2571
        %v2573 = vmul.f32 %v2567, %v2571
        %v2574 = vadd.f32 %v2553, %v2572
        %v2575 = vadd.f32 %v2554, %v2573
        %v2576 = vrot.slane %v2529, 7
        %v2577 = vrot.slane %v2530, 7
        %vm2578 = vcmp.lt.s32.totalorder %v2532, 1
        %v2579 = vsel %vm2578, %v2576, %v2577
        %v2580 = vsel %vm2578, %v2577, %v2576
        %vm2581 = vcmp.ge.s32.totalorder %v2532, 1
        %vm2582 = vcmp.ge.s32.totalorder %v2533, 1
        %vm2583 = vcmp.lt.s32.totalorder %v2532, 17
        %vm2584 = vcmp.lt.s32.totalorder %v2533, 17
        %vm2585 = vmand %vm2581, %vm2583
        %vm2586 = vmand %vm2582, %vm2584
        %v2587 = vsel %vm2585, %v2580, 0.0
        %v2588 = vsel %vm2586, %v2579, 0.0
        %v2589 = vlaneseq
        %v2590 = vshrl.u32 %v2589, 7
        %v2591 = vsub.s32 3, %v2590
        %v2592 = vrot.slane %v611, %v2591
        %v2593 = vmul.f32 %v2587, %v2592
        %v2594 = vmul.f32 %v2588, %v2592
        %v2595 = vadd.f32 %v2574, %v2593
        %v2596 = vadd.f32 %v2575, %v2594
        %vm2597 = vcmp.ge.s32.totalorder %v2532, 0
        %vm2598 = vcmp.ge.s32.totalorder %v2533, 0
        %vm2599 = vcmp.lt.s32.totalorder %v2532, 16
        %vm2600 = vcmp.lt.s32.totalorder %v2533, 16
        %vm2601 = vmand %vm2597, %vm2599
        %vm2602 = vmand %vm2598, %vm2600
        %v2603 = vsel %vm2601, %v2529, 0.0
        %v2604 = vsel %vm2602, %v2530, 0.0
        %v2605 = vlaneseq
        %v2606 = vshrl.u32 %v2605, 7
        %v2607 = vsub.s32 4, %v2606
        %v2608 = vrot.slane %v611, %v2607
        %v2609 = vmul.f32 %v2603, %v2608
        %v2610 = vmul.f32 %v2604, %v2608
        %v2611 = vadd.f32 %v2595, %v2609
        %v2612 = vadd.f32 %v2596, %v2610
        %v2613 = vrot.slane %v2529, 1
        %v2614 = vrot.slane %v2530, 1
        %vm2615 = vcmp.lt.s32.totalorder %v2532, 7
        %v2616 = vsel %vm2615, %v2613, %v2614
        %v2617 = vsel %vm2615, %v2614, %v2613
        %vm2618 = vcmp.ge.s32.totalorder %v2532, 4294967295
        %vm2619 = vcmp.ge.s32.totalorder %v2533, 4294967295
        %vm2620 = vcmp.lt.s32.totalorder %v2532, 15
        %vm2621 = vcmp.lt.s32.totalorder %v2533, 15
        %vm2622 = vmand %vm2618, %vm2620
        %vm2623 = vmand %vm2619, %vm2621
        %v2624 = vsel %vm2622, %v2616, 0.0
        %v2625 = vsel %vm2623, %v2617, 0.0
        %v2626 = vlaneseq
        %v2627 = vshrl.u32 %v2626, 7
        %v2628 = vsub.s32 5, %v2627
        %v2629 = vrot.slane %v611, %v2628
        %v2630 = vmul.f32 %v2624, %v2629
        %v2631 = vmul.f32 %v2625, %v2629
        %v2632 = vadd.f32 %v2611, %v2630
        %v2633 = vadd.f32 %v2612, %v2631
        %v2634 = vrot.slane %v2529, 2
        %v2635 = vrot.slane %v2530, 2
        %vm2636 = vcmp.lt.s32.totalorder %v2532, 6
        %v2637 = vsel %vm2636, %v2634, %v2635
        %v2638 = vsel %vm2636, %v2635, %v2634
        %vm2639 = vcmp.ge.s32.totalorder %v2532, 4294967294
        %vm2640 = vcmp.ge.s32.totalorder %v2533, 4294967294
        %vm2641 = vcmp.lt.s32.totalorder %v2532, 14
        %vm2642 = vcmp.lt.s32.totalorder %v2533, 14
        %vm2643 = vmand %vm2639, %vm2641
        %vm2644 = vmand %vm2640, %vm2642
        %v2645 = vsel %vm2643, %v2637, 0.0
        %v2646 = vsel %vm2644, %v2638, 0.0
        %v2647 = vlaneseq
        %v2648 = vshrl.u32 %v2647, 7
        %v2649 = vsub.s32 6, %v2648
        %v2650 = vrot.slane %v611, %v2649
        %v2651 = vmul.f32 %v2645, %v2650
        %v2652 = vmul.f32 %v2646, %v2650
        %v2653 = vadd.f32 %v2632, %v2651
        %v2654 = vadd.f32 %v2633, %v2652
        %v2655 = vrot.slane %v2529, 3
        %v2656 = vrot.slane %v2530, 3
        %vm2657 = vcmp.lt.s32.totalorder %v2532, 5
        %v2658 = vsel %vm2657, %v2655, %v2656
        %v2659 = vsel %vm2657, %v2656, %v2655
        %vm2660 = vcmp.ge.s32.totalorder %v2532, 4294967293
        %vm2661 = vcmp.ge.s32.totalorder %v2533, 4294967293
        %vm2662 = vcmp.lt.s32.totalorder %v2532, 13
        %vm2663 = vcmp.lt.s32.totalorder %v2533, 13
        %vm2664 = vmand %vm2660, %vm2662
        %vm2665 = vmand %vm2661, %vm2663
        %v2666 = vsel %vm2664, %v2658, 0.0
        %v2667 = vsel %vm2665, %v2659, 0.0
        %v2668 = vlaneseq
        %v2669 = vshrl.u32 %v2668, 7
        %v2670 = vsub.s32 7, %v2669
        %v2671 = vrot.slane %v611, %v2670
        %v2672 = vmul.f32 %v2666, %v2671
        %v2673 = vmul.f32 %v2667, %v2671
        %v2674 = vadd.f32 %v2653, %v2672
        %v2675 = vadd.f32 %v2654, %v2673
        %v2676 = vlaneseq
        %v2677 = vshrl.u32 %v2676, 7
        %v2678 = vsub.s32 0, %v2677
        %v2679 = vrot.slane %v610, %v2678
        %v2680 = vadd.f32 %v2674, %v2679
        %v2681 = vadd.f32 %v2675, %v2679
        %v2682 = vlaneseq
        %v2683 = vshrl.u32 %v2682, 7
        %v2684 = vsub.s32 1, %v2683
        %v2685 = vrot.slane %v610, %v2684
        %v2686 = vmul.f32 %v2680, %v2685
        %v2687 = vmul.f32 %v2681, %v2685
        %v2688 = vlaneseq
        %v2689 = vshrl.u32 %v2688, 7
        %v2690 = vsub.s32 2, %v2689
        %v2691 = vrot.slane %v610, %v2690
        %v2692 = vadd.f32 %v2686, %v2691
        %v2693 = vadd.f32 %v2687, %v2691
        %v2694 = vxor.u32 %v2692, 2147483648
        %v2695 = vxor.u32 %v2693, 2147483648
        %v2696 = vmul.f32 %v2694, 1.442695
        %v2697 = vpow.pop %v2696
        %v2698 = vmul.f32 %v2695, 1.442695
        %v2699 = vpow.pop %v2698
        %v2700 = vadd.f32 %v2697, 1.0
        %v2701 = vadd.f32 %v2699, 1.0
        %v2702 = vrcp.pop %v2700
        %v2703 = vmul.f32 1.0, %v2702
        %v2704 = vrcp.pop %v2701
        %v2705 = vmul.f32 1.0, %v2704
        %v2706 = vmul.f32 %v2692, %v2703
        %v2707 = vmul.f32 %v2693, %v2705
        %v2708 = vpack.c.bf16 %v2707, %v2706
        %v2709 = vld [vmem:[#allocation12] sm:$0xf]
        %v2710 = vld [vmem:[#allocation12 + $0x4] sm:$0xf]
        %v2711 = vld [vmem:[#allocation12 + $0x8] sm:$0xf]
        %v2712 = vld [vmem:[#allocation12 + $0xc] sm:$0xf]
        %v2713 = vld [vmem:[#allocation12 + $0x10] sm:$0xf]
        %v2714 = vld [vmem:[#allocation12 + $0x14] sm:$0xf]
        %v2715 = vld [vmem:[#allocation12 + $0x18] sm:$0xf]
        %v2716 = vld [vmem:[#allocation12 + $0x1c] sm:$0xf]
        %v2717 = vld [vmem:[#allocation12 + $0x20] sm:$0xf]
        %v2718 = vld [vmem:[#allocation12 + $0x24] sm:$0xf]
        %v2719 = vld [vmem:[#allocation12 + $0x28] sm:$0xf]
        %v2720 = vld [vmem:[#allocation12 + $0x2c] sm:$0xf]
        %v2721 = vld [vmem:[#allocation12 + $0x30] sm:$0xf]
        %v2722 = vld [vmem:[#allocation12 + $0x34] sm:$0xf]
        %v2723 = vld [vmem:[#allocation12 + $0x38] sm:$0xf]
        %v2724 = vld [vmem:[#allocation12 + $0x3c] sm:$0xf]
        %v2725 = vlaneseq
        %v2726 = vshrl.u32 %v2725, 7
        %v2727 = vsub.s32 3, %v2726
        %v2728 = vrot.slane %v610, %v2727
        %v2745 = vunpack.c.l.b16 %v2709
        %v2746 = vunpack.c.l.b16 %v2710
        %v2747 = vunpack.c.l.b16 %v2711
        %v2748 = vunpack.c.l.b16 %v2712
        %v2749 = vunpack.c.l.b16 %v2713
        %v2750 = vunpack.c.l.b16 %v2714
        %v2751 = vunpack.c.l.b16 %v2715
        %v2752 = vunpack.c.l.b16 %v2716
        %v2753 = vunpack.c.l.b16 %v2717
        %v2754 = vunpack.c.l.b16 %v2718
        %v2755 = vunpack.c.l.b16 %v2719
        %v2756 = vunpack.c.l.b16 %v2720
        %v2757 = vunpack.c.l.b16 %v2721
        %v2758 = vunpack.c.l.b16 %v2722
        %v2759 = vunpack.c.l.b16 %v2723
        %v2760 = vunpack.c.l.b16 %v2724
        %v2761 = vpack.c.b16 %v2746, %v2745
        %v2762 = vpack.c.b16 %v2748, %v2747
        %v2763 = vpack.c.b16 %v2750, %v2749
        %v2764 = vpack.c.b16 %v2752, %v2751
        %v2765 = vpack.c.b16 %v2754, %v2753
        %v2766 = vpack.c.b16 %v2756, %v2755
        %v2767 = vpack.c.b16 %v2758, %v2757
        %v2768 = vpack.c.b16 %v2760, %v2759
        %2777 = vmatprep.subr.bf16.mxu0 0
        %2778 = vmatpush1.bf16.msra.mxu0 %v2768
        %2779 = vmatprep.subr.bf16.mxu0 0
        %2780 = vmatpush1.bf16.msra.mxu0 %v2767
        %2781 = vmatprep.subr.bf16.mxu0 0
        %2782 = vmatpush1.bf16.msra.mxu0 %v2766
        %2783 = vmatprep.subr.bf16.mxu0 0
        %2784 = vmatpush1.bf16.msra.mxu0 %v2765
        %2785 = vmatprep.subr.bf16.mxu0 0
        %2786 = vmatpush1.bf16.msra.mxu0 %v2764
        %2787 = vmatprep.subr.bf16.mxu0 0
        %2788 = vmatpush1.bf16.msra.mxu0 %v2763
        %2789 = vmatprep.subr.bf16.mxu0 0
        %2790 = vmatpush1.bf16.msra.mxu0 %v2762
        %2791 = vmatprep.subr.bf16.mxu0 0
        %2792 = vmatpush1.bf16.msra.mxu0 %v2761
        %2793 = vmatprep.subr.bf16.mxu0 0
        %2794 = vmatpush2.bf16.msra.mxu0 0
        %2795 = vmatprep.subr.bf16.mxu0 0
        %2796 = vmatpush2.bf16.msra.mxu0 0
        %2797 = vmatprep.subr.bf16.mxu0 0
        %2798 = vmatpush2.bf16.msra.mxu0 0
        %2799 = vmatprep.subr.bf16.mxu0 0
        %2800 = vmatpush2.bf16.msra.mxu0 0
        %2801 = vmatprep.subr.bf16.mxu0 0
        %2802 = vmatpush2.bf16.msra.mxu0 0
        %2803 = vmatprep.subr.bf16.mxu0 0
        %2804 = vmatpush2.bf16.msra.mxu0 0
        %2805 = vmatprep.subr.bf16.mxu0 0
        %2806 = vmatpush2.bf16.msra.mxu0 0
        %2807 = vmatprep.subr.bf16.mxu0 0
        %2808 = vmatpush2.bf16.msra.mxu0 0
        %2809 = vmatprep.mubr.bf16.mxu0 0
        %2810 = vmatmul.mubr.bf16.gmra.mxu0 %v2708
        %v2811 = vpop.f32.mrf.mxu0
        %v2812 = vadd.f32 %v2728, %v2811
        %v2813 = vpop.f32.mrf.mxu0
        %v2814 = vpop.f32.mrf.mxu0
        %v2815 = vadd.f32 %v2728, %v2814
        %v2816 = vpop.f32.mrf.mxu0
        %2817 = vdwg.mxu0
        %v2818 = vadd.f32 %v2329, %v2812
        %v2819 = vadd.f32 %v2330, %v2815
        %2820 = vadd.xlane.f32.xlu0 %v2818
        %v2821 = vpop.xlane.xlu0 %2820
        %2822 = vadd.xlane.f32.xlu0 %v2819
        %v2823 = vpop.xlane.xlu0 %2822
        %v2824 = vmul.f32 %v2821, %v616
        %v2825 = vmul.f32 %v2823, %v616
        %v2826 = vsub.f32 %v2818, %v2824
        %v2827 = vsub.f32 %v2819, %v2825
        %v2828 = vmul.f32 %v2826, %v2826
        %v2829 = vmul.f32 %v2827, %v2827
        %2830 = vadd.xlane.f32.xlu0 %v2828
        %v2831 = vpop.xlane.xlu0 %2830
        %2832 = vadd.xlane.f32.xlu0 %v2829
        %v2833 = vpop.xlane.xlu0 %2832
        %v2834 = vmul.f32 %v2831, %v616
        %v2835 = vmul.f32 %v2833, %v616
        %v2836 = vadd.f32 %v2834, 1e-05
        %v2837 = vadd.f32 %v2835, 1e-05
        %v2838 = vrsqrt.pop %v2836
        %v2839 = vrsqrt.pop %v2837
        %v2840 = vmul.f32 %v2826, %v2838
        %v2841 = vmul.f32 %v2827, %v2839
        %v2842 = vlaneseq
        %v2843 = vshrl.u32 %v2842, 7
        %v2844 = vsub.s32 4, %v2843
        %v2845 = vrot.slane %v610, %v2844
        %v2846 = vmul.f32 %v2840, %v2845
        %v2847 = vmul.f32 %v2841, %v2845
        %v2848 = vlaneseq
        %v2849 = vshrl.u32 %v2848, 7
        %v2850 = vsub.s32 5, %v2849
        %v2851 = vrot.slane %v610, %v2850
        %v2852 = vadd.f32 %v2846, %v2851
        %v2853 = vadd.f32 %v2847, %v2851
        %v2854 = vpack.c.bf16 %v2853, %v2852
        %v2855 = vld [vmem:[#allocation13] sm:$0xff]
        %v2856 = vld [vmem:[#allocation13 + $0x8] sm:$0xff]
        %v2857 = vld [vmem:[#allocation13 + $0x10] sm:$0xff]
        %v2858 = vld [vmem:[#allocation13 + $0x18] sm:$0xff]
        %v2859 = vld [vmem:[#allocation13 + $0x20] sm:$0xff]
        %v2860 = vld [vmem:[#allocation13 + $0x28] sm:$0xff]
        %v2861 = vld [vmem:[#allocation13 + $0x30] sm:$0xff]
        %v2862 = vld [vmem:[#allocation13 + $0x38] sm:$0xff]
        %v2863 = vld [vmem:[#allocation13 + $0x40] sm:$0xff]
        %v2864 = vld [vmem:[#allocation13 + $0x48] sm:$0xff]
        %v2865 = vld [vmem:[#allocation13 + $0x50] sm:$0xff]
        %v2866 = vld [vmem:[#allocation13 + $0x58] sm:$0xff]
        %v2867 = vld [vmem:[#allocation13 + $0x60] sm:$0xff]
        %v2868 = vld [vmem:[#allocation13 + $0x68] sm:$0xff]
        %v2869 = vld [vmem:[#allocation13 + $0x70] sm:$0xff]
        %v2870 = vld [vmem:[#allocation13 + $0x78] sm:$0xff]
        %v2871 = vld [vmem:[#allocation13 + $0x80] sm:$0xff]
        %v2872 = vld [vmem:[#allocation13 + $0x88] sm:$0xff]
        %v2873 = vld [vmem:[#allocation13 + $0x90] sm:$0xff]
        %v2874 = vld [vmem:[#allocation13 + $0x98] sm:$0xff]
        %v2875 = vld [vmem:[#allocation13 + $0xa0] sm:$0xff]
        %v2876 = vld [vmem:[#allocation13 + $0xa8] sm:$0xff]
        %v2877 = vld [vmem:[#allocation13 + $0xb0] sm:$0xff]
        %v2878 = vld [vmem:[#allocation13 + $0xb8] sm:$0xff]
        %v2879 = vld [vmem:[#allocation13 + $0xc0] sm:$0xff]
        %v2880 = vld [vmem:[#allocation13 + $0xc8] sm:$0xff]
        %v2881 = vld [vmem:[#allocation13 + $0xd0] sm:$0xff]
        %v2882 = vld [vmem:[#allocation13 + $0xd8] sm:$0xff]
        %v2883 = vld [vmem:[#allocation13 + $0xe0] sm:$0xff]
        %v2884 = vld [vmem:[#allocation13 + $0xe8] sm:$0xff]
        %v2885 = vld [vmem:[#allocation13 + $0xf0] sm:$0xff]
        %v2886 = vld [vmem:[#allocation13 + $0xf8] sm:$0xff]
        %v2887 = vld [vmem:[#allocation15] sm:$0xf]
        %v2889 = vlaneseq
        %v2890 = vshrl.u32 %v2889, 7
        %v2891 = vsub.s32 0, %v2890
        %v2892 = vrot.slane %v2887, %v2891
        %v2893 = vlaneseq
        %v2894 = vshrl.u32 %v2893, 7
        %v2895 = vsub.s32 1, %v2894
        %v2896 = vrot.slane %v2887, %v2895
        %v2897 = vlaneseq
        %v2898 = vshrl.u32 %v2897, 7
        %v2899 = vsub.s32 2, %v2898
        %v2900 = vrot.slane %v2887, %v2899
        %v2901 = vlaneseq
        %v2902 = vshrl.u32 %v2901, 7
        %v2903 = vsub.s32 3, %v2902
        %v2904 = vrot.slane %v2887, %v2903
        %v2941 = vunpack.c.l.b16 %v2855
        %v2942 = vunpack.c.h.b16 %v2855
        %v2943 = vunpack.c.l.b16 %v2856
        %v2944 = vunpack.c.h.b16 %v2856
        %v2945 = vunpack.c.l.b16 %v2857
        %v2946 = vunpack.c.h.b16 %v2857
        %v2947 = vunpack.c.l.b16 %v2858
        %v2948 = vunpack.c.h.b16 %v2858
        %v2949 = vunpack.c.l.b16 %v2859
        %v2950 = vunpack.c.h.b16 %v2859
        %v2951 = vunpack.c.l.b16 %v2860
        %v2952 = vunpack.c.h.b16 %v2860
        %v2953 = vunpack.c.l.b16 %v2861
        %v2954 = vunpack.c.h.b16 %v2861
        %v2955 = vunpack.c.l.b16 %v2862
        %v2956 = vunpack.c.h.b16 %v2862
        %v2957 = vunpack.c.l.b16 %v2863
        %v2958 = vunpack.c.h.b16 %v2863
        %v2959 = vunpack.c.l.b16 %v2864
        %v2960 = vunpack.c.h.b16 %v2864
        %v2961 = vunpack.c.l.b16 %v2865
        %v2962 = vunpack.c.h.b16 %v2865
        %v2963 = vunpack.c.l.b16 %v2866
        %v2964 = vunpack.c.h.b16 %v2866
        %v2965 = vunpack.c.l.b16 %v2867
        %v2966 = vunpack.c.h.b16 %v2867
        %v2967 = vunpack.c.l.b16 %v2868
        %v2968 = vunpack.c.h.b16 %v2868
        %v2969 = vunpack.c.l.b16 %v2869
        %v2970 = vunpack.c.h.b16 %v2869
        %v2971 = vunpack.c.l.b16 %v2870
        %v2972 = vunpack.c.h.b16 %v2870
        %v2973 = vunpack.c.l.b16 %v2871
        %v2974 = vunpack.c.h.b16 %v2871
        %v2975 = vunpack.c.l.b16 %v2872
        %v2976 = vunpack.c.h.b16 %v2872
        %v2977 = vunpack.c.l.b16 %v2873
        %v2978 = vunpack.c.h.b16 %v2873
        %v2979 = vunpack.c.l.b16 %v2874
        %v2980 = vunpack.c.h.b16 %v2874
        %v2981 = vunpack.c.l.b16 %v2875
        %v2982 = vunpack.c.h.b16 %v2875
        %v2983 = vunpack.c.l.b16 %v2876
        %v2984 = vunpack.c.h.b16 %v2876
        %v2985 = vunpack.c.l.b16 %v2877
        %v2986 = vunpack.c.h.b16 %v2877
        %v2987 = vunpack.c.l.b16 %v2878
        %v2988 = vunpack.c.h.b16 %v2878
        %v2989 = vunpack.c.l.b16 %v2879
        %v2990 = vunpack.c.h.b16 %v2879
        %v2991 = vunpack.c.l.b16 %v2880
        %v2992 = vunpack.c.h.b16 %v2880
        %v2993 = vunpack.c.l.b16 %v2881
        %v2994 = vunpack.c.h.b16 %v2881
        %v2995 = vunpack.c.l.b16 %v2882
        %v2996 = vunpack.c.h.b16 %v2882
        %v2997 = vunpack.c.l.b16 %v2883
        %v2998 = vunpack.c.h.b16 %v2883
        %v2999 = vunpack.c.l.b16 %v2884
        %v3000 = vunpack.c.h.b16 %v2884
        %v3001 = vunpack.c.l.b16 %v2885
        %v3002 = vunpack.c.h.b16 %v2885
        %v3003 = vunpack.c.l.b16 %v2886
        %v3004 = vunpack.c.h.b16 %v2886
        %v3005 = vpack.c.b16 %v2945, %v2941
        %v3006 = vpack.c.b16 %v2946, %v2942
        %v3007 = vpack.c.b16 %v2947, %v2943
        %v3008 = vpack.c.b16 %v2948, %v2944
        %v3009 = vpack.c.b16 %v2953, %v2949
        %v3010 = vpack.c.b16 %v2954, %v2950
        %v3011 = vpack.c.b16 %v2955, %v2951
        %v3012 = vpack.c.b16 %v2956, %v2952
        %v3013 = vpack.c.b16 %v2961, %v2957
        %v3014 = vpack.c.b16 %v2962, %v2958
        %v3015 = vpack.c.b16 %v2963, %v2959
        %v3016 = vpack.c.b16 %v2964, %v2960
        %v3017 = vpack.c.b16 %v2969, %v2965
        %v3018 = vpack.c.b16 %v2970, %v2966
        %v3019 = vpack.c.b16 %v2971, %v2967
        %v3020 = vpack.c.b16 %v2972, %v2968
        %v3021 = vpack.c.b16 %v2977, %v2973
        %v3022 = vpack.c.b16 %v2978, %v2974
        %v3023 = vpack.c.b16 %v2979, %v2975
        %v3024 = vpack.c.b16 %v2980, %v2976
        %v3025 = vpack.c.b16 %v2985, %v2981
        %v3026 = vpack.c.b16 %v2986, %v2982
        %v3027 = vpack.c.b16 %v2987, %v2983
        %v3028 = vpack.c.b16 %v2988, %v2984
        %v3029 = vpack.c.b16 %v2993, %v2989
        %v3030 = vpack.c.b16 %v2994, %v2990
        %v3031 = vpack.c.b16 %v2995, %v2991
        %v3032 = vpack.c.b16 %v2996, %v2992
        %v3033 = vpack.c.b16 %v3001, %v2997
        %v3034 = vpack.c.b16 %v3002, %v2998
        %v3035 = vpack.c.b16 %v3003, %v2999
        %v3036 = vpack.c.b16 %v3004, %v3000
        %3069 = vmatprep.subr.bf16.mxu0 %v3034
        %3070 = vmatpush1.bf16.msra.mxu0 %v3033
        %3071 = vmatprep.subr.bf16.mxu0 %v3030
        %3072 = vmatpush1.bf16.msra.mxu0 %v3029
        %3073 = vmatprep.subr.bf16.mxu0 %v3026
        %3074 = vmatpush1.bf16.msra.mxu0 %v3025
        %3075 = vmatprep.subr.bf16.mxu0 %v3022
        %3076 = vmatpush1.bf16.msra.mxu0 %v3021
        %3077 = vmatprep.subr.bf16.mxu0 %v3018
        %3078 = vmatpush1.bf16.msra.mxu0 %v3017
        %3079 = vmatprep.subr.bf16.mxu0 %v3014
        %3080 = vmatpush1.bf16.msra.mxu0 %v3013
        %3081 = vmatprep.subr.bf16.mxu0 %v3010
        %3082 = vmatpush1.bf16.msra.mxu0 %v3009
        %3083 = vmatprep.subr.bf16.mxu0 %v3006
        %3084 = vmatpush1.bf16.msra.mxu0 %v3005
        %3085 = vmatprep.subr.bf16.mxu0 0
        %3086 = vmatpush2.bf16.msra.mxu0 0
        %3087 = vmatprep.subr.bf16.mxu0 0
        %3088 = vmatpush2.bf16.msra.mxu0 0
        %3089 = vmatprep.subr.bf16.mxu0 0
        %3090 = vmatpush2.bf16.msra.mxu0 0
        %3091 = vmatprep.subr.bf16.mxu0 0
        %3092 = vmatpush2.bf16.msra.mxu0 0
        %3093 = vmatprep.subr.bf16.mxu0 0
        %3094 = vmatpush2.bf16.msra.mxu0 0
        %3095 = vmatprep.subr.bf16.mxu0 0
        %3096 = vmatpush2.bf16.msra.mxu0 0
        %3097 = vmatprep.subr.bf16.mxu0 0
        %3098 = vmatpush2.bf16.msra.mxu0 0
        %3099 = vmatprep.subr.bf16.mxu0 0
        %3100 = vmatpush2.bf16.msra.mxu0 0
        %3101 = vmatprep.mubr.bf16.mxu0 0
        %3102 = vmatmul.mubr.bf16.gmra.mxu0 %v2854
        %v3103 = vpop.f32.mrf.mxu0
        %v3104 = vadd.f32 %v2892, %v3103
        %v3105 = vpop.f32.mrf.mxu0
        %v3106 = vadd.f32 %v2896, %v3105
        %v3107 = vpop.f32.mrf.mxu0
        %v3108 = vadd.f32 %v2892, %v3107
        %v3109 = vpop.f32.mrf.mxu0
        %v3110 = vadd.f32 %v2896, %v3109
        %3111 = vdwg.mxu0
        %3112 = vmatprep.subr.bf16.mxu0 %v3036
        %3113 = vmatpush1.bf16.msra.mxu0 %v3035
        %3114 = vmatprep.subr.bf16.mxu0 %v3032
        %3115 = vmatpush1.bf16.msra.mxu0 %v3031
        %3116 = vmatprep.subr.bf16.mxu0 %v3028
        %3117 = vmatpush1.bf16.msra.mxu0 %v3027
        %3118 = vmatprep.subr.bf16.mxu0 %v3024
        %3119 = vmatpush1.bf16.msra.mxu0 %v3023
        %3120 = vmatprep.subr.bf16.mxu0 %v3020
        %3121 = vmatpush1.bf16.msra.mxu0 %v3019
        %3122 = vmatprep.subr.bf16.mxu0 %v3016
        %3123 = vmatpush1.bf16.msra.mxu0 %v3015
        %3124 = vmatprep.subr.bf16.mxu0 %v3012
        %3125 = vmatpush1.bf16.msra.mxu0 %v3011
        %3126 = vmatprep.subr.bf16.mxu0 %v3008
        %3127 = vmatpush1.bf16.msra.mxu0 %v3007
        %3128 = vmatprep.subr.bf16.mxu0 0
        %3129 = vmatpush2.bf16.msra.mxu0 0
        %3130 = vmatprep.subr.bf16.mxu0 0
        %3131 = vmatpush2.bf16.msra.mxu0 0
        %3132 = vmatprep.subr.bf16.mxu0 0
        %3133 = vmatpush2.bf16.msra.mxu0 0
        %3134 = vmatprep.subr.bf16.mxu0 0
        %3135 = vmatpush2.bf16.msra.mxu0 0
        %3136 = vmatprep.subr.bf16.mxu0 0
        %3137 = vmatpush2.bf16.msra.mxu0 0
        %3138 = vmatprep.subr.bf16.mxu0 0
        %3139 = vmatpush2.bf16.msra.mxu0 0
        %3140 = vmatprep.subr.bf16.mxu0 0
        %3141 = vmatpush2.bf16.msra.mxu0 0
        %3142 = vmatprep.subr.bf16.mxu0 0
        %3143 = vmatpush2.bf16.msra.mxu0 0
        %3144 = vmatprep.mubr.bf16.mxu0 0
        %3145 = vmatmul.mubr.bf16.gmra.mxu0 %v2854
        %v3146 = vpop.f32.mrf.mxu0
        %v3147 = vadd.f32 %v2900, %v3146
        %v3148 = vpop.f32.mrf.mxu0
        %v3149 = vadd.f32 %v2904, %v3148
        %v3150 = vpop.f32.mrf.mxu0
        %v3151 = vadd.f32 %v2900, %v3150
        %v3152 = vpop.f32.mrf.mxu0
        %v3153 = vadd.f32 %v2904, %v3152
        %3154 = vdwg.mxu0
        %v3155 = vxor.u32 %v3104, 2147483648
        %v3156 = vxor.u32 %v3106, 2147483648
        %v3157 = vxor.u32 %v3147, 2147483648
        %v3158 = vxor.u32 %v3149, 2147483648
        %v3159 = vxor.u32 %v3108, 2147483648
        %v3160 = vxor.u32 %v3110, 2147483648
        %v3161 = vxor.u32 %v3151, 2147483648
        %v3162 = vxor.u32 %v3153, 2147483648
        %v3163 = vmul.f32 %v3155, 1.442695
        %v3164 = vpow.pop %v3163
        %v3165 = vmul.f32 %v3156, 1.442695
        %v3166 = vpow.pop %v3165
        %v3167 = vmul.f32 %v3157, 1.442695
        %v3168 = vpow.pop %v3167
        %v3169 = vmul.f32 %v3158, 1.442695
        %v3170 = vpow.pop %v3169
        %v3171 = vmul.f32 %v3159, 1.442695
        %v3172 = vpow.pop %v3171
        %v3173 = vmul.f32 %v3160, 1.442695
        %v3174 = vpow.pop %v3173
        %v3175 = vmul.f32 %v3161, 1.442695
        %v3176 = vpow.pop %v3175
        %v3177 = vmul.f32 %v3162, 1.442695
        %v3178 = vpow.pop %v3177
        %v3179 = vadd.f32 %v3164, 1.0
        %v3180 = vadd.f32 %v3166, 1.0
        %v3181 = vadd.f32 %v3168, 1.0
        %v3182 = vadd.f32 %v3170, 1.0
        %v3183 = vadd.f32 %v3172, 1.0
        %v3184 = vadd.f32 %v3174, 1.0
        %v3185 = vadd.f32 %v3176, 1.0
        %v3186 = vadd.f32 %v3178, 1.0
        %v3187 = vrcp.pop %v3179
        %v3188 = vmul.f32 1.0, %v3187
        %v3189 = vrcp.pop %v3180
        %v3190 = vmul.f32 1.0, %v3189
        %v3191 = vrcp.pop %v3181
        %v3192 = vmul.f32 1.0, %v3191
        %v3193 = vrcp.pop %v3182
        %v3194 = vmul.f32 1.0, %v3193
        %v3195 = vrcp.pop %v3183
        %v3196 = vmul.f32 1.0, %v3195
        %v3197 = vrcp.pop %v3184
        %v3198 = vmul.f32 1.0, %v3197
        %v3199 = vrcp.pop %v3185
        %v3200 = vmul.f32 1.0, %v3199
        %v3201 = vrcp.pop %v3186
        %v3202 = vmul.f32 1.0, %v3201
        %v3203 = vmul.f32 %v3104, %v3188
        %v3204 = vmul.f32 %v3106, %v3190
        %v3205 = vmul.f32 %v3147, %v3192
        %v3206 = vmul.f32 %v3149, %v3194
        %v3207 = vmul.f32 %v3108, %v3196
        %v3208 = vmul.f32 %v3110, %v3198
        %v3209 = vmul.f32 %v3151, %v3200
        %v3210 = vmul.f32 %v3153, %v3202
        %v3211 = vpack.c.bf16 %v3207, %v3203
        %v3212 = vpack.c.bf16 %v3208, %v3204
        %v3213 = vpack.c.bf16 %v3209, %v3205
        %v3214 = vpack.c.bf16 %v3210, %v3206
        %v3215 = vld [vmem:[#allocation16] sm:$0xf]
        %v3216 = vld [vmem:[#allocation16 + $0x4] sm:$0xf]
        %v3217 = vld [vmem:[#allocation16 + $0x8] sm:$0xf]
        %v3218 = vld [vmem:[#allocation16 + $0xc] sm:$0xf]
        %v3219 = vld [vmem:[#allocation16 + $0x10] sm:$0xf]
        %v3220 = vld [vmem:[#allocation16 + $0x14] sm:$0xf]
        %v3221 = vld [vmem:[#allocation16 + $0x18] sm:$0xf]
        %v3222 = vld [vmem:[#allocation16 + $0x1c] sm:$0xf]
        %v3223 = vld [vmem:[#allocation16 + $0x20] sm:$0xf]
        %v3224 = vld [vmem:[#allocation16 + $0x24] sm:$0xf]
        %v3225 = vld [vmem:[#allocation16 + $0x28] sm:$0xf]
        %v3226 = vld [vmem:[#allocation16 + $0x2c] sm:$0xf]
        %v3227 = vld [vmem:[#allocation16 + $0x30] sm:$0xf]
        %v3228 = vld [vmem:[#allocation16 + $0x34] sm:$0xf]
        %v3229 = vld [vmem:[#allocation16 + $0x38] sm:$0xf]
        %v3230 = vld [vmem:[#allocation16 + $0x3c] sm:$0xf]
        %v3231 = vld [vmem:[#allocation16 + $0x40] sm:$0xf]
        %v3232 = vld [vmem:[#allocation16 + $0x44] sm:$0xf]
        %v3233 = vld [vmem:[#allocation16 + $0x48] sm:$0xf]
        %v3234 = vld [vmem:[#allocation16 + $0x4c] sm:$0xf]
        %v3235 = vld [vmem:[#allocation16 + $0x50] sm:$0xf]
        %v3236 = vld [vmem:[#allocation16 + $0x54] sm:$0xf]
        %v3237 = vld [vmem:[#allocation16 + $0x58] sm:$0xf]
        %v3238 = vld [vmem:[#allocation16 + $0x5c] sm:$0xf]
        %v3239 = vld [vmem:[#allocation16 + $0x60] sm:$0xf]
        %v3240 = vld [vmem:[#allocation16 + $0x64] sm:$0xf]
        %v3241 = vld [vmem:[#allocation16 + $0x68] sm:$0xf]
        %v3242 = vld [vmem:[#allocation16 + $0x6c] sm:$0xf]
        %v3243 = vld [vmem:[#allocation16 + $0x70] sm:$0xf]
        %v3244 = vld [vmem:[#allocation16 + $0x74] sm:$0xf]
        %v3245 = vld [vmem:[#allocation16 + $0x78] sm:$0xf]
        %v3246 = vld [vmem:[#allocation16 + $0x7c] sm:$0xf]
        %v3247 = vld [vmem:[#allocation16 + $0x80] sm:$0xf]
        %v3248 = vld [vmem:[#allocation16 + $0x84] sm:$0xf]
        %v3249 = vld [vmem:[#allocation16 + $0x88] sm:$0xf]
        %v3250 = vld [vmem:[#allocation16 + $0x8c] sm:$0xf]
        %v3251 = vld [vmem:[#allocation16 + $0x90] sm:$0xf]
        %v3252 = vld [vmem:[#allocation16 + $0x94] sm:$0xf]
        %v3253 = vld [vmem:[#allocation16 + $0x98] sm:$0xf]
        %v3254 = vld [vmem:[#allocation16 + $0x9c] sm:$0xf]
        %v3255 = vld [vmem:[#allocation16 + $0xa0] sm:$0xf]
        %v3256 = vld [vmem:[#allocation16 + $0xa4] sm:$0xf]
        %v3257 = vld [vmem:[#allocation16 + $0xa8] sm:$0xf]
        %v3258 = vld [vmem:[#allocation16 + $0xac] sm:$0xf]
        %v3259 = vld [vmem:[#allocation16 + $0xb0] sm:$0xf]
        %v3260 = vld [vmem:[#allocation16 + $0xb4] sm:$0xf]
        %v3261 = vld [vmem:[#allocation16 + $0xb8] sm:$0xf]
        %v3262 = vld [vmem:[#allocation16 + $0xbc] sm:$0xf]
        %v3263 = vld [vmem:[#allocation16 + $0xc0] sm:$0xf]
        %v3264 = vld [vmem:[#allocation16 + $0xc4] sm:$0xf]
        %v3265 = vld [vmem:[#allocation16 + $0xc8] sm:$0xf]
        %v3266 = vld [vmem:[#allocation16 + $0xcc] sm:$0xf]
        %v3267 = vld [vmem:[#allocation16 + $0xd0] sm:$0xf]
        %v3268 = vld [vmem:[#allocation16 + $0xd4] sm:$0xf]
        %v3269 = vld [vmem:[#allocation16 + $0xd8] sm:$0xf]
        %v3270 = vld [vmem:[#allocation16 + $0xdc] sm:$0xf]
        %v3271 = vld [vmem:[#allocation16 + $0xe0] sm:$0xf]
        %v3272 = vld [vmem:[#allocation16 + $0xe4] sm:$0xf]
        %v3273 = vld [vmem:[#allocation16 + $0xe8] sm:$0xf]
        %v3274 = vld [vmem:[#allocation16 + $0xec] sm:$0xf]
        %v3275 = vld [vmem:[#allocation16 + $0xf0] sm:$0xf]
        %v3276 = vld [vmem:[#allocation16 + $0xf4] sm:$0xf]
        %v3277 = vld [vmem:[#allocation16 + $0xf8] sm:$0xf]
        %v3278 = vld [vmem:[#allocation16 + $0xfc] sm:$0xf]
        %v3279 = vlaneseq
        %v3280 = vshrl.u32 %v3279, 7
        %v3281 = vsub.s32 6, %v3280
        %v3282 = vrot.slane %v610, %v3281
        %v3347 = vunpack.c.l.b16 %v3215
        %v3348 = vunpack.c.l.b16 %v3216
        %v3349 = vunpack.c.l.b16 %v3217
        %v3350 = vunpack.c.l.b16 %v3218
        %v3351 = vunpack.c.l.b16 %v3219
        %v3352 = vunpack.c.l.b16 %v3220
        %v3353 = vunpack.c.l.b16 %v3221
        %v3354 = vunpack.c.l.b16 %v3222
        %v3355 = vunpack.c.l.b16 %v3223
        %v3356 = vunpack.c.l.b16 %v3224
        %v3357 = vunpack.c.l.b16 %v3225
        %v3358 = vunpack.c.l.b16 %v3226
        %v3359 = vunpack.c.l.b16 %v3227
        %v3360 = vunpack.c.l.b16 %v3228
        %v3361 = vunpack.c.l.b16 %v3229
        %v3362 = vunpack.c.l.b16 %v3230
        %v3363 = vunpack.c.l.b16 %v3231
        %v3364 = vunpack.c.l.b16 %v3232
        %v3365 = vunpack.c.l.b16 %v3233
        %v3366 = vunpack.c.l.b16 %v3234
        %v3367 = vunpack.c.l.b16 %v3235
        %v3368 = vunpack.c.l.b16 %v3236
        %v3369 = vunpack.c.l.b16 %v3237
        %v3370 = vunpack.c.l.b16 %v3238
        %v3371 = vunpack.c.l.b16 %v3239
        %v3372 = vunpack.c.l.b16 %v3240
        %v3373 = vunpack.c.l.b16 %v3241
        %v3374 = vunpack.c.l.b16 %v3242
        %v3375 = vunpack.c.l.b16 %v3243
        %v3376 = vunpack.c.l.b16 %v3244
        %v3377 = vunpack.c.l.b16 %v3245
        %v3378 = vunpack.c.l.b16 %v3246
        %v3379 = vunpack.c.l.b16 %v3247
        %v3380 = vunpack.c.l.b16 %v3248
        %v3381 = vunpack.c.l.b16 %v3249
        %v3382 = vunpack.c.l.b16 %v3250
        %v3383 = vunpack.c.l.b16 %v3251
        %v3384 = vunpack.c.l.b16 %v3252
        %v3385 = vunpack.c.l.b16 %v3253
        %v3386 = vunpack.c.l.b16 %v3254
        %v3387 = vunpack.c.l.b16 %v3255
        %v3388 = vunpack.c.l.b16 %v3256
        %v3389 = vunpack.c.l.b16 %v3257
        %v3390 = vunpack.c.l.b16 %v3258
        %v3391 = vunpack.c.l.b16 %v3259
        %v3392 = vunpack.c.l.b16 %v3260
        %v3393 = vunpack.c.l.b16 %v3261
        %v3394 = vunpack.c.l.b16 %v3262
        %v3395 = vunpack.c.l.b16 %v3263
        %v3396 = vunpack.c.l.b16 %v3264
        %v3397 = vunpack.c.l.b16 %v3265
        %v3398 = vunpack.c.l.b16 %v3266
        %v3399 = vunpack.c.l.b16 %v3267
        %v3400 = vunpack.c.l.b16 %v3268
        %v3401 = vunpack.c.l.b16 %v3269
        %v3402 = vunpack.c.l.b16 %v3270
        %v3403 = vunpack.c.l.b16 %v3271
        %v3404 = vunpack.c.l.b16 %v3272
        %v3405 = vunpack.c.l.b16 %v3273
        %v3406 = vunpack.c.l.b16 %v3274
        %v3407 = vunpack.c.l.b16 %v3275
        %v3408 = vunpack.c.l.b16 %v3276
        %v3409 = vunpack.c.l.b16 %v3277
        %v3410 = vunpack.c.l.b16 %v3278
        %v3411 = vpack.c.b16 %v3348, %v3347
        %v3412 = vpack.c.b16 %v3350, %v3349
        %v3413 = vpack.c.b16 %v3352, %v3351
        %v3414 = vpack.c.b16 %v3354, %v3353
        %v3415 = vpack.c.b16 %v3356, %v3355
        %v3416 = vpack.c.b16 %v3358, %v3357
        %v3417 = vpack.c.b16 %v3360, %v3359
        %v3418 = vpack.c.b16 %v3362, %v3361
        %v3419 = vpack.c.b16 %v3364, %v3363
        %v3420 = vpack.c.b16 %v3366, %v3365
        %v3421 = vpack.c.b16 %v3368, %v3367
        %v3422 = vpack.c.b16 %v3370, %v3369
        %v3423 = vpack.c.b16 %v3372, %v3371
        %v3424 = vpack.c.b16 %v3374, %v3373
        %v3425 = vpack.c.b16 %v3376, %v3375
        %v3426 = vpack.c.b16 %v3378, %v3377
        %v3427 = vpack.c.b16 %v3380, %v3379
        %v3428 = vpack.c.b16 %v3382, %v3381
        %v3429 = vpack.c.b16 %v3384, %v3383
        %v3430 = vpack.c.b16 %v3386, %v3385
        %v3431 = vpack.c.b16 %v3388, %v3387
        %v3432 = vpack.c.b16 %v3390, %v3389
        %v3433 = vpack.c.b16 %v3392, %v3391
        %v3434 = vpack.c.b16 %v3394, %v3393
        %v3435 = vpack.c.b16 %v3396, %v3395
        %v3436 = vpack.c.b16 %v3398, %v3397
        %v3437 = vpack.c.b16 %v3400, %v3399
        %v3438 = vpack.c.b16 %v3402, %v3401
        %v3439 = vpack.c.b16 %v3404, %v3403
        %v3440 = vpack.c.b16 %v3406, %v3405
        %v3441 = vpack.c.b16 %v3408, %v3407
        %v3442 = vpack.c.b16 %v3410, %v3409
        %3475 = vmatprep.subr.bf16.mxu0 0
        %3476 = vmatpush1.bf16.msra.mxu0 %v3418
        %3477 = vmatprep.subr.bf16.mxu0 0
        %3478 = vmatpush1.bf16.msra.mxu0 %v3417
        %3479 = vmatprep.subr.bf16.mxu0 0
        %3480 = vmatpush1.bf16.msra.mxu0 %v3416
        %3481 = vmatprep.subr.bf16.mxu0 0
        %3482 = vmatpush1.bf16.msra.mxu0 %v3415
        %3483 = vmatprep.subr.bf16.mxu0 0
        %3484 = vmatpush1.bf16.msra.mxu0 %v3414
        %3485 = vmatprep.subr.bf16.mxu0 0
        %3486 = vmatpush1.bf16.msra.mxu0 %v3413
        %3487 = vmatprep.subr.bf16.mxu0 0
        %3488 = vmatpush1.bf16.msra.mxu0 %v3412
        %3489 = vmatprep.subr.bf16.mxu0 0
        %3490 = vmatpush1.bf16.msra.mxu0 %v3411
        %3491 = vmatprep.subr.bf16.mxu0 0
        %3492 = vmatpush2.bf16.msra.mxu0 %v3426
        %3493 = vmatprep.subr.bf16.mxu0 0
        %3494 = vmatpush2.bf16.msra.mxu0 %v3425
        %3495 = vmatprep.subr.bf16.mxu0 0
        %3496 = vmatpush2.bf16.msra.mxu0 %v3424
        %3497 = vmatprep.subr.bf16.mxu0 0
        %3498 = vmatpush2.bf16.msra.mxu0 %v3423
        %3499 = vmatprep.subr.bf16.mxu0 0
        %3500 = vmatpush2.bf16.msra.mxu0 %v3422
        %3501 = vmatprep.subr.bf16.mxu0 0
        %3502 = vmatpush2.bf16.msra.mxu0 %v3421
        %3503 = vmatprep.subr.bf16.mxu0 0
        %3504 = vmatpush2.bf16.msra.mxu0 %v3420
        %3505 = vmatprep.subr.bf16.mxu0 0
        %3506 = vmatpush2.bf16.msra.mxu0 %v3419
        %3507 = vmatprep.mubr.bf16.mxu0 %v3212
        %3508 = vmatmul.mubr.bf16.gmra.mxu0 %v3211
        %v3509 = vpop.f32.mrf.mxu0
        %v3510 = vadd.f32 %v3282, %v3509
        %v3511 = vpop.f32.mrf.mxu0
        %v3512 = vpop.f32.mrf.mxu0
        %v3513 = vadd.f32 %v3282, %v3512
        %v3514 = vpop.f32.mrf.mxu0
        %3515 = vdwg.mxu0
        %3516 = vmatprep.subr.bf16.mxu0 0
        %3517 = vmatpush1.bf16.msra.mxu0 %v3434
        %3518 = vmatprep.subr.bf16.mxu0 0
        %3519 = vmatpush1.bf16.msra.mxu0 %v3433
        %3520 = vmatprep.subr.bf16.mxu0 0
        %3521 = vmatpush1.bf16.msra.mxu0 %v3432
        %3522 = vmatprep.subr.bf16.mxu0 0
        %3523 = vmatpush1.bf16.msra.mxu0 %v3431
        %3524 = vmatprep.subr.bf16.mxu0 0
        %3525 = vmatpush1.bf16.msra.mxu0 %v3430
        %3526 = vmatprep.subr.bf16.mxu0 0
        %3527 = vmatpush1.bf16.msra.mxu0 %v3429
        %3528 = vmatprep.subr.bf16.mxu0 0
        %3529 = vmatpush1.bf16.msra.mxu0 %v3428
        %3530 = vmatprep.subr.bf16.mxu0 0
        %3531 = vmatpush1.bf16.msra.mxu0 %v3427
        %3532 = vmatprep.subr.bf16.mxu0 0
        %3533 = vmatpush2.bf16.msra.mxu0 %v3442
        %3534 = vmatprep.subr.bf16.mxu0 0
        %3535 = vmatpush2.bf16.msra.mxu0 %v3441
        %3536 = vmatprep.subr.bf16.mxu0 0
        %3537 = vmatpush2.bf16.msra.mxu0 %v3440
        %3538 = vmatprep.subr.bf16.mxu0 0
        %3539 = vmatpush2.bf16.msra.mxu0 %v3439
        %3540 = vmatprep.subr.bf16.mxu0 0
        %3541 = vmatpush2.bf16.msra.mxu0 %v3438
        %3542 = vmatprep.subr.bf16.mxu0 0
        %3543 = vmatpush2.bf16.msra.mxu0 %v3437
        %3544 = vmatprep.subr.bf16.mxu0 0
        %3545 = vmatpush2.bf16.msra.mxu0 %v3436
        %3546 = vmatprep.subr.bf16.mxu0 0
        %3547 = vmatpush2.bf16.msra.mxu0 %v3435
        %3548 = vmatprep.mubr.bf16.mxu0 %v3214
        %3549 = vmatmul.mubr.bf16.gmra.mxu0 %v3213
        %v3550 = vpop.f32.mrf.mxu0
        %v3551 = vadd.f32 %v3510, %v3550
        %v3552 = vpop.f32.mrf.mxu0
        %v3553 = vpop.f32.mrf.mxu0
        %v3554 = vadd.f32 %v3513, %v3553
        %v3555 = vpop.f32.mrf.mxu0
        %3556 = vdwg.mxu0
        %v3557 = vmul.f32 %v3551, 0.5
        %v3558 = vmul.f32 %v3554, 0.5
        %v3559 = vadd.f32 %v2818, %v3557
        %v3560 = vadd.f32 %v2819, %v3558
        %3561 = vadd.xlane.f32.xlu0 %v3559
        %v3562 = vpop.xlane.xlu0 %3561
        %3563 = vadd.xlane.f32.xlu0 %v3560
        %v3564 = vpop.xlane.xlu0 %3563
        %v3565 = vmul.f32 %v3562, %v616
        %v3566 = vmul.f32 %v3564, %v616
        %v3567 = vsub.f32 %v3559, %v3565
        %v3568 = vsub.f32 %v3560, %v3566
        %v3569 = vmul.f32 %v3567, %v3567
        %v3570 = vmul.f32 %v3568, %v3568
        %3571 = vadd.xlane.f32.xlu0 %v3569
        %v3572 = vpop.xlane.xlu0 %3571
        %3573 = vadd.xlane.f32.xlu0 %v3570
        %v3574 = vpop.xlane.xlu0 %3573
        %v3575 = vmul.f32 %v3572, %v616
        %v3576 = vmul.f32 %v3574, %v616
        %v3577 = vadd.f32 %v3575, 1e-05
        %v3578 = vadd.f32 %v3576, 1e-05
        %v3579 = vrsqrt.pop %v3577
        %v3580 = vrsqrt.pop %v3578
        %v3581 = vmul.f32 %v3567, %v3579
        %v3582 = vmul.f32 %v3568, %v3580
        %v3583 = vlaneseq
        %v3584 = vshrl.u32 %v3583, 7
        %v3585 = vsub.s32 7, %v3584
        %v3586 = vrot.slane %v610, %v3585
        %v3587 = vmul.f32 %v3581, %v3586
        %v3588 = vmul.f32 %v3582, %v3586
        %v3589 = vlaneseq
        %v3590 = vshrl.u32 %v3589, 7
        %v3591 = vsub.s32 0, %v3590
        %v3592 = vrot.slane %v611, %v3591
        %v3593 = vadd.f32 %v3587, %v3592
        %v3594 = vadd.f32 %v3588, %v3592
        %3595 = vst [vmem:[%s605] sm:$0xff] %v3593
        %3596 = vst [vmem:[%s605 + $0x8] sm:$0xff] %v3594
        %p3597 = scmp.lt.s32.totalorder %s31, 1
        %s3598 = scalar_select %p3597, %s31, 1
        %s3599 = smul.addr %s3598, 2
        %s3600 = smul.addr %s3599, 8
        %s3601 = scalar_lea.vmem %s14, %s3600
        // Predicated region
        $region117: #{conformer_encoder.4} parent=75 // pred_check
          %p3602 = pneg %p348
        $region118: #{conformer_encoder.4} parent=75 // pred_check_branch
          %3604 = sbr.rel (%p3602) target = $region120
        $region119: #{conformer_encoder.4} parent=75 // pred_region
          _
        $region120: #{conformer_encoder.4} parent=75 // pred_fallthru
          _
      $region76: #{conformer_encoder.4} parent=5 // pred_fallthru
        _
      %p3605 = scmp.le.s32.totalorder 2, %s26
      // Predicated region
      $region121: #{conformer_encoder.4} parent=5 // pred_check
        %p3606 = pneg %p3605
      $region122: #{conformer_encoder.4} parent=5 // pred_check_branch
        %3608 = sbr.rel (%p3606) target = $region124
      $region123: #{conformer_encoder.4} parent=5 // pred_region
        %s3609 = ssub.s32 %s26, 2
        // Predicated region
        $region125: #{conformer_encoder.4} parent=123 // pred_check
          %p3610 = pneg %p354
        $region126: #{conformer_encoder.4} parent=123 // pred_check_branch
          %3612 = sbr.rel (%p3610) target = $region128
        $region127: #{conformer_encoder.4} parent=123 // pred_region
          %p3613 = scmp.lt.s32.totalorder %s32, 1
          %s3614 = scalar_select %p3613, %s32, 1
          %s3615 = smul.addr %s3614, 2
          %s3616 = smul.addr %s3615, 8
          %s3617 = scalar_lea.vmem %s14, %s3616
        $region128: #{conformer_encoder.4} parent=123 // pred_fallthru
          _
      $region124: #{conformer_encoder.4} parent=5 // pred_fallthru
        _
    $region6: #{conformer_encoder.4} parent=1 // loop_footer
      %s30 = sadd.s32 1, %s26
    $region7: #{conformer_encoder.4} parent=1 // loop_footer_branch
      %25 = sbr.rel target = $region3
    $region8: #{conformer_encoder.4} parent=1 // loop_exit
      _
    %3618 = vsyncpa [#allocation3], 1
    %s3619 = scalar_lea.sflag [#allocation3], 1
    %3620 = vsyncpa %s3619, 1
    %3621 = vsyncpa [#allocation5], 1
    %3622 = vsyncpa [#allocation8], 1
    %3623 = vsyncpa [#allocation11], 1
    %3624 = vsyncpa [#allocation14], 1
    %3625 = vsyncpa [#allocation17], 1

// kernel: conformer_encoder.5
$region0: #{conformer_encoder.5}
  #allocation0 [shape = 'u32[]', space=smem, size = 0x4, offset = 0x4, fixed_abs, tag = 'smem constant byte address 0x4 - core index']
  #allocation1 [shape = 'u32[144,128]{1,0:T(1,128)}', space=vmem, size = 0x12000, scoped, tag = 'internal scratch']
  %s0 = inlined_call_operand.hbm [shape: f32[2,16,128], index: 0, kind: input, shape index: {}, may-alias: {0,14}]
  %s1 = inlined_call_operand.vmem [shape: f32[24,128], index: 1, kind: input, shape index: {}]
  %s2 = inlined_call_operand.vmem [shape: bf16[128,512], index: 2, kind: input, shape index: {}]
  %s3 = inlined_call_operand.vmem [shape: f32[1,512], index: 3, kind: input, shape index: {}]
  %s4 = inlined_call_operand.vmem [shape: bf16[512,128], index: 4, kind: input, shape index: {}]
  %s5 = inlined_call_operand.vmem [shape: bf16[128,384], index: 5, kind: input, shape index: {}]
  %s6 = inlined_call_operand.vmem [shape: f32[1,384], index: 6, kind: input, shape index: {}]
  %s7 = inlined_call_operand.vmem [shape: bf16[128,128], index: 7, kind: input, shape index: {}]
  %s8 = inlined_call_operand.vmem [shape: bf16[128,256], index: 8, kind: input, shape index: {}]
  %s9 = inlined_call_operand.vmem [shape: f32[1,256], index: 9, kind: input, shape index: {}]
  %s10 = inlined_call_operand.vmem [shape: bf16[128,128], index: 10, kind: input, shape index: {}]
  %s11 = inlined_call_operand.vmem [shape: bf16[128,512], index: 11, kind: input, shape index: {}]
  %s12 = inlined_call_operand.vmem [shape: f32[1,512], index: 12, kind: input, shape index: {}]
  %s13 = inlined_call_operand.vmem [shape: bf16[512,128], index: 13, kind: input, shape index: {}]
  %s14 = inlined_call_operand.hbm [shape: f32[2,16,128], index: 14, kind: output, shape index: {}, may-alias: {0,14}]
  %s15 = sld [smem:[#allocation0]]
  $region93: #{conformer_encoder.5} parent=0
    _
  %s17 = ssub.s32 1, %s15
  %s18 = scalar_select 0, %s17, %s15
  $region1: #{conformer_encoder.5} parent=0
    #allocation2 [shape = 'u8[16384]{0}', space=vmem, size = 0x4000, scoped, tag = 'input window, operand 0']
    #allocation3 [shape = 's32[2]{0}', space=sflag, size = 0x8, scoped, tag = 'scoped memory for conformer_encoder.5']
    #allocation4 [shape = 's32[2]{0}', space=sflag, size = 0x8, scoped, tag = 'scoped memory for conformer_encoder.5']
    #allocation5 [shape = 'u8[16384]{0}', space=vmem, size = 0x4000, scoped, tag = 'output window, operand 0']
    %19 = vsyncpa [#allocation3], 0
    %s20 = scalar_lea.sflag [#allocation3], 1
    %21 = vsyncpa %s20, 0
    %22 = vsyncpa [#allocation4], 0
    %s23 = scalar_lea.sflag [#allocation4], 1
    %24 = vsyncpa %s23, 0
    loop: start=0, step=1, limit=4
    $region2: #{conformer_encoder.5} parent=1 // loop_pre_header
      _
    $region3: #{conformer_encoder.5} parent=1 // loop_header
      %s26 = sphi 0, %s30
      %p27 = scmp.ge.s32.totalorder %s26, 4
      %s36 = sphi 0, %s38
      %s39 = sphi 0, %s36
      %s40 = sphi 0, %s39
      %s56 = sphi 0, %s40
      %s60 = sphi 0, %s60
      %s62 = sphi 0, %s60
      %s63 = sphi 0, %s62
      %s77 = sphi 0, %s63
      %s81 = sphi 0, %s81
      %s83 = sphi 0, %s81
      %s84 = sphi 0, %s83
      %s98 = sphi 0, %s84
      %s102 = sphi 0, %s102
      %s104 = sphi 0, %s102
      %s105 = sphi 0, %s104
      %s119 = sphi 0, %s105
      %s123 = sphi 0, %s123
      %s125 = sphi 0, %s123
      %s126 = sphi 0, %s125
      %s140 = sphi 0, %s126
      %s144 = sphi 0, %s144
      %s146 = sphi 0, %s144
      %s147 = sphi 0, %s146
      %s161 = sphi 0, %s147
      %s165 = sphi 0, %s165
      %s167 = sphi 0, %s165
      %s168 = sphi 0, %s167
      %s182 = sphi 0, %s168
      %s186 = sphi 0, %s186
      %s188 = sphi 0, %s186
      %s189 = sphi 0, %s188
      %s203 = sphi 0, %s189
      %s207 = sphi 0, %s207
      %s209 = sphi 0, %s207
      %s210 = sphi 0, %s209
      %s224 = sphi 0, %s210
      %s228 = sphi 0, %s228
      %s230 = sphi 0, %s228
      %s231 = sphi 0, %s230
      %s245 = sphi 0, %s231
      %s249 = sphi 0, %s249
      %s251 = sphi 0, %s249
      %s252 = sphi 0, %s251
      %s266 = sphi 0, %s252
      %s270 = sphi 0, %s270
      %s272 = sphi 0, %s270
      %s273 = sphi 0, %s272
      %s287 = sphi 0, %s273
      %s291 = sphi 0, %s291
      %s293 = sphi 0, %s291
      %s294 = sphi 0, %s293
      %s308 = sphi 0, %s294
      %s312 = sphi 0, %s312
      %s314 = sphi 0, %s312
      %s315 = sphi 0, %s314
      %s329 = sphi 0, %s315
      %s335 = sphi 0, %s337
      %s338 = sphi 0, %s335
      %s339 = sphi 0, %s338
      %s355 = sphi 0, %s339
    $region4: #{conformer_encoder.5} parent=1 // loop_header_branch
      %29 = sbr.rel (%p27) target = $region8
    $region5: #{conformer_encoder.5} parent=1 // loop_body
      %s31 = ssub.s32 %s26, 1
      %s32 = ssub.s32 %s26, 2
      %s33 = sadd.s32 %s26, 1
      %s34 = ssub.s32 %s26, %s33
      %p35 = scmp.eq.s32.totalorder %s34, 0
      %s37 = sadd.s32 %s36, 1
      %s38 = scalar_select %p35, %s36, %s37
      %p41 = pneg %p35
      %p42 = scmp.eq.s32.totalorder %s26, 1
      %p43 = por %p41, %p42
      %p44 = scmp.ne.s32.totalorder %s36, %s39
      %p45 = scmp.eq.s32.totalorder %s26, 0
      %p46 = por %p44, %p45
      %p47 = scmp.ne.s32.totalorder %s36, %s39
      %p48 = scmp.eq.s32.totalorder %s31, 1
      %p49 = por %p47, %p48
      %p50 = scmp.ne.s32.totalorder %s39, %s40
      %p51 = scmp.eq.s32.totalorder %s31, 0
      %p52 = por %p50, %p51
      %p53 = scmp.ne.s32.totalorder %s39, %s40
      %p54 = scmp.eq.s32.totalorder %s32, 1
      %p55 = por %p53, %p54
      %p57 = scmp.ne.s32.totalorder %s40, %s56
      %p58 = scmp.eq.s32.totalorder %s32, 0
      %p59 = por %p57, %p58
      %s61 = sadd.s32 %s60, 1
      %p64 = scmp.eq.s32.totalorder %s26, 1
      %p65 = scmp.ne.s32.totalorder %s60, %s62
      %p66 = scmp.eq.s32.totalorder %s26, 0
      %p67 = por %p65, %p66
      %p68 = scmp.ne.s32.totalorder %s60, %s62
      %p69 = scmp.eq.s32.totalorder %s31, 1
      %p70 = por %p68, %p69
      %p71 = scmp.ne.s32.totalorder %s62, %s63
      %p72 = scmp.eq.s32.totalorder %s31, 0
      %p73 = por %p71, %p72
      %p74 = scmp.ne.s32.totalorder %s62, %s63
      %p75 = scmp.eq.s32.totalorder %s32, 1
      %p76 = por %p74, %p75
      %p78 = scmp.ne.s32.totalorder %s63, %s77
      %p79 = scmp.eq.s32.totalorder %s32, 0
      %p80 = por %p78, %p79
      %s82 = sadd.s32 %s81, 1
      %p85 = scmp.eq.s32.totalorder %s26, 1
      %p86 = scmp.ne.s32.totalorder %s81, %s83
      %p87 = scmp.eq.s32.totalorder %s26, 0
      %p88 = por %p86, %p87
      %p89 = scmp.ne.s32.totalorder %s81, %s83
      %p90 = scmp.eq.s32.totalorder %s31, 1
      %p91 = por %p89, %p90
      %p92 = scmp.ne.s32.totalorder %s83, %s84
      %p93 = scmp.eq.s32.totalorder %s31, 0
      %p94 = por %p92, %p93
      %p95 = scmp.ne.s32.totalorder %s83, %s84
      %p96 = scmp.eq.s32.totalorder %s32, 1
      %p97 = por %p95, %p96
      %p99 = scmp.ne.s32.totalorder %s84, %s98
      %p100 = scmp.eq.s32.totalorder %s32, 0
      %p101 = por %p99, %p100
      %s103 = sadd.s32 %s102, 1
      %p106 = scmp.eq.s32.totalorder %s26, 1
      %p107 = scmp.ne.s32.totalorder %s102, %s104
      %p108 = scmp.eq.s32.totalorder %s26, 0
      %p109 = por %p107, %p108
      %p110 = scmp.ne.s32.totalorder %s102, %s104
      %p111 = scmp.eq.s32.totalorder %s31, 1
      %p112 = por %p110, %p111
      %p113 = scmp.ne.s32.totalorder %s104, %s105
      %p114 = scmp.eq.s32.totalorder %s31, 0
      %p115 = por %p113, %p114
      %p116 = scmp.ne.s32.totalorder %s104, %s105
      %p117 = scmp.eq.s32.totalorder %s32, 1
      %p118 = por %p116, %p117
      %p120 = scmp.ne.s32.totalorder %s105, %s119
      %p121 = scmp.eq.s32.totalorder %s32, 0
      %p122 = por %p120, %p121
      %s124 = sadd.s32 %s123, 1
      %p127 = scmp.eq.s32.totalorder %s26, 1
      %p128 = scmp.ne.s32.totalorder %s123, %s125
      %p129 = scmp.eq.s32.totalorder %s26, 0
      %p130 = por %p128, %p129
      %p131 = scmp.ne.s32.totalorder %s123, %s125
      %p132 = scmp.eq.s32.totalorder %s31, 1
      %p133 = por %p131, %p132
      %p134 = scmp.ne.s32.totalorder %s125, %s126
      %p135 = scmp.eq.s32.totalorder %s31, 0
      %p136 = por %p134, %p135
      %p137 = scmp.ne.s32.totalorder %s125, %s126
      %p138 = scmp.eq.s32.totalorder %s32, 1
      %p139 = por %p137, %p138
      %p141 = scmp.ne.s32.totalorder %s126, %s140
      %p142 = scmp.eq.s32.totalorder %s32, 0
      %p143 = por %p141, %p142
      %s145 = sadd.s32 %s144, 1
      %p148 = scmp.eq.s32.totalorder %s26, 1
      %p149 = scmp.ne.s32.totalorder %s144, %s146
      %p150 = scmp.eq.s32.totalorder %s26, 0
      %p151 = por %p149, %p150
      %p152 = scmp.ne.s32.totalorder %s144, %s146
      %p153 = scmp.eq.s32.totalorder %s31, 1
      %p154 = por %p152, %p153
      %p155 = scmp.ne.s32.totalorder %s146, %s147
      %p156 = scmp.eq.s32.totalorder %s31, 0
      %p157 = por %p155, %p156
      %p158 = scmp.ne.s32.totalorder %s146, %s147
      %p159 = scmp.eq.s32.totalorder %s32, 1
      %p160 = por %p158, %p159
      %p162 = scmp.ne.s32.totalorder %s147, %s161
      %p163 = scmp.eq.s32.totalorder %s32, 0
      %p164 = por %p162, %p163
      %s166 = sadd.s32 %s165, 1
      %p169 = scmp.eq.s32.totalorder %s26, 1
      %p170 = scmp.ne.s32.totalorder %s165, %s167
      %p171 = scmp.eq.s32.totalorder %s26, 0
      %p172 = por %p170, %p171
      %p173 = scmp.ne.s32.totalorder %s165, %s167
      %p174 = scmp.eq.s32.totalorder %s31, 1
      %p175 = por %p173, %p174
      %p176 = scmp.ne.s32.totalorder %s167, %s168
      %p177 = scmp.eq.s32.totalorder %s31, 0
      %p178 = por %p176, %p177
      %p179 = scmp.ne.s32.totalorder %s167, %s168
      %p180 = scmp.eq.s32.totalorder %s32, 1
      %p181 = por %p179, %p180
      %p183 = scmp.ne.s32.totalorder %s168, %s182
      %p184 = scmp.eq.s32.totalorder %s32, 0
      %p185 = por %p183, %p184
      %s187 = sadd.s32 %s186, 1
      %p190 = scmp.eq.s32.totalorder %s26, 1
      %p191 = scmp.ne.s32.totalorder %s186, %s188
      %p192 = scmp.eq.s32.totalorder %s26, 0
      %p193 = por %p191, %p192
      %p194 = scmp.ne.s32.totalorder %s186, %s188
      %p195 = scmp.eq.s32.totalorder %s31, 1
      %p196 = por %p194, %p195
      %p197 = scmp.ne.s32.totalorder %s188, %s189
      %p198 = scmp.eq.s32.totalorder %s31, 0
      %p199 = por %p197, %p198
      %p200 = scmp.ne.s32.totalorder %s188, %s189
      %p201 = scmp.eq.s32.totalorder %s32, 1
      %p202 = por %p200, %p201
      %p204 = scmp.ne.s32.totalorder %s189, %s203
      %p205 = scmp.eq.s32.totalorder %s32, 0
      %p206 = por %p204, %p205
      %s208 = sadd.s32 %s207, 1
      %p211 = scmp.eq.s32.totalorder %s26, 1
      %p212 = scmp.ne.s32.totalorder %s207, %s209
      %p213 = scmp.eq.s32.totalorder %s26, 0
      %p214 = por %p212, %p213
      %p215 = scmp.ne.s32.totalorder %s207, %s209
      %p216 = scmp.eq.s32.totalorder %s31, 1
      %p217 = por %p215, %p216
      %p218 = scmp.ne.s32.totalorder %s209, %s210
      %p219 = scmp.eq.s32.totalorder %s31, 0
      %p220 = por %p218, %p219
      %p221 = scmp.ne.s32.totalorder %s209, %s210
      %p222 = scmp.eq.s32.totalorder %s32, 1
      %p223 = por %p221, %p222
      %p225 = scmp.ne.s32.totalorder %s210, %s224
      %p226 = scmp.eq.s32.totalorder %s32, 0
      %p227 = por %p225, %p226
      %s229 = sadd.s32 %s228, 1
      %p232 = scmp.eq.s32.totalorder %s26, 1
      %p233 = scmp.ne.s32.totalorder %s228, %s230
      %p234 = scmp.eq.s32.totalorder %s26, 0
      %p235 = por %p233, %p234
      %p236 = scmp.ne.s32.totalorder %s228, %s230
      %p237 = scmp.eq.s32.totalorder %s31, 1
      %p238 = por %p236, %p237
      %p239 = scmp.ne.s32.totalorder %s230, %s231
      %p240 = scmp.eq.s32.totalorder %s31, 0
      %p241 = por %p239, %p240
      %p242 = scmp.ne.s32.totalorder %s230, %s231
      %p243 = scmp.eq.s32.totalorder %s32, 1
      %p244 = por %p242, %p243
      %p246 = scmp.ne.s32.totalorder %s231, %s245
      %p247 = scmp.eq.s32.totalorder %s32, 0
      %p248 = por %p246, %p247
      %s250 = sadd.s32 %s249, 1
      %p253 = scmp.eq.s32.totalorder %s26, 1
      %p254 = scmp.ne.s32.totalorder %s249, %s251
      %p255 = scmp.eq.s32.totalorder %s26, 0
      %p256 = por %p254, %p255
      %p257 = scmp.ne.s32.totalorder %s249, %s251
      %p258 = scmp.eq.s32.totalorder %s31, 1
      %p259 = por %p257, %p258
      %p260 = scmp.ne.s32.totalorder %s251, %s252
      %p261 = scmp.eq.s32.totalorder %s31, 0
      %p262 = por %p260, %p261
      %p263 = scmp.ne.s32.totalorder %s251, %s252
      %p264 = scmp.eq.s32.totalorder %s32, 1
      %p265 = por %p263, %p264
      %p267 = scmp.ne.s32.totalorder %s252, %s266
      %p268 = scmp.eq.s32.totalorder %s32, 0
      %p269 = por %p267, %p268
      %s271 = sadd.s32 %s270, 1
      %p274 = scmp.eq.s32.totalorder %s26, 1
      %p275 = scmp.ne.s32.totalorder %s270, %s272
      %p276 = scmp.eq.s32.totalorder %s26, 0
      %p277 = por %p275, %p276
      %p278 = scmp.ne.s32.totalorder %s270, %s272
      %p279 = scmp.eq.s32.totalorder %s31, 1
      %p280 = por %p278, %p279
      %p281 = scmp.ne.s32.totalorder %s272, %s273
      %p282 = scmp.eq.s32.totalorder %s31, 0
      %p283 = por %p281, %p282
      %p284 = scmp.ne.s32.totalorder %s272, %s273
      %p285 = scmp.eq.s32.totalorder %s32, 1
      %p286 = por %p284, %p285
      %p288 = scmp.ne.s32.totalorder %s273, %s287
      %p289 = scmp.eq.s32.totalorder %s32, 0
      %p290 = por %p288, %p289
      %s292 = sadd.s32 %s291, 1
      %p295 = scmp.eq.s32.totalorder %s26, 1
      %p296 = scmp.ne.s32.totalorder %s291, %s293
      %p297 = scmp.eq.s32.totalorder %s26, 0
      %p298 = por %p296, %p297
      %p299 = scmp.ne.s32.totalorder %s291, %s293
      %p300 = scmp.eq.s32.totalorder %s31, 1
      %p301 = por %p299, %p300
      %p302 = scmp.ne.s32.totalorder %s293, %s294
      %p303 = scmp.eq.s32.totalorder %s31, 0
      %p304 = por %p302, %p303
      %p305 = scmp.ne.s32.totalorder %s293, %s294
      %p306 = scmp.eq.s32.totalorder %s32, 1
      %p307 = por %p305, %p306
      %p309 = scmp.ne.s32.totalorder %s294, %s308
      %p310 = scmp.eq.s32.totalorder %s32, 0
      %p311 = por %p309, %p310
      %s313 = sadd.s32 %s312, 1
      %p316 = scmp.eq.s32.totalorder %s26, 1
      %p317 = scmp.ne.s32.totalorder %s312, %s314
      %p318 = scmp.eq.s32.totalorder %s26, 0
      %p319 = por %p317, %p318
      %p320 = scmp.ne.s32.totalorder %s312, %s314
      %p321 = scmp.eq.s32.totalorder %s31, 1
      %p322 = por %p320, %p321
      %p323 = scmp.ne.s32.totalorder %s314, %s315
      %p324 = scmp.eq.s32.totalorder %s31, 0
      %p325 = por %p323, %p324
      %p326 = scmp.ne.s32.totalorder %s314, %s315
      %p327 = scmp.eq.s32.totalorder %s32, 1
      %p328 = por %p326, %p327
      %p330 = scmp.ne.s32.totalorder %s315, %s329
      %p331 = scmp.eq.s32.totalorder %s32, 0
      %p332 = por %p330, %p331
      %s333 = ssub.s32 %s26, %s33
      %p334 = scmp.eq.s32.totalorder %s333, 0
      %s336 = sadd.s32 %s335, 1
      %s337 = scalar_select %p334, %s335, %s336
      %p340 = pneg %p334
      %p341 = scmp.eq.s32.totalorder %s26, 1
      %p342 = por %p340, %p341
      %p343 = scmp.ne.s32.totalorder %s335, %s338
      %p344 = scmp.eq.s32.totalorder %s26, 0
      %p345 = por %p343, %p344
      %p346 = scmp.ne.s32.totalorder %s335, %s338
      %p347 = scmp.eq.s32.totalorder %s31, 1
      %p348 = por %p346, %p347
      %p349 = scmp.ne.s32.totalorder %s338, %s339
      %p350 = scmp.eq.s32.totalorder %s31, 0
      %p351 = por %p349, %p350
      %p352 = scmp.ne.s32.totalorder %s338, %s339
      %p353 = scmp.eq.s32.totalorder %s32, 1
      %p354 = por %p352, %p353
      %p356 = scmp.ne.s32.totalorder %s339, %s355
      %p357 = scmp.eq.s32.totalorder %s32, 0
      %p358 = por %p356, %p357
      %p359 = scmp.le.s32.totalorder 1, %s26
      %p360 = scmp.lt.s32.totalorder %s26, 3
      %p361 = pnand %p359, %p360
      %p362 = pneg %p361
      // Predicated region
      $region9: #{conformer_encoder.5} parent=5 // pred_check
        _
      $region10: #{conformer_encoder.5} parent=5 // pred_check_branch
        %364 = sbr.rel (%p361) target = $region12
      $region11: #{conformer_encoder.5} parent=5 // pred_region
        %s365 = ssub.s32 %s26, 1
        // Predicated region
        $region13: #{conformer_encoder.5} parent=11 // pred_check
          %p366 = pneg %p73
        $region14: #{conformer_encoder.5} parent=11 // pred_check_branch
          %368 = sbr.rel (%p366) target = $region16
        $region15: #{conformer_encoder.5} parent=11 // pred_region
          _
        $region16: #{conformer_encoder.5} parent=11 // pred_fallthru
          _
        // Predicated region
        $region17: #{conformer_encoder.5} parent=11 // pred_check
          %p369 = pneg %p94
        $region18: #{conformer_encoder.5} parent=11 // pred_check_branch
          %371 = sbr.rel (%p369) target = $region20
        $region19: #{conformer_encoder.5} parent=11 // pred_region
          _
        $region20: #{conformer_encoder.5} parent=11 // pred_fallthru
          _
        // Predicated region
        $region21: #{conformer_encoder.5} parent=11 // pred_check
          %p372 = pneg %p115
        $region22: #{conformer_encoder.5} parent=11 // pred_check_branch
          %374 = sbr.rel (%p372) target = $region24
        $region23: #{conformer_encoder.5} parent=11 // pred_region
          _
        $region24: #{conformer_encoder.5} parent=11 // pred_fallthru
          _
        // Predicated region
        $region25: #{conformer_encoder.5} parent=11 // pred_check
          %p375 = pneg %p136
        $region26: #{conformer_encoder.5} parent=11 // pred_check_branch
          %377 = sbr.rel (%p375) target = $region28
        $region27: #{conformer_encoder.5} parent=11 // pred_region
          _
        $region28: #{conformer_encoder.5} parent=11 // pred_fallthru
          _
        // Predicated region
        $region29: #{conformer_encoder.5} parent=11 // pred_check
          %p378 = pneg %p157
        $region30: #{conformer_encoder.5} parent=11 // pred_check_branch
          %380 = sbr.rel (%p378) target = $region32
        $region31: #{conformer_encoder.5} parent=11 // pred_region
          _
        $region32: #{conformer_encoder.5} parent=11 // pred_fallthru
          _
        // Predicated region
        $region33: #{conformer_encoder.5} parent=11 // pred_check
          %p381 = pneg %p178
        $region34: #{conformer_encoder.5} parent=11 // pred_check_branch
          %383 = sbr.rel (%p381) target = $region36
        $region35: #{conformer_encoder.5} parent=11 // pred_region
          _
        $region36: #{conformer_encoder.5} parent=11 // pred_fallthru
          _
        // Predicated region
        $region37: #{conformer_encoder.5} parent=11 // pred_check
          %p384 = pneg %p199
        $region38: #{conformer_encoder.5} parent=11 // pred_check_branch
          %386 = sbr.rel (%p384) target = $region40
        $region39: #{conformer_encoder.5} parent=11 // pred_region
          _
        $region40: #{conformer_encoder.5} parent=11 // pred_fallthru
          _
        // Predicated region
        $region41: #{conformer_encoder.5} parent=11 // pred_check
          %p387 = pneg %p220
        $region42: #{conformer_encoder.5} parent=11 // pred_check_branch
          %389 = sbr.rel (%p387) target = $region44
        $region43: #{conformer_encoder.5} parent=11 // pred_region
          _
        $region44: #{conformer_encoder.5} parent=11 // pred_fallthru
          _
        // Predicated region
        $region45: #{conformer_encoder.5} parent=11 // pred_check
          %p390 = pneg %p241
        $region46: #{conformer_encoder.5} parent=11 // pred_check_branch
          %392 = sbr.rel (%p390) target = $region48
        $region47: #{conformer_encoder.5} parent=11 // pred_region
          _
        $region48: #{conformer_encoder.5} parent=11 // pred_fallthru
          _
        // Predicated region
        $region49: #{conformer_encoder.5} parent=11 // pred_check
          %p393 = pneg %p262
        $region50: #{conformer_encoder.5} parent=11 // pred_check_branch
          %395 = sbr.rel (%p393) target = $region52
        $region51: #{conformer_encoder.5} parent=11 // pred_region
          _
        $region52: #{conformer_encoder.5} parent=11 // pred_fallthru
          _
        // Predicated region
        $region53: #{conformer_encoder.5} parent=11 // pred_check
          %p396 = pneg %p283
        $region54: #{conformer_encoder.5} parent=11 // pred_check_branch
          %398 = sbr.rel (%p396) target = $region56
        $region55: #{conformer_encoder.5} parent=11 // pred_region
          _
        $region56: #{conformer_encoder.5} parent=11 // pred_fallthru
          _
        // Predicated region
        $region57: #{conformer_encoder.5} parent=11 // pred_check
          %p399 = pneg %p304
        $region58: #{conformer_encoder.5} parent=11 // pred_check_branch
          %401 = sbr.rel (%p399) target = $region60
        $region59: #{conformer_encoder.5} parent=11 // pred_region
          _
        $region60: #{conformer_encoder.5} parent=11 // pred_fallthru
          _
        // Predicated region
        $region61: #{conformer_encoder.5} parent=11 // pred_check
          %p402 = pneg %p325
        $region62: #{conformer_encoder.5} parent=11 // pred_check_branch
          %404 = sbr.rel (%p402) target = $region64
        $region63: #{conformer_encoder.5} parent=11 // pred_region
          _
        $region64: #{conformer_encoder.5} parent=11 // pred_fallthru
          _
      $region12: #{conformer_encoder.5} parent=5 // pred_fallthru
        _
      %p405 = scmp.lt.s32.totalorder %s26, 2
      // Predicated region
      $region65: #{conformer_encoder.5} parent=5 // pred_check
        %p406 = pneg %p405
      $region66: #{conformer_encoder.5} parent=5 // pred_check_branch
        %408 = sbr.rel (%p406) target = $region68
      $region67: #{conformer_encoder.5} parent=5 // pred_region
        // Predicated region
        $region69: #{conformer_encoder.5} parent=67 // pred_check
          %p409 = pneg %p46
        $region70: #{conformer_encoder.5} parent=67 // pred_check_branch
          %411 = sbr.rel (%p409) target = $region72
        $region71: #{conformer_encoder.5} parent=67 // pred_region
          %s412 = sand.u32 %s36, 1
          %s413 = scalar_lea.sflag [#allocation3], %s412
          %s414 = sand.u32 %s36, 1
          %s415 = smul.addr %s414, 16
          %s416 = scalar_lea.vmem [#allocation2], %s415
          %s418 = ssub.s32 256, 256
          %419 = vsyncadd %s413, %s418
          %s420 = smul.addr %s26, 2
          %s421 = smul.addr %s420, 128
          %s422 = scalar_lea.hbm %s0, %s421
          %s423 = sshll.u32 %s416, 4
          %s424 = int_to_ptr.vmem [resolvable:$true] %s423
          %429 = dma.hbm_to_vmem [thread:$0]  %s422, 256, %s424, %s413, 128, 128, 8
        $region72: #{conformer_encoder.5} parent=67 // pred_fallthru
          _
      $region68: #{conformer_encoder.5} parent=5 // pred_fallthru
        _
      %p430 = scmp.le.s32.totalorder 1, %s26
      %p431 = scmp.lt.s32.totalorder %s26, 3
      %p432 = pnand %p430, %p431
      %p433 = pneg %p432
      // Predicated region
      $region73: #{conformer_encoder.5} parent=5 // pred_check
        _
      $region74: #{conformer_encoder.5} parent=5 // pred_check_branch
        %435 = sbr.rel (%p432) target = $region76
      $region75: #{conformer_encoder.5} parent=5 // pred_region
        %s436 = ssub.s32 %s26, 1
        %s437 = sand.u32 %s39, 1
        %s438 = scalar_lea.sflag [#allocation3], %s437
        %s439 = sand.u32 %s39, 1
        %s440 = smul.addr %s439, 16
        %s441 = scalar_lea.vmem [#allocation2], %s440
        // Predicated region
        $region77: #{conformer_encoder.5} parent=75 // pred_check
          %p442 = pneg %p52
        $region78: #{conformer_encoder.5} parent=75 // pred_check_branch
          %444 = sbr.rel (%p442) target = $region80
        $region79: #{conformer_encoder.5} parent=75 // pred_region
          %445 = dma.done %s438, 256
        $region80: #{conformer_encoder.5} parent=75 // pred_fallthru
          _
        %s446 = sand.u32 %s39, 1
        %s447 = scalar_lea.sflag [#allocation3], %s446
        %s448 = sand.u32 %s39, 1
        %s449 = smul.addr %s448, 16
        %s450 = scalar_lea.vmem [#allocation2], %s449
        %p451 = pneg %p52
        %p452 = pneg %p49
        %p453 = pneg %p73
        %p454 = pneg %p70
        %p455 = pneg %p94
        %p456 = pneg %p91
        %p457 = pneg %p115
        %p458 = pneg %p112
        %p459 = pneg %p136
        %p460 = pneg %p133
        %p461 = pneg %p157
        %p462 = pneg %p154
        %p463 = pneg %p178
        %p464 = pneg %p175
        %p465 = pneg %p199
        %p466 = pneg %p196
        %p467 = pneg %p220
        %p468 = pneg %p217
        %p469 = pneg %p241
        %p470 = pneg %p238
        %p471 = pneg %p262
        %p472 = pneg %p259
        %p473 = pneg %p283
        %p474 = pneg %p280
        %p475 = pneg %p304
        %p476 = pneg %p301
        %p477 = pneg %p325
        %p478 = pneg %p322
        %p479 = pneg %p351
        %p480 = pneg %p348
        %s481 = sand.u32 %s338, 1
        %s482 = scalar_lea.sflag [#allocation4], %s481
        %s483 = sand.u32 %s338, 1
        %s484 = smul.addr %s483, 16
        %s485 = scalar_lea.vmem [#allocation5], %s484
        %v487 = vld [vmem:[%s441] sm:$0xff]
        %v488 = vld [vmem:[%s441 + $0x8] sm:$0xff]
        %v489 = vld [vmem:[%s1] sm:$0xff]
        %v490 = vld [vmem:[%s1 + $0x8] sm:$0xff]
        %v491 = vld [vmem:[%s1 + $0x10] sm:$0xff]
        %492 = vadd.xlane.f32.xlu0 %v487
        %v493 = vpop.xlane.xlu0 %492
        %494 = vadd.xlane.f32.xlu0 %v488
        %v495 = vpop.xlane.xlu0 %494
        %v496 = vrcp.pop 128.0
        %v497 = vmul.f32 %v493, %v496
        %v498 = vmul.f32 %v495, %v496
        %v499 = vsub.f32 %v487, %v497
        %v500 = vsub.f32 %v488, %v498
        %v501 = vmul.f32 %v499, %v499
        %v502 = vmul.f32 %v500, %v500
        %503 = vadd.xlane.f32.xlu0 %v501
        %v504 = vpop.xlane.xlu0 %503
        %505 = vadd.xlane.f32.xlu0 %v502
        %v506 = vpop.xlane.xlu0 %505
        %v507 = vmul.f32 %v504, %v496
        %v508 = vmul.f32 %v506, %v496
        %v509 = vadd.f32 %v507, 1e-05
        %v510 = vadd.f32 %v508, 1e-05
        %v511 = vrsqrt.pop %v509
        %v512 = vrsqrt.pop %v510
        %v513 = vmul.f32 %v499, %v511
        %v514 = vmul.f32 %v500, %v512
        %v515 = vlaneseq
        %v516 = vshrl.u32 %v515, 7
        %v517 = vsub.s32 0, %v516
        %v518 = vrot.slane %v489, %v517
        %v519 = vmul.f32 %v513, %v518
        %v520 = vmul.f32 %v514, %v518
        %v521 = vlaneseq
        %v522 = vshrl.u32 %v521, 7
        %v523 = vsub.s32 1, %v522
        %v524 = vrot.slane %v489, %v523
        %v525 = vadd.f32 %v519, %v524
        %v526 = vadd.f32 %v520, %v524
        %v527 = vpack.c.bf16 %v526, %v525
        %v528 = vld [vmem:[%s2] sm:$0xff]
        %v529 = vld [vmem:[%s2 + $0x8] sm:$0xff]
        %v530 = vld [vmem:[%s2 + $0x10] sm:$0xff]
        %v531 = vld [vmem:[%s2 + $0x18] sm:$0xff]
        %v532 = vld [vmem:[%s2 + $0x20] sm:$0xff]
        %v533 = vld [vmem:[%s2 + $0x28] sm:$0xff]
        %v534 = vld [vmem:[%s2 + $0x30] sm:$0xff]
        %v535 = vld [vmem:[%s2 + $0x38] sm:$0xff]
        %v536 = vld [vmem:[%s2 + $0x40] sm:$0xff]
        %v537 = vld [vmem:[%s2 + $0x48] sm:$0xff]
        %v538 = vld [vmem:[%s2 + $0x50] sm:$0xff]
        %v539 = vld [vmem:[%s2 + $0x58] sm:$0xff]
        %v540 = vld [vmem:[%s2 + $0x60] sm:$0xff]
        %v541 = vld [vmem:[%s2 + $0x68] sm:$0xff]
        %v542 = vld [vmem:[%s2 + $0x70] sm:$0xff]
        %v543 = vld [vmem:[%s2 + $0x78] sm:$0xff]
        %v544 = vld [vmem:[%s2 + $0x80] sm:$0xff]
        %v545 = vld [vmem:[%s2 + $0x88] sm:$0xff]
        %v546 = vld [vmem:[%s2 + $0x90] sm:$0xff]
        %v547 = vld [vmem:[%s2 + $0x98] sm:$0xff]
        %v548 = vld [vmem:[%s2 + $0xa0] sm:$0xff]
        %v549 = vld [vmem:[%s2 + $0xa8] sm:$0xff]
        %v550 = vld [vmem:[%s2 + $0xb0] sm:$0xff]
        %v551 = vld [vmem:[%s2 + $0xb8] sm:$0xff]
        %v552 = vld [vmem:[%s2 + $0xc0] sm:$0xff]
        %v553 = vld [vmem:[%s2 + $0xc8] sm:$0xff]
        %v554 = vld [vmem:[%s2 + $0xd0] sm:$0xff]
        %v555 = vld [vmem:[%s2 + $0xd8] sm:$0xff]
        %v556 = vld [vmem:[%s2 + $0xe0] sm:$0xff]
        %v557 = vld [vmem:[%s2 + $0xe8] sm:$0xff]
        %v558 = vld [vmem:[%s2 + $0xf0] sm:$0xff]
        %v559 = vld [vmem:[%s2 + $0xf8] sm:$0xff]
        %v560 = vld [vmem:[%s3] sm:$0xf]
        %v562 = vlaneseq
        %v563 = vshrl.u32 %v562, 7
        %v564 = vsub.s32 0, %v563
        %v565 = vrot.slane %v560, %v564
        %v566 = vlaneseq
        %v567 = vshrl.u32 %v566, 7
        %v568 = vsub.s32 1, %v567
        %v569 = vrot.slane %v560, %v568
        %v570 = vlaneseq
        %v571 = vshrl.u32 %v570, 7
        %v572 = vsub.s32 2, %v571
        %v573 = vrot.slane %v560, %v572
        %v574 = vlaneseq
        %v575 = vshrl.u32 %v574, 7
        %v576 = vsub.s32 3, %v575
        %v577 = vrot.slane %v560, %v576
        %v614 = vunpack.c.l.b16 %v528
        %v615 = vunpack.c.h.b16 %v528
        %v616 = vunpack.c.l.b16 %v529
        %v617 = vunpack.c.h.b16 %v529
        %v618 = vunpack.c.l.b16 %v530
        %v619 = vunpack.c.h.b16 %v530
        %v620 = vunpack.c.l.b16 %v531
        %v621 = vunpack.c.h.b16 %v531
        %v622 = vunpack.c.l.b16 %v532
        %v623 = vunpack.c.h.b16 %v532
        %v624 = vunpack.c.l.b16 %v533
        %v625 = vunpack.c.h.b16 %v533
        %v626 = vunpack.c.l.b16 %v534
        %v627 = vunpack.c.h.b16 %v534
        %v628 = vunpack.c.l.b16 %v535
        %v629 = vunpack.c.h.b16 %v535
        %v630 = vunpack.c.l.b16 %v536
        %v631 = vunpack.c.h.b16 %v536
        %v632 = vunpack.c.l.b16 %v537
        %v633 = vunpack.c.h.b16 %v537
        %v634 = vunpack.c.l.b16 %v538
        %v635 = vunpack.c.h.b16 %v538
        %v636 = vunpack.c.l.b16 %v539
        %v637 = vunpack.c.h.b16 %v539
        %v638 = vunpack.c.l.b16 %v540
        %v639 = vunpack.c.h.b16 %v540
        %v640 = vunpack.c.l.b16 %v541
        %v641 = vunpack.c.h.b16 %v541
        %v642 = vunpack.c.l.b16 %v542
        %v643 = vunpack.c.h.b16 %v542
        %v644 = vunpack.c.l.b16 %v543
        %v645 = vunpack.c.h.b16 %v543
        %v646 = vunpack.c.l.b16 %v544
        %v647 = vunpack.c.h.b16 %v544
        %v648 = vunpack.c.l.b16 %v545
        %v649 = vunpack.c.h.b16 %v545
        %v650 = vunpack.c.l.b16 %v546
        %v651 = vunpack.c.h.b16 %v546
        %v652 = vunpack.c.l.b16 %v547
        %v653 = vunpack.c.h.b16 %v547
        %v654 = vunpack.c.l.b16 %v548
        %v655 = vunpack.c.h.b16 %v548
        %v656 = vunpack.c.l.b16 %v549
        %v657 = vunpack.c.h.b16 %v549
        %v658 = vunpack.c.l.b16 %v550
        %v659 = vunpack.c.h.b16 %v550
        %v660 = vunpack.c.l.b16 %v551
        %v661 = vunpack.c.h.b16 %v551
        %v662 = vunpack.c.l.b16 %v552
        %v663 = vunpack.c.h.b16 %v552
        %v664 = vunpack.c.l.b16 %v553
        %v665 = vunpack.c.h.b16 %v553
        %v666 = vunpack.c.l.b16 %v554
        %v667 = vunpack.c.h.b16 %v554
        %v668 = vunpack.c.l.b16 %v555
        %v669 = vunpack.c.h.b16 %v555
        %v670 = vunpack.c.l.b16 %v556
        %v671 = vunpack.c.h.b16 %v556
        %v672 = vunpack.c.l.b16 %v557
        %v673 = vunpack.c.h.b16 %v557
        %v674 = vunpack.c.l.b16 %v558
        %v675 = vunpack.c.h.b16 %v558
        %v676 = vunpack.c.l.b16 %v559
        %v677 = vunpack.c.h.b16 %v559
        %v678 = vpack.c.b16 %v618, %v614
        %v679 = vpack.c.b16 %v619, %v615
        %v680 = vpack.c.b16 %v620, %v616
        %v681 = vpack.c.b16 %v621, %v617
        %v682 = vpack.c.b16 %v626, %v622
        %v683 = vpack.c.b16 %v627, %v623
        %v684 = vpack.c.b16 %v628, %v624
        %v685 = vpack.c.b16 %v629, %v625
        %v686 = vpack.c.b16 %v634, %v630
        %v687 = vpack.c.b16 %v635, %v631
        %v688 = vpack.c.b16 %v636, %v632
        %v689 = vpack.c.b16 %v637, %v633
        %v690 = vpack.c.b16 %v642, %v638
        %v691 = vpack.c.b16 %v643, %v639
        %v692 = vpack.c.b16 %v644, %v640
        %v693 = vpack.c.b16 %v645, %v641
        %v694 = vpack.c.b16 %v650, %v646
        %v695 = vpack.c.b16 %v651, %v647
        %v696 = vpack.c.b16 %v652, %v648
        %v697 = vpack.c.b16 %v653, %v649
        %v698 = vpack.c.b16 %v658, %v654
        %v699 = vpack.c.b16 %v659, %v655
        %v700 = vpack.c.b16 %v660, %v656
        %v701 = vpack.c.b16 %v661, %v657
        %v702 = vpack.c.b16 %v666, %v662
        %v703 = vpack.c.b16 %v667, %v663
        %v704 = vpack.c.b16 %v668, %v664
        %v705 = vpack.c.b16 %v669, %v665
        %v706 = vpack.c.b16 %v674, %v670
        %v707 = vpack.c.b16 %v675, %v671
        %v708 = vpack.c.b16 %v676, %v672
        %v709 = vpack.c.b16 %v677, %v673
        %742 = vmatprep.subr.bf16.mxu0 %v707
        %743 = vmatpush1.bf16.msra.mxu0 %v706
        %744 = vmatprep.subr.bf16.mxu0 %v703
        %745 = vmatpush1.bf16.msra.mxu0 %v702
        %746 = vmatprep.subr.bf16.mxu0 %v699
        %747 = vmatpush1.bf16.msra.mxu0 %v698
        %748 = vmatprep.subr.bf16.mxu0 %v695
        %749 = vmatpush1.bf16.msra.mxu0 %v694
        %750 = vmatprep.subr.bf16.mxu0 %v691
        %751 = vmatpush1.bf16.msra.mxu0 %v690
        %752 = vmatprep.subr.bf16.mxu0 %v687
        %753 = vmatpush1.bf16.msra.mxu0 %v686
        %754 = vmatprep.subr.bf16.mxu0 %v683
        %755 = vmatpush1.bf16.msra.mxu0 %v682
        %756 = vmatprep.subr.bf16.mxu0 %v679
        %757 = vmatpush1.bf16.msra.mxu0 %v678
        %758 = vmatprep.subr.bf16.mxu0 0
        %759 = vmatpush2.bf16.msra.mxu0 0
        %760 = vmatprep.subr.bf16.mxu0 0
        %761 = vmatpush2.bf16.msra.mxu0 0
        %762 = vmatprep.subr.bf16.mxu0 0
        %763 = vmatpush2.bf16.msra.mxu0 0
        %764 = vmatprep.subr.bf16.mxu0 0
        %765 = vmatpush2.bf16.msra.mxu0 0
        %766 = vmatprep.subr.bf16.mxu0 0
        %767 = vmatpush2.bf16.msra.mxu0 0
        %768 = vmatprep.subr.bf16.mxu0 0
        %769 = vmatpush2.bf16.msra.mxu0 0
        %770 = vmatprep.subr.bf16.mxu0 0
        %771 = vmatpush2.bf16.msra.mxu0 0
        %772 = vmatprep.subr.bf16.mxu0 0
        %773 = vmatpush2.bf16.msra.mxu0 0
        %774 = vmatprep.mubr.bf16.mxu0 0
        %775 = vmatmul.mubr.bf16.gmra.mxu0 %v527
        %v776 = vpop.f32.mrf.mxu0
        %v777 = vadd.f32 %v565, %v776
        %v778 = vpop.f32.mrf.mxu0
        %v779 = vadd.f32 %v569, %v778
        %v780 = vpop.f32.mrf.mxu0
        %v781 = vadd.f32 %v565, %v780
        %v782 = vpop.f32.mrf.mxu0
        %v783 = vadd.f32 %v569, %v782
        %784 = vdwg.mxu0
        %785 = vmatprep.subr.bf16.mxu0 %v709
        %786 = vmatpush1.bf16.msra.mxu0 %v708
        %787 = vmatprep.subr.bf16.mxu0 %v705
        %788 = vmatpush1.bf16.msra.mxu0 %v704
        %789 = vmatprep.subr.bf16.mxu0 %v701
        %790 = vmatpush1.bf16.msra.mxu0 %v700
        %791 = vmatprep.subr.bf16.mxu0 %v697
        %792 = vmatpush1.bf16.msra.mxu0 %v696
        %793 = vmatprep.subr.bf16.mxu0 %v693
        %794 = vmatpush1.bf16.msra.mxu0 %v692
        %795 = vmatprep.subr.bf16.mxu0 %v689
        %796 = vmatpush1.bf16.msra.mxu0 %v688
        %797 = vmatprep.subr.bf16.mxu0 %v685
        %798 = vmatpush1.bf16.msra.mxu0 %v684
        %799 = vmatprep.subr.bf16.mxu0 %v681
        %800 = vmatpush1.bf16.msra.mxu0 %v680
        %801 = vmatprep.subr.bf16.mxu0 0
        %802 = vmatpush2.bf16.msra.mxu0 0
        %803 = vmatprep.subr.bf16.mxu0 0
        %804 = vmatpush2.bf16.msra.mxu0 0
        %805 = vmatprep.subr.bf16.mxu0 0
        %806 = vmatpush2.bf16.msra.mxu0 0
        %807 = vmatprep.subr.bf16.mxu0 0
        %808 = vmatpush2.bf16.msra.mxu0 0
        %809 = vmatprep.subr.bf16.mxu0 0
        %810 = vmatpush2.bf16.msra.mxu0 0
        %811 = vmatprep.subr.bf16.mxu0 0
        %812 = vmatpush2.bf16.msra.mxu0 0
        %813 = vmatprep.subr.bf16.mxu0 0
        %814 = vmatpush2.bf16.msra.mxu0 0
        %815 = vmatprep.subr.bf16.mxu0 0
        %816 = vmatpush2.bf16.msra.mxu0 0
        %817 = vmatprep.mubr.bf16.mxu0 0
        %818 = vmatmul.mubr.bf16.gmra.mxu0 %v527
        %v819 = vpop.f32.mrf.mxu0
        %v820 = vadd.f32 %v573, %v819
        %v821 = vpop.f32.mrf.mxu0
        %v822 = vadd.f32 %v577, %v821
        %v823 = vpop.f32.mrf.mxu0
        %v824 = vadd.f32 %v573, %v823
        %v825 = vpop.f32.mrf.mxu0
        %v826 = vadd.f32 %v577, %v825
        %827 = vdwg.mxu0
        %v828 = vxor.u32 %v777, 2147483648
        %v829 = vxor.u32 %v779, 2147483648
        %v830 = vxor.u32 %v820, 2147483648
        %v831 = vxor.u32 %v822, 2147483648
        %v832 = vxor.u32 %v781, 2147483648
        %v833 = vxor.u32 %v783, 2147483648
        %v834 = vxor.u32 %v824, 2147483648
        %v835 = vxor.u32 %v826, 2147483648
        %v836 = vmul.f32 %v828, 1.442695
        %v837 = vpow.pop %v836
        %v838 = vmul.f32 %v829, 1.442695
        %v839 = vpow.pop %v838
        %v840 = vmul.f32 %v830, 1.442695
        %v841 = vpow.pop %v840
        %v842 = vmul.f32 %v831, 1.442695
        %v843 = vpow.pop %v842
        %v844 = vmul.f32 %v832, 1.442695
        %v845 = vpow.pop %v844
        %v846 = vmul.f32 %v833, 1.442695
        %v847 = vpow.pop %v846
        %v848 = vmul.f32 %v834, 1.442695
        %v849 = vpow.pop %v848
        %v850 = vmul.f32 %v835, 1.442695
        %v851 = vpow.pop %v850
        %v852 = vadd.f32 %v837, 1.0
        %v853 = vadd.f32 %v839, 1.0
        %v854 = vadd.f32 %v841, 1.0
        %v855 = vadd.f32 %v843, 1.0
        %v856 = vadd.f32 %v845, 1.0
        %v857 = vadd.f32 %v847, 1.0
        %v858 = vadd.f32 %v849, 1.0
        %v859 = vadd.f32 %v851, 1.0
        %v860 = vrcp.pop %v852
        %v861 = vmul.f32 1.0, %v860
        %v862 = vrcp.pop %v853
        %v863 = vmul.f32 1.0, %v862
        %v864 = vrcp.pop %v854
        %v865 = vmul.f32 1.0, %v864
        %v866 = vrcp.pop %v855
        %v867 = vmul.f32 1.0, %v866
        %v868 = vrcp.pop %v856
        %v869 = vmul.f32 1.0, %v868
        %v870 = vrcp.pop %v857
        %v871 = vmul.f32 1.0, %v870
        %v872 = vrcp.pop %v858
        %v873 = vmul.f32 1.0, %v872
        %v874 = vrcp.pop %v859
        %v875 = vmul.f32 1.0, %v874
        %v876 = vmul.f32 %v777, %v861
        %v877 = vmul.f32 %v779, %v863
        %v878 = vmul.f32 %v820, %v865
        %v879 = vmul.f32 %v822, %v867
        %v880 = vmul.f32 %v781, %v869
        %v881 = vmul.f32 %v783, %v871
        %v882 = vmul.f32 %v824, %v873
        %v883 = vmul.f32 %v826, %v875
        %v884 = vpack.c.bf16 %v880, %v876
        %v885 = vpack.c.bf16 %v881, %v877
        %v886 = vpack.c.bf16 %v882, %v878
        %v887 = vpack.c.bf16 %v883, %v879
        %v888 = vld [vmem:[%s4] sm:$0xf]
        %v889 = vld [vmem:[%s4 + $0x4] sm:$0xf]
        %v890 = vld [vmem:[%s4 + $0x8] sm:$0xf]
        %v891 = vld [vmem:[%s4 + $0xc] sm:$0xf]
        %v892 = vld [vmem:[%s4 + $0x10] sm:$0xf]
        %v893 = vld [vmem:[%s4 + $0x14] sm:$0xf]
        %v894 = vld [vmem:[%s4 + $0x18] sm:$0xf]
        %v895 = vld [vmem:[%s4 + $0x1c] sm:$0xf]
        %v896 = vld [vmem:[%s4 + $0x20] sm:$0xf]
        %v897 = vld [vmem:[%s4 + $0x24] sm:$0xf]
        %v898 = vld [vmem:[%s4 + $0x28] sm:$0xf]
        %v899 = vld [vmem:[%s4 + $0x2c] sm:$0xf]
        %v900 = vld [vmem:[%s4 + $0x30] sm:$0xf]
        %v901 = vld [vmem:[%s4 + $0x34] sm:$0xf]
        %v902 = vld [vmem:[%s4 + $0x38] sm:$0xf]
        %v903 = vld [vmem:[%s4 + $0x3c] sm:$0xf]
        %v904 = vld [vmem:[%s4 + $0x40] sm:$0xf]
        %v905 = vld [vmem:[%s4 + $0x44] sm:$0xf]
        %v906 = vld [vmem:[%s4 + $0x48] sm:$0xf]
        %v907 = vld [vmem:[%s4 + $0x4c] sm:$0xf]
        %v908 = vld [vmem:[%s4 + $0x50] sm:$0xf]
        %v909 = vld [vmem:[%s4 + $0x54] sm:$0xf]
        %v910 = vld [vmem:[%s4 + $0x58] sm:$0xf]
        %v911 = vld [vmem:[%s4 + $0x5c] sm:$0xf]
        %v912 = vld [vmem:[%s4 + $0x60] sm:$0xf]
        %v913 = vld [vmem:[%s4 + $0x64] sm:$0xf]
        %v914 = vld [vmem:[%s4 + $0x68] sm:$0xf]
        %v915 = vld [vmem:[%s4 + $0x6c] sm:$0xf]
        %v916 = vld [vmem:[%s4 + $0x70] sm:$0xf]
        %v917 = vld [vmem:[%s4 + $0x74] sm:$0xf]
        %v918 = vld [vmem:[%s4 + $0x78] sm:$0xf]
        %v919 = vld [vmem:[%s4 + $0x7c] sm:$0xf]
        %v920 = vld [vmem:[%s4 + $0x80] sm:$0xf]
        %v921 = vld [vmem:[%s4 + $0x84] sm:$0xf]
        %v922 = vld [vmem:[%s4 + $0x88] sm:$0xf]
        %v923 = vld [vmem:[%s4 + $0x8c] sm:$0xf]
        %v924 = vld [vmem:[%s4 + $0x90] sm:$0xf]
        %v925 = vld [vmem:[%s4 + $0x94] sm:$0xf]
        %v926 = vld [vmem:[%s4 + $0x98] sm:$0xf]
        %v927 = vld [vmem:[%s4 + $0x9c] sm:$0xf]
        %v928 = vld [vmem:[%s4 + $0xa0] sm:$0xf]
        %v929 = vld [vmem:[%s4 + $0xa4] sm:$0xf]
        %v930 = vld [vmem:[%s4 + $0xa8] sm:$0xf]
        %v931 = vld [vmem:[%s4 + $0xac] sm:$0xf]
        %v932 = vld [vmem:[%s4 + $0xb0] sm:$0xf]
        %v933 = vld [vmem:[%s4 + $0xb4] sm:$0xf]
        %v934 = vld [vmem:[%s4 + $0xb8] sm:$0xf]
        %v935 = vld [vmem:[%s4 + $0xbc] sm:$0xf]
        %v936 = vld [vmem:[%s4 + $0xc0] sm:$0xf]
        %v937 = vld [vmem:[%s4 + $0xc4] sm:$0xf]
        %v938 = vld [vmem:[%s4 + $0xc8] sm:$0xf]
        %v939 = vld [vmem:[%s4 + $0xcc] sm:$0xf]
        %v940 = vld [vmem:[%s4 + $0xd0] sm:$0xf]
        %v941 = vld [vmem:[%s4 + $0xd4] sm:$0xf]
        %v942 = vld [vmem:[%s4 + $0xd8] sm:$0xf]
        %v943 = vld [vmem:[%s4 + $0xdc] sm:$0xf]
        %v944 = vld [vmem:[%s4 + $0xe0] sm:$0xf]
        %v945 = vld [vmem:[%s4 + $0xe4] sm:$0xf]
        %v946 = vld [vmem:[%s4 + $0xe8] sm:$0xf]
        %v947 = vld [vmem:[%s4 + $0xec] sm:$0xf]
        %v948 = vld [vmem:[%s4 + $0xf0] sm:$0xf]
        %v949 = vld [vmem:[%s4 + $0xf4] sm:$0xf]
        %v950 = vld [vmem:[%s4 + $0xf8] sm:$0xf]
        %v951 = vld [vmem:[%s4 + $0xfc] sm:$0xf]
        %v952 = vlaneseq
        %v953 = vshrl.u32 %v952, 7
        %v954 = vsub.s32 2, %v953
        %v955 = vrot.slane %v489, %v954
        %v1020 = vunpack.c.l.b16 %v888
        %v1021 = vunpack.c.l.b16 %v889
        %v1022 = vunpack.c.l.b16 %v890
        %v1023 = vunpack.c.l.b16 %v891
        %v1024 = vunpack.c.l.b16 %v892
        %v1025 = vunpack.c.l.b16 %v893
        %v1026 = vunpack.c.l.b16 %v894
        %v1027 = vunpack.c.l.b16 %v895
        %v1028 = vunpack.c.l.b16 %v896
        %v1029 = vunpack.c.l.b16 %v897
        %v1030 = vunpack.c.l.b16 %v898
        %v1031 = vunpack.c.l.b16 %v899
        %v1032 = vunpack.c.l.b16 %v900
        %v1033 = vunpack.c.l.b16 %v901
        %v1034 = vunpack.c.l.b16 %v902
        %v1035 = vunpack.c.l.b16 %v903
        %v1036 = vunpack.c.l.b16 %v904
        %v1037 = vunpack.c.l.b16 %v905
        %v1038 = vunpack.c.l.b16 %v906
        %v1039 = vunpack.c.l.b16 %v907
        %v1040 = vunpack.c.l.b16 %v908
        %v1041 = vunpack.c.l.b16 %v909
        %v1042 = vunpack.c.l.b16 %v910
        %v1043 = vunpack.c.l.b16 %v911
        %v1044 = vunpack.c.l.b16 %v912
        %v1045 = vunpack.c.l.b16 %v913
        %v1046 = vunpack.c.l.b16 %v914
        %v1047 = vunpack.c.l.b16 %v915
        %v1048 = vunpack.c.l.b16 %v916
        %v1049 = vunpack.c.l.b16 %v917
        %v1050 = vunpack.c.l.b16 %v918
        %v1051 = vunpack.c.l.b16 %v919
        %v1052 = vunpack.c.l.b16 %v920
        %v1053 = vunpack.c.l.b16 %v921
        %v1054 = vunpack.c.l.b16 %v922
        %v1055 = vunpack.c.l.b16 %v923
        %v1056 = vunpack.c.l.b16 %v924
        %v1057 = vunpack.c.l.b16 %v925
        %v1058 = vunpack.c.l.b16 %v926
        %v1059 = vunpack.c.l.b16 %v927
        %v1060 = vunpack.c.l.b16 %v928
        %v1061 = vunpack.c.l.b16 %v929
        %v1062 = vunpack.c.l.b16 %v930
        %v1063 = vunpack.c.l.b16 %v931
        %v1064 = vunpack.c.l.b16 %v932
        %v1065 = vunpack.c.l.b16 %v933
        %v1066 = vunpack.c.l.b16 %v934
        %v1067 = vunpack.c.l.b16 %v935
        %v1068 = vunpack.c.l.b16 %v936
        %v1069 = vunpack.c.l.b16 %v937
        %v1070 = vunpack.c.l.b16 %v938
        %v1071 = vunpack.c.l.b16 %v939
        %v1072 = vunpack.c.l.b16 %v940
        %v1073 = vunpack.c.l.b16 %v941
        %v1074 = vunpack.c.l.b16 %v942
        %v1075 = vunpack.c.l.b16 %v943
        %v1076 = vunpack.c.l.b16 %v944
        %v1077 = vunpack.c.l.b16 %v945
        %v1078 = vunpack.c.l.b16 %v946
        %v1079 = vunpack.c.l.b16 %v947
        %v1080 = vunpack.c.l.b16 %v948
        %v1081 = vunpack.c.l.b16 %v949
        %v1082 = vunpack.c.l.b16 %v950
        %v1083 = vunpack.c.l.b16 %v951
        %v1084 = vpack.c.b16 %v1021, %v1020
        %v1085 = vpack.c.b16 %v1023, %v1022
        %v1086 = vpack.c.b16 %v1025, %v1024
        %v1087 = vpack.c.b16 %v1027, %v1026
        %v1088 = vpack.c.b16 %v1029, %v1028
        %v1089 = vpack.c.b16 %v1031, %v1030
        %v1090 = vpack.c.b16 %v1033, %v1032
        %v1091 = vpack.c.b16 %v1035, %v1034
        %v1092 = vpack.c.b16 %v1037, %v1036
        %v1093 = vpack.c.b16 %v1039, %v1038
        %v1094 = vpack.c.b16 %v1041, %v1040
        %v1095 = vpack.c.b16 %v1043, %v1042
        %v1096 = vpack.c.b16 %v1045, %v1044
        %v1097 = vpack.c.b16 %v1047, %v1046
        %v1098 = vpack.c.b16 %v1049, %v1048
        %v1099 = vpack.c.b16 %v1051, %v1050
        %v1100 = vpack.c.b16 %v1053, %v1052
        %v1101 = vpack.c.b16 %v1055, %v1054
        %v1102 = vpack.c.b16 %v1057, %v1056
        %v1103 = vpack.c.b16 %v1059, %v1058
        %v1104 = vpack.c.b16 %v1061, %v1060
        %v1105 = vpack.c.b16 %v1063, %v1062
        %v1106 = vpack.c.b16 %v1065, %v1064
        %v1107 = vpack.c.b16 %v1067, %v1066
        %v1108 = vpack.c.b16 %v1069, %v1068
        %v1109 = vpack.c.b16 %v1071, %v1070
        %v1110 = vpack.c.b16 %v1073, %v1072
        %v1111 = vpack.c.b16 %v1075, %v1074
        %v1112 = vpack.c.b16 %v1077, %v1076
        %v1113 = vpack.c.b16 %v1079, %v1078
        %v1114 = vpack.c.b16 %v1081, %v1080
        %v1115 = vpack.c.b16 %v1083, %v1082
        %1148 = vmatprep.subr.bf16.mxu0 0
        %1149 = vmatpush1.bf16.msra.mxu0 %v1091
        %1150 = vmatprep.subr.bf16.mxu0 0
        %1151 = vmatpush1.bf16.msra.mxu0 %v1090
        %1152 = vmatprep.subr.bf16.mxu0 0
        %1153 = vmatpush1.bf16.msra.mxu0 %v1089
        %1154 = vmatprep.subr.bf16.mxu0 0
        %1155 = vmatpush1.bf16.msra.mxu0 %v1088
        %1156 = vmatprep.subr.bf16.mxu0 0
        %1157 = vmatpush1.bf16.msra.mxu0 %v1087
        %1158 = vmatprep.subr.bf16.mxu0 0
        %1159 = vmatpush1.bf16.msra.mxu0 %v1086
        %1160 = vmatprep.subr.bf16.mxu0 0
        %1161 = vmatpush1.bf16.msra.mxu0 %v1085
        %1162 = vmatprep.subr.bf16.mxu0 0
        %1163 = vmatpush1.bf16.msra.mxu0 %v1084
        %1164 = vmatprep.subr.bf16.mxu0 0
        %1165 = vmatpush2.bf16.msra.mxu0 %v1099
        %1166 = vmatprep.subr.bf16.mxu0 0
        %1167 = vmatpush2.bf16.msra.mxu0 %v1098
        %1168 = vmatprep.subr.bf16.mxu0 0
        %1169 = vmatpush2.bf16.msra.mxu0 %v1097
        %1170 = vmatprep.subr.bf16.mxu0 0
        %1171 = vmatpush2.bf16.msra.mxu0 %v1096
        %1172 = vmatprep.subr.bf16.mxu0 0
        %1173 = vmatpush2.bf16.msra.mxu0 %v1095
        %1174 = vmatprep.subr.bf16.mxu0 0
        %1175 = vmatpush2.bf16.msra.mxu0 %v1094
        %1176 = vmatprep.subr.bf16.mxu0 0
        %1177 = vmatpush2.bf16.msra.mxu0 %v1093
        %1178 = vmatprep.subr.bf16.mxu0 0
        %1179 = vmatpush2.bf16.msra.mxu0 %v1092
        %1180 = vmatprep.mubr.bf16.mxu0 %v885
        %1181 = vmatmul.mubr.bf16.gmra.mxu0 %v884
        %v1182 = vpop.f32.mrf.mxu0
        %v1183 = vadd.f32 %v955, %v1182
        %v1184 = vpop.f32.mrf.mxu0
        %v1185 = vpop.f32.mrf.mxu0
        %v1186 = vadd.f32 %v955, %v1185
        %v1187 = vpop.f32.mrf.mxu0
        %1188 = vdwg.mxu0
        %1189 = vmatprep.subr.bf16.mxu0 0
        %1190 = vmatpush1.bf16.msra.mxu0 %v1107
        %1191 = vmatprep.subr.bf16.mxu0 0
        %1192 = vmatpush1.bf16.msra.mxu0 %v1106
        %1193 = vmatprep.subr.bf16.mxu0 0
        %1194 = vmatpush1.bf16.msra.mxu0 %v1105
        %1195 = vmatprep.subr.bf16.mxu0 0
        %1196 = vmatpush1.bf16.msra.mxu0 %v1104
        %1197 = vmatprep.subr.bf16.mxu0 0
        %1198 = vmatpush1.bf16.msra.mxu0 %v1103
        %1199 = vmatprep.subr.bf16.mxu0 0
        %1200 = vmatpush1.bf16.msra.mxu0 %v1102
        %1201 = vmatprep.subr.bf16.mxu0 0
        %1202 = vmatpush1.bf16.msra.mxu0 %v1101
        %1203 = vmatprep.subr.bf16.mxu0 0
        %1204 = vmatpush1.bf16.msra.mxu0 %v1100
        %1205 = vmatprep.subr.bf16.mxu0 0
        %1206 = vmatpush2.bf16.msra.mxu0 %v1115
        %1207 = vmatprep.subr.bf16.mxu0 0
        %1208 = vmatpush2.bf16.msra.mxu0 %v1114
        %1209 = vmatprep.subr.bf16.mxu0 0
        %1210 = vmatpush2.bf16.msra.mxu0 %v1113
        %1211 = vmatprep.subr.bf16.mxu0 0
        %1212 = vmatpush2.bf16.msra.mxu0 %v1112
        %1213 = vmatprep.subr.bf16.mxu0 0
        %1214 = vmatpush2.bf16.msra.mxu0 %v1111
        %1215 = vmatprep.subr.bf16.mxu0 0
        %1216 = vmatpush2.bf16.msra.mxu0 %v1110
        %1217 = vmatprep.subr.bf16.mxu0 0
        %1218 = vmatpush2.bf16.msra.mxu0 %v1109
        %1219 = vmatprep.subr.bf16.mxu0 0
        %1220 = vmatpush2.bf16.msra.mxu0 %v1108
        %1221 = vmatprep.mubr.bf16.mxu0 %v887
        %1222 = vmatmul.mubr.bf16.gmra.mxu0 %v886
        %v1223 = vpop.f32.mrf.mxu0
        %v1224 = vadd.f32 %v1183, %v1223
        %v1225 = vpop.f32.mrf.mxu0
        %v1226 = vpop.f32.mrf.mxu0
        %v1227 = vadd.f32 %v1186, %v1226
        %v1228 = vpop.f32.mrf.mxu0
        %1229 = vdwg.mxu0
        %v1230 = vmul.f32 %v1224, 0.5
        %v1231 = vmul.f32 %v1227, 0.5
        %v1232 = vadd.f32 %v487, %v1230
        %v1233 = vadd.f32 %v488, %v1231
        %1234 = vadd.xlane.f32.xlu0 %v1232
        %v1235 = vpop.xlane.xlu0 %1234
        %1236 = vadd.xlane.f32.xlu0 %v1233
        %v1237 = vpop.xlane.xlu0 %1236
        %v1238 = vmul.f32 %v1235, %v496
        %v1239 = vmul.f32 %v1237, %v496
        %v1240 = vsub.f32 %v1232, %v1238
        %v1241 = vsub.f32 %v1233, %v1239
        %v1242 = vmul.f32 %v1240, %v1240
        %v1243 = vmul.f32 %v1241, %v1241
        %1244 = vadd.xlane.f32.xlu0 %v1242
        %v1245 = vpop.xlane.xlu0 %1244
        %1246 = vadd.xlane.f32.xlu0 %v1243
        %v1247 = vpop.xlane.xlu0 %1246
        %v1248 = vmul.f32 %v1245, %v496
        %v1249 = vmul.f32 %v1247, %v496
        %v1250 = vadd.f32 %v1248, 1e-05
        %v1251 = vadd.f32 %v1249, 1e-05
        %v1252 = vrsqrt.pop %v1250
        %v1253 = vrsqrt.pop %v1251
        %v1254 = vmul.f32 %v1240, %v1252
        %v1255 = vmul.f32 %v1241, %v1253
        %v1256 = vlaneseq
        %v1257 = vshrl.u32 %v1256, 7
        %v1258 = vsub.s32 3, %v1257
        %v1259 = vrot.slane %v489, %v1258
        %v1260 = vmul.f32 %v1254, %v1259
        %v1261 = vmul.f32 %v1255, %v1259
        %v1262 = vlaneseq
        %v1263 = vshrl.u32 %v1262, 7
        %v1264 = vsub.s32 4, %v1263
        %v1265 = vrot.slane %v489, %v1264
        %v1266 = vadd.f32 %v1260, %v1265
        %v1267 = vadd.f32 %v1261, %v1265
        %v1268 = vpack.c.bf16 %v1267, %v1266
        %v1269 = vld [vmem:[%s5] sm:$0xff]
        %v1270 = vld [vmem:[%s5 + $0x8] sm:$0xf]
        %v1271 = vld [vmem:[%s5 + $0xc] sm:$0xff]
        %v1272 = vld [vmem:[%s5 + $0x14] sm:$0xf]
        %v1273 = vld [vmem:[%s5 + $0x18] sm:$0xff]
        %v1274 = vld [vmem:[%s5 + $0x20] sm:$0xf]
        %v1275 = vld [vmem:[%s5 + $0x24] sm:$0xff]
        %v1276 = vld [vmem:[%s5 + $0x2c] sm:$0xf]
        %v1277 = vld [vmem:[%s5 + $0x30] sm:$0xff]
        %v1278 = vld [vmem:[%s5 + $0x38] sm:$0xf]
        %v1279 = vld [vmem:[%s5 + $0x3c] sm:$0xff]
        %v1280 = vld [vmem:[%s5 + $0x44] sm:$0xf]
        %v1281 = vld [vmem:[%s5 + $0x48] sm:$0xff]
        %v1282 = vld [vmem:[%s5 + $0x50] sm:$0xf]
        %v1283 = vld [vmem:[%s5 + $0x54] sm:$0xff]
        %v1284 = vld [vmem:[%s5 + $0x5c] sm:$0xf]
        %v1285 = vld [vmem:[%s5 + $0x60] sm:$0xff]
        %v1286 = vld [vmem:[%s5 + $0x68] sm:$0xf]
        %v1287 = vld [vmem:[%s5 + $0x6c] sm:$0xff]
        %v1288 = vld [vmem:[%s5 + $0x74] sm:$0xf]
        %v1289 = vld [vmem:[%s5 + $0x78] sm:$0xff]
        %v1290 = vld [vmem:[%s5 + $0x80] sm:$0xf]
        %v1291 = vld [vmem:[%s5 + $0x84] sm:$0xff]
        %v1292 = vld [vmem:[%s5 + $0x8c] sm:$0xf]
        %v1293 = vld [vmem:[%s5 + $0x90] sm:$0xff]
        %v1294 = vld [vmem:[%s5 + $0x98] sm:$0xf]
        %v1295 = vld [vmem:[%s5 + $0x9c] sm:$0xff]
        %v1296 = vld [vmem:[%s5 + $0xa4] sm:$0xf]
        %v1297 = vld [vmem:[%s5 + $0xa8] sm:$0xff]
        %v1298 = vld [vmem:[%s5 + $0xb0] sm:$0xf]
        %v1299 = vld [vmem:[%s5 + $0xb4] sm:$0xff]
        %v1300 = vld [vmem:[%s5 + $0xbc] sm:$0xf]
        %v1301 = vld [vmem:[%s6] sm:$0x7]
        %v1303 = vlaneseq
        %v1304 = vshrl.u32 %v1303, 7
        %v1305 = vsub.s32 0, %v1304
        %v1306 = vrot.slane %v1301, %v1305
        %v1307 = vlaneseq
        %v1308 = vshrl.u32 %v1307, 7
        %v1309 = vsub.s32 1, %v1308
        %v1310 = vrot.slane %v1301, %v1309
        %v1311 = vlaneseq
        %v1312 = vshrl.u32 %v1311, 7
        %v1313 = vsub.s32 2, %v1312
        %v1314 = vrot.slane %v1301, %v1313
        %v1350 = vunpack.c.l.b16 %v1269
        %v1351 = vunpack.c.h.b16 %v1269
        %v1352 = vunpack.c.l.b16 %v1270
        %v1353 = vunpack.c.l.b16 %v1271
        %v1354 = vunpack.c.h.b16 %v1271
        %v1355 = vunpack.c.l.b16 %v1272
        %v1356 = vunpack.c.l.b16 %v1273
        %v1357 = vunpack.c.h.b16 %v1273
        %v1358 = vunpack.c.l.b16 %v1274
        %v1359 = vunpack.c.l.b16 %v1275
        %v1360 = vunpack.c.h.b16 %v1275
        %v1361 = vunpack.c.l.b16 %v1276
        %v1362 = vunpack.c.l.b16 %v1277
        %v1363 = vunpack.c.h.b16 %v1277
        %v1364 = vunpack.c.l.b16 %v1278
        %v1365 = vunpack.c.l.b16 %v1279
        %v1366 = vunpack.c.h.b16 %v1279
        %v1367 = vunpack.c.l.b16 %v1280
        %v1368 = vunpack.c.l.b16 %v1281
        %v1369 = vunpack.c.h.b16 %v1281
        %v1370 = vunpack.c.l.b16 %v1282
        %v1371 = vunpack.c.l.b16 %v1283
        %v1372 = vunpack.c.h.b16 %v1283
        %v1373 = vunpack.c.l.b16 %v1284
        %v1374 = vunpack.c.l.b16 %v1285
        %v1375 = vunpack.c.h.b16 %v1285
        %v1376 = vunpack.c.l.b16 %v1286
        %v1377 = vunpack.c.l.b16 %v1287
        %v1378 = vunpack.c.h.b16 %v1287
        %v1379 = vunpack.c.l.b16 %v1288
        %v1380 = vunpack.c.l.b16 %v1289
        %v1381 = vunpack.c.h.b16 %v1289
        %v1382 = vunpack.c.l.b16 %v1290
        %v1383 = vunpack.c.l.b16 %v1291
        %v1384 = vunpack.c.h.b16 %v1291
        %v1385 = vunpack.c.l.b16 %v1292
        %v1386 = vunpack.c.l.b16 %v1293
        %v1387 = vunpack.c.h.b16 %v1293
        %v1388 = vunpack.c.l.b16 %v1294
        %v1389 = vunpack.c.l.b16 %v1295
        %v1390 = vunpack.c.h.b16 %v1295
        %v1391 = vunpack.c.l.b16 %v1296
        %v1392 = vunpack.c.l.b16 %v1297
        %v1393 = vunpack.c.h.b16 %v1297
        %v1394 = vunpack.c.l.b16 %v1298
        %v1395 = vunpack.c.l.b16 %v1299
        %v1396 = vunpack.c.h.b16 %v1299
        %v1397 = vunpack.c.l.b16 %v1300
        %v1398 = vpack.c.b16 %v1353, %v1350
        %v1399 = vpack.c.b16 %v1354, %v1351
        %v1400 = vpack.c.b16 %v1355, %v1352
        %v1401 = vpack.c.b16 %v1359, %v1356
        %v1402 = vpack.c.b16 %v1360, %v1357
        %v1403 = vpack.c.b16 %v1361, %v1358
        %v1404 = vpack.c.b16 %v1365, %v1362
        %v1405 = vpack.c.b16 %v1366, %v1363
        %v1406 = vpack.c.b16 %v1367, %v1364
        %v1407 = vpack.c.b16 %v1371, %v1368
        %v1408 = vpack.c.b16 %v1372, %v1369
        %v1409 = vpack.c.b16 %v1373, %v1370
        %v1410 = vpack.c.b16 %v1377, %v1374
        %v1411 = vpack.c.b16 %v1378, %v1375
        %v1412 = vpack.c.b16 %v1379, %v1376
        %v1413 = vpack.c.b16 %v1383, %v1380
        %v1414 = vpack.c.b16 %v1384, %v1381
        %v1415 = vpack.c.b16 %v1385, %v1382
        %v1416 = vpack.c.b16 %v1389, %v1386
        %v1417 = vpack.c.b16 %v1390, %v1387
        %v1418 = vpack.c.b16 %v1391, %v1388
        %v1419 = vpack.c.b16 %v1395, %v1392
        %v1420 = vpack.c.b16 %v1396, %v1393
        %v1421 = vpack.c.b16 %v1397, %v1394
        %1446 = vmatprep.subr.bf16.mxu0 %v1420
        %1447 = vmatpush1.bf16.msra.mxu0 %v1419
        %1448 = vmatprep.subr.bf16.mxu0 %v1417
        %1449 = vmatpush1.bf16.msra.mxu0 %v1416
        %1450 = vmatprep.subr.bf16.mxu0 %v1414
        %1451 = vmatpush1.bf16.msra.mxu0 %v1413
        %1452 = vmatprep.subr.bf16.mxu0 %v1411
        %1453 = vmatpush1.bf16.msra.mxu0 %v1410
        %1454 = vmatprep.subr.bf16.mxu0 %v1408
        %1455 = vmatpush1.bf16.msra.mxu0 %v1407
        %1456 = vmatprep.subr.bf16.mxu0 %v1405
        %1457 = vmatpush1.bf16.msra.mxu0 %v1404
        %1458 = vmatprep.subr.bf16.mxu0 %v1402
        %1459 = vmatpush1.bf16.msra.mxu0 %v1401
        %1460 = vmatprep.subr.bf16.mxu0 %v1399
        %1461 = vmatpush1.bf16.msra.mxu0 %v1398
        %1462 = vmatprep.subr.bf16.mxu0 0
        %1463 = vmatpush2.bf16.msra.mxu0 0
        %1464 = vmatprep.subr.bf16.mxu0 0
        %1465 = vmatpush2.bf16.msra.mxu0 0
        %1466 = vmatprep.subr.bf16.mxu0 0
        %1467 = vmatpush2.bf16.msra.mxu0 0
        %1468 = vmatprep.subr.bf16.mxu0 0
        %1469 = vmatpush2.bf16.msra.mxu0 0
        %1470 = vmatprep.subr.bf16.mxu0 0
        %1471 = vmatpush2.bf16.msra.mxu0 0
        %1472 = vmatprep.subr.bf16.mxu0 0
        %1473 = vmatpush2.bf16.msra.mxu0 0
        %1474 = vmatprep.subr.bf16.mxu0 0
        %1475 = vmatpush2.bf16.msra.mxu0 0
        %1476 = vmatprep.subr.bf16.mxu0 0
        %1477 = vmatpush2.bf16.msra.mxu0 0
        %1478 = vmatprep.mubr.bf16.mxu0 0
        %1479 = vmatmul.mubr.bf16.gmra.mxu0 %v1268
        %v1480 = vpop.f32.mrf.mxu0
        %v1481 = vadd.f32 %v1306, %v1480
        %v1482 = vpop.f32.mrf.mxu0
        %v1483 = vadd.f32 %v1310, %v1482
        %v1484 = vpop.f32.mrf.mxu0
        %v1485 = vadd.f32 %v1306, %v1484
        %v1486 = vpop.f32.mrf.mxu0
        %v1487 = vadd.f32 %v1310, %v1486
        %1488 = vdwg.mxu0
        %1489 = vmatprep.subr.bf16.mxu0 0
        %1490 = vmatpush1.bf16.msra.mxu0 %v1421
        %1491 = vmatprep.subr.bf16.mxu0 0
        %1492 = vmatpush1.bf16.msra.mxu0 %v1418
        %1493 = vmatprep.subr.bf16.mxu0 0
        %1494 = vmatpush1.bf16.msra.mxu0 %v1415
        %1495 = vmatprep.subr.bf16.mxu0 0
        %1496 = vmatpush1.bf16.msra.mxu0 %v1412
        %1497 = vmatprep.subr.bf16.mxu0 0
        %1498 = vmatpush1.bf16.msra.mxu0 %v1409
        %1499 = vmatprep.subr.bf16.mxu0 0
        %1500 = vmatpush1.bf16.msra.mxu0 %v1406
        %1501 = vmatprep.subr.bf16.mxu0 0
        %1502 = vmatpush1.bf16.msra.mxu0 %v1403
        %1503 = vmatprep.subr.bf16.mxu0 0
        %1504 = vmatpush1.bf16.msra.mxu0 %v1400
        %1505 = vmatprep.subr.bf16.mxu0 0
        %1506 = vmatpush2.bf16.msra.mxu0 0
        %1507 = vmatprep.subr.bf16.mxu0 0
        %1508 = vmatpush2.bf16.msra.mxu0 0
        %1509 = vmatprep.subr.bf16.mxu0 0
        %1510 = vmatpush2.bf16.msra.mxu0 0
        %1511 = vmatprep.subr.bf16.mxu0 0
        %1512 = vmatpush2.bf16.msra.mxu0 0
        %1513 = vmatprep.subr.bf16.mxu0 0
        %1514 = vmatpush2.bf16.msra.mxu0 0
        %1515 = vmatprep.subr.bf16.mxu0 0
        %1516 = vmatpush2.bf16.msra.mxu0 0
        %1517 = vmatprep.subr.bf16.mxu0 0
        %1518 = vmatpush2.bf16.msra.mxu0 0
        %1519 = vmatprep.subr.bf16.mxu0 0
        %1520 = vmatpush2.bf16.msra.mxu0 0
        %1521 = vmatprep.mubr.bf16.mxu0 0
        %1522 = vmatmul.mubr.bf16.gmra.mxu0 %v1268
        %v1523 = vpop.f32.mrf.mxu0
        %v1524 = vadd.f32 %v1314, %v1523
        %v1525 = vpop.f32.mrf.mxu0
        %v1526 = vpop.f32.mrf.mxu0
        %v1527 = vadd.f32 %v1314, %v1526
        %v1528 = vpop.f32.mrf.mxu0
        %1529 = vdwg.mxu0
        %v1530 = vmul.f32 %v1481, 0.17677669
        %v1531 = vmul.f32 %v1485, 0.17677669
        %v1532 = vpack.c.bf16 %v1531, %v1530
        %1534 = vrot.lane.b32.xlu0 %v1532, 96
        %v1535 = vpop.permute.xlu0 %1534
        %1536 = vrot.lane.b32.xlu0 %v1532, 64
        %v1537 = vpop.permute.xlu0 %1536
        %1538 = vrot.lane.b32.xlu0 %v1532, 32
        %v1539 = vpop.permute.xlu0 %1538
        %v1540 = vpack.c.bf16 %v1487, %v1483
        %1542 = vrot.lane.b32.xlu0 %v1540, 96
        %v1543 = vpop.permute.xlu0 %1542
        %1544 = vrot.lane.b32.xlu0 %v1540, 64
        %v1545 = vpop.permute.xlu0 %1544
        %1546 = vrot.lane.b32.xlu0 %v1540, 32
        %v1547 = vpop.permute.xlu0 %1546
        %v1548 = vpack.c.bf16 %v1527, %v1524
        %1550 = vrot.lane.b32.xlu0 %v1548, 96
        %v1551 = vpop.permute.xlu0 %1550
        %1553 = vrot.lane.b32.xlu0 %v1548, 64
        %v1554 = vpop.permute.xlu0 %1553
        %1556 = vrot.lane.b32.xlu0 %v1548, 32
        %v1557 = vpop.permute.xlu0 %1556
        %vm1559 = vcmask 261120
        %v1561 = vsel %vm1559, %v1532, 0
        %v1564 = vsel %vm1559, %v1540, 0
        %1566 = vmatprep.subr.bf16.mxu0 0
        %1567 = vmatpush1.bf16.xpose.msra.mxu0 0
        %1568 = vmatprep.subr.bf16.mxu0 0
        %1569 = vmatpush1.bf16.xpose.msra.mxu0 0
        %1570 = vmatprep.subr.bf16.mxu0 0
        %1571 = vmatpush1.bf16.xpose.msra.mxu0 0
        %1572 = vmatprep.subr.bf16.mxu0 0
        %1573 = vmatpush1.bf16.xpose.msra.mxu0 0
        %1574 = vmatprep.subr.bf16.mxu0 0
        %1575 = vmatpush1.bf16.xpose.msra.mxu0 0
        %1576 = vmatprep.subr.bf16.mxu0 0
        %1577 = vmatpush1.bf16.xpose.msra.mxu0 0
        %1578 = vmatprep.subr.bf16.mxu0 0
        %1579 = vmatpush1.bf16.xpose.msra.mxu0 0
        %1580 = vmatprep.subr.bf16.mxu0 0
        %1581 = vmatpush1.bf16.xpose.msra.mxu0 %v1564
        %1582 = vmatprep.subr.bf16.mxu0 0
        %1583 = vmatpush2.bf16.xpose.msra.mxu0 0
        %1584 = vmatprep.subr.bf16.mxu0 0
        %1585 = vmatpush2.bf16.xpose.msra.mxu0 0
        %1586 = vmatprep.subr.bf16.mxu0 0
        %1587 = vmatpush2.bf16.xpose.msra.mxu0 0
        %1588 = vmatprep.subr.bf16.mxu0 0
        %1589 = vmatpush2.bf16.xpose.msra.mxu0 0
        %1590 = vmatprep.subr.bf16.mxu0 0
        %1591 = vmatpush2.bf16.xpose.msra.mxu0 0
        %1592 = vmatprep.subr.bf16.mxu0 0
        %1593 = vmatpush2.bf16.xpose.msra.mxu0 0
        %1594 = vmatprep.subr.bf16.mxu0 0
        %1595 = vmatpush2.bf16.xpose.msra.mxu0 0
        %1596 = vmatprep.subr.bf16.mxu0 0
        %1597 = vmatpush2.bf16.xpose.msra.mxu0 0
        %1598 = vmatprep.mubr.bf16.mxu0 0
        %1599 = vmatmul.mubr.bf16.gmra.mxu0 %v1561
        %v1600 = vpop.f32.mrf.mxu0
        %v1601 = vadd.f32 0.0, %v1600
        %v1602 = vpop.f32.mrf.mxu0
        %v1603 = vpop.f32.mrf.mxu0
        %v1604 = vadd.f32 0.0, %v1603
        %v1605 = vpop.f32.mrf.mxu0
        %1606 = vdwg.mxu0
        %v1608 = vsel %vm1559, %v1535, 0
        %v1611 = vsel %vm1559, %v1543, 0
        %1613 = vmatprep.subr.bf16.mxu0 0
        %1614 = vmatpush1.bf16.xpose.msra.mxu0 0
        %1615 = vmatprep.subr.bf16.mxu0 0
        %1616 = vmatpush1.bf16.xpose.msra.mxu0 0
        %1617 = vmatprep.subr.bf16.mxu0 0
        %1618 = vmatpush1.bf16.xpose.msra.mxu0 0
        %1619 = vmatprep.subr.bf16.mxu0 0
        %1620 = vmatpush1.bf16.xpose.msra.mxu0 0
        %1621 = vmatprep.subr.bf16.mxu0 0
        %1622 = vmatpush1.bf16.xpose.msra.mxu0 0
        %1623 = vmatprep.subr.bf16.mxu0 0
        %1624 = vmatpush1.bf16.xpose.msra.mxu0 0
        %1625 = vmatprep.subr.bf16.mxu0 0
        %1626 = vmatpush1.bf16.xpose.msra.mxu0 0
        %1627 = vmatprep.subr.bf16.mxu0 0
        %1628 = vmatpush1.bf16.xpose.msra.mxu0 %v1611
        %1629 = vmatprep.subr.bf16.mxu0 0
        %1630 = vmatpush2.bf16.xpose.msra.mxu0 0
        %1631 = vmatprep.subr.bf16.mxu0 0
        %1632 = vmatpush2.bf16.xpose.msra.mxu0 0
        %1633 = vmatprep.subr.bf16.mxu0 0
        %1634 = vmatpush2.bf16.xpose.msra.mxu0 0
        %1635 = vmatprep.subr.bf16.mxu0 0
        %1636 = vmatpush2.bf16.xpose.msra.mxu0 0
        %1637 = vmatprep.subr.bf16.mxu0 0
        %1638 = vmatpush2.bf16.xpose.msra.mxu0 0
        %1639 = vmatprep.subr.bf16.mxu0 0
        %1640 = vmatpush2.bf16.xpose.msra.mxu0 0
        %1641 = vmatprep.subr.bf16.mxu0 0
        %1642 = vmatpush2.bf16.xpose.msra.mxu0 0
        %1643 = vmatprep.subr.bf16.mxu0 0
        %1644 = vmatpush2.bf16.xpose.msra.mxu0 0
        %1645 = vmatprep.mubr.bf16.mxu0 0
        %1646 = vmatmul.mubr.bf16.gmra.mxu0 %v1608
        %v1647 = vpop.f32.mrf.mxu0
        %v1648 = vadd.f32 0.0, %v1647
        %v1649 = vpop.f32.mrf.mxu0
        %v1650 = vpop.f32.mrf.mxu0
        %v1651 = vadd.f32 0.0, %v1650
        %v1652 = vpop.f32.mrf.mxu0
        %1653 = vdwg.mxu0
        %v1655 = vsel %vm1559, %v1537, 0
        %v1658 = vsel %vm1559, %v1545, 0
        %1660 = vmatprep.subr.bf16.mxu0 0
        %1661 = vmatpush1.bf16.xpose.msra.mxu0 0
        %1662 = vmatprep.subr.bf16.mxu0 0
        %1663 = vmatpush1.bf16.xpose.msra.mxu0 0
        %1664 = vmatprep.subr.bf16.mxu0 0
        %1665 = vmatpush1.bf16.xpose.msra.mxu0 0
        %1666 = vmatprep.subr.bf16.mxu0 0
        %1667 = vmatpush1.bf16.xpose.msra.mxu0 0
        %1668 = vmatprep.subr.bf16.mxu0 0
        %1669 = vmatpush1.bf16.xpose.msra.mxu0 0
        %1670 = vmatprep.subr.bf16.mxu0 0
        %1671 = vmatpush1.bf16.xpose.msra.mxu0 0
        %1672 = vmatprep.subr.bf16.mxu0 0
        %1673 = vmatpush1.bf16.xpose.msra.mxu0 0
        %1674 = vmatprep.subr.bf16.mxu0 0
        %1675 = vmatpush1.bf16.xpose.msra.mxu0 %v1658
        %1676 = vmatprep.subr.bf16.mxu0 0
        %1677 = vmatpush2.bf16.xpose.msra.mxu0 0
        %1678 = vmatprep.subr.bf16.mxu0 0
        %1679 = vmatpush2.bf16.xpose.msra.mxu0 0
        %1680 = vmatprep.subr.bf16.mxu0 0
        %1681 = vmatpush2.bf16.xpose.msra.mxu0 0
        %1682 = vmatprep.subr.bf16.mxu0 0
        %1683 = vmatpush2.bf16.xpose.msra.mxu0 0
        %1684 = vmatprep.subr.bf16.mxu0 0
        %1685 = vmatpush2.bf16.xpose.msra.mxu0 0
        %1686 = vmatprep.subr.bf16.mxu0 0
        %1687 = vmatpush2.bf16.xpose.msra.mxu0 0
        %1688 = vmatprep.subr.bf16.mxu0 0
        %1689 = vmatpush2.bf16.xpose.msra.mxu0 0
        %1690 = vmatprep.subr.bf16.mxu0 0
        %1691 = vmatpush2.bf16.xpose.msra.mxu0 0
        %1692 = vmatprep.mubr.bf16.mxu0 0
        %1693 = vmatmul.mubr.bf16.gmra.mxu0 %v1655
        %v1694 = vpop.f32.mrf.mxu0
        %v1695 = vadd.f32 0.0, %v1694
        %v1696 = vpop.f32.mrf.mxu0
        %v1697 = vpop.f32.mrf.mxu0
        %v1698 = vadd.f32 0.0, %v1697
        %v1699 = vpop.f32.mrf.mxu0
        %1700 = vdwg.mxu0
        %v1702 = vsel %vm1559, %v1539, 0
        %v1705 = vsel %vm1559, %v1547, 0
        %1707 = vmatprep.subr.bf16.mxu0 0
        %1708 = vmatpush1.bf16.xpose.msra.mxu0 0
        %1709 = vmatprep.subr.bf16.mxu0 0
        %1710 = vmatpush1.bf16.xpose.msra.mxu0 0
        %1711 = vmatprep.subr.bf16.mxu0 0
        %1712 = vmatpush1.bf16.xpose.msra.mxu0 0
        %1713 = vmatprep.subr.bf16.mxu0 0
        %1714 = vmatpush1.bf16.xpose.msra.mxu0 0
        %1715 = vmatprep.subr.bf16.mxu0 0
        %1716 = vmatpush1.bf16.xpose.msra.mxu0 0
        %1717 = vmatprep.subr.bf16.mxu0 0
        %1718 = vmatpush1.bf16.xpose.msra.mxu0 0
        %1719 = vmatprep.subr.bf16.mxu0 0
        %1720 = vmatpush1.bf16.xpose.msra.mxu0 0
        %1721 = vmatprep.subr.bf16.mxu0 0
        %1722 = vmatpush1.bf16.xpose.msra.mxu0 %v1705
        %1723 = vmatprep.subr.bf16.mxu0 0
        %1724 = vmatpush2.bf16.xpose.msra.mxu0 0
        %1725 = vmatprep.subr.bf16.mxu0 0
        %1726 = vmatpush2.bf16.xpose.msra.mxu0 0
        %1727 = vmatprep.subr.bf16.mxu0 0
        %1728 = vmatpush2.bf16.xpose.msra.mxu0 0
        %1729 = vmatprep.subr.bf16.mxu0 0
        %1730 = vmatpush2.bf16.xpose.msra.mxu0 0
        %1731 = vmatprep.subr.bf16.mxu0 0
        %1732 = vmatpush2.bf16.xpose.msra.mxu0 0
        %1733 = vmatprep.subr.bf16.mxu0 0
        %1734 = vmatpush2.bf16.xpose.msra.mxu0 0
        %1735 = vmatprep.subr.bf16.mxu0 0
        %1736 = vmatpush2.bf16.xpose.msra.mxu0 0
        %1737 = vmatprep.subr.bf16.mxu0 0
        %1738 = vmatpush2.bf16.xpose.msra.mxu0 0
        %1739 = vmatprep.mubr.bf16.mxu0 0
        %1740 = vmatmul.mubr.bf16.gmra.mxu0 %v1702
        %v1741 = vpop.f32.mrf.mxu0
        %v1742 = vadd.f32 0.0, %v1741
        %v1743 = vpop.f32.mrf.mxu0
        %v1744 = vpop.f32.mrf.mxu0
        %v1745 = vadd.f32 0.0, %v1744
        %v1746 = vpop.f32.mrf.mxu0
        %1747 = vdwg.mxu0
        %vm1748 = vcmask 130048
        %v1749 = vsel %vm1748, %v1601, -inf
        %1750 = vmax.xlane.f32.xlu0 %v1749
        %v1751 = vpop.xlane.xlu0 %1750
        %v1752 = vsel %vm1748, %v1604, -inf
        %1753 = vmax.xlane.f32.xlu0 %v1752
        %v1754 = vpop.xlane.xlu0 %1753
        %v1755 = vsel %vm1748, %v1648, -inf
        %1756 = vmax.xlane.f32.xlu0 %v1755
        %v1757 = vpop.xlane.xlu0 %1756
        %v1758 = vsel %vm1748, %v1651, -inf
        %1759 = vmax.xlane.f32.xlu0 %v1758
        %v1760 = vpop.xlane.xlu0 %1759
        %v1761 = vsel %vm1748, %v1695, -inf
        %1762 = vmax.xlane.f32.xlu0 %v1761
        %v1763 = vpop.xlane.xlu0 %1762
        %v1764 = vsel %vm1748, %v1698, -inf
        %1765 = vmax.xlane.f32.xlu0 %v1764
        %v1766 = vpop.xlane.xlu0 %1765
        %v1767 = vsel %vm1748, %v1742, -inf
        %1768 = vmax.xlane.f32.xlu0 %v1767
        %v1769 = vpop.xlane.xlu0 %1768
        %v1770 = vsel %vm1748, %v1745, -inf
        %1771 = vmax.xlane.f32.xlu0 %v1770
        %v1772 = vpop.xlane.xlu0 %1771
        %v1773 = vsub.f32 -inf, %v1751
        %v1774 = vsub.f32 -inf, %v1754
        %v1775 = vsub.f32 -inf, %v1757
        %v1776 = vsub.f32 -inf, %v1760
        %v1777 = vsub.f32 -inf, %v1763
        %v1778 = vsub.f32 -inf, %v1766
        %v1779 = vsub.f32 -inf, %v1769
        %v1780 = vsub.f32 -inf, %v1772
        %v1781 = vmul.f32 %v1773, 1.442695
        %v1782 = vpow.pop %v1781
        %v1783 = vmul.f32 %v1774, 1.442695
        %v1784 = vpow.pop %v1783
        %v1785 = vmul.f32 %v1775, 1.442695
        %v1786 = vpow.pop %v1785
        %v1787 = vmul.f32 %v1776, 1.442695
        %v1788 = vpow.pop %v1787
        %v1789 = vmul.f32 %v1777, 1.442695
        %v1790 = vpow.pop %v1789
        %v1791 = vmul.f32 %v1778, 1.442695
        %v1792 = vpow.pop %v1791
        %v1793 = vmul.f32 %v1779, 1.442695
        %v1794 = vpow.pop %v1793
        %v1795 = vmul.f32 %v1780, 1.442695
        %v1796 = vpow.pop %v1795
        %v1797 = vsub.f32 %v1601, %v1751
        %v1798 = vsub.f32 %v1604, %v1754
        %v1799 = vsub.f32 %v1648, %v1757
        %v1800 = vsub.f32 %v1651, %v1760
        %v1801 = vsub.f32 %v1695, %v1763
        %v1802 = vsub.f32 %v1698, %v1766
        %v1803 = vsub.f32 %v1742, %v1769
        %v1804 = vsub.f32 %v1745, %v1772
        %v1805 = vmul.f32 %v1797, 1.442695
        %v1806 = vpow.pop %v1805
        %v1807 = vmul.f32 %v1798, 1.442695
        %v1808 = vpow.pop %v1807
        %v1809 = vmul.f32 %v1799, 1.442695
        %v1810 = vpow.pop %v1809
        %v1811 = vmul.f32 %v1800, 1.442695
        %v1812 = vpow.pop %v1811
        %v1813 = vmul.f32 %v1801, 1.442695
        %v1814 = vpow.pop %v1813
        %v1815 = vmul.f32 %v1802, 1.442695
        %v1816 = vpow.pop %v1815
        %v1817 = vmul.f32 %v1803, 1.442695
        %v1818 = vpow.pop %v1817
        %v1819 = vmul.f32 %v1804, 1.442695
        %v1820 = vpow.pop %v1819
        %v1821 = vmul.f32 %v1782, 0.0
        %v1822 = vmul.f32 %v1784, 0.0
        %v1823 = vmul.f32 %v1786, 0.0
        %v1824 = vmul.f32 %v1788, 0.0
        %v1825 = vmul.f32 %v1790, 0.0
        %v1826 = vmul.f32 %v1792, 0.0
        %v1827 = vmul.f32 %v1794, 0.0
        %v1828 = vmul.f32 %v1796, 0.0
        %v1829 = vsel %vm1748, %v1806, 0.0
        %1830 = vadd.xlane.f32.xlu0 %v1829
        %v1831 = vpop.xlane.xlu0 %1830
        %v1832 = vsel %vm1748, %v1808, 0.0
        %1833 = vadd.xlane.f32.xlu0 %v1832
        %v1834 = vpop.xlane.xlu0 %1833
        %v1835 = vsel %vm1748, %v1810, 0.0
        %1836 = vadd.xlane.f32.xlu0 %v1835
        %v1837 = vpop.xlane.xlu0 %1836
        %v1838 = vsel %vm1748, %v1812, 0.0
        %1839 = vadd.xlane.f32.xlu0 %v1838
        %v1840 = vpop.xlane.xlu0 %1839
        %v1841 = vsel %vm1748, %v1814, 0.0
        %1842 = vadd.xlane.f32.xlu0 %v1841
        %v1843 = vpop.xlane.xlu0 %1842
        %v1844 = vsel %vm1748, %v1816, 0.0
        %1845 = vadd.xlane.f32.xlu0 %v1844
        %v1846 = vpop.xlane.xlu0 %1845
        %v1847 = vsel %vm1748, %v1818, 0.0
        %1848 = vadd.xlane.f32.xlu0 %v1847
        %v1849 = vpop.xlane.xlu0 %1848
        %v1850 = vsel %vm1748, %v1820, 0.0
        %1851 = vadd.xlane.f32.xlu0 %v1850
        %v1852 = vpop.xlane.xlu0 %1851
        %v1853 = vadd.f32 %v1821, %v1831
        %v1854 = vadd.f32 %v1822, %v1834
        %v1855 = vadd.f32 %v1823, %v1837
        %v1856 = vadd.f32 %v1824, %v1840
        %v1857 = vadd.f32 %v1825, %v1843
        %v1858 = vadd.f32 %v1826, %v1846
        %v1859 = vadd.f32 %v1827, %v1849
        %v1860 = vadd.f32 %v1828, %v1852
        %v1861 = vpack.c.bf16 %v1808, %v1806
        %v1862 = vpack.c.bf16 %v1812, %v1810
        %v1863 = vpack.c.bf16 %v1816, %v1814
        %v1864 = vpack.c.bf16 %v1820, %v1818
        %v1866 = vsel %vm1748, %v1861, 0
        %1868 = vmatprep.subr.bf16.mxu0 0
        %1869 = vmatpush1.bf16.msra.mxu0 0
        %1870 = vmatprep.subr.bf16.mxu0 0
        %1871 = vmatpush1.bf16.msra.mxu0 0
        %1872 = vmatprep.subr.bf16.mxu0 0
        %1873 = vmatpush1.bf16.msra.mxu0 0
        %1874 = vmatprep.subr.bf16.mxu0 0
        %1875 = vmatpush1.bf16.msra.mxu0 0
        %1876 = vmatprep.subr.bf16.mxu0 0
        %1877 = vmatpush1.bf16.msra.mxu0 0
        %1878 = vmatprep.subr.bf16.mxu0 0
        %1879 = vmatpush1.bf16.msra.mxu0 0
        %1880 = vmatprep.subr.bf16.mxu0 0
        %1881 = vmatpush1.bf16.msra.mxu0 0
        %1882 = vmatprep.subr.bf16.mxu0 0
        %1883 = vmatpush1.bf16.msra.mxu0 %v1548
        %1884 = vmatprep.subr.bf16.mxu0 0
        %1885 = vmatpush2.bf16.msra.mxu0 0
        %1886 = vmatprep.subr.bf16.mxu0 0
        %1887 = vmatpush2.bf16.msra.mxu0 0
        %1888 = vmatprep.subr.bf16.mxu0 0
        %1889 = vmatpush2.bf16.msra.mxu0 0
        %1890 = vmatprep.subr.bf16.mxu0 0
        %1891 = vmatpush2.bf16.msra.mxu0 0
        %1892 = vmatprep.subr.bf16.mxu0 0
        %1893 = vmatpush2.bf16.msra.mxu0 0
        %1894 = vmatprep.subr.bf16.mxu0 0
        %1895 = vmatpush2.bf16.msra.mxu0 0
        %1896 = vmatprep.subr.bf16.mxu0 0
        %1897 = vmatpush2.bf16.msra.mxu0 0
        %1898 = vmatprep.subr.bf16.mxu0 0
        %1899 = vmatpush2.bf16.msra.mxu0 0
        %1900 = vmatprep.mubr.bf16.mxu0 0
        %1901 = vmatmul.mubr.bf16.gmra.mxu0 %v1866
        %v1902 = vpop.f32.mrf.mxu0
        %v1903 = vadd.f32 0.0, %v1902
        %v1904 = vpop.f32.mrf.mxu0
        %v1905 = vpop.f32.mrf.mxu0
        %v1906 = vadd.f32 0.0, %v1905
        %v1907 = vpop.f32.mrf.mxu0
        %1908 = vdwg.mxu0
        %v1910 = vsel %vm1748, %v1862, 0
        %1912 = vmatprep.subr.bf16.mxu0 0
        %1913 = vmatpush1.bf16.msra.mxu0 0
        %1914 = vmatprep.subr.bf16.mxu0 0
        %1915 = vmatpush1.bf16.msra.mxu0 0
        %1916 = vmatprep.subr.bf16.mxu0 0
        %1917 = vmatpush1.bf16.msra.mxu0 0
        %1918 = vmatprep.subr.bf16.mxu0 0
        %1919 = vmatpush1.bf16.msra.mxu0 0
        %1920 = vmatprep.subr.bf16.mxu0 0
        %1921 = vmatpush1.bf16.msra.mxu0 0
        %1922 = vmatprep.subr.bf16.mxu0 0
        %1923 = vmatpush1.bf16.msra.mxu0 0
        %1924 = vmatprep.subr.bf16.mxu0 0
        %1925 = vmatpush1.bf16.msra.mxu0 0
        %1926 = vmatprep.subr.bf16.mxu0 0
        %1927 = vmatpush1.bf16.msra.mxu0 %v1551
        %1928 = vmatprep.subr.bf16.mxu0 0
        %1929 = vmatpush2.bf16.msra.mxu0 0
        %1930 = vmatprep.subr.bf16.mxu0 0
        %1931 = vmatpush2.bf16.msra.mxu0 0
        %1932 = vmatprep.subr.bf16.mxu0 0
        %1933 = vmatpush2.bf16.msra.mxu0 0
        %1934 = vmatprep.subr.bf16.mxu0 0
        %1935 = vmatpush2.bf16.msra.mxu0 0
        %1936 = vmatprep.subr.bf16.mxu0 0
        %1937 = vmatpush2.bf16.msra.mxu0 0
        %1938 = vmatprep.subr.bf16.mxu0 0
        %1939 = vmatpush2.bf16.msra.mxu0 0
        %1940 = vmatprep.subr.bf16.mxu0 0
        %1941 = vmatpush2.bf16.msra.mxu0 0
        %1942 = vmatprep.subr.bf16.mxu0 0
        %1943 = vmatpush2.bf16.msra.mxu0 0
        %1944 = vmatprep.mubr.bf16.mxu0 0
        %1945 = vmatmul.mubr.bf16.gmra.mxu0 %v1910
        %v1946 = vpop.f32.mrf.mxu0
        %v1947 = vadd.f32 0.0, %v1946
        %v1948 = vpop.f32.mrf.mxu0
        %v1949 = vpop.f32.mrf.mxu0
        %v1950 = vadd.f32 0.0, %v1949
        %v1951 = vpop.f32.mrf.mxu0
        %1952 = vdwg.mxu0
        %v1954 = vsel %vm1748, %v1863, 0
        %1956 = vmatprep.subr.bf16.mxu0 0
        %1957 = vmatpush1.bf16.msra.mxu0 0
        %1958 = vmatprep.subr.bf16.mxu0 0
        %1959 = vmatpush1.bf16.msra.mxu0 0
        %1960 = vmatprep.subr.bf16.mxu0 0
        %1961 = vmatpush1.bf16.msra.mxu0 0
        %1962 = vmatprep.subr.bf16.mxu0 0
        %1963 = vmatpush1.bf16.msra.mxu0 0
        %1964 = vmatprep.subr.bf16.mxu0 0
        %1965 = vmatpush1.bf16.msra.mxu0 0
        %1966 = vmatprep.subr.bf16.mxu0 0
        %1967 = vmatpush1.bf16.msra.mxu0 0
        %1968 = vmatprep.subr.bf16.mxu0 0
        %1969 = vmatpush1.bf16.msra.mxu0 0
        %1970 = vmatprep.subr.bf16.mxu0 0
        %1971 = vmatpush1.bf16.msra.mxu0 %v1554
        %1972 = vmatprep.subr.bf16.mxu0 0
        %1973 = vmatpush2.bf16.msra.mxu0 0
        %1974 = vmatprep.subr.bf16.mxu0 0
        %1975 = vmatpush2.bf16.msra.mxu0 0
        %1976 = vmatprep.subr.bf16.mxu0 0
        %1977 = vmatpush2.bf16.msra.mxu0 0
        %1978 = vmatprep.subr.bf16.mxu0 0
        %1979 = vmatpush2.bf16.msra.mxu0 0
        %1980 = vmatprep.subr.bf16.mxu0 0
        %1981 = vmatpush2.bf16.msra.mxu0 0
        %1982 = vmatprep.subr.bf16.mxu0 0
        %1983 = vmatpush2.bf16.msra.mxu0 0
        %1984 = vmatprep.subr.bf16.mxu0 0
        %1985 = vmatpush2.bf16.msra.mxu0 0
        %1986 = vmatprep.subr.bf16.mxu0 0
        %1987 = vmatpush2.bf16.msra.mxu0 0
        %1988 = vmatprep.mubr.bf16.mxu0 0
        %1989 = vmatmul.mubr.bf16.gmra.mxu0 %v1954
        %v1990 = vpop.f32.mrf.mxu0
        %v1991 = vadd.f32 0.0, %v1990
        %v1992 = vpop.f32.mrf.mxu0
        %v1993 = vpop.f32.mrf.mxu0
        %v1994 = vadd.f32 0.0, %v1993
        %v1995 = vpop.f32.mrf.mxu0
        %1996 = vdwg.mxu0
        %v1998 = vsel %vm1748, %v1864, 0
        %2000 = vmatprep.subr.bf16.mxu0 0
        %2001 = vmatpush1.bf16.msra.mxu0 0
        %2002 = vmatprep.subr.bf16.mxu0 0
        %2003 = vmatpush1.bf16.msra.mxu0 0
        %2004 = vmatprep.subr.bf16.mxu0 0
        %2005 = vmatpush1.bf16.msra.mxu0 0
        %2006 = vmatprep.subr.bf16.mxu0 0
        %2007 = vmatpush1.bf16.msra.mxu0 0
        %2008 = vmatprep.subr.bf16.mxu0 0
        %2009 = vmatpush1.bf16.msra.mxu0 0
        %2010 = vmatprep.subr.bf16.mxu0 0
        %2011 = vmatpush1.bf16.msra.mxu0 0
        %2012 = vmatprep.subr.bf16.mxu0 0
        %2013 = vmatpush1.bf16.msra.mxu0 0
        %2014 = vmatprep.subr.bf16.mxu0 0
        %2015 = vmatpush1.bf16.msra.mxu0 %v1557
        %2016 = vmatprep.subr.bf16.mxu0 0
        %2017 = vmatpush2.bf16.msra.mxu0 0
        %2018 = vmatprep.subr.bf16.mxu0 0
        %2019 = vmatpush2.bf16.msra.mxu0 0
        %2020 = vmatprep.subr.bf16.mxu0 0
        %2021 = vmatpush2.bf16.msra.mxu0 0
        %2022 = vmatprep.subr.bf16.mxu0 0
        %2023 = vmatpush2.bf16.msra.mxu0 0
        %2024 = vmatprep.subr.bf16.mxu0 0
        %2025 = vmatpush2.bf16.msra.mxu0 0
        %2026 = vmatprep.subr.bf16.mxu0 0
        %2027 = vmatpush2.bf16.msra.mxu0 0
        %2028 = vmatprep.subr.bf16.mxu0 0
        %2029 = vmatpush2.bf16.msra.mxu0 0
        %2030 = vmatprep.subr.bf16.mxu0 0
        %2031 = vmatpush2.bf16.msra.mxu0 0
        %2032 = vmatprep.mubr.bf16.mxu0 0
        %2033 = vmatmul.mubr.bf16.gmra.mxu0 %v1998
        %v2034 = vpop.f32.mrf.mxu0
        %v2035 = vadd.f32 0.0, %v2034
        %v2036 = vpop.f32.mrf.mxu0
        %v2037 = vpop.f32.mrf.mxu0
        %v2038 = vadd.f32 0.0, %v2037
        %v2039 = vpop.f32.mrf.mxu0
        %2040 = vdwg.mxu0
        %v2041 = vadd.f32 %v1821, %v1903
        %v2042 = vadd.f32 %v1822, %v1906
        %v2043 = vadd.f32 %v1823, %v1947
        %v2044 = vadd.f32 %v1824, %v1950
        %v2045 = vadd.f32 %v1825, %v1991
        %v2046 = vadd.f32 %v1826, %v1994
        %v2047 = vadd.f32 %v1827, %v2035
        %v2048 = vadd.f32 %v1828, %v2038
        %v2049 = vrcp.pop %v1853
        %v2050 = vrcp.pop %v1854
        %v2051 = vrcp.pop %v1855
        %v2052 = vrcp.pop %v1856
        %v2053 = vrcp.pop %v1857
        %v2054 = vrcp.pop %v1858
        %v2055 = vrcp.pop %v1859
        %v2056 = vrcp.pop %v1860
        %v2057 = vmul.f32 %v2041, %v2049
        %v2058 = vmul.f32 %v2042, %v2050
        %v2059 = vmul.f32 %v2043, %v2051
        %v2060 = vmul.f32 %v2044, %v2052
        %v2061 = vmul.f32 %v2045, %v2053
        %v2062 = vmul.f32 %v2046, %v2054
        %v2063 = vmul.f32 %v2047, %v2055
        %v2064 = vmul.f32 %v2048, %v2056
        %2067 = vrot.lane.b32.xlu0 %v2059, 32
        %v2068 = vpop.permute.xlu0 %2067
        %2069 = vrot.lane.b32.xlu0 %v2060, 32
        %v2070 = vpop.permute.xlu0 %2069
        %2075 = vrot.lane.b32.xlu0 %v2061, 64
        %v2076 = vpop.permute.xlu0 %2075
        %2077 = vrot.lane.b32.xlu0 %v2062, 64
        %v2078 = vpop.permute.xlu0 %2077
        %2083 = vrot.lane.b32.xlu0 %v2063, 96
        %v2084 = vpop.permute.xlu0 %2083
        %2085 = vrot.lane.b32.xlu0 %v2064, 96
        %v2086 = vpop.permute.xlu0 %2085
        %v2089 = vsel %vm1559, %v2057, %v2068
        %v2090 = vsel %vm1559, %v2058, %v2070
        %vm2091 = vcmask 523264
        %v2092 = vsel %vm2091, %v2089, %v2076
        %v2093 = vsel %vm2091, %v2090, %v2078
        %vm2094 = vcmask 785408
        %v2095 = vsel %vm2094, %v2092, %v2084
        %v2096 = vsel %vm2094, %v2093, %v2086
        %v2097 = vpack.c.bf16 %v2096, %v2095
        %v2098 = vld [vmem:[%s7] sm:$0xf]
        %v2099 = vld [vmem:[%s7 + $0x4] sm:$0xf]
        %v2100 = vld [vmem:[%s7 + $0x8] sm:$0xf]
        %v2101 = vld [vmem:[%s7 + $0xc] sm:$0xf]
        %v2102 = vld [vmem:[%s7 + $0x10] sm:$0xf]
        %v2103 = vld [vmem:[%s7 + $0x14] sm:$0xf]
        %v2104 = vld [vmem:[%s7 + $0x18] sm:$0xf]
        %v2105 = vld [vmem:[%s7 + $0x1c] sm:$0xf]
        %v2106 = vld [vmem:[%s7 + $0x20] sm:$0xf]
        %v2107 = vld [vmem:[%s7 + $0x24] sm:$0xf]
        %v2108 = vld [vmem:[%s7 + $0x28] sm:$0xf]
        %v2109 = vld [vmem:[%s7 + $0x2c] sm:$0xf]
        %v2110 = vld [vmem:[%s7 + $0x30] sm:$0xf]
        %v2111 = vld [vmem:[%s7 + $0x34] sm:$0xf]
        %v2112 = vld [vmem:[%s7 + $0x38] sm:$0xf]
        %v2113 = vld [vmem:[%s7 + $0x3c] sm:$0xf]
        %v2130 = vunpack.c.l.b16 %v2098
        %v2131 = vunpack.c.l.b16 %v2099
        %v2132 = vunpack.c.l.b16 %v2100
        %v2133 = vunpack.c.l.b16 %v2101
        %v2134 = vunpack.c.l.b16 %v2102
        %v2135 = vunpack.c.l.b16 %v2103
        %v2136 = vunpack.c.l.b16 %v2104
        %v2137 = vunpack.c.l.b16 %v2105
        %v2138 = vunpack.c.l.b16 %v2106
        %v2139 = vunpack.c.l.b16 %v2107
        %v2140 = vunpack.c.l.b16 %v2108
        %v2141 = vunpack.c.l.b16 %v2109
        %v2142 = vunpack.c.l.b16 %v2110
        %v2143 = vunpack.c.l.b16 %v2111
        %v2144 = vunpack.c.l.b16 %v2112
        %v2145 = vunpack.c.l.b16 %v2113
        %v2146 = vpack.c.b16 %v2131, %v2130
        %v2147 = vpack.c.b16 %v2133, %v2132
        %v2148 = vpack.c.b16 %v2135, %v2134
        %v2149 = vpack.c.b16 %v2137, %v2136
        %v2150 = vpack.c.b16 %v2139, %v2138
        %v2151 = vpack.c.b16 %v2141, %v2140
        %v2152 = vpack.c.b16 %v2143, %v2142
        %v2153 = vpack.c.b16 %v2145, %v2144
        %2162 = vmatprep.subr.bf16.mxu0 0
        %2163 = vmatpush1.bf16.msra.mxu0 %v2153
        %2164 = vmatprep.subr.bf16.mxu0 0
        %2165 = vmatpush1.bf16.msra.mxu0 %v2152
        %2166 = vmatprep.subr.bf16.mxu0 0
        %2167 = vmatpush1.bf16.msra.mxu0 %v2151
        %2168 = vmatprep.subr.bf16.mxu0 0
        %2169 = vmatpush1.bf16.msra.mxu0 %v2150
        %2170 = vmatprep.subr.bf16.mxu0 0
        %2171 = vmatpush1.bf16.msra.mxu0 %v2149
        %2172 = vmatprep.subr.bf16.mxu0 0
        %2173 = vmatpush1.bf16.msra.mxu0 %v2148
        %2174 = vmatprep.subr.bf16.mxu0 0
        %2175 = vmatpush1.bf16.msra.mxu0 %v2147
        %2176 = vmatprep.subr.bf16.mxu0 0
        %2177 = vmatpush1.bf16.msra.mxu0 %v2146
        %2178 = vmatprep.subr.bf16.mxu0 0
        %2179 = vmatpush2.bf16.msra.mxu0 0
        %2180 = vmatprep.subr.bf16.mxu0 0
        %2181 = vmatpush2.bf16.msra.mxu0 0
        %2182 = vmatprep.subr.bf16.mxu0 0
        %2183 = vmatpush2.bf16.msra.mxu0 0
        %2184 = vmatprep.subr.bf16.mxu0 0
        %2185 = vmatpush2.bf16.msra.mxu0 0
        %2186 = vmatprep.subr.bf16.mxu0 0
        %2187 = vmatpush2.bf16.msra.mxu0 0
        %2188 = vmatprep.subr.bf16.mxu0 0
        %2189 = vmatpush2.bf16.msra.mxu0 0
        %2190 = vmatprep.subr.bf16.mxu0 0
        %2191 = vmatpush2.bf16.msra.mxu0 0
        %2192 = vmatprep.subr.bf16.mxu0 0
        %2193 = vmatpush2.bf16.msra.mxu0 0
        %2194 = vmatprep.mubr.bf16.mxu0 0
        %2195 = vmatmul.mubr.bf16.gmra.mxu0 %v2097
        %v2196 = vpop.f32.mrf.mxu0
        %v2197 = vadd.f32 0.0, %v2196
        %v2198 = vpop.f32.mrf.mxu0
        %v2199 = vpop.f32.mrf.mxu0
        %v2200 = vadd.f32 0.0, %v2199
        %v2201 = vpop.f32.mrf.mxu0
        %2202 = vdwg.mxu0
        %v2203 = vadd.f32 %v1232, %v2197
        %v2204 = vadd.f32 %v1233, %v2200
        %v2205 = vlaneseq
        %v2206 = vshrl.u32 %v2205, 7
        %v2207 = vsub.s32 5, %v2206
        %v2208 = vrot.slane %v489, %v2207
        %v2209 = vadd.f32 %v2203, %v2208
        %v2210 = vadd.f32 %v2204, %v2208
        %2211 = vadd.xlane.f32.xlu0 %v2209
        %v2212 = vpop.xlane.xlu0 %2211
        %2213 = vadd.xlane.f32.xlu0 %v2210
        %v2214 = vpop.xlane.xlu0 %2213
        %v2215 = vmul.f32 %v2212, %v496
        %v2216 = vmul.f32 %v2214, %v496
        %v2217 = vsub.f32 %v2209, %v2215
        %v2218 = vsub.f32 %v2210, %v2216
        %v2219 = vmul.f32 %v2217, %v2217
        %v2220 = vmul.f32 %v2218, %v2218
        %2221 = vadd.xlane.f32.xlu0 %v2219
        %v2222 = vpop.xlane.xlu0 %2221
        %2223 = vadd.xlane.f32.xlu0 %v2220
        %v2224 = vpop.xlane.xlu0 %2223
        %v2225 = vmul.f32 %v2222, %v496
        %v2226 = vmul.f32 %v2224, %v496
        %v2227 = vadd.f32 %v2225, 1e-05
        %v2228 = vadd.f32 %v2226, 1e-05
        %v2229 = vrsqrt.pop %v2227
        %v2230 = vrsqrt.pop %v2228
        %v2231 = vmul.f32 %v2217, %v2229
        %v2232 = vmul.f32 %v2218, %v2230
        %v2233 = vlaneseq
        %v2234 = vshrl.u32 %v2233, 7
        %v2235 = vsub.s32 6, %v2234
        %v2236 = vrot.slane %v489, %v2235
        %v2237 = vmul.f32 %v2231, %v2236
        %v2238 = vmul.f32 %v2232, %v2236
        %v2239 = vlaneseq
        %v2240 = vshrl.u32 %v2239, 7
        %v2241 = vsub.s32 7, %v2240
        %v2242 = vrot.slane %v489, %v2241
        %v2243 = vadd.f32 %v2237, %v2242
        %v2244 = vadd.f32 %v2238, %v2242
        %v2245 = vpack.c.bf16 %v2244, %v2243
        %v2246 = vld [vmem:[%s8] sm:$0xff]
        %v2247 = vld [vmem:[%s8 + $0x8] sm:$0xff]
        %v2248 = vld [vmem:[%s8 + $0x10] sm:$0xff]
        %v2249 = vld [vmem:[%s8 + $0x18] sm:$0xff]
        %v2250 = vld [vmem:[%s8 + $0x20] sm:$0xff]
        %v2251 = vld [vmem:[%s8 + $0x28] sm:$0xff]
        %v2252 = vld [vmem:[%s8 + $0x30] sm:$0xff]
        %v2253 = vld [vmem:[%s8 + $0x38] sm:$0xff]
        %v2254 = vld [vmem:[%s8 + $0x40] sm:$0xff]
        %v2255 = vld [vmem:[%s8 + $0x48] sm:$0xff]
        %v2256 = vld [vmem:[%s8 + $0x50] sm:$0xff]
        %v2257 = vld [vmem:[%s8 + $0x58] sm:$0xff]
        %v2258 = vld [vmem:[%s8 + $0x60] sm:$0xff]
        %v2259 = vld [vmem:[%s8 + $0x68] sm:$0xff]
        %v2260 = vld [vmem:[%s8 + $0x70] sm:$0xff]
        %v2261 = vld [vmem:[%s8 + $0x78] sm:$0xff]
        %v2262 = vld [vmem:[%s9] sm:$0x3]
        %v2264 = vlaneseq
        %v2265 = vshrl.u32 %v2264, 7
        %v2266 = vsub.s32 0, %v2265
        %v2267 = vrot.slane %v2262, %v2266
        %v2268 = vlaneseq
        %v2269 = vshrl.u32 %v2268, 7
        %v2270 = vsub.s32 1, %v2269
        %v2271 = vrot.slane %v2262, %v2270
        %v2290 = vunpack.c.l.b16 %v2246
        %v2291 = vunpack.c.h.b16 %v2246
        %v2292 = vunpack.c.l.b16 %v2247
        %v2293 = vunpack.c.h.b16 %v2247
        %v2294 = vunpack.c.l.b16 %v2248
        %v2295 = vunpack.c.h.b16 %v2248
        %v2296 = vunpack.c.l.b16 %v2249
        %v2297 = vunpack.c.h.b16 %v2249
        %v2298 = vunpack.c.l.b16 %v2250
        %v2299 = vunpack.c.h.b16 %v2250
        %v2300 = vunpack.c.l.b16 %v2251
        %v2301 = vunpack.c.h.b16 %v2251
        %v2302 = vunpack.c.l.b16 %v2252
        %v2303 = vunpack.c.h.b16 %v2252
        %v2304 = vunpack.c.l.b16 %v2253
        %v2305 = vunpack.c.h.b16 %v2253
        %v2306 = vunpack.c.l.b16 %v2254
        %v2307 = vunpack.c.h.b16 %v2254
        %v2308 = vunpack.c.l.b16 %v2255
        %v2309 = vunpack.c.h.b16 %v2255
        %v2310 = vunpack.c.l.b16 %v2256
        %v2311 = vunpack.c.h.b16 %v2256
        %v2312 = vunpack.c.l.b16 %v2257
        %v2313 = vunpack.c.h.b16 %v2257
        %v2314 = vunpack.c.l.b16 %v2258
        %v2315 = vunpack.c.h.b16 %v2258
        %v2316 = vunpack.c.l.b16 %v2259
        %v2317 = vunpack.c.h.b16 %v2259
        %v2318 = vunpack.c.l.b16 %v2260
        %v2319 = vunpack.c.h.b16 %v2260
        %v2320 = vunpack.c.l.b16 %v2261
        %v2321 = vunpack.c.h.b16 %v2261
        %v2322 = vpack.c.b16 %v2292, %v2290
        %v2323 = vpack.c.b16 %v2293, %v2291
        %v2324 = vpack.c.b16 %v2296, %v2294
        %v2325 = vpack.c.b16 %v2297, %v2295
        %v2326 = vpack.c.b16 %v2300, %v2298
        %v2327 = vpack.c.b16 %v2301, %v2299
        %v2328 = vpack.c.b16 %v2304, %v2302
        %v2329 = vpack.c.b16 %v2305, %v2303
        %v2330 = vpack.c.b16 %v2308, %v2306
        %v2331 = vpack.c.b16 %v2309, %v2307
        %v2332 = vpack.c.b16 %v2312, %v2310
        %v2333 = vpack.c.b16 %v2313, %v2311
        %v2334 = vpack.c.b16 %v2316, %v2314
        %v2335 = vpack.c.b16 %v2317, %v2315
        %v2336 = vpack.c.b16 %v2320, %v2318
        %v2337 = vpack.c.b16 %v2321, %v2319
        %2354 = vmatprep.subr.bf16.mxu0 %v2337
        %2355 = vmatpush1.bf16.msra.mxu0 %v2336
        %2356 = vmatprep.subr.bf16.mxu0 %v2335
        %2357 = vmatpush1.bf16.msra.mxu0 %v2334
        %2358 = vmatprep.subr.bf16.mxu0 %v2333
        %2359 = vmatpush1.bf16.msra.mxu0 %v2332
        %2360 = vmatprep.subr.bf16.mxu0 %v2331
        %2361 = vmatpush1.bf16.msra.mxu0 %v2330
        %2362 = vmatprep.subr.bf16.mxu0 %v2329
        %2363 = vmatpush1.bf16.msra.mxu0 %v2328
        %2364 = vmatprep.subr.bf16.mxu0 %v2327
        %2365 = vmatpush1.bf16.msra.mxu0 %v2326
        %2366 = vmatprep.subr.bf16.mxu0 %v2325
        %2367 = vmatpush1.bf16.msra.mxu0 %v2324
        %2368 = vmatprep.subr.bf16.mxu0 %v2323
        %2369 = vmatpush1.bf16.msra.mxu0 %v2322
        %2370 = vmatprep.subr.bf16.mxu0 0
        %2371 = vmatpush2.bf16.msra.mxu0 0
        %2372 = vmatprep.subr.bf16.mxu0 0
        %2373 = vmatpush2.bf16.msra.mxu0 0
        %2374 = vmatprep.subr.bf16.mxu0 0
        %2375 = vmatpush2.bf16.msra.mxu0 0
        %2376 = vmatprep.subr.bf16.mxu0 0
        %2377 = vmatpush2.bf16.msra.mxu0 0
        %2378 = vmatprep.subr.bf16.mxu0 0
        %2379 = vmatpush2.bf16.msra.mxu0 0
        %2380 = vmatprep.subr.bf16.mxu0 0
        %2381 = vmatpush2.bf16.msra.mxu0 0
        %2382 = vmatprep.subr.bf16.mxu0 0
        %2383 = vmatpush2.bf16.msra.mxu0 0
        %2384 = vmatprep.subr.bf16.mxu0 0
        %2385 = vmatpush2.bf16.msra.mxu0 0
        %2386 = vmatprep.mubr.bf16.mxu0 0
        %2387 = vmatmul.mubr.bf16.gmra.mxu0 %v2245
        %v2388 = vpop.f32.mrf.mxu0
        %v2389 = vadd.f32 %v2267, %v2388
        %v2390 = vpop.f32.mrf.mxu0
        %v2391 = vadd.f32 %v2271, %v2390
        %v2392 = vpop.f32.mrf.mxu0
        %v2393 = vadd.f32 %v2267, %v2392
        %v2394 = vpop.f32.mrf.mxu0
        %v2395 = vadd.f32 %v2271, %v2394
        %2396 = vdwg.mxu0
        %v2397 = vxor.u32 %v2391, 2147483648
        %v2398 = vxor.u32 %v2395, 2147483648
        %v2399 = vmul.f32 %v2397, 1.442695
        %v2400 = vpow.pop %v2399
        %v2401 = vmul.f32 %v2398, 1.442695
        %v2402 = vpow.pop %v2401
        %v2403 = vadd.f32 %v2400, 1.0
        %v2404 = vadd.f32 %v2402, 1.0
        %v2405 = vrcp.pop %v2403
        %v2406 = vmul.f32 1.0, %v2405
        %v2407 = vrcp.pop %v2404
        %v2408 = vmul.f32 1.0, %v2407
        %v2409 = vmul.f32 %v2389, %v2406
        %v2410 = vmul.f32 %v2393, %v2408
        %v2411 = vlaneseq
        %v2412 = vshrl.u32 %v2411, 7
        %v2413 = vadd.s32 %v2412, 8
        %v2414 = vrot.slane %v2409, 5
        %v2415 = vrot.slane %v2410, 5
        %vm2416 = vcmp.lt.s32.totalorder %v2412, 3
        %v2417 = vsel %vm2416, %v2414, %v2415
        %v2418 = vsel %vm2416, %v2415, %v2414
        %vm2419 = vcmp.ge.s32.totalorder %v2412, 3
        %vm2420 = vcmp.ge.s32.totalorder %v2413, 3
        %vm2421 = vcmp.lt.s32.totalorder %v2412, 19
        %vm2422 = vcmp.lt.s32.totalorder %v2413, 19
        %vm2423 = vmand %vm2419, %vm2421
        %vm2424 = vmand %vm2420, %vm2422
        %v2425 = vsel %vm2423, %v2418, 0.0
        %v2426 = vsel %vm2424, %v2417, 0.0
        %v2427 = vlaneseq
        %v2428 = vshrl.u32 %v2427, 7
        %v2429 = vsub.s32 1, %v2428
        %v2430 = vrot.slane %v491, %v2429
        %v2431 = vmul.f32 %v2425, %v2430
        %v2432 = vmul.f32 %v2426, %v2430
        %v2433 = vadd.f32 %v2431, 0.0
        %v2434 = vadd.f32 %v2432, 0.0
        %v2435 = vrot.slane %v2409, 6
        %v2436 = vrot.slane %v2410, 6
        %vm2437 = vcmp.lt.s32.totalorder %v2412, 2
        %v2438 = vsel %vm2437, %v2435, %v2436
        %v2439 = vsel %vm2437, %v2436, %v2435
        %vm2440 = vcmp.ge.s32.totalorder %v2412, 2
        %vm2441 = vcmp.ge.s32.totalorder %v2413, 2
        %vm2442 = vcmp.lt.s32.totalorder %v2412, 18
        %vm2443 = vcmp.lt.s32.totalorder %v2413, 18
        %vm2444 = vmand %vm2440, %vm2442
        %vm2445 = vmand %vm2441, %vm2443
        %v2446 = vsel %vm2444, %v2439, 0.0
        %v2447 = vsel %vm2445, %v2438, 0.0
        %v2448 = vlaneseq
        %v2449 = vshrl.u32 %v2448, 7
        %v2450 = vsub.s32 2, %v2449
        %v2451 = vrot.slane %v491, %v2450
        %v2452 = vmul.f32 %v2446, %v2451
        %v2453 = vmul.f32 %v2447, %v2451
        %v2454 = vadd.f32 %v2433, %v2452
        %v2455 = vadd.f32 %v2434, %v2453
        %v2456 = vrot.slane %v2409, 7
        %v2457 = vrot.slane %v2410, 7
        %vm2458 = vcmp.lt.s32.totalorder %v2412, 1
        %v2459 = vsel %vm2458, %v2456, %v2457
        %v2460 = vsel %vm2458, %v2457, %v2456
        %vm2461 = vcmp.ge.s32.totalorder %v2412, 1
        %vm2462 = vcmp.ge.s32.totalorder %v2413, 1
        %vm2463 = vcmp.lt.s32.totalorder %v2412, 17
        %vm2464 = vcmp.lt.s32.totalorder %v2413, 17
        %vm2465 = vmand %vm2461, %vm2463
        %vm2466 = vmand %vm2462, %vm2464
        %v2467 = vsel %vm2465, %v2460, 0.0
        %v2468 = vsel %vm2466, %v2459, 0.0
        %v2469 = vlaneseq
        %v2470 = vshrl.u32 %v2469, 7
        %v2471 = vsub.s32 3, %v2470
        %v2472 = vrot.slane %v491, %v2471
        %v2473 = vmul.f32 %v2467, %v2472
        %v2474 = vmul.f32 %v2468, %v2472
        %v2475 = vadd.f32 %v2454, %v2473
        %v2476 = vadd.f32 %v2455, %v2474
        %vm2477 = vcmp.ge.s32.totalorder %v2412, 0
        %vm2478 = vcmp.ge.s32.totalorder %v2413, 0
        %vm2479 = vcmp.lt.s32.totalorder %v2412, 16
        %vm2480 = vcmp.lt.s32.totalorder %v2413, 16
        %vm2481 = vmand %vm2477, %vm2479
        %vm2482 = vmand %vm2478, %vm2480
        %v2483 = vsel %vm2481, %v2409, 0.0
        %v2484 = vsel %vm2482, %v2410, 0.0
        %v2485 = vlaneseq
        %v2486 = vshrl.u32 %v2485, 7
        %v2487 = vsub.s32 4, %v2486
        %v2488 = vrot.slane %v491, %v2487
        %v2489 = vmul.f32 %v2483, %v2488
        %v2490 = vmul.f32 %v2484, %v2488
        %v2491 = vadd.f32 %v2475, %v2489
        %v2492 = vadd.f32 %v2476, %v2490
        %v2493 = vrot.slane %v2409, 1
        %v2494 = vrot.slane %v2410, 1
        %vm2495 = vcmp.lt.s32.totalorder %v2412, 7
        %v2496 = vsel %vm2495, %v2493, %v2494
        %v2497 = vsel %vm2495, %v2494, %v2493
        %vm2498 = vcmp.ge.s32.totalorder %v2412, 4294967295
        %vm2499 = vcmp.ge.s32.totalorder %v2413, 4294967295
        %vm2500 = vcmp.lt.s32.totalorder %v2412, 15
        %vm2501 = vcmp.lt.s32.totalorder %v2413, 15
        %vm2502 = vmand %vm2498, %vm2500
        %vm2503 = vmand %vm2499, %vm2501
        %v2504 = vsel %vm2502, %v2496, 0.0
        %v2505 = vsel %vm2503, %v2497, 0.0
        %v2506 = vlaneseq
        %v2507 = vshrl.u32 %v2506, 7
        %v2508 = vsub.s32 5, %v2507
        %v2509 = vrot.slane %v491, %v2508
        %v2510 = vmul.f32 %v2504, %v2509
        %v2511 = vmul.f32 %v2505, %v2509
        %v2512 = vadd.f32 %v2491, %v2510
        %v2513 = vadd.f32 %v2492, %v2511
        %v2514 = vrot.slane %v2409, 2
        %v2515 = vrot.slane %v2410, 2
        %vm2516 = vcmp.lt.s32.totalorder %v2412, 6
        %v2517 = vsel %vm2516, %v2514, %v2515
        %v2518 = vsel %vm2516, %v2515, %v2514
        %vm2519 = vcmp.ge.s32.totalorder %v2412, 4294967294
        %vm2520 = vcmp.ge.s32.totalorder %v2413, 4294967294
        %vm2521 = vcmp.lt.s32.totalorder %v2412, 14
        %vm2522 = vcmp.lt.s32.totalorder %v2413, 14
        %vm2523 = vmand %vm2519, %vm2521
        %vm2524 = vmand %vm2520, %vm2522
        %v2525 = vsel %vm2523, %v2517, 0.0
        %v2526 = vsel %vm2524, %v2518, 0.0
        %v2527 = vlaneseq
        %v2528 = vshrl.u32 %v2527, 7
        %v2529 = vsub.s32 6, %v2528
        %v2530 = vrot.slane %v491, %v2529
        %v2531 = vmul.f32 %v2525, %v2530
        %v2532 = vmul.f32 %v2526, %v2530
        %v2533 = vadd.f32 %v2512, %v2531
        %v2534 = vadd.f32 %v2513, %v2532
        %v2535 = vrot.slane %v2409, 3
        %v2536 = vrot.slane %v2410, 3
        %vm2537 = vcmp.lt.s32.totalorder %v2412, 5
        %v2538 = vsel %vm2537, %v2535, %v2536
        %v2539 = vsel %vm2537, %v2536, %v2535
        %vm2540 = vcmp.ge.s32.totalorder %v2412, 4294967293
        %vm2541 = vcmp.ge.s32.totalorder %v2413, 4294967293
        %vm2542 = vcmp.lt.s32.totalorder %v2412, 13
        %vm2543 = vcmp.lt.s32.totalorder %v2413, 13
        %vm2544 = vmand %vm2540, %vm2542
        %vm2545 = vmand %vm2541, %vm2543
        %v2546 = vsel %vm2544, %v2538, 0.0
        %v2547 = vsel %vm2545, %v2539, 0.0
        %v2548 = vlaneseq
        %v2549 = vshrl.u32 %v2548, 7
        %v2550 = vsub.s32 7, %v2549
        %v2551 = vrot.slane %v491, %v2550
        %v2552 = vmul.f32 %v2546, %v2551
        %v2553 = vmul.f32 %v2547, %v2551
        %v2554 = vadd.f32 %v2533, %v2552
        %v2555 = vadd.f32 %v2534, %v2553
        %v2556 = vlaneseq
        %v2557 = vshrl.u32 %v2556, 7
        %v2558 = vsub.s32 0, %v2557
        %v2559 = vrot.slane %v490, %v2558
        %v2560 = vadd.f32 %v2554, %v2559
        %v2561 = vadd.f32 %v2555, %v2559
        %v2562 = vlaneseq
        %v2563 = vshrl.u32 %v2562, 7
        %v2564 = vsub.s32 1, %v2563
        %v2565 = vrot.slane %v490, %v2564
        %v2566 = vmul.f32 %v2560, %v2565
        %v2567 = vmul.f32 %v2561, %v2565
        %v2568 = vlaneseq
        %v2569 = vshrl.u32 %v2568, 7
        %v2570 = vsub.s32 2, %v2569
        %v2571 = vrot.slane %v490, %v2570
        %v2572 = vadd.f32 %v2566, %v2571
        %v2573 = vadd.f32 %v2567, %v2571
        %v2574 = vxor.u32 %v2572, 2147483648
        %v2575 = vxor.u32 %v2573, 2147483648
        %v2576 = vmul.f32 %v2574, 1.442695
        %v2577 = vpow.pop %v2576
        %v2578 = vmul.f32 %v2575, 1.442695
        %v2579 = vpow.pop %v2578
        %v2580 = vadd.f32 %v2577, 1.0
        %v2581 = vadd.f32 %v2579, 1.0
        %v2582 = vrcp.pop %v2580
        %v2583 = vmul.f32 1.0, %v2582
        %v2584 = vrcp.pop %v2581
        %v2585 = vmul.f32 1.0, %v2584
        %v2586 = vmul.f32 %v2572, %v2583
        %v2587 = vmul.f32 %v2573, %v2585
        %v2588 = vpack.c.bf16 %v2587, %v2586
        %v2589 = vld [vmem:[%s10] sm:$0xf]
        %v2590 = vld [vmem:[%s10 + $0x4] sm:$0xf]
        %v2591 = vld [vmem:[%s10 + $0x8] sm:$0xf]
        %v2592 = vld [vmem:[%s10 + $0xc] sm:$0xf]
        %v2593 = vld [vmem:[%s10 + $0x10] sm:$0xf]
        %v2594 = vld [vmem:[%s10 + $0x14] sm:$0xf]
        %v2595 = vld [vmem:[%s10 + $0x18] sm:$0xf]
        %v2596 = vld [vmem:[%s10 + $0x1c] sm:$0xf]
        %v2597 = vld [vmem:[%s10 + $0x20] sm:$0xf]
        %v2598 = vld [vmem:[%s10 + $0x24] sm:$0xf]
        %v2599 = vld [vmem:[%s10 + $0x28] sm:$0xf]
        %v2600 = vld [vmem:[%s10 + $0x2c] sm:$0xf]
        %v2601 = vld [vmem:[%s10 + $0x30] sm:$0xf]
        %v2602 = vld [vmem:[%s10 + $0x34] sm:$0xf]
        %v2603 = vld [vmem:[%s10 + $0x38] sm:$0xf]
        %v2604 = vld [vmem:[%s10 + $0x3c] sm:$0xf]
        %v2605 = vlaneseq
        %v2606 = vshrl.u32 %v2605, 7
        %v2607 = vsub.s32 3, %v2606
        %v2608 = vrot.slane %v490, %v2607
        %v2625 = vunpack.c.l.b16 %v2589
        %v2626 = vunpack.c.l.b16 %v2590
        %v2627 = vunpack.c.l.b16 %v2591
        %v2628 = vunpack.c.l.b16 %v2592
        %v2629 = vunpack.c.l.b16 %v2593
        %v2630 = vunpack.c.l.b16 %v2594
        %v2631 = vunpack.c.l.b16 %v2595
        %v2632 = vunpack.c.l.b16 %v2596
        %v2633 = vunpack.c.l.b16 %v2597
        %v2634 = vunpack.c.l.b16 %v2598
        %v2635 = vunpack.c.l.b16 %v2599
        %v2636 = vunpack.c.l.b16 %v2600
        %v2637 = vunpack.c.l.b16 %v2601
        %v2638 = vunpack.c.l.b16 %v2602
        %v2639 = vunpack.c.l.b16 %v2603
        %v2640 = vunpack.c.l.b16 %v2604
        %v2641 = vpack.c.b16 %v2626, %v2625
        %v2642 = vpack.c.b16 %v2628, %v2627
        %v2643 = vpack.c.b16 %v2630, %v2629
        %v2644 = vpack.c.b16 %v2632, %v2631
        %v2645 = vpack.c.b16 %v2634, %v2633
        %v2646 = vpack.c.b16 %v2636, %v2635
        %v2647 = vpack.c.b16 %v2638, %v2637
        %v2648 = vpack.c.b16 %v2640, %v2639
        %2657 = vmatprep.subr.bf16.mxu0 0
        %2658 = vmatpush1.bf16.msra.mxu0 %v2648
        %2659 = vmatprep.subr.bf16.mxu0 0
        %2660 = vmatpush1.bf16.msra.mxu0 %v2647
        %2661 = vmatprep.subr.bf16.mxu0 0
        %2662 = vmatpush1.bf16.msra.mxu0 %v2646
        %2663 = vmatprep.subr.bf16.mxu0 0
        %2664 = vmatpush1.bf16.msra.mxu0 %v2645
        %2665 = vmatprep.subr.bf16.mxu0 0
        %2666 = vmatpush1.bf16.msra.mxu0 %v2644
        %2667 = vmatprep.subr.bf16.mxu0 0
        %2668 = vmatpush1.bf16.msra.mxu0 %v2643
        %2669 = vmatprep.subr.bf16.mxu0 0
        %2670 = vmatpush1.bf16.msra.mxu0 %v2642
        %2671 = vmatprep.subr.bf16.mxu0 0
        %2672 = vmatpush1.bf16.msra.mxu0 %v2641
        %2673 = vmatprep.subr.bf16.mxu0 0
        %2674 = vmatpush2.bf16.msra.mxu0 0
        %2675 = vmatprep.subr.bf16.mxu0 0
        %2676 = vmatpush2.bf16.msra.mxu0 0
        %2677 = vmatprep.subr.bf16.mxu0 0
        %2678 = vmatpush2.bf16.msra.mxu0 0
        %2679 = vmatprep.subr.bf16.mxu0 0
        %2680 = vmatpush2.bf16.msra.mxu0 0
        %2681 = vmatprep.subr.bf16.mxu0 0
        %2682 = vmatpush2.bf16.msra.mxu0 0
        %2683 = vmatprep.subr.bf16.mxu0 0
        %2684 = vmatpush2.bf16.msra.mxu0 0
        %2685 = vmatprep.subr.bf16.mxu0 0
        %2686 = vmatpush2.bf16.msra.mxu0 0
        %2687 = vmatprep.subr.bf16.mxu0 0
        %2688 = vmatpush2.bf16.msra.mxu0 0
        %2689 = vmatprep.mubr.bf16.mxu0 0
        %2690 = vmatmul.mubr.bf16.gmra.mxu0 %v2588
        %v2691 = vpop.f32.mrf.mxu0
        %v2692 = vadd.f32 %v2608, %v2691
        %v2693 = vpop.f32.mrf.mxu0
        %v2694 = vpop.f32.mrf.mxu0
        %v2695 = vadd.f32 %v2608, %v2694
        %v2696 = vpop.f32.mrf.mxu0
        %2697 = vdwg.mxu0
        %v2698 = vadd.f32 %v2209, %v2692
        %v2699 = vadd.f32 %v2210, %v2695
        %2700 = vadd.xlane.f32.xlu0 %v2698
        %v2701 = vpop.xlane.xlu0 %2700
        %2702 = vadd.xlane.f32.xlu0 %v2699
        %v2703 = vpop.xlane.xlu0 %2702
        %v2704 = vmul.f32 %v2701, %v496
        %v2705 = vmul.f32 %v2703, %v496
        %v2706 = vsub.f32 %v2698, %v2704
        %v2707 = vsub.f32 %v2699, %v2705
        %v2708 = vmul.f32 %v2706, %v2706
        %v2709 = vmul.f32 %v2707, %v2707
        %2710 = vadd.xlane.f32.xlu0 %v2708
        %v2711 = vpop.xlane.xlu0 %2710
        %2712 = vadd.xlane.f32.xlu0 %v2709
        %v2713 = vpop.xlane.xlu0 %2712
        %v2714 = vmul.f32 %v2711, %v496
        %v2715 = vmul.f32 %v2713, %v496
        %v2716 = vadd.f32 %v2714, 1e-05
        %v2717 = vadd.f32 %v2715, 1e-05
        %v2718 = vrsqrt.pop %v2716
        %v2719 = vrsqrt.pop %v2717
        %v2720 = vmul.f32 %v2706, %v2718
        %v2721 = vmul.f32 %v2707, %v2719
        %v2722 = vlaneseq
        %v2723 = vshrl.u32 %v2722, 7
        %v2724 = vsub.s32 4, %v2723
        %v2725 = vrot.slane %v490, %v2724
        %v2726 = vmul.f32 %v2720, %v2725
        %v2727 = vmul.f32 %v2721, %v2725
        %v2728 = vlaneseq
        %v2729 = vshrl.u32 %v2728, 7
        %v2730 = vsub.s32 5, %v2729
        %v2731 = vrot.slane %v490, %v2730
        %v2732 = vadd.f32 %v2726, %v2731
        %v2733 = vadd.f32 %v2727, %v2731
        %v2734 = vpack.c.bf16 %v2733, %v2732
        %v2735 = vld [vmem:[%s11] sm:$0xff]
        %v2736 = vld [vmem:[%s11 + $0x8] sm:$0xff]
        %v2737 = vld [vmem:[%s11 + $0x10] sm:$0xff]
        %v2738 = vld [vmem:[%s11 + $0x18] sm:$0xff]
        %v2739 = vld [vmem:[%s11 + $0x20] sm:$0xff]
        %v2740 = vld [vmem:[%s11 + $0x28] sm:$0xff]
        %v2741 = vld [vmem:[%s11 + $0x30] sm:$0xff]
        %v2742 = vld [vmem:[%s11 + $0x38] sm:$0xff]
        %v2743 = vld [vmem:[%s11 + $0x40] sm:$0xff]
        %v2744 = vld [vmem:[%s11 + $0x48] sm:$0xff]
        %v2745 = vld [vmem:[%s11 + $0x50] sm:$0xff]
        %v2746 = vld [vmem:[%s11 + $0x58] sm:$0xff]
        %v2747 = vld [vmem:[%s11 + $0x60] sm:$0xff]
        %v2748 = vld [vmem:[%s11 + $0x68] sm:$0xff]
        %v2749 = vld [vmem:[%s11 + $0x70] sm:$0xff]
        %v2750 = vld [vmem:[%s11 + $0x78] sm:$0xff]
        %v2751 = vld [vmem:[%s11 + $0x80] sm:$0xff]
        %v2752 = vld [vmem:[%s11 + $0x88] sm:$0xff]
        %v2753 = vld [vmem:[%s11 + $0x90] sm:$0xff]
        %v2754 = vld [vmem:[%s11 + $0x98] sm:$0xff]
        %v2755 = vld [vmem:[%s11 + $0xa0] sm:$0xff]
        %v2756 = vld [vmem:[%s11 + $0xa8] sm:$0xff]
        %v2757 = vld [vmem:[%s11 + $0xb0] sm:$0xff]
        %v2758 = vld [vmem:[%s11 + $0xb8] sm:$0xff]
        %v2759 = vld [vmem:[%s11 + $0xc0] sm:$0xff]
        %v2760 = vld [vmem:[%s11 + $0xc8] sm:$0xff]
        %v2761 = vld [vmem:[%s11 + $0xd0] sm:$0xff]
        %v2762 = vld [vmem:[%s11 + $0xd8] sm:$0xff]
        %v2763 = vld [vmem:[%s11 + $0xe0] sm:$0xff]
        %v2764 = vld [vmem:[%s11 + $0xe8] sm:$0xff]
        %v2765 = vld [vmem:[%s11 + $0xf0] sm:$0xff]
        %v2766 = vld [vmem:[%s11 + $0xf8] sm:$0xff]
        %v2767 = vld [vmem:[%s12] sm:$0xf]
        %v2769 = vlaneseq
        %v2770 = vshrl.u32 %v2769, 7
        %v2771 = vsub.s32 0, %v2770
        %v2772 = vrot.slane %v2767, %v2771
        %v2773 = vlaneseq
        %v2774 = vshrl.u32 %v2773, 7
        %v2775 = vsub.s32 1, %v2774
        %v2776 = vrot.slane %v2767, %v2775
        %v2777 = vlaneseq
        %v2778 = vshrl.u32 %v2777, 7
        %v2779 = vsub.s32 2, %v2778
        %v2780 = vrot.slane %v2767, %v2779
        %v2781 = vlaneseq
        %v2782 = vshrl.u32 %v2781, 7
        %v2783 = vsub.s32 3, %v2782
        %v2784 = vrot.slane %v2767, %v2783
        %v2821 = vunpack.c.l.b16 %v2735
        %v2822 = vunpack.c.h.b16 %v2735
        %v2823 = vunpack.c.l.b16 %v2736
        %v2824 = vunpack.c.h.b16 %v2736
        %v2825 = vunpack.c.l.b16 %v2737
        %v2826 = vunpack.c.h.b16 %v2737
        %v2827 = vunpack.c.l.b16 %v2738
        %v2828 = vunpack.c.h.b16 %v2738
        %v2829 = vunpack.c.l.b16 %v2739
        %v2830 = vunpack.c.h.b16 %v2739
        %v2831 = vunpack.c.l.b16 %v2740
        %v2832 = vunpack.c.h.b16 %v2740
        %v2833 = vunpack.c.l.b16 %v2741
        %v2834 = vunpack.c.h.b16 %v2741
        %v2835 = vunpack.c.l.b16 %v2742
        %v2836 = vunpack.c.h.b16 %v2742
        %v2837 = vunpack.c.l.b16 %v2743
        %v2838 = vunpack.c.h.b16 %v2743
        %v2839 = vunpack.c.l.b16 %v2744
        %v2840 = vunpack.c.h.b16 %v2744
        %v2841 = vunpack.c.l.b16 %v2745
        %v2842 = vunpack.c.h.b16 %v2745
        %v2843 = vunpack.c.l.b16 %v2746
        %v2844 = vunpack.c.h.b16 %v2746
        %v2845 = vunpack.c.l.b16 %v2747
        %v2846 = vunpack.c.h.b16 %v2747
        %v2847 = vunpack.c.l.b16 %v2748
        %v2848 = vunpack.c.h.b16 %v2748
        %v2849 = vunpack.c.l.b16 %v2749
        %v2850 = vunpack.c.h.b16 %v2749
        %v2851 = vunpack.c.l.b16 %v2750
        %v2852 = vunpack.c.h.b16 %v2750
        %v2853 = vunpack.c.l.b16 %v2751
        %v2854 = vunpack.c.h.b16 %v2751
        %v2855 = vunpack.c.l.b16 %v2752
        %v2856 = vunpack.c.h.b16 %v2752
        %v2857 = vunpack.c.l.b16 %v2753
        %v2858 = vunpack.c.h.b16 %v2753
        %v2859 = vunpack.c.l.b16 %v2754
        %v2860 = vunpack.c.h.b16 %v2754
        %v2861 = vunpack.c.l.b16 %v2755
        %v2862 = vunpack.c.h.b16 %v2755
        %v2863 = vunpack.c.l.b16 %v2756
        %v2864 = vunpack.c.h.b16 %v2756
        %v2865 = vunpack.c.l.b16 %v2757
        %v2866 = vunpack.c.h.b16 %v2757
        %v2867 = vunpack.c.l.b16 %v2758
        %v2868 = vunpack.c.h.b16 %v2758
        %v2869 = vunpack.c.l.b16 %v2759
        %v2870 = vunpack.c.h.b16 %v2759
        %v2871 = vunpack.c.l.b16 %v2760
        %v2872 = vunpack.c.h.b16 %v2760
        %v2873 = vunpack.c.l.b16 %v2761
        %v2874 = vunpack.c.h.b16 %v2761
        %v2875 = vunpack.c.l.b16 %v2762
        %v2876 = vunpack.c.h.b16 %v2762
        %v2877 = vunpack.c.l.b16 %v2763
        %v2878 = vunpack.c.h.b16 %v2763
        %v2879 = vunpack.c.l.b16 %v2764
        %v2880 = vunpack.c.h.b16 %v2764
        %v2881 = vunpack.c.l.b16 %v2765
        %v2882 = vunpack.c.h.b16 %v2765
        %v2883 = vunpack.c.l.b16 %v2766
        %v2884 = vunpack.c.h.b16 %v2766
        %v2885 = vpack.c.b16 %v2825, %v2821
        %v2886 = vpack.c.b16 %v2826, %v2822
        %v2887 = vpack.c.b16 %v2827, %v2823
        %v2888 = vpack.c.b16 %v2828, %v2824
        %v2889 = vpack.c.b16 %v2833, %v2829
        %v2890 = vpack.c.b16 %v2834, %v2830
        %v2891 = vpack.c.b16 %v2835, %v2831
        %v2892 = vpack.c.b16 %v2836, %v2832
        %v2893 = vpack.c.b16 %v2841, %v2837
        %v2894 = vpack.c.b16 %v2842, %v2838
        %v2895 = vpack.c.b16 %v2843, %v2839
        %v2896 = vpack.c.b16 %v2844, %v2840
        %v2897 = vpack.c.b16 %v2849, %v2845
        %v2898 = vpack.c.b16 %v2850, %v2846
        %v2899 = vpack.c.b16 %v2851, %v2847
        %v2900 = vpack.c.b16 %v2852, %v2848
        %v2901 = vpack.c.b16 %v2857, %v2853
        %v2902 = vpack.c.b16 %v2858, %v2854
        %v2903 = vpack.c.b16 %v2859, %v2855
        %v2904 = vpack.c.b16 %v2860, %v2856
        %v2905 = vpack.c.b16 %v2865, %v2861
        %v2906 = vpack.c.b16 %v2866, %v2862
        %v2907 = vpack.c.b16 %v2867, %v2863
        %v2908 = vpack.c.b16 %v2868, %v2864
        %v2909 = vpack.c.b16 %v2873, %v2869
        %v2910 = vpack.c.b16 %v2874, %v2870
        %v2911 = vpack.c.b16 %v2875, %v2871
        %v2912 = vpack.c.b16 %v2876, %v2872
        %v2913 = vpack.c.b16 %v2881, %v2877
        %v2914 = vpack.c.b16 %v2882, %v2878
        %v2915 = vpack.c.b16 %v2883, %v2879
        %v2916 = vpack.c.b16 %v2884, %v2880
        %2949 = vmatprep.subr.bf16.mxu0 %v2914
        %2950 = vmatpush1.bf16.msra.mxu0 %v2913
        %2951 = vmatprep.subr.bf16.mxu0 %v2910
        %2952 = vmatpush1.bf16.msra.mxu0 %v2909
        %2953 = vmatprep.subr.bf16.mxu0 %v2906
        %2954 = vmatpush1.bf16.msra.mxu0 %v2905
        %2955 = vmatprep.subr.bf16.mxu0 %v2902
        %2956 = vmatpush1.bf16.msra.mxu0 %v2901
        %2957 = vmatprep.subr.bf16.mxu0 %v2898
        %2958 = vmatpush1.bf16.msra.mxu0 %v2897
        %2959 = vmatprep.subr.bf16.mxu0 %v2894
        %2960 = vmatpush1.bf16.msra.mxu0 %v2893
        %2961 = vmatprep.subr.bf16.mxu0 %v2890
        %2962 = vmatpush1.bf16.msra.mxu0 %v2889
        %2963 = vmatprep.subr.bf16.mxu0 %v2886
        %2964 = vmatpush1.bf16.msra.mxu0 %v2885
        %2965 = vmatprep.subr.bf16.mxu0 0
        %2966 = vmatpush2.bf16.msra.mxu0 0
        %2967 = vmatprep.subr.bf16.mxu0 0
        %2968 = vmatpush2.bf16.msra.mxu0 0
        %2969 = vmatprep.subr.bf16.mxu0 0
        %2970 = vmatpush2.bf16.msra.mxu0 0
        %2971 = vmatprep.subr.bf16.mxu0 0
        %2972 = vmatpush2.bf16.msra.mxu0 0
        %2973 = vmatprep.subr.bf16.mxu0 0
        %2974 = vmatpush2.bf16.msra.mxu0 0
        %2975 = vmatprep.subr.bf16.mxu0 0
        %2976 = vmatpush2.bf16.msra.mxu0 0
        %2977 = vmatprep.subr.bf16.mxu0 0
        %2978 = vmatpush2.bf16.msra.mxu0 0
        %2979 = vmatprep.subr.bf16.mxu0 0
        %2980 = vmatpush2.bf16.msra.mxu0 0
        %2981 = vmatprep.mubr.bf16.mxu0 0
        %2982 = vmatmul.mubr.bf16.gmra.mxu0 %v2734
        %v2983 = vpop.f32.mrf.mxu0
        %v2984 = vadd.f32 %v2772, %v2983
        %v2985 = vpop.f32.mrf.mxu0
        %v2986 = vadd.f32 %v2776, %v2985
        %v2987 = vpop.f32.mrf.mxu0
        %v2988 = vadd.f32 %v2772, %v2987
        %v2989 = vpop.f32.mrf.mxu0
        %v2990 = vadd.f32 %v2776, %v2989
        %2991 = vdwg.mxu0
        %2992 = vmatprep.subr.bf16.mxu0 %v2916
        %2993 = vmatpush1.bf16.msra.mxu0 %v2915
        %2994 = vmatprep.subr.bf16.mxu0 %v2912
        %2995 = vmatpush1.bf16.msra.mxu0 %v2911
        %2996 = vmatprep.subr.bf16.mxu0 %v2908
        %2997 = vmatpush1.bf16.msra.mxu0 %v2907
        %2998 = vmatprep.subr.bf16.mxu0 %v2904
        %2999 = vmatpush1.bf16.msra.mxu0 %v2903
        %3000 = vmatprep.subr.bf16.mxu0 %v2900
        %3001 = vmatpush1.bf16.msra.mxu0 %v2899
        %3002 = vmatprep.subr.bf16.mxu0 %v2896
        %3003 = vmatpush1.bf16.msra.mxu0 %v2895
        %3004 = vmatprep.subr.bf16.mxu0 %v2892
        %3005 = vmatpush1.bf16.msra.mxu0 %v2891
        %3006 = vmatprep.subr.bf16.mxu0 %v2888
        %3007 = vmatpush1.bf16.msra.mxu0 %v2887
        %3008 = vmatprep.subr.bf16.mxu0 0
        %3009 = vmatpush2.bf16.msra.mxu0 0
        %3010 = vmatprep.subr.bf16.mxu0 0
        %3011 = vmatpush2.bf16.msra.mxu0 0
        %3012 = vmatprep.subr.bf16.mxu0 0
        %3013 = vmatpush2.bf16.msra.mxu0 0
        %3014 = vmatprep.subr.bf16.mxu0 0
        %3015 = vmatpush2.bf16.msra.mxu0 0
        %3016 = vmatprep.subr.bf16.mxu0 0
        %3017 = vmatpush2.bf16.msra.mxu0 0
        %3018 = vmatprep.subr.bf16.mxu0 0
        %3019 = vmatpush2.bf16.msra.mxu0 0
        %3020 = vmatprep.subr.bf16.mxu0 0
        %3021 = vmatpush2.bf16.msra.mxu0 0
        %3022 = vmatprep.subr.bf16.mxu0 0
        %3023 = vmatpush2.bf16.msra.mxu0 0
        %3024 = vmatprep.mubr.bf16.mxu0 0
        %3025 = vmatmul.mubr.bf16.gmra.mxu0 %v2734
        %v3026 = vpop.f32.mrf.mxu0
        %v3027 = vadd.f32 %v2780, %v3026
        %v3028 = vpop.f32.mrf.mxu0
        %v3029 = vadd.f32 %v2784, %v3028
        %v3030 = vpop.f32.mrf.mxu0
        %v3031 = vadd.f32 %v2780, %v3030
        %v3032 = vpop.f32.mrf.mxu0
        %v3033 = vadd.f32 %v2784, %v3032
        %3034 = vdwg.mxu0
        %v3035 = vxor.u32 %v2984, 2147483648
        %v3036 = vxor.u32 %v2986, 2147483648
        %v3037 = vxor.u32 %v3027, 2147483648
        %v3038 = vxor.u32 %v3029, 2147483648
        %v3039 = vxor.u32 %v2988, 2147483648
        %v3040 = vxor.u32 %v2990, 2147483648
        %v3041 = vxor.u32 %v3031, 2147483648
        %v3042 = vxor.u32 %v3033, 2147483648
        %v3043 = vmul.f32 %v3035, 1.442695
        %v3044 = vpow.pop %v3043
        %v3045 = vmul.f32 %v3036, 1.442695
        %v3046 = vpow.pop %v3045
        %v3047 = vmul.f32 %v3037, 1.442695
        %v3048 = vpow.pop %v3047
        %v3049 = vmul.f32 %v3038, 1.442695
        %v3050 = vpow.pop %v3049
        %v3051 = vmul.f32 %v3039, 1.442695
        %v3052 = vpow.pop %v3051
        %v3053 = vmul.f32 %v3040, 1.442695
        %v3054 = vpow.pop %v3053
        %v3055 = vmul.f32 %v3041, 1.442695
        %v3056 = vpow.pop %v3055
        %v3057 = vmul.f32 %v3042, 1.442695
        %v3058 = vpow.pop %v3057
        %v3059 = vadd.f32 %v3044, 1.0
        %v3060 = vadd.f32 %v3046, 1.0
        %v3061 = vadd.f32 %v3048, 1.0
        %v3062 = vadd.f32 %v3050, 1.0
        %v3063 = vadd.f32 %v3052, 1.0
        %v3064 = vadd.f32 %v3054, 1.0
        %v3065 = vadd.f32 %v3056, 1.0
        %v3066 = vadd.f32 %v3058, 1.0
        %v3067 = vrcp.pop %v3059
        %v3068 = vmul.f32 1.0, %v3067
        %v3069 = vrcp.pop %v3060
        %v3070 = vmul.f32 1.0, %v3069
        %v3071 = vrcp.pop %v3061
        %v3072 = vmul.f32 1.0, %v3071
        %v3073 = vrcp.pop %v3062
        %v3074 = vmul.f32 1.0, %v3073
        %v3075 = vrcp.pop %v3063
        %v3076 = vmul.f32 1.0, %v3075
        %v3077 = vrcp.pop %v3064
        %v3078 = vmul.f32 1.0, %v3077
        %v3079 = vrcp.pop %v3065
        %v3080 = vmul.f32 1.0, %v3079
        %v3081 = vrcp.pop %v3066
        %v3082 = vmul.f32 1.0, %v3081
        %v3083 = vmul.f32 %v2984, %v3068
        %v3084 = vmul.f32 %v2986, %v3070
        %v3085 = vmul.f32 %v3027, %v3072
        %v3086 = vmul.f32 %v3029, %v3074
        %v3087 = vmul.f32 %v2988, %v3076
        %v3088 = vmul.f32 %v2990, %v3078
        %v3089 = vmul.f32 %v3031, %v3080
        %v3090 = vmul.f32 %v3033, %v3082
        %v3091 = vpack.c.bf16 %v3087, %v3083
        %v3092 = vpack.c.bf16 %v3088, %v3084
        %v3093 = vpack.c.bf16 %v3089, %v3085
        %v3094 = vpack.c.bf16 %v3090, %v3086
        %v3095 = vld [vmem:[%s13] sm:$0xf]
        %v3096 = vld [vmem:[%s13 + $0x4] sm:$0xf]
        %v3097 = vld [vmem:[%s13 + $0x8] sm:$0xf]
        %v3098 = vld [vmem:[%s13 + $0xc] sm:$0xf]
        %v3099 = vld [vmem:[%s13 + $0x10] sm:$0xf]
        %v3100 = vld [vmem:[%s13 + $0x14] sm:$0xf]
        %v3101 = vld [vmem:[%s13 + $0x18] sm:$0xf]
        %v3102 = vld [vmem:[%s13 + $0x1c] sm:$0xf]
        %v3103 = vld [vmem:[%s13 + $0x20] sm:$0xf]
        %v3104 = vld [vmem:[%s13 + $0x24] sm:$0xf]
        %v3105 = vld [vmem:[%s13 + $0x28] sm:$0xf]
        %v3106 = vld [vmem:[%s13 + $0x2c] sm:$0xf]
        %v3107 = vld [vmem:[%s13 + $0x30] sm:$0xf]
        %v3108 = vld [vmem:[%s13 + $0x34] sm:$0xf]
        %v3109 = vld [vmem:[%s13 + $0x38] sm:$0xf]
        %v3110 = vld [vmem:[%s13 + $0x3c] sm:$0xf]
        %v3111 = vld [vmem:[%s13 + $0x40] sm:$0xf]
        %v3112 = vld [vmem:[%s13 + $0x44] sm:$0xf]
        %v3113 = vld [vmem:[%s13 + $0x48] sm:$0xf]
        %v3114 = vld [vmem:[%s13 + $0x4c] sm:$0xf]
        %v3115 = vld [vmem:[%s13 + $0x50] sm:$0xf]
        %v3116 = vld [vmem:[%s13 + $0x54] sm:$0xf]
        %v3117 = vld [vmem:[%s13 + $0x58] sm:$0xf]
        %v3118 = vld [vmem:[%s13 + $0x5c] sm:$0xf]
        %v3119 = vld [vmem:[%s13 + $0x60] sm:$0xf]
        %v3120 = vld [vmem:[%s13 + $0x64] sm:$0xf]
        %v3121 = vld [vmem:[%s13 + $0x68] sm:$0xf]
        %v3122 = vld [vmem:[%s13 + $0x6c] sm:$0xf]
        %v3123 = vld [vmem:[%s13 + $0x70] sm:$0xf]
        %v3124 = vld [vmem:[%s13 + $0x74] sm:$0xf]
        %v3125 = vld [vmem:[%s13 + $0x78] sm:$0xf]
        %v3126 = vld [vmem:[%s13 + $0x7c] sm:$0xf]
        %v3127 = vld [vmem:[%s13 + $0x80] sm:$0xf]
        %v3128 = vld [vmem:[%s13 + $0x84] sm:$0xf]
        %v3129 = vld [vmem:[%s13 + $0x88] sm:$0xf]
        %v3130 = vld [vmem:[%s13 + $0x8c] sm:$0xf]
        %v3131 = vld [vmem:[%s13 + $0x90] sm:$0xf]
        %v3132 = vld [vmem:[%s13 + $0x94] sm:$0xf]
        %v3133 = vld [vmem:[%s13 + $0x98] sm:$0xf]
        %v3134 = vld [vmem:[%s13 + $0x9c] sm:$0xf]
        %v3135 = vld [vmem:[%s13 + $0xa0] sm:$0xf]
        %v3136 = vld [vmem:[%s13 + $0xa4] sm:$0xf]
        %v3137 = vld [vmem:[%s13 + $0xa8] sm:$0xf]
        %v3138 = vld [vmem:[%s13 + $0xac] sm:$0xf]
        %v3139 = vld [vmem:[%s13 + $0xb0] sm:$0xf]
        %v3140 = vld [vmem:[%s13 + $0xb4] sm:$0xf]
        %v3141 = vld [vmem:[%s13 + $0xb8] sm:$0xf]
        %v3142 = vld [vmem:[%s13 + $0xbc] sm:$0xf]
        %v3143 = vld [vmem:[%s13 + $0xc0] sm:$0xf]
        %v3144 = vld [vmem:[%s13 + $0xc4] sm:$0xf]
        %v3145 = vld [vmem:[%s13 + $0xc8] sm:$0xf]
        %v3146 = vld [vmem:[%s13 + $0xcc] sm:$0xf]
        %v3147 = vld [vmem:[%s13 + $0xd0] sm:$0xf]
        %v3148 = vld [vmem:[%s13 + $0xd4] sm:$0xf]
        %v3149 = vld [vmem:[%s13 + $0xd8] sm:$0xf]
        %v3150 = vld [vmem:[%s13 + $0xdc] sm:$0xf]
        %v3151 = vld [vmem:[%s13 + $0xe0] sm:$0xf]
        %v3152 = vld [vmem:[%s13 + $0xe4] sm:$0xf]
        %v3153 = vld [vmem:[%s13 + $0xe8] sm:$0xf]
        %v3154 = vld [vmem:[%s13 + $0xec] sm:$0xf]
        %v3155 = vld [vmem:[%s13 + $0xf0] sm:$0xf]
        %v3156 = vld [vmem:[%s13 + $0xf4] sm:$0xf]
        %v3157 = vld [vmem:[%s13 + $0xf8] sm:$0xf]
        %v3158 = vld [vmem:[%s13 + $0xfc] sm:$0xf]
        %v3159 = vlaneseq
        %v3160 = vshrl.u32 %v3159, 7
        %v3161 = vsub.s32 6, %v3160
        %v3162 = vrot.slane %v490, %v3161
        %v3227 = vunpack.c.l.b16 %v3095
        %v3228 = vunpack.c.l.b16 %v3096
        %v3229 = vunpack.c.l.b16 %v3097
        %v3230 = vunpack.c.l.b16 %v3098
        %v3231 = vunpack.c.l.b16 %v3099
        %v3232 = vunpack.c.l.b16 %v3100
        %v3233 = vunpack.c.l.b16 %v3101
        %v3234 = vunpack.c.l.b16 %v3102
        %v3235 = vunpack.c.l.b16 %v3103
        %v3236 = vunpack.c.l.b16 %v3104
        %v3237 = vunpack.c.l.b16 %v3105
        %v3238 = vunpack.c.l.b16 %v3106
        %v3239 = vunpack.c.l.b16 %v3107
        %v3240 = vunpack.c.l.b16 %v3108
        %v3241 = vunpack.c.l.b16 %v3109
        %v3242 = vunpack.c.l.b16 %v3110
        %v3243 = vunpack.c.l.b16 %v3111
        %v3244 = vunpack.c.l.b16 %v3112
        %v3245 = vunpack.c.l.b16 %v3113
        %v3246 = vunpack.c.l.b16 %v3114
        %v3247 = vunpack.c.l.b16 %v3115
        %v3248 = vunpack.c.l.b16 %v3116
        %v3249 = vunpack.c.l.b16 %v3117
        %v3250 = vunpack.c.l.b16 %v3118
        %v3251 = vunpack.c.l.b16 %v3119
        %v3252 = vunpack.c.l.b16 %v3120
        %v3253 = vunpack.c.l.b16 %v3121
        %v3254 = vunpack.c.l.b16 %v3122
        %v3255 = vunpack.c.l.b16 %v3123
        %v3256 = vunpack.c.l.b16 %v3124
        %v3257 = vunpack.c.l.b16 %v3125
        %v3258 = vunpack.c.l.b16 %v3126
        %v3259 = vunpack.c.l.b16 %v3127
        %v3260 = vunpack.c.l.b16 %v3128
        %v3261 = vunpack.c.l.b16 %v3129
        %v3262 = vunpack.c.l.b16 %v3130
        %v3263 = vunpack.c.l.b16 %v3131
        %v3264 = vunpack.c.l.b16 %v3132
        %v3265 = vunpack.c.l.b16 %v3133
        %v3266 = vunpack.c.l.b16 %v3134
        %v3267 = vunpack.c.l.b16 %v3135
        %v3268 = vunpack.c.l.b16 %v3136
        %v3269 = vunpack.c.l.b16 %v3137
        %v3270 = vunpack.c.l.b16 %v3138
        %v3271 = vunpack.c.l.b16 %v3139
        %v3272 = vunpack.c.l.b16 %v3140
        %v3273 = vunpack.c.l.b16 %v3141
        %v3274 = vunpack.c.l.b16 %v3142
        %v3275 = vunpack.c.l.b16 %v3143
        %v3276 = vunpack.c.l.b16 %v3144
        %v3277 = vunpack.c.l.b16 %v3145
        %v3278 = vunpack.c.l.b16 %v3146
        %v3279 = vunpack.c.l.b16 %v3147
        %v3280 = vunpack.c.l.b16 %v3148
        %v3281 = vunpack.c.l.b16 %v3149
        %v3282 = vunpack.c.l.b16 %v3150
        %v3283 = vunpack.c.l.b16 %v3151
        %v3284 = vunpack.c.l.b16 %v3152
        %v3285 = vunpack.c.l.b16 %v3153
        %v3286 = vunpack.c.l.b16 %v3154
        %v3287 = vunpack.c.l.b16 %v3155
        %v3288 = vunpack.c.l.b16 %v3156
        %v3289 = vunpack.c.l.b16 %v3157
        %v3290 = vunpack.c.l.b16 %v3158
        %v3291 = vpack.c.b16 %v3228, %v3227
        %v3292 = vpack.c.b16 %v3230, %v3229
        %v3293 = vpack.c.b16 %v3232, %v3231
        %v3294 = vpack.c.b16 %v3234, %v3233
        %v3295 = vpack.c.b16 %v3236, %v3235
        %v3296 = vpack.c.b16 %v3238, %v3237
        %v3297 = vpack.c.b16 %v3240, %v3239
        %v3298 = vpack.c.b16 %v3242, %v3241
        %v3299 = vpack.c.b16 %v3244, %v3243
        %v3300 = vpack.c.b16 %v3246, %v3245
        %v3301 = vpack.c.b16 %v3248, %v3247
        %v3302 = vpack.c.b16 %v3250, %v3249
        %v3303 = vpack.c.b16 %v3252, %v3251
        %v3304 = vpack.c.b16 %v3254, %v3253
        %v3305 = vpack.c.b16 %v3256, %v3255
        %v3306 = vpack.c.b16 %v3258, %v3257
        %v3307 = vpack.c.b16 %v3260, %v3259
        %v3308 = vpack.c.b16 %v3262, %v3261
        %v3309 = vpack.c.b16 %v3264, %v3263
        %v3310 = vpack.c.b16 %v3266, %v3265
        %v3311 = vpack.c.b16 %v3268, %v3267
        %v3312 = vpack.c.b16 %v3270, %v3269
        %v3313 = vpack.c.b16 %v3272, %v3271
        %v3314 = vpack.c.b16 %v3274, %v3273
        %v3315 = vpack.c.b16 %v3276, %v3275
        %v3316 = vpack.c.b16 %v3278, %v3277
        %v3317 = vpack.c.b16 %v3280, %v3279
        %v3318 = vpack.c.b16 %v3282, %v3281
        %v3319 = vpack.c.b16 %v3284, %v3283
        %v3320 = vpack.c.b16 %v3286, %v3285
        %v3321 = vpack.c.b16 %v3288, %v3287
        %v3322 = vpack.c.b16 %v3290, %v3289
        %3355 = vmatprep.subr.bf16.mxu0 0
        %3356 = vmatpush1.bf16.msra.mxu0 %v3298
        %3357 = vmatprep.subr.bf16.mxu0 0
        %3358 = vmatpush1.bf16.msra.mxu0 %v3297
        %3359 = vmatprep.subr.bf16.mxu0 0
        %3360 = vmatpush1.bf16.msra.mxu0 %v3296
        %3361 = vmatprep.subr.bf16.mxu0 0
        %3362 = vmatpush1.bf16.msra.mxu0 %v3295
        %3363 = vmatprep.subr.bf16.mxu0 0
        %3364 = vmatpush1.bf16.msra.mxu0 %v3294
        %3365 = vmatprep.subr.bf16.mxu0 0
        %3366 = vmatpush1.bf16.msra.mxu0 %v3293
        %3367 = vmatprep.subr.bf16.mxu0 0
        %3368 = vmatpush1.bf16.msra.mxu0 %v3292
        %3369 = vmatprep.subr.bf16.mxu0 0
        %3370 = vmatpush1.bf16.msra.mxu0 %v3291
        %3371 = vmatprep.subr.bf16.mxu0 0
        %3372 = vmatpush2.bf16.msra.mxu0 %v3306
        %3373 = vmatprep.subr.bf16.mxu0 0
        %3374 = vmatpush2.bf16.msra.mxu0 %v3305
        %3375 = vmatprep.subr.bf16.mxu0 0
        %3376 = vmatpush2.bf16.msra.mxu0 %v3304
        %3377 = vmatprep.subr.bf16.mxu0 0
        %3378 = vmatpush2.bf16.msra.mxu0 %v3303
        %3379 = vmatprep.subr.bf16.mxu0 0
        %3380 = vmatpush2.bf16.msra.mxu0 %v3302
        %3381 = vmatprep.subr.bf16.mxu0 0
        %3382 = vmatpush2.bf16.msra.mxu0 %v3301
        %3383 = vmatprep.subr.bf16.mxu0 0
        %3384 = vmatpush2.bf16.msra.mxu0 %v3300
        %3385 = vmatprep.subr.bf16.mxu0 0
        %3386 = vmatpush2.bf16.msra.mxu0 %v3299
        %3387 = vmatprep.mubr.bf16.mxu0 %v3092
        %3388 = vmatmul.mubr.bf16.gmra.mxu0 %v3091
        %v3389 = vpop.f32.mrf.mxu0
        %v3390 = vadd.f32 %v3162, %v3389
        %v3391 = vpop.f32.mrf.mxu0
        %v3392 = vpop.f32.mrf.mxu0
        %v3393 = vadd.f32 %v3162, %v3392
        %v3394 = vpop.f32.mrf.mxu0
        %3395 = vdwg.mxu0
        %3396 = vmatprep.subr.bf16.mxu0 0
        %3397 = vmatpush1.bf16.msra.mxu0 %v3314
        %3398 = vmatprep.subr.bf16.mxu0 0
        %3399 = vmatpush1.bf16.msra.mxu0 %v3313
        %3400 = vmatprep.subr.bf16.mxu0 0
        %3401 = vmatpush1.bf16.msra.mxu0 %v3312
        %3402 = vmatprep.subr.bf16.mxu0 0
        %3403 = vmatpush1.bf16.msra.mxu0 %v3311
        %3404 = vmatprep.subr.bf16.mxu0 0
        %3405 = vmatpush1.bf16.msra.mxu0 %v3310
        %3406 = vmatprep.subr.bf16.mxu0 0
        %3407 = vmatpush1.bf16.msra.mxu0 %v3309
        %3408 = vmatprep.subr.bf16.mxu0 0
        %3409 = vmatpush1.bf16.msra.mxu0 %v3308
        %3410 = vmatprep.subr.bf16.mxu0 0
        %3411 = vmatpush1.bf16.msra.mxu0 %v3307
        %3412 = vmatprep.subr.bf16.mxu0 0
        %3413 = vmatpush2.bf16.msra.mxu0 %v3322
        %3414 = vmatprep.subr.bf16.mxu0 0
        %3415 = vmatpush2.bf16.msra.mxu0 %v3321
        %3416 = vmatprep.subr.bf16.mxu0 0
        %3417 = vmatpush2.bf16.msra.mxu0 %v3320
        %3418 = vmatprep.subr.bf16.mxu0 0
        %3419 = vmatpush2.bf16.msra.mxu0 %v3319
        %3420 = vmatprep.subr.bf16.mxu0 0
        %3421 = vmatpush2.bf16.msra.mxu0 %v3318
        %3422 = vmatprep.subr.bf16.mxu0 0
        %3423 = vmatpush2.bf16.msra.mxu0 %v3317
        %3424 = vmatprep.subr.bf16.mxu0 0
        %3425 = vmatpush2.bf16.msra.mxu0 %v3316
        %3426 = vmatprep.subr.bf16.mxu0 0
        %3427 = vmatpush2.bf16.msra.mxu0 %v3315
        %3428 = vmatprep.mubr.bf16.mxu0 %v3094
        %3429 = vmatmul.mubr.bf16.gmra.mxu0 %v3093
        %v3430 = vpop.f32.mrf.mxu0
        %v3431 = vadd.f32 %v3390, %v3430
        %v3432 = vpop.f32.mrf.mxu0
        %v3433 = vpop.f32.mrf.mxu0
        %v3434 = vadd.f32 %v3393, %v3433
        %v3435 = vpop.f32.mrf.mxu0
        %3436 = vdwg.mxu0
        %v3437 = vmul.f32 %v3431, 0.5
        %v3438 = vmul.f32 %v3434, 0.5
        %v3439 = vadd.f32 %v2698, %v3437
        %v3440 = vadd.f32 %v2699, %v3438
        %3441 = vadd.xlane.f32.xlu0 %v3439
        %v3442 = vpop.xlane.xlu0 %3441
        %3443 = vadd.xlane.f32.xlu0 %v3440
        %v3444 = vpop.xlane.xlu0 %3443
        %v3445 = vmul.f32 %v3442, %v496
        %v3446 = vmul.f32 %v3444, %v496
        %v3447 = vsub.f32 %v3439, %v3445
        %v3448 = vsub.f32 %v3440, %v3446
        %v3449 = vmul.f32 %v3447, %v3447
        %v3450 = vmul.f32 %v3448, %v3448
        %3451 = vadd.xlane.f32.xlu0 %v3449
        %v3452 = vpop.xlane.xlu0 %3451
        %3453 = vadd.xlane.f32.xlu0 %v3450
        %v3454 = vpop.xlane.xlu0 %3453
        %v3455 = vmul.f32 %v3452, %v496
        %v3456 = vmul.f32 %v3454, %v496
        %v3457 = vadd.f32 %v3455, 1e-05
        %v3458 = vadd.f32 %v3456, 1e-05
        %v3459 = vrsqrt.pop %v3457
        %v3460 = vrsqrt.pop %v3458
        %v3461 = vmul.f32 %v3447, %v3459
        %v3462 = vmul.f32 %v3448, %v3460
        %v3463 = vlaneseq
        %v3464 = vshrl.u32 %v3463, 7
        %v3465 = vsub.s32 7, %v3464
        %v3466 = vrot.slane %v490, %v3465
        %v3467 = vmul.f32 %v3461, %v3466
        %v3468 = vmul.f32 %v3462, %v3466
        %v3469 = vlaneseq
        %v3470 = vshrl.u32 %v3469, 7
        %v3471 = vsub.s32 0, %v3470
        %v3472 = vrot.slane %v491, %v3471
        %v3473 = vadd.f32 %v3467, %v3472
        %v3474 = vadd.f32 %v3468, %v3472
        %3475 = vst [vmem:[%s485] sm:$0xff] %v3473
        %3476 = vst [vmem:[%s485 + $0x8] sm:$0xff] %v3474
        %s3477 = sand.u32 %s338, 1
        %s3478 = scalar_lea.sflag [#allocation4], %s3477
        %s3479 = sand.u32 %s338, 1
        %s3480 = smul.addr %s3479, 16
        %s3481 = scalar_lea.vmem [#allocation5], %s3480
        // Predicated region
        $region81: #{conformer_encoder.5} parent=75 // pred_check
          %p3482 = pneg %p348
        $region82: #{conformer_encoder.5} parent=75 // pred_check_branch
          %3484 = sbr.rel (%p3482) target = $region84
        $region83: #{conformer_encoder.5} parent=75 // pred_region
          %s3486 = ssub.s32 256, 256
          %3487 = vsyncadd %s3478, %s3486
          %s3488 = smul.addr %s31, 2
          %s3489 = smul.addr %s3488, 128
          %s3490 = scalar_lea.hbm %s14, %s3489
          %s3491 = sshll.u32 %s3481, 4
          %s3492 = int_to_ptr.vmem [resolvable:$true] %s3491
          %3497 = dma.vmem_to_hbm [thread:$0]  %s3492, 256, %s3490, %s3478, 128, 128, 8
        $region84: #{conformer_encoder.5} parent=75 // pred_fallthru
          _
      $region76: #{conformer_encoder.5} parent=5 // pred_fallthru
        _
      %p3498 = scmp.le.s32.totalorder 2, %s26
      // Predicated region
      $region85: #{conformer_encoder.5} parent=5 // pred_check
        %p3499 = pneg %p3498
      $region86: #{conformer_encoder.5} parent=5 // pred_check_branch
        %3501 = sbr.rel (%p3499) target = $region88
      $region87: #{conformer_encoder.5} parent=5 // pred_region
        %s3502 = ssub.s32 %s26, 2
        // Predicated region
        $region89: #{conformer_encoder.5} parent=87 // pred_check
          %p3503 = pneg %p354
        $region90: #{conformer_encoder.5} parent=87 // pred_check_branch
          %3505 = sbr.rel (%p3503) target = $region92
        $region91: #{conformer_encoder.5} parent=87 // pred_region
          %s3506 = sand.u32 %s339, 1
          %s3507 = scalar_lea.sflag [#allocation4], %s3506
          %s3508 = sand.u32 %s339, 1
          %s3509 = smul.addr %s3508, 16
          %s3510 = scalar_lea.vmem [#allocation5], %s3509
          %3511 = dma.done %s3507, 256
        $region92: #{conformer_encoder.5} parent=87 // pred_fallthru
          _
      $region88: #{conformer_encoder.5} parent=5 // pred_fallthru
        _
    $region6: #{conformer_encoder.5} parent=1 // loop_footer
      %s30 = sadd.s32 1, %s26
    $region7: #{conformer_encoder.5} parent=1 // loop_footer_branch
      %25 = sbr.rel target = $region3
    $region8: #{conformer_encoder.5} parent=1 // loop_exit
      _
    %3512 = vsyncpa [#allocation3], 1
    %s3513 = scalar_lea.sflag [#allocation3], 1
    %3514 = vsyncpa %s3513, 1
    %3515 = vsyncpa [#allocation4], 1
    %s3516 = scalar_lea.sflag [#allocation4], 1
    %3517 = vsyncpa %s3516, 1

</llo_original>
